<compile_context>
chip_gen: v7x
topology: tpu7x:2x2x1
jax: 0.10.0
libtpu: 0.0.40
codegen_flags: <defaults>
</compile_context>

<pallas_src>
import functools

import jax
import jax.numpy as jnp
from jax import lax
from jax.experimental import pallas as pl
from jax.experimental.pallas import tpu as pltpu

_LANE = 128


def _round_up(x, m):
    return (x + m - 1) // m * m


def _unet_conv2_kernel(x_ref, w1_ref, s1_ref, b1_ref, w2_ref, s2_ref, b2_ref,
                       o_ref, mid_ref, *, H, W):
    """Fused conv3x3+BN+ReLU x2 for one batch element.

    All activations use a row-flattened "padded width" layout:
        flat index q = y * (W+2) + x,   y in [0, H), x in [0, W+2)
    Columns x in {W, W+1} of each row are garbage (they wrap into the next
    padded row); they are masked before feeding layer 2 and sliced off by the
    wrapper on output.

    x_ref  : (P_alloc, Cin_p)  spatially padded, flattened input (halo = 0)
    w*_ref : (9, Cin, Cp)      3x3 taps flattened on the leading dim (HWIO)
    s*_ref : (1, Cp)           folded BN scale
    b*_ref : (1, Cp)           folded BN bias (includes conv bias)
    o_ref  : (H*(W+2), Cp)     layer-2 output in the padded-width layout
    mid_ref: (P_alloc, Cp)     VMEM scratch: zero-haloed layer-1 activation
    """
    Wp = W + 2
    rows = H * Wp
    cp = w1_ref.shape[-1]

    # Valid-column mask over the padded-width layout (x < W).
    col = jax.lax.broadcasted_iota(jnp.int32, (rows, 1), 0) % Wp
    valid = col < W

    def conv3x3_bn_relu(src_ref, w_ref, scale, bias):
        acc = jnp.zeros((rows, cp), jnp.float32)
        # 9 taps == 9 contiguous sublane-offset matmuls; no reshapes inside.
        for dy in range(3):
            for dx in range(3):
                patch = src_ref[pl.ds(dy * Wp + dx, rows), :]
                acc += jnp.dot(patch, w_ref[dy * 3 + dx],
                               preferred_element_type=jnp.float32)
        # f32 epilogue (scale/bias/ReLU) on the VPU.
        return jnp.maximum(acc * scale + bias, 0.0)

    # ---- layer 1 -----------------------------------------------------------
    # Zero the scratch so its 1-pixel halo (and the tap over-read tail) is 0.
    # Store the masked layer-1 output shifted by one padded row + one column:
    # valid positions land exactly on the interior, garbage columns land
    # exactly on halo positions (already zeroed by the mask).
    mid_ref[...] = jnp.zeros_like(mid_ref)
    y1 = conv3x3_bn_relu(x_ref, w1_ref, s1_ref[...], b1_ref[...])
    y1 = jnp.where(valid, y1, 0.0)
    mid_ref[pl.ds(Wp + 1, rows), :] = y1.astype(mid_ref.dtype)

    # ---- layer 2 -----------------------------------------------------------
    y2 = conv3x3_bn_relu(mid_ref, w2_ref, s2_ref[...], b2_ref[...])
    o_ref[...] = y2.astype(o_ref.dtype)   # single lane-dense (rows, Cp) store


def fold_bn(conv_bias, gamma, beta, running_mean, running_var, eps=1e-5):
    """Fold eval-mode BatchNorm2d (and the conv bias) into scale/bias."""
    scale = gamma / jnp.sqrt(running_var + eps)
    bias = beta + (conv_bias - running_mean) * scale
    return scale, bias


def unet_conv2_forward(x_nchw, params, is_batchnorm=True,
                       compute_dtype=jnp.float32):
    """Forward pass of unetConv2. Input/output layout matches PyTorch: NCHW.

    compute_dtype: dtype fed to the MXU (accumulation is always f32).
                   Use jnp.bfloat16 on v6e/v7x for higher matmul throughput.
    """
    N, Cin, H, W = x_nchw.shape
    Cout = params["w1"].shape[-1]

    Wp = W + 2
    rows = H * Wp                                 # padded-width output rows
    p_full = (H + 2) * Wp                         # padded image, flattened
    p_alloc = _round_up(p_full + 2, 8)            # +2 guards the last tap read
    cin_p = _round_up(Cin, 8)                     # sublane-friendly K
    cp = _round_up(Cout, _LANE)                   # lane-dense channels

    # ---- activations: NCHW -> NHWC, halo pad, flatten (glue, plain XLA) ----
    # TODO(synk): fold the first layer's halo pad into the kernel as well
    # (the layer-2 halo is already handled fully in-kernel via VMEM scratch).
    x = jnp.transpose(x_nchw, (0, 2, 3, 1)).astype(compute_dtype)
    x = jnp.pad(x, ((0, 0), (1, 1), (1, 1), (0, cin_p - Cin)))
    x = x.reshape(N, p_full, cin_p)
    x = jnp.pad(x, ((0, 0), (0, p_alloc - p_full), (0, 0)))

    # ---- weights: HWIO -> (9, Cin, Cp), channel-padded, compute dtype ------
    w1 = jnp.pad(params["w1"],
                 ((0, 0), (0, 0), (0, cin_p - Cin), (0, cp - Cout)))
    w1 = w1.reshape(9, cin_p, cp).astype(compute_dtype)
    w2 = jnp.pad(params["w2"],
                 ((0, 0), (0, 0), (0, cp - Cout), (0, cp - Cout)))
    w2 = w2.reshape(9, cp, cp).astype(compute_dtype)

    # ---- folded BN scale/bias (eval semantics); epilogue stays f32 ---------
    if is_batchnorm:
        s1, bb1 = fold_bn(params["b1"], params["g1"], params["beta1"],
                          params["rm1"], params["rv1"])
        s2, bb2 = fold_bn(params["b2"], params["g2"], params["beta2"],
                          params["rm2"], params["rv2"])
    else:
        s1 = jnp.ones((Cout,), jnp.float32)
        bb1 = params["b1"]
        s2 = jnp.ones((Cout,), jnp.float32)
        bb2 = params["b2"]

    def pad_sb(v, fill):
        return jnp.pad(v.astype(jnp.float32), (0, cp - Cout),
                       constant_values=fill).reshape(1, cp)

    s1p, b1p = pad_sb(s1, 1.0), pad_sb(bb1, 0.0)
    s2p, b2p = pad_sb(s2, 1.0), pad_sb(bb2, 0.0)

    kernel = functools.partial(_unet_conv2_kernel, H=H, W=W)

    out_flat = pl.pallas_call(
        kernel,
        out_shape=jax.ShapeDtypeStruct((N, rows, cp), jnp.float32),
        grid_spec=pltpu.PrefetchScalarGridSpec(
            num_scalar_prefetch=0,
            grid=(N,),
            in_specs=[
                pl.BlockSpec((None, p_alloc, cin_p), lambda n: (n, 0, 0)),
                pl.BlockSpec((9, cin_p, cp), lambda n: (0, 0, 0)),
                pl.BlockSpec((1, cp), lambda n: (0, 0)),
                pl.BlockSpec((1, cp), lambda n: (0, 0)),
                pl.BlockSpec((9, cp, cp), lambda n: (0, 0, 0)),
                pl.BlockSpec((1, cp), lambda n: (0, 0)),
                pl.BlockSpec((1, cp), lambda n: (0, 0)),
            ],
            out_specs=pl.BlockSpec((None, rows, cp), lambda n: (n, 0, 0)),
            scratch_shapes=[pltpu.VMEM((p_alloc, cp), compute_dtype)],
        ),
        compiler_params=pltpu.CompilerParams(
            dimension_semantics=("parallel",),     # batch axis across TCs
            vmem_limit_bytes=32 * 1024 * 1024,     # demo tiles use ~2 MiB
        ),
    )(x, w1, s1p, b1p, w2, s2p, b2p)

    # Drop the 2 garbage columns per row and the channel padding; back to NCHW.
    out = out_flat.reshape(N, H, Wp, cp)[:, :, :W, :Cout]
    return jnp.transpose(out, (0, 3, 1, 2))


def init_unet_conv2_params(key, in_size, out_size):
    """Deterministic synthetic parameters matching nn.Conv2d/BatchNorm2d shapes."""
    k1, k2, k3, k4, k5, k6 = jax.random.split(key, 6)
    # Conv weights in HWIO; PyTorch stores OIHW -> equivalent content, synthetic.
    w1 = jax.random.normal(k1, (3, 3, in_size, out_size), jnp.float32) * 0.1
    b1 = jax.random.normal(k2, (out_size,), jnp.float32) * 0.05
    w2 = jax.random.normal(k3, (3, 3, out_size, out_size), jnp.float32) * 0.1
    b2 = jax.random.normal(k4, (out_size,), jnp.float32) * 0.05
    # BatchNorm params (gamma, beta) + running stats (eval semantics).
    g1 = 1.0 + 0.1 * jax.random.normal(k5, (out_size,), jnp.float32)
    beta1 = 0.1 * jax.random.normal(k6, (out_size,), jnp.float32)
    rm1 = jnp.zeros((out_size,), jnp.float32)
    rv1 = jnp.ones((out_size,), jnp.float32)
    g2 = jnp.ones((out_size,), jnp.float32)
    beta2 = jnp.zeros((out_size,), jnp.float32)
    rm2 = jnp.zeros((out_size,), jnp.float32)
    rv2 = jnp.ones((out_size,), jnp.float32)
    return dict(w1=w1, b1=b1, g1=g1, beta1=beta1, rm1=rm1, rv1=rv1,
                w2=w2, b2=b2, g2=g2, beta2=beta2, rm2=rm2, rv2=rv2)


# ------------------------- pure-JAX reference -------------------------------
def _ref_conv_bn_relu(x_nhwc, w_hwio, scale, bias):
    y = lax.conv_general_dilated(
        x_nhwc, w_hwio, window_strides=(1, 1), padding="SAME",
        dimension_numbers=("NHWC", "HWIO", "NHWC"))
    y = y * scale[None, None, None, :] + bias[None, None, None, :]
    return jnp.maximum(y, 0.0)


def _ref_forward(x_nchw, params):
    x = jnp.transpose(x_nchw, (0, 2, 3, 1)).astype(jnp.float32)
    s1, bb1 = fold_bn(params["b1"], params["g1"], params["beta1"],
                      params["rm1"], params["rv1"])
    s2, bb2 = fold_bn(params["b2"], params["g2"], params["beta2"],
                      params["rm2"], params["rv2"])
    y = _ref_conv_bn_relu(x, params["w1"], s1, bb1)
    y = _ref_conv_bn_relu(y, params["w2"], s2, bb2)
    return jnp.transpose(y, (0, 3, 1, 2))


if __name__ == "__main__":
    key = jax.random.PRNGKey(0)
    k_x, k_p = jax.random.split(key)

    N, C_in, H, W = 2, 4, 16, 16
    C_out = 8

    x = jax.random.normal(k_x, (N, C_in, H, W), jnp.float32)
    params = init_unet_conv2_params(k_p, C_in, C_out)

    ref = _ref_forward(x, params)

    # f32 MXU path: exact parity with the f32 reference.
    out = unet_conv2_forward(x, params, is_batchnorm=True,
                             compute_dtype=jnp.float32)
    out = jax.block_until_ready(out)
    assert out.shape == (N, C_out, H, W), out.shape
    assert jnp.allclose(out, ref, rtol=1e-4, atol=1e-4), "f32 mismatch vs ref"

    # bf16 MXU path (recommended on v6e/v7x): f32 accumulation, loose check.
    out_bf16 = unet_conv2_forward(x, params, is_batchnorm=True,
                                  compute_dtype=jnp.bfloat16)
    out_bf16 = jax.block_until_ready(out_bf16)
    assert jnp.allclose(out_bf16, ref, rtol=1e-1, atol=1e-1), "bf16 mismatch"

    print("KERNEL_OK")
</pallas_src>

<mosaic_0001>
module attributes {stable_mosaic.version = 11 : i64} {
  func.func @_unet_conv2_kernel(%arg0: i32, %arg1: memref<1x328x8xf32, #tpu.memory_space<vmem>>, %arg2: memref<9x8x128xf32, #tpu.memory_space<vmem>>, %arg3: memref<1x128xf32, #tpu.memory_space<vmem>>, %arg4: memref<1x128xf32, #tpu.memory_space<vmem>>, %arg5: memref<9x128x128xf32, #tpu.memory_space<vmem>>, %arg6: memref<1x128xf32, #tpu.memory_space<vmem>>, %arg7: memref<1x128xf32, #tpu.memory_space<vmem>>, %arg8: memref<1x288x128xf32, #tpu.memory_space<vmem>>, %arg9: memref<328x128xf32, #tpu.memory_space<vmem>>) attributes {dimension_semantics = [#tpu.dimension_semantics<parallel>], iteration_bounds = array<i64: 2>, scalar_prefetch = 0 : i64, scratch_operands = 1 : i64, tpu.core_type = #tpu.core_type<tc>, window_params = [{transform_indices = @transform_0, window_bounds = array<i64: 1, 328, 8>}, {pipeline_mode = #tpu.pipeline_mode<synchronous>, transform_indices = @transform_1, window_bounds = array<i64: 9, 8, 128>}, {pipeline_mode = #tpu.pipeline_mode<synchronous>, transform_indices = @transform_2, window_bounds = array<i64: 1, 128>}, {pipeline_mode = #tpu.pipeline_mode<synchronous>, transform_indices = @transform_3, window_bounds = array<i64: 1, 128>}, {pipeline_mode = #tpu.pipeline_mode<synchronous>, transform_indices = @transform_4, window_bounds = array<i64: 9, 128, 128>}, {pipeline_mode = #tpu.pipeline_mode<synchronous>, transform_indices = @transform_5, window_bounds = array<i64: 1, 128>}, {pipeline_mode = #tpu.pipeline_mode<synchronous>, transform_indices = @transform_6, window_bounds = array<i64: 1, 128>}, {transform_indices = @transform_7, window_bounds = array<i64: 1, 288, 128>}]} {
    %0 = tpu.iota {dimensions = array<i32: 0>} : vector<288x1xi32>
    %c18_i32 = arith.constant 18 : i32
    %c0_i32 = arith.constant 0 : i32
    %1 = arith.cmpi eq, %c18_i32, %c0_i32 : i32
    %c1_i32 = arith.constant 1 : i32
    %2 = arith.select %1, %c1_i32, %c18_i32 : i32
    %3 = vector.broadcast %2 : i32 to vector<288x1xi32>
    %4 = arith.remsi %0, %3 : vector<288x1xi32>
    %c0_i32_0 = arith.constant 0 : i32
    %5 = vector.broadcast %c0_i32_0 : i32 to vector<288x1xi32>
    %6 = arith.cmpi ne, %4, %5 : vector<288x1xi32>
    %c0_i32_1 = arith.constant 0 : i32
    %7 = vector.broadcast %c0_i32_1 : i32 to vector<288x1xi32>
    %8 = arith.cmpi slt, %4, %7 : vector<288x1xi32>
    %c0_i32_2 = arith.constant 0 : i32
    %9 = arith.cmpi slt, %2, %c0_i32_2 : i32
    %10 = vector.broadcast %9 : i1 to vector<288x1xi1>
    %11 = vector.broadcast %10 : vector<288x1xi1> to vector<288x1xi1>
    %12 = arith.xori %8, %11 : vector<288x1xi1>
    %13 = arith.andi %12, %6 : vector<288x1xi1>
    %14 = vector.broadcast %2 : i32 to vector<288x1xi32>
    %15 = arith.addi %4, %14 : vector<288x1xi32>
    %16 = arith.select %13, %15, %4 : vector<288x1xi1>, vector<288x1xi32>
    %c16_i32 = arith.constant 16 : i32
    %17 = vector.broadcast %c16_i32 : i32 to vector<288x1xi32>
    %18 = arith.cmpi slt, %16, %17 : vector<288x1xi32>
    %cst = arith.constant 0.000000e+00 : f32
    %19 = vector.broadcast %cst : f32 to vector<328x128xf32>
    %c0 = arith.constant 0 : index
    %c0_3 = arith.constant 0 : index
    %20 = vector.load %arg9[%c0, %c0_3] : memref<328x128xf32, #tpu.memory_space<vmem>>, vector<328x128xf32>
    tpu.vector_store %arg9[%c0, %c0_3], %19 {strides = array<i32>} : memref<328x128xf32, #tpu.memory_space<vmem>>, vector<328x128xf32>,
    %c0_4 = arith.constant 0 : index
    %c0_5 = arith.constant 0 : index
    %21 = vector.load %arg3[%c0_4, %c0_5] : memref<1x128xf32, #tpu.memory_space<vmem>>, vector<1x128xf32>
    %c0_6 = arith.constant 0 : index
    %c0_7 = arith.constant 0 : index
    %22 = vector.load %arg4[%c0_6, %c0_7] : memref<1x128xf32, #tpu.memory_space<vmem>>, vector<1x128xf32>
    %cst_8 = arith.constant 0.000000e+00 : f32
    %23 = vector.broadcast %cst_8 : f32 to vector<288x128xf32>
    %c0_9 = arith.constant 0 : index
    %c0_10 = arith.constant 0 : index
    %c0_11 = arith.constant 0 : index
    %24 = vector.load %arg1[%c0_9, %c0_10, %c0_11] : memref<1x328x8xf32, #tpu.memory_space<vmem>>, vector<1x288x8xf32>
    %25 = vector.shape_cast %24 : vector<1x288x8xf32> to vector<288x8xf32>
    %c0_12 = arith.constant 0 : index
    %c0_13 = arith.constant 0 : index
    %c0_14 = arith.constant 0 : index
    %26 = vector.load %arg2[%c0_12, %c0_13, %c0_14] : memref<9x8x128xf32, #tpu.memory_space<vmem>>, vector<1x8x128xf32>
    %27 = vector.shape_cast %26 : vector<1x8x128xf32> to vector<8x128xf32>
    %cst_15 = arith.constant dense<0.000000e+00> : vector<288x128xf32>
    %28 = tpu.matmul %25, %27, %cst_15 {dimension_numbers = #tpu.dot_dimension_numbers<[1], [0], [0], [1], [0, 0, 1, 1], [], []>} : vector<288x8xf32>, vector<8x128xf32>, vector<288x128xf32> -> vector<288x128xf32>
    %29 = arith.addf %23, %28 : vector<288x128xf32>
    %c0_16 = arith.constant 0 : index
    %c1 = arith.constant 1 : index
    %c0_17 = arith.constant 0 : index
    %30 = vector.load %arg1[%c0_16, %c1, %c0_17] : memref<1x328x8xf32, #tpu.memory_space<vmem>>, vector<1x288x8xf32>
    %31 = vector.shape_cast %30 : vector<1x288x8xf32> to vector<288x8xf32>
    %c1_18 = arith.constant 1 : index
    %c0_19 = arith.constant 0 : index
    %c0_20 = arith.constant 0 : index
    %32 = vector.load %arg2[%c1_18, %c0_19, %c0_20] : memref<9x8x128xf32, #tpu.memory_space<vmem>>, vector<1x8x128xf32>
    %33 = vector.shape_cast %32 : vector<1x8x128xf32> to vector<8x128xf32>
    %cst_21 = arith.constant dense<0.000000e+00> : vector<288x128xf32>
    %34 = tpu.matmul %31, %33, %cst_21 {dimension_numbers = #tpu.dot_dimension_numbers<[1], [0], [0], [1], [0, 0, 1, 1], [], []>} : vector<288x8xf32>, vector<8x128xf32>, vector<288x128xf32> -> vector<288x128xf32>
    %35 = arith.addf %29, %34 : vector<288x128xf32>
    %c0_22 = arith.constant 0 : index
    %c2 = arith.constant 2 : index
    %c0_23 = arith.constant 0 : index
    %36 = vector.load %arg1[%c0_22, %c2, %c0_23] : memref<1x328x8xf32, #tpu.memory_space<vmem>>, vector<1x288x8xf32>
    %37 = vector.shape_cast %36 : vector<1x288x8xf32> to vector<288x8xf32>
    %c2_24 = arith.constant 2 : index
    %c0_25 = arith.constant 0 : index
    %c0_26 = arith.constant 0 : index
    %38 = vector.load %arg2[%c2_24, %c0_25, %c0_26] : memref<9x8x128xf32, #tpu.memory_space<vmem>>, vector<1x8x128xf32>
    %39 = vector.shape_cast %38 : vector<1x8x128xf32> to vector<8x128xf32>
    %cst_27 = arith.constant dense<0.000000e+00> : vector<288x128xf32>
    %40 = tpu.matmul %37, %39, %cst_27 {dimension_numbers = #tpu.dot_dimension_numbers<[1], [0], [0], [1], [0, 0, 1, 1], [], []>} : vector<288x8xf32>, vector<8x128xf32>, vector<288x128xf32> -> vector<288x128xf32>
    %41 = arith.addf %35, %40 : vector<288x128xf32>
    %c0_28 = arith.constant 0 : index
    %c18 = arith.constant 18 : index
    %c0_29 = arith.constant 0 : index
    %42 = vector.load %arg1[%c0_28, %c18, %c0_29] : memref<1x328x8xf32, #tpu.memory_space<vmem>>, vector<1x288x8xf32>
    %43 = vector.shape_cast %42 : vector<1x288x8xf32> to vector<288x8xf32>
    %c3 = arith.constant 3 : index
    %c0_30 = arith.constant 0 : index
    %c0_31 = arith.constant 0 : index
    %44 = vector.load %arg2[%c3, %c0_30, %c0_31] : memref<9x8x128xf32, #tpu.memory_space<vmem>>, vector<1x8x128xf32>
    %45 = vector.shape_cast %44 : vector<1x8x128xf32> to vector<8x128xf32>
    %cst_32 = arith.constant dense<0.000000e+00> : vector<288x128xf32>
    %46 = tpu.matmul %43, %45, %cst_32 {dimension_numbers = #tpu.dot_dimension_numbers<[1], [0], [0], [1], [0, 0, 1, 1], [], []>} : vector<288x8xf32>, vector<8x128xf32>, vector<288x128xf32> -> vector<288x128xf32>
    %47 = arith.addf %41, %46 : vector<288x128xf32>
    %c0_33 = arith.constant 0 : index
    %c19 = arith.constant 19 : index
    %c0_34 = arith.constant 0 : index
    %48 = vector.load %arg1[%c0_33, %c19, %c0_34] : memref<1x328x8xf32, #tpu.memory_space<vmem>>, vector<1x288x8xf32>
    %49 = vector.shape_cast %48 : vector<1x288x8xf32> to vector<288x8xf32>
    %c4 = arith.constant 4 : index
    %c0_35 = arith.constant 0 : index
    %c0_36 = arith.constant 0 : index
    %50 = vector.load %arg2[%c4, %c0_35, %c0_36] : memref<9x8x128xf32, #tpu.memory_space<vmem>>, vector<1x8x128xf32>
    %51 = vector.shape_cast %50 : vector<1x8x128xf32> to vector<8x128xf32>
    %cst_37 = arith.constant dense<0.000000e+00> : vector<288x128xf32>
    %52 = tpu.matmul %49, %51, %cst_37 {dimension_numbers = #tpu.dot_dimension_numbers<[1], [0], [0], [1], [0, 0, 1, 1], [], []>} : vector<288x8xf32>, vector<8x128xf32>, vector<288x128xf32> -> vector<288x128xf32>
    %53 = arith.addf %47, %52 : vector<288x128xf32>
    %c0_38 = arith.constant 0 : index
    %c20 = arith.constant 20 : index
    %c0_39 = arith.constant 0 : index
    %54 = vector.load %arg1[%c0_38, %c20, %c0_39] : memref<1x328x8xf32, #tpu.memory_space<vmem>>, vector<1x288x8xf32>
    %55 = vector.shape_cast %54 : vector<1x288x8xf32> to vector<288x8xf32>
    %c5 = arith.constant 5 : index
    %c0_40 = arith.constant 0 : index
    %c0_41 = arith.constant 0 : index
    %56 = vector.load %arg2[%c5, %c0_40, %c0_41] : memref<9x8x128xf32, #tpu.memory_space<vmem>>, vector<1x8x128xf32>
    %57 = vector.shape_cast %56 : vector<1x8x128xf32> to vector<8x128xf32>
    %cst_42 = arith.constant dense<0.000000e+00> : vector<288x128xf32>
    %58 = tpu.matmul %55, %57, %cst_42 {dimension_numbers = #tpu.dot_dimension_numbers<[1], [0], [0], [1], [0, 0, 1, 1], [], []>} : vector<288x8xf32>, vector<8x128xf32>, vector<288x128xf32> -> vector<288x128xf32>
    %59 = arith.addf %53, %58 : vector<288x128xf32>
    %c0_43 = arith.constant 0 : index
    %c36 = arith.constant 36 : index
    %c0_44 = arith.constant 0 : index
    %60 = vector.load %arg1[%c0_43, %c36, %c0_44] : memref<1x328x8xf32, #tpu.memory_space<vmem>>, vector<1x288x8xf32>
    %61 = vector.shape_cast %60 : vector<1x288x8xf32> to vector<288x8xf32>
    %c6 = arith.constant 6 : index
    %c0_45 = arith.constant 0 : index
    %c0_46 = arith.constant 0 : index
    %62 = vector.load %arg2[%c6, %c0_45, %c0_46] : memref<9x8x128xf32, #tpu.memory_space<vmem>>, vector<1x8x128xf32>
    %63 = vector.shape_cast %62 : vector<1x8x128xf32> to vector<8x128xf32>
    %cst_47 = arith.constant dense<0.000000e+00> : vector<288x128xf32>
    %64 = tpu.matmul %61, %63, %cst_47 {dimension_numbers = #tpu.dot_dimension_numbers<[1], [0], [0], [1], [0, 0, 1, 1], [], []>} : vector<288x8xf32>, vector<8x128xf32>, vector<288x128xf32> -> vector<288x128xf32>
    %65 = arith.addf %59, %64 : vector<288x128xf32>
    %c0_48 = arith.constant 0 : index
    %c37 = arith.constant 37 : index
    %c0_49 = arith.constant 0 : index
    %66 = vector.load %arg1[%c0_48, %c37, %c0_49] : memref<1x328x8xf32, #tpu.memory_space<vmem>>, vector<1x288x8xf32>
    %67 = vector.shape_cast %66 : vector<1x288x8xf32> to vector<288x8xf32>
    %c7 = arith.constant 7 : index
    %c0_50 = arith.constant 0 : index
    %c0_51 = arith.constant 0 : index
    %68 = vector.load %arg2[%c7, %c0_50, %c0_51] : memref<9x8x128xf32, #tpu.memory_space<vmem>>, vector<1x8x128xf32>
    %69 = vector.shape_cast %68 : vector<1x8x128xf32> to vector<8x128xf32>
    %cst_52 = arith.constant dense<0.000000e+00> : vector<288x128xf32>
    %70 = tpu.matmul %67, %69, %cst_52 {dimension_numbers = #tpu.dot_dimension_numbers<[1], [0], [0], [1], [0, 0, 1, 1], [], []>} : vector<288x8xf32>, vector<8x128xf32>, vector<288x128xf32> -> vector<288x128xf32>
    %71 = arith.addf %65, %70 : vector<288x128xf32>
    %c0_53 = arith.constant 0 : index
    %c38 = arith.constant 38 : index
    %c0_54 = arith.constant 0 : index
    %72 = vector.load %arg1[%c0_53, %c38, %c0_54] : memref<1x328x8xf32, #tpu.memory_space<vmem>>, vector<1x288x8xf32>
    %73 = vector.shape_cast %72 : vector<1x288x8xf32> to vector<288x8xf32>
    %c8 = arith.constant 8 : index
    %c0_55 = arith.constant 0 : index
    %c0_56 = arith.constant 0 : index
    %74 = vector.load %arg2[%c8, %c0_55, %c0_56] : memref<9x8x128xf32, #tpu.memory_space<vmem>>, vector<1x8x128xf32>
    %75 = vector.shape_cast %74 : vector<1x8x128xf32> to vector<8x128xf32>
    %cst_57 = arith.constant dense<0.000000e+00> : vector<288x128xf32>
    %76 = tpu.matmul %73, %75, %cst_57 {dimension_numbers = #tpu.dot_dimension_numbers<[1], [0], [0], [1], [0, 0, 1, 1], [], []>} : vector<288x8xf32>, vector<8x128xf32>, vector<288x128xf32> -> vector<288x128xf32>
    %77 = arith.addf %71, %76 : vector<288x128xf32>
    %78 = vector.broadcast %21 : vector<1x128xf32> to vector<288x128xf32>
    %79 = arith.mulf %77, %78 : vector<288x128xf32>
    %80 = vector.broadcast %22 : vector<1x128xf32> to vector<288x128xf32>
    %81 = arith.addf %79, %80 : vector<288x128xf32>
    %cst_58 = arith.constant 0.000000e+00 : f32
    %82 = vector.broadcast %cst_58 : f32 to vector<288x128xf32>
    %83 = arith.maximumf %81, %82 : vector<288x128xf32>
    %cst_59 = arith.constant 0.000000e+00 : f32
    %84 = vector.shape_cast %18 : vector<288x1xi1> to vector<288x1xi1>
    %85 = vector.broadcast %84 : vector<288x1xi1> to vector<288x128xi1>
    %86 = vector.broadcast %cst_59 : f32 to vector<288x128xf32>
    %87 = arith.select %85, %83, %86 : vector<288x128xi1>, vector<288x128xf32>
    %c19_60 = arith.constant 19 : index
    %c0_61 = arith.constant 0 : index
    %88 = vector.load %arg9[%c19_60, %c0_61] : memref<328x128xf32, #tpu.memory_space<vmem>>, vector<288x128xf32>
    tpu.vector_store %arg9[%c19_60, %c0_61], %87 {strides = array<i32>} : memref<328x128xf32, #tpu.memory_space<vmem>>, vector<288x128xf32>,
    %c0_62 = arith.constant 0 : index
    %c0_63 = arith.constant 0 : index
    %89 = vector.load %arg6[%c0_62, %c0_63] : memref<1x128xf32, #tpu.memory_space<vmem>>, vector<1x128xf32>
    %c0_64 = arith.constant 0 : index
    %c0_65 = arith.constant 0 : index
    %90 = vector.load %arg7[%c0_64, %c0_65] : memref<1x128xf32, #tpu.memory_space<vmem>>, vector<1x128xf32>
    %cst_66 = arith.constant 0.000000e+00 : f32
    %91 = vector.broadcast %cst_66 : f32 to vector<288x128xf32>
    %c0_67 = arith.constant 0 : index
    %c0_68 = arith.constant 0 : index
    %92 = vector.load %arg9[%c0_67, %c0_68] : memref<328x128xf32, #tpu.memory_space<vmem>>, vector<288x128xf32>
    %c0_69 = arith.constant 0 : index
    %c0_70 = arith.constant 0 : index
    %c0_71 = arith.constant 0 : index
    %93 = vector.load %arg5[%c0_69, %c0_70, %c0_71] : memref<9x128x128xf32, #tpu.memory_space<vmem>>, vector<1x128x128xf32>
    %94 = vector.shape_cast %93 : vector<1x128x128xf32> to vector<128x128xf32>
    %cst_72 = arith.constant dense<0.000000e+00> : vector<288x128xf32>
    %95 = tpu.matmul %92, %94, %cst_72 {dimension_numbers = #tpu.dot_dimension_numbers<[1], [0], [0], [1], [0, 0, 1, 1], [], []>} : vector<288x128xf32>, vector<128x128xf32>, vector<288x128xf32> -> vector<288x128xf32>
    %96 = arith.addf %91, %95 : vector<288x128xf32>
    %c1_73 = arith.constant 1 : index
    %c0_74 = arith.constant 0 : index
    %97 = vector.load %arg9[%c1_73, %c0_74] : memref<328x128xf32, #tpu.memory_space<vmem>>, vector<288x128xf32>
    %c1_75 = arith.constant 1 : index
    %c0_76 = arith.constant 0 : index
    %c0_77 = arith.constant 0 : index
    %98 = vector.load %arg5[%c1_75, %c0_76, %c0_77] : memref<9x128x128xf32, #tpu.memory_space<vmem>>, vector<1x128x128xf32>
    %99 = vector.shape_cast %98 : vector<1x128x128xf32> to vector<128x128xf32>
    %cst_78 = arith.constant dense<0.000000e+00> : vector<288x128xf32>
    %100 = tpu.matmul %97, %99, %cst_78 {dimension_numbers = #tpu.dot_dimension_numbers<[1], [0], [0], [1], [0, 0, 1, 1], [], []>} : vector<288x128xf32>, vector<128x128xf32>, vector<288x128xf32> -> vector<288x128xf32>
    %101 = arith.addf %96, %100 : vector<288x128xf32>
    %c2_79 = arith.constant 2 : index
    %c0_80 = arith.constant 0 : index
    %102 = vector.load %arg9[%c2_79, %c0_80] : memref<328x128xf32, #tpu.memory_space<vmem>>, vector<288x128xf32>
    %c2_81 = arith.constant 2 : index
    %c0_82 = arith.constant 0 : index
    %c0_83 = arith.constant 0 : index
    %103 = vector.load %arg5[%c2_81, %c0_82, %c0_83] : memref<9x128x128xf32, #tpu.memory_space<vmem>>, vector<1x128x128xf32>
    %104 = vector.shape_cast %103 : vector<1x128x128xf32> to vector<128x128xf32>
    %cst_84 = arith.constant dense<0.000000e+00> : vector<288x128xf32>
    %105 = tpu.matmul %102, %104, %cst_84 {dimension_numbers = #tpu.dot_dimension_numbers<[1], [0], [0], [1], [0, 0, 1, 1], [], []>} : vector<288x128xf32>, vector<128x128xf32>, vector<288x128xf32> -> vector<288x128xf32>
    %106 = arith.addf %101, %105 : vector<288x128xf32>
    %c18_85 = arith.constant 18 : index
    %c0_86 = arith.constant 0 : index
    %107 = vector.load %arg9[%c18_85, %c0_86] : memref<328x128xf32, #tpu.memory_space<vmem>>, vector<288x128xf32>
    %c3_87 = arith.constant 3 : index
    %c0_88 = arith.constant 0 : index
    %c0_89 = arith.constant 0 : index
    %108 = vector.load %arg5[%c3_87, %c0_88, %c0_89] : memref<9x128x128xf32, #tpu.memory_space<vmem>>, vector<1x128x128xf32>
    %109 = vector.shape_cast %108 : vector<1x128x128xf32> to vector<128x128xf32>
    %cst_90 = arith.constant dense<0.000000e+00> : vector<288x128xf32>
    %110 = tpu.matmul %107, %109, %cst_90 {dimension_numbers = #tpu.dot_dimension_numbers<[1], [0], [0], [1], [0, 0, 1, 1], [], []>} : vector<288x128xf32>, vector<128x128xf32>, vector<288x128xf32> -> vector<288x128xf32>
    %111 = arith.addf %106, %110 : vector<288x128xf32>
    %c19_91 = arith.constant 19 : index
    %c0_92 = arith.constant 0 : index
    %112 = vector.load %arg9[%c19_91, %c0_92] : memref<328x128xf32, #tpu.memory_space<vmem>>, vector<288x128xf32>
    %c4_93 = arith.constant 4 : index
    %c0_94 = arith.constant 0 : index
    %c0_95 = arith.constant 0 : index
    %113 = vector.load %arg5[%c4_93, %c0_94, %c0_95] : memref<9x128x128xf32, #tpu.memory_space<vmem>>, vector<1x128x128xf32>
    %114 = vector.shape_cast %113 : vector<1x128x128xf32> to vector<128x128xf32>
    %cst_96 = arith.constant dense<0.000000e+00> : vector<288x128xf32>
    %115 = tpu.matmul %112, %114, %cst_96 {dimension_numbers = #tpu.dot_dimension_numbers<[1], [0], [0], [1], [0, 0, 1, 1], [], []>} : vector<288x128xf32>, vector<128x128xf32>, vector<288x128xf32> -> vector<288x128xf32>
    %116 = arith.addf %111, %115 : vector<288x128xf32>
    %c20_97 = arith.constant 20 : index
    %c0_98 = arith.constant 0 : index
    %117 = vector.load %arg9[%c20_97, %c0_98] : memref<328x128xf32, #tpu.memory_space<vmem>>, vector<288x128xf32>
    %c5_99 = arith.constant 5 : index
    %c0_100 = arith.constant 0 : index
    %c0_101 = arith.constant 0 : index
    %118 = vector.load %arg5[%c5_99, %c0_100, %c0_101] : memref<9x128x128xf32, #tpu.memory_space<vmem>>, vector<1x128x128xf32>
    %119 = vector.shape_cast %118 : vector<1x128x128xf32> to vector<128x128xf32>
    %cst_102 = arith.constant dense<0.000000e+00> : vector<288x128xf32>
    %120 = tpu.matmul %117, %119, %cst_102 {dimension_numbers = #tpu.dot_dimension_numbers<[1], [0], [0], [1], [0, 0, 1, 1], [], []>} : vector<288x128xf32>, vector<128x128xf32>, vector<288x128xf32> -> vector<288x128xf32>
    %121 = arith.addf %116, %120 : vector<288x128xf32>
    %c36_103 = arith.constant 36 : index
    %c0_104 = arith.constant 0 : index
    %122 = vector.load %arg9[%c36_103, %c0_104] : memref<328x128xf32, #tpu.memory_space<vmem>>, vector<288x128xf32>
    %c6_105 = arith.constant 6 : index
    %c0_106 = arith.constant 0 : index
    %c0_107 = arith.constant 0 : index
    %123 = vector.load %arg5[%c6_105, %c0_106, %c0_107] : memref<9x128x128xf32, #tpu.memory_space<vmem>>, vector<1x128x128xf32>
    %124 = vector.shape_cast %123 : vector<1x128x128xf32> to vector<128x128xf32>
    %cst_108 = arith.constant dense<0.000000e+00> : vector<288x128xf32>
    %125 = tpu.matmul %122, %124, %cst_108 {dimension_numbers = #tpu.dot_dimension_numbers<[1], [0], [0], [1], [0, 0, 1, 1], [], []>} : vector<288x128xf32>, vector<128x128xf32>, vector<288x128xf32> -> vector<288x128xf32>
    %126 = arith.addf %121, %125 : vector<288x128xf32>
    %c37_109 = arith.constant 37 : index
    %c0_110 = arith.constant 0 : index
    %127 = vector.load %arg9[%c37_109, %c0_110] : memref<328x128xf32, #tpu.memory_space<vmem>>, vector<288x128xf32>
    %c7_111 = arith.constant 7 : index
    %c0_112 = arith.constant 0 : index
    %c0_113 = arith.constant 0 : index
    %128 = vector.load %arg5[%c7_111, %c0_112, %c0_113] : memref<9x128x128xf32, #tpu.memory_space<vmem>>, vector<1x128x128xf32>
    %129 = vector.shape_cast %128 : vector<1x128x128xf32> to vector<128x128xf32>
    %cst_114 = arith.constant dense<0.000000e+00> : vector<288x128xf32>
    %130 = tpu.matmul %127, %129, %cst_114 {dimension_numbers = #tpu.dot_dimension_numbers<[1], [0], [0], [1], [0, 0, 1, 1], [], []>} : vector<288x128xf32>, vector<128x128xf32>, vector<288x128xf32> -> vector<288x128xf32>
    %131 = arith.addf %126, %130 : vector<288x128xf32>
    %c38_115 = arith.constant 38 : index
    %c0_116 = arith.constant 0 : index
    %132 = vector.load %arg9[%c38_115, %c0_116] : memref<328x128xf32, #tpu.memory_space<vmem>>, vector<288x128xf32>
    %c8_117 = arith.constant 8 : index
    %c0_118 = arith.constant 0 : index
    %c0_119 = arith.constant 0 : index
    %133 = vector.load %arg5[%c8_117, %c0_118, %c0_119] : memref<9x128x128xf32, #tpu.memory_space<vmem>>, vector<1x128x128xf32>
    %134 = vector.shape_cast %133 : vector<1x128x128xf32> to vector<128x128xf32>
    %cst_120 = arith.constant dense<0.000000e+00> : vector<288x128xf32>
    %135 = tpu.matmul %132, %134, %cst_120 {dimension_numbers = #tpu.dot_dimension_numbers<[1], [0], [0], [1], [0, 0, 1, 1], [], []>} : vector<288x128xf32>, vector<128x128xf32>, vector<288x128xf32> -> vector<288x128xf32>
    %136 = arith.addf %131, %135 : vector<288x128xf32>
    %137 = vector.broadcast %89 : vector<1x128xf32> to vector<288x128xf32>
    %138 = arith.mulf %136, %137 : vector<288x128xf32>
    %139 = vector.broadcast %90 : vector<1x128xf32> to vector<288x128xf32>
    %140 = arith.addf %138, %139 : vector<288x128xf32>
    %cst_121 = arith.constant 0.000000e+00 : f32
    %141 = vector.broadcast %cst_121 : f32 to vector<288x128xf32>
    %142 = arith.maximumf %140, %141 : vector<288x128xf32>
    %c0_122 = arith.constant 0 : index
    %c0_123 = arith.constant 0 : index
    %c0_124 = arith.constant 0 : index
    %143 = vector.load %arg8[%c0_122, %c0_123, %c0_124] : memref<1x288x128xf32, #tpu.memory_space<vmem>>, vector<1x288x128xf32>
    %144 = vector.shape_cast %143 : vector<1x288x128xf32> to vector<288x128xf32>
    %145 = vector.shape_cast %142 : vector<288x128xf32> to vector<1x288x128xf32>
    tpu.vector_store %arg8[%c0_122, %c0_123, %c0_124], %145 {strides = array<i32>} : memref<1x288x128xf32, #tpu.memory_space<vmem>>, vector<1x288x128xf32>,
    return
  }
  func.func @transform_0(%arg0: i32) -> (i32, i32, i32) {
    %c0_i32 = arith.constant 0 : i32
    %c0_i32_0 = arith.constant 0 : i32
    %c0_i32_1 = arith.constant 0 : i32
    return %arg0, %c0_i32, %c0_i32_0 : i32, i32, i32
  }
  func.func @transform_1(%arg0: i32) -> (i32, i32, i32) {
    %c0_i32 = arith.constant 0 : i32
    %c0_i32_0 = arith.constant 0 : i32
    %c0_i32_1 = arith.constant 0 : i32
    %c0_i32_2 = arith.constant 0 : i32
    return %c0_i32, %c0_i32_0, %c0_i32_1 : i32, i32, i32
  }
  func.func @transform_2(%arg0: i32) -> (i32, i32) {
    %c0_i32 = arith.constant 0 : i32
    %c0_i32_0 = arith.constant 0 : i32
    %c0_i32_1 = arith.constant 0 : i32
    return %c0_i32, %c0_i32_0 : i32, i32
  }
  func.func @transform_3(%arg0: i32) -> (i32, i32) {
    %c0_i32 = arith.constant 0 : i32
    %c0_i32_0 = arith.constant 0 : i32
    %c0_i32_1 = arith.constant 0 : i32
    return %c0_i32, %c0_i32_0 : i32, i32
  }
  func.func @transform_4(%arg0: i32) -> (i32, i32, i32) {
    %c0_i32 = arith.constant 0 : i32
    %c0_i32_0 = arith.constant 0 : i32
    %c0_i32_1 = arith.constant 0 : i32
    %c0_i32_2 = arith.constant 0 : i32
    return %c0_i32, %c0_i32_0, %c0_i32_1 : i32, i32, i32
  }
  func.func @transform_5(%arg0: i32) -> (i32, i32) {
    %c0_i32 = arith.constant 0 : i32
    %c0_i32_0 = arith.constant 0 : i32
    %c0_i32_1 = arith.constant 0 : i32
    return %c0_i32, %c0_i32_0 : i32, i32
  }
  func.func @transform_6(%arg0: i32) -> (i32, i32) {
    %c0_i32 = arith.constant 0 : i32
    %c0_i32_0 = arith.constant 0 : i32
    %c0_i32_1 = arith.constant 0 : i32
    return %c0_i32, %c0_i32_0 : i32, i32
  }
  func.func @transform_7(%arg0: i32) -> (i32, i32, i32) {
    %c0_i32 = arith.constant 0 : i32
    %c0_i32_0 = arith.constant 0 : i32
    %c0_i32_1 = arith.constant 0 : i32
    return %arg0, %c0_i32, %c0_i32_0 : i32, i32, i32
  }
}

</mosaic_0001>

<llo_original>
// kernel: tpu_custom_call.1
$region0: #{tpu_custom_call.1}
  #allocation0 [shape = 'u32[]', space=smem, size = 0x4, offset = 0x4, fixed_abs, tag = 'smem constant byte address 0x4 - core index']
  #allocation1 [shape = 'u32[144,128]{1,0:T(1,128)}', space=vmem, size = 0x12000, scoped, tag = 'internal scratch']
  #allocation2 [shape = 'f32[328,128]{1,0:T(8,128)}', space=vmem, size = 0x29000, scoped, tag = 'scratch operand']
  %s0 = inlined_call_operand.vmem [shape: f32[2,328,8], index: 0, kind: input, shape index: {}]
  %s1 = inlined_call_operand.vmem [shape: f32[9,8,128], index: 1, kind: input, shape index: {}]
  %s2 = inlined_call_operand.vmem [shape: f32[1,128], index: 2, kind: input, shape index: {}]
  %s3 = inlined_call_operand.vmem [shape: f32[1,128], index: 3, kind: input, shape index: {}]
  %s4 = inlined_call_operand.hbm [shape: f32[9,128,128], index: 4, kind: input, shape index: {}]
  %s5 = inlined_call_operand.vmem [shape: f32[1,128], index: 5, kind: input, shape index: {}]
  %s6 = inlined_call_operand.vmem [shape: f32[1,128], index: 6, kind: input, shape index: {}]
  %s7 = inlined_call_operand.hbm [shape: f32[2,288,128], index: 7, kind: output, shape index: {}]
  %s8 = sld [smem:[#allocation0]]
  $region65: #{tpu_custom_call.1} parent=0
    _
  %s10 = ssub.s32 1, %s8
  %s11 = scalar_select 0, %s10, %s8
  $region1: #{tpu_custom_call.1} parent=0
    #allocation3 [shape = 'u8[589824]{0}', space=vmem, size = 0x90000, scoped, tag = 'input window, operand 4, single buffered']
    #allocation4 [shape = 's32[2]{0}', space=sflag, size = 0x8, scoped, tag = 'scoped memory for tpu_custom_call.1']
    #allocation5 [shape = 's32[2]{0}', space=sflag, size = 0x8, scoped, tag = 'scoped memory for tpu_custom_call.1']
    #allocation6 [shape = 'u8[294912]{0}', space=vmem, size = 0x48000, scoped, tag = 'output window, operand 0']
    %12 = vsyncpa [#allocation4], 0
    %13 = vsyncpa [#allocation5], 0
    %s14 = scalar_lea.sflag [#allocation5], 1
    %15 = vsyncpa %s14, 0
    loop: start=0, step=1, limit=4
    $region2: #{tpu_custom_call.1} parent=1 // loop_pre_header
      _
    $region3: #{tpu_custom_call.1} parent=1 // loop_header
      %s17 = sphi 0, %s21
      %p18 = scmp.ge.s32.totalorder %s17, 4
      %s27 = sphi 0, %s29
      %s30 = sphi 0, %s27
      %s31 = sphi 0, %s30
      %s47 = sphi 0, %s31
      %s51 = sphi 0, %s51
      %s53 = sphi 0, %s51
      %s54 = sphi 0, %s53
      %s68 = sphi 0, %s54
      %s72 = sphi 0, %s72
      %s74 = sphi 0, %s72
      %s75 = sphi 0, %s74
      %s89 = sphi 0, %s75
      %s93 = sphi 0, %s93
      %s95 = sphi 0, %s93
      %s96 = sphi 0, %s95
      %s110 = sphi 0, %s96
      %s114 = sphi 0, %s114
      %s116 = sphi 0, %s114
      %s117 = sphi 0, %s116
      %s131 = sphi 0, %s117
      %s135 = sphi 0, %s135
      %s137 = sphi 0, %s135
      %s138 = sphi 0, %s137
      %s152 = sphi 0, %s138
      %s156 = sphi 0, %s156
      %s158 = sphi 0, %s156
      %s159 = sphi 0, %s158
      %s173 = sphi 0, %s159
      %s179 = sphi 0, %s181
      %s182 = sphi 0, %s179
      %s183 = sphi 0, %s182
      %s199 = sphi 0, %s183
    $region4: #{tpu_custom_call.1} parent=1 // loop_header_branch
      %20 = sbr.rel (%p18) target = $region8
    $region5: #{tpu_custom_call.1} parent=1 // loop_body
      %s22 = ssub.s32 %s17, 1
      %s23 = ssub.s32 %s17, 2
      %s24 = sadd.s32 %s17, 1
      %s25 = ssub.s32 %s17, %s24
      %p26 = scmp.eq.s32.totalorder %s25, 0
      %s28 = sadd.s32 %s27, 1
      %s29 = scalar_select %p26, %s27, %s28
      %p32 = pneg %p26
      %p33 = scmp.eq.s32.totalorder %s17, 1
      %p34 = por %p32, %p33
      %p35 = scmp.ne.s32.totalorder %s27, %s30
      %p36 = scmp.eq.s32.totalorder %s17, 0
      %p37 = por %p35, %p36
      %p38 = scmp.ne.s32.totalorder %s27, %s30
      %p39 = scmp.eq.s32.totalorder %s22, 1
      %p40 = por %p38, %p39
      %p41 = scmp.ne.s32.totalorder %s30, %s31
      %p42 = scmp.eq.s32.totalorder %s22, 0
      %p43 = por %p41, %p42
      %p44 = scmp.ne.s32.totalorder %s30, %s31
      %p45 = scmp.eq.s32.totalorder %s23, 1
      %p46 = por %p44, %p45
      %p48 = scmp.ne.s32.totalorder %s31, %s47
      %p49 = scmp.eq.s32.totalorder %s23, 0
      %p50 = por %p48, %p49
      %s52 = sadd.s32 %s51, 1
      %p55 = scmp.eq.s32.totalorder %s17, 1
      %p56 = scmp.ne.s32.totalorder %s51, %s53
      %p57 = scmp.eq.s32.totalorder %s17, 0
      %p58 = por %p56, %p57
      %p59 = scmp.ne.s32.totalorder %s51, %s53
      %p60 = scmp.eq.s32.totalorder %s22, 1
      %p61 = por %p59, %p60
      %p62 = scmp.ne.s32.totalorder %s53, %s54
      %p63 = scmp.eq.s32.totalorder %s22, 0
      %p64 = por %p62, %p63
      %p65 = scmp.ne.s32.totalorder %s53, %s54
      %p66 = scmp.eq.s32.totalorder %s23, 1
      %p67 = por %p65, %p66
      %p69 = scmp.ne.s32.totalorder %s54, %s68
      %p70 = scmp.eq.s32.totalorder %s23, 0
      %p71 = por %p69, %p70
      %s73 = sadd.s32 %s72, 1
      %p76 = scmp.eq.s32.totalorder %s17, 1
      %p77 = scmp.ne.s32.totalorder %s72, %s74
      %p78 = scmp.eq.s32.totalorder %s17, 0
      %p79 = por %p77, %p78
      %p80 = scmp.ne.s32.totalorder %s72, %s74
      %p81 = scmp.eq.s32.totalorder %s22, 1
      %p82 = por %p80, %p81
      %p83 = scmp.ne.s32.totalorder %s74, %s75
      %p84 = scmp.eq.s32.totalorder %s22, 0
      %p85 = por %p83, %p84
      %p86 = scmp.ne.s32.totalorder %s74, %s75
      %p87 = scmp.eq.s32.totalorder %s23, 1
      %p88 = por %p86, %p87
      %p90 = scmp.ne.s32.totalorder %s75, %s89
      %p91 = scmp.eq.s32.totalorder %s23, 0
      %p92 = por %p90, %p91
      %s94 = sadd.s32 %s93, 1
      %p97 = scmp.eq.s32.totalorder %s17, 1
      %p98 = scmp.ne.s32.totalorder %s93, %s95
      %p99 = scmp.eq.s32.totalorder %s17, 0
      %p100 = por %p98, %p99
      %p101 = scmp.ne.s32.totalorder %s93, %s95
      %p102 = scmp.eq.s32.totalorder %s22, 1
      %p103 = por %p101, %p102
      %p104 = scmp.ne.s32.totalorder %s95, %s96
      %p105 = scmp.eq.s32.totalorder %s22, 0
      %p106 = por %p104, %p105
      %p107 = scmp.ne.s32.totalorder %s95, %s96
      %p108 = scmp.eq.s32.totalorder %s23, 1
      %p109 = por %p107, %p108
      %p111 = scmp.ne.s32.totalorder %s96, %s110
      %p112 = scmp.eq.s32.totalorder %s23, 0
      %p113 = por %p111, %p112
      %s115 = sadd.s32 %s114, 1
      %p118 = scmp.eq.s32.totalorder %s17, 1
      %p119 = scmp.ne.s32.totalorder %s114, %s116
      %p120 = scmp.eq.s32.totalorder %s17, 0
      %p121 = por %p119, %p120
      %p122 = scmp.ne.s32.totalorder %s114, %s116
      %p123 = scmp.eq.s32.totalorder %s22, 1
      %p124 = por %p122, %p123
      %p125 = scmp.ne.s32.totalorder %s116, %s117
      %p126 = scmp.eq.s32.totalorder %s22, 0
      %p127 = por %p125, %p126
      %p128 = scmp.ne.s32.totalorder %s116, %s117
      %p129 = scmp.eq.s32.totalorder %s23, 1
      %p130 = por %p128, %p129
      %p132 = scmp.ne.s32.totalorder %s117, %s131
      %p133 = scmp.eq.s32.totalorder %s23, 0
      %p134 = por %p132, %p133
      %s136 = sadd.s32 %s135, 1
      %p139 = scmp.eq.s32.totalorder %s17, 1
      %p140 = scmp.ne.s32.totalorder %s135, %s137
      %p141 = scmp.eq.s32.totalorder %s17, 0
      %p142 = por %p140, %p141
      %p143 = scmp.ne.s32.totalorder %s135, %s137
      %p144 = scmp.eq.s32.totalorder %s22, 1
      %p145 = por %p143, %p144
      %p146 = scmp.ne.s32.totalorder %s137, %s138
      %p147 = scmp.eq.s32.totalorder %s22, 0
      %p148 = por %p146, %p147
      %p149 = scmp.ne.s32.totalorder %s137, %s138
      %p150 = scmp.eq.s32.totalorder %s23, 1
      %p151 = por %p149, %p150
      %p153 = scmp.ne.s32.totalorder %s138, %s152
      %p154 = scmp.eq.s32.totalorder %s23, 0
      %p155 = por %p153, %p154
      %s157 = sadd.s32 %s156, 1
      %p160 = scmp.eq.s32.totalorder %s17, 1
      %p161 = scmp.ne.s32.totalorder %s156, %s158
      %p162 = scmp.eq.s32.totalorder %s17, 0
      %p163 = por %p161, %p162
      %p164 = scmp.ne.s32.totalorder %s156, %s158
      %p165 = scmp.eq.s32.totalorder %s22, 1
      %p166 = por %p164, %p165
      %p167 = scmp.ne.s32.totalorder %s158, %s159
      %p168 = scmp.eq.s32.totalorder %s22, 0
      %p169 = por %p167, %p168
      %p170 = scmp.ne.s32.totalorder %s158, %s159
      %p171 = scmp.eq.s32.totalorder %s23, 1
      %p172 = por %p170, %p171
      %p174 = scmp.ne.s32.totalorder %s159, %s173
      %p175 = scmp.eq.s32.totalorder %s23, 0
      %p176 = por %p174, %p175
      %s177 = ssub.s32 %s17, %s24
      %p178 = scmp.eq.s32.totalorder %s177, 0
      %s180 = sadd.s32 %s179, 1
      %s181 = scalar_select %p178, %s179, %s180
      %p184 = pneg %p178
      %p185 = scmp.eq.s32.totalorder %s17, 1
      %p186 = por %p184, %p185
      %p187 = scmp.ne.s32.totalorder %s179, %s182
      %p188 = scmp.eq.s32.totalorder %s17, 0
      %p189 = por %p187, %p188
      %p190 = scmp.ne.s32.totalorder %s179, %s182
      %p191 = scmp.eq.s32.totalorder %s22, 1
      %p192 = por %p190, %p191
      %p193 = scmp.ne.s32.totalorder %s182, %s183
      %p194 = scmp.eq.s32.totalorder %s22, 0
      %p195 = por %p193, %p194
      %p196 = scmp.ne.s32.totalorder %s182, %s183
      %p197 = scmp.eq.s32.totalorder %s23, 1
      %p198 = por %p196, %p197
      %p200 = scmp.ne.s32.totalorder %s183, %s199
      %p201 = scmp.eq.s32.totalorder %s23, 0
      %p202 = por %p200, %p201
      %p203 = scmp.le.s32.totalorder 1, %s17
      %p204 = scmp.lt.s32.totalorder %s17, 3
      %p205 = pnand %p203, %p204
      %p206 = pneg %p205
      // Predicated region
      $region9: #{tpu_custom_call.1} parent=5 // pred_check
        _
      $region10: #{tpu_custom_call.1} parent=5 // pred_check_branch
        %208 = sbr.rel (%p205) target = $region12
      $region11: #{tpu_custom_call.1} parent=5 // pred_region
        %s209 = ssub.s32 %s17, 1
        // Predicated region
        $region13: #{tpu_custom_call.1} parent=11 // pred_check
          %p210 = pneg %p64
        $region14: #{tpu_custom_call.1} parent=11 // pred_check_branch
          %212 = sbr.rel (%p210) target = $region16
        $region15: #{tpu_custom_call.1} parent=11 // pred_region
          _
        $region16: #{tpu_custom_call.1} parent=11 // pred_fallthru
          _
        // Predicated region
        $region17: #{tpu_custom_call.1} parent=11 // pred_check
          %p213 = pneg %p85
        $region18: #{tpu_custom_call.1} parent=11 // pred_check_branch
          %215 = sbr.rel (%p213) target = $region20
        $region19: #{tpu_custom_call.1} parent=11 // pred_region
          _
        $region20: #{tpu_custom_call.1} parent=11 // pred_fallthru
          _
        // Predicated region
        $region21: #{tpu_custom_call.1} parent=11 // pred_check
          %p216 = pneg %p106
        $region22: #{tpu_custom_call.1} parent=11 // pred_check_branch
          %218 = sbr.rel (%p216) target = $region24
        $region23: #{tpu_custom_call.1} parent=11 // pred_region
          _
        $region24: #{tpu_custom_call.1} parent=11 // pred_fallthru
          _
        // Predicated region
        $region25: #{tpu_custom_call.1} parent=11 // pred_check
          %p219 = pneg %p127
        $region26: #{tpu_custom_call.1} parent=11 // pred_check_branch
          %221 = sbr.rel (%p219) target = $region28
        $region27: #{tpu_custom_call.1} parent=11 // pred_region
          %s223 = ssub.s32 18432, 18432
          %224 = vsyncadd [#allocation4], %s223
          %s225 = sshll.u32 [#allocation3], 4
          %s226 = int_to_ptr.vmem [resolvable:$true] %s225
          %231 = dma.hbm_to_vmem [thread:$0]  %s4, 18432, %s226, [#allocation4], 128, 128, 8
        $region28: #{tpu_custom_call.1} parent=11 // pred_fallthru
          _
        // Predicated region
        $region29: #{tpu_custom_call.1} parent=11 // pred_check
          %p232 = pneg %p148
        $region30: #{tpu_custom_call.1} parent=11 // pred_check_branch
          %234 = sbr.rel (%p232) target = $region32
        $region31: #{tpu_custom_call.1} parent=11 // pred_region
          _
        $region32: #{tpu_custom_call.1} parent=11 // pred_fallthru
          _
        // Predicated region
        $region33: #{tpu_custom_call.1} parent=11 // pred_check
          %p235 = pneg %p169
        $region34: #{tpu_custom_call.1} parent=11 // pred_check_branch
          %237 = sbr.rel (%p235) target = $region36
        $region35: #{tpu_custom_call.1} parent=11 // pred_region
          _
        $region36: #{tpu_custom_call.1} parent=11 // pred_fallthru
          _
      $region12: #{tpu_custom_call.1} parent=5 // pred_fallthru
        _
      %p238 = scmp.lt.s32.totalorder %s17, 2
      // Predicated region
      $region37: #{tpu_custom_call.1} parent=5 // pred_check
        %p239 = pneg %p238
      $region38: #{tpu_custom_call.1} parent=5 // pred_check_branch
        %241 = sbr.rel (%p239) target = $region40
      $region39: #{tpu_custom_call.1} parent=5 // pred_region
        // Predicated region
        $region41: #{tpu_custom_call.1} parent=39 // pred_check
          %p242 = pneg %p37
        $region42: #{tpu_custom_call.1} parent=39 // pred_check_branch
          %244 = sbr.rel (%p242) target = $region44
        $region43: #{tpu_custom_call.1} parent=39 // pred_region
          %p245 = scmp.lt.s32.totalorder %s17, 1
          %s246 = scalar_select %p245, %s17, 1
          %s247 = smul.addr %s246, 41
          %s248 = smul.addr %s247, 8
          %s249 = scalar_lea.vmem %s0, %s248
        $region44: #{tpu_custom_call.1} parent=39 // pred_fallthru
          _
      $region40: #{tpu_custom_call.1} parent=5 // pred_fallthru
        _
      %p250 = scmp.le.s32.totalorder 1, %s17
      %p251 = scmp.lt.s32.totalorder %s17, 3
      %p252 = pnand %p250, %p251
      %p253 = pneg %p252
      // Predicated region
      $region45: #{tpu_custom_call.1} parent=5 // pred_check
        _
      $region46: #{tpu_custom_call.1} parent=5 // pred_check_branch
        %255 = sbr.rel (%p252) target = $region48
      $region47: #{tpu_custom_call.1} parent=5 // pred_region
        %s256 = ssub.s32 %s17, 1
        // Predicated region
        $region49: #{tpu_custom_call.1} parent=47 // pred_check
          %p257 = pneg %p127
        $region50: #{tpu_custom_call.1} parent=47 // pred_check_branch
          %259 = sbr.rel (%p257) target = $region52
        $region51: #{tpu_custom_call.1} parent=47 // pred_region
          %260 = dma.done [#allocation4], 18432
        $region52: #{tpu_custom_call.1} parent=47 // pred_fallthru
          _
        %p261 = scmp.lt.s32.totalorder %s22, 1
        %s262 = scalar_select %p261, %s22, 1
        %s263 = smul.addr %s262, 41
        %s264 = smul.addr %s263, 8
        %s265 = scalar_lea.vmem %s0, %s264
        %p266 = pneg %p43
        %p267 = pneg %p40
        %p268 = pneg %p64
        %p269 = pneg %p61
        %p270 = pneg %p85
        %p271 = pneg %p82
        %p272 = pneg %p106
        %p273 = pneg %p103
        %p274 = pneg %p127
        %p275 = pneg %p124
        %p276 = pneg %p148
        %p277 = pneg %p145
        %p278 = pneg %p169
        %p279 = pneg %p166
        %p280 = pneg %p195
        %p281 = pneg %p192
        %s282 = sand.u32 %s182, 1
        %s283 = scalar_lea.sflag [#allocation5], %s282
        %s284 = sand.u32 %s182, 1
        %s285 = smul.addr %s284, 288
        %s286 = scalar_lea.vmem [#allocation6], %s285
        %p287 = scmp.lt.s32.totalorder %s22, 1
        %s288 = scalar_select %p287, %s22, 1
        %s289 = smul.addr %s288, 41
        %s290 = smul.addr %s289, 8
        %s291 = scalar_lea.vmem %s0, %s290
        %v292 = vlaneseq
        %v293 = vshrl.u32 %v292, 7
        %v294 = vadd.s32 %v293, 8
        %v295 = vadd.s32 %v293, 16
        %v296 = vadd.s32 %v293, 24
        %v297 = vadd.s32 %v293, 32
        %v298 = vadd.s32 %v293, 40
        %v299 = vadd.s32 %v293, 48
        %v300 = vadd.s32 %v293, 56
        %v301 = vadd.s32 %v293, 64
        %v302 = vadd.s32 %v293, 72
        %v303 = vadd.s32 %v293, 80
        %v304 = vadd.s32 %v293, 88
        %v305 = vadd.s32 %v293, 96
        %v306 = vadd.s32 %v293, 104
        %v307 = vadd.s32 %v293, 112
        %v308 = vadd.s32 %v293, 120
        %v309 = vadd.s32 %v293, 128
        %v310 = vadd.s32 %v293, 136
        %v311 = vadd.s32 %v293, 144
        %v312 = vadd.s32 %v293, 152
        %v313 = vadd.s32 %v293, 160
        %v314 = vadd.s32 %v293, 168
        %v315 = vadd.s32 %v293, 176
        %v316 = vadd.s32 %v293, 184
        %v317 = vadd.s32 %v293, 192
        %v318 = vadd.s32 %v293, 200
        %v319 = vadd.s32 %v293, 208
        %v320 = vadd.s32 %v293, 216
        %v321 = vadd.s32 %v293, 224
        %v322 = vadd.s32 %v293, 232
        %v323 = vadd.s32 %v293, 240
        %v324 = vadd.s32 %v293, 248
        %v325 = vadd.s32 %v293, 256
        %v326 = vadd.s32 %v293, 264
        %v327 = vadd.s32 %v293, 272
        %v328 = vadd.s32 %v293, 280
        %vm329 = vcmp.lt.s32.totalorder %v293, 0
        %v330 = vsub.s32 0, %v293
        %v331 = vsel %vm329, %v330, %v293
        %v332 = vmul.u32.u64.compose %v331, 3817748708
        %v333 = vextract.low.u32 %v332
        %v334 = vextract.high.u32 %v332
        %v335 = vshrl.u32 %v334, 4
        %v336 = vmul.u32 %v335, 18
        %v337 = vsub.s32 %v331, %v336
        %v338 = vsub.s32 0, %v337
        %v339 = vsel %vm329, %v338, %v337
        %vm340 = vcmp.lt.s32.totalorder %v294, 0
        %v341 = vsub.s32 0, %v294
        %v342 = vsel %vm340, %v341, %v294
        %v343 = vmul.u32.u64.compose %v342, 3817748708
        %v344 = vextract.low.u32 %v343
        %v345 = vextract.high.u32 %v343
        %v346 = vshrl.u32 %v345, 4
        %v347 = vmul.u32 %v346, 18
        %v348 = vsub.s32 %v342, %v347
        %v349 = vsub.s32 0, %v348
        %v350 = vsel %vm340, %v349, %v348
        %vm351 = vcmp.lt.s32.totalorder %v295, 0
        %v352 = vsub.s32 0, %v295
        %v353 = vsel %vm351, %v352, %v295
        %v354 = vmul.u32.u64.compose %v353, 3817748708
        %v355 = vextract.low.u32 %v354
        %v356 = vextract.high.u32 %v354
        %v357 = vshrl.u32 %v356, 4
        %v358 = vmul.u32 %v357, 18
        %v359 = vsub.s32 %v353, %v358
        %v360 = vsub.s32 0, %v359
        %v361 = vsel %vm351, %v360, %v359
        %vm362 = vcmp.lt.s32.totalorder %v296, 0
        %v363 = vsub.s32 0, %v296
        %v364 = vsel %vm362, %v363, %v296
        %v365 = vmul.u32.u64.compose %v364, 3817748708
        %v366 = vextract.low.u32 %v365
        %v367 = vextract.high.u32 %v365
        %v368 = vshrl.u32 %v367, 4
        %v369 = vmul.u32 %v368, 18
        %v370 = vsub.s32 %v364, %v369
        %v371 = vsub.s32 0, %v370
        %v372 = vsel %vm362, %v371, %v370
        %vm373 = vcmp.lt.s32.totalorder %v297, 0
        %v374 = vsub.s32 0, %v297
        %v375 = vsel %vm373, %v374, %v297
        %v376 = vmul.u32.u64.compose %v375, 3817748708
        %v377 = vextract.low.u32 %v376
        %v378 = vextract.high.u32 %v376
        %v379 = vshrl.u32 %v378, 4
        %v380 = vmul.u32 %v379, 18
        %v381 = vsub.s32 %v375, %v380
        %v382 = vsub.s32 0, %v381
        %v383 = vsel %vm373, %v382, %v381
        %vm384 = vcmp.lt.s32.totalorder %v298, 0
        %v385 = vsub.s32 0, %v298
        %v386 = vsel %vm384, %v385, %v298
        %v387 = vmul.u32.u64.compose %v386, 3817748708
        %v388 = vextract.low.u32 %v387
        %v389 = vextract.high.u32 %v387
        %v390 = vshrl.u32 %v389, 4
        %v391 = vmul.u32 %v390, 18
        %v392 = vsub.s32 %v386, %v391
        %v393 = vsub.s32 0, %v392
        %v394 = vsel %vm384, %v393, %v392
        %vm395 = vcmp.lt.s32.totalorder %v299, 0
        %v396 = vsub.s32 0, %v299
        %v397 = vsel %vm395, %v396, %v299
        %v398 = vmul.u32.u64.compose %v397, 3817748708
        %v399 = vextract.low.u32 %v398
        %v400 = vextract.high.u32 %v398
        %v401 = vshrl.u32 %v400, 4
        %v402 = vmul.u32 %v401, 18
        %v403 = vsub.s32 %v397, %v402
        %v404 = vsub.s32 0, %v403
        %v405 = vsel %vm395, %v404, %v403
        %vm406 = vcmp.lt.s32.totalorder %v300, 0
        %v407 = vsub.s32 0, %v300
        %v408 = vsel %vm406, %v407, %v300
        %v409 = vmul.u32.u64.compose %v408, 3817748708
        %v410 = vextract.low.u32 %v409
        %v411 = vextract.high.u32 %v409
        %v412 = vshrl.u32 %v411, 4
        %v413 = vmul.u32 %v412, 18
        %v414 = vsub.s32 %v408, %v413
        %v415 = vsub.s32 0, %v414
        %v416 = vsel %vm406, %v415, %v414
        %vm417 = vcmp.lt.s32.totalorder %v301, 0
        %v418 = vsub.s32 0, %v301
        %v419 = vsel %vm417, %v418, %v301
        %v420 = vmul.u32.u64.compose %v419, 3817748708
        %v421 = vextract.low.u32 %v420
        %v422 = vextract.high.u32 %v420
        %v423 = vshrl.u32 %v422, 4
        %v424 = vmul.u32 %v423, 18
        %v425 = vsub.s32 %v419, %v424
        %v426 = vsub.s32 0, %v425
        %v427 = vsel %vm417, %v426, %v425
        %vm428 = vcmp.lt.s32.totalorder %v302, 0
        %v429 = vsub.s32 0, %v302
        %v430 = vsel %vm428, %v429, %v302
        %v431 = vmul.u32.u64.compose %v430, 3817748708
        %v432 = vextract.low.u32 %v431
        %v433 = vextract.high.u32 %v431
        %v434 = vshrl.u32 %v433, 4
        %v435 = vmul.u32 %v434, 18
        %v436 = vsub.s32 %v430, %v435
        %v437 = vsub.s32 0, %v436
        %v438 = vsel %vm428, %v437, %v436
        %vm439 = vcmp.lt.s32.totalorder %v303, 0
        %v440 = vsub.s32 0, %v303
        %v441 = vsel %vm439, %v440, %v303
        %v442 = vmul.u32.u64.compose %v441, 3817748708
        %v443 = vextract.low.u32 %v442
        %v444 = vextract.high.u32 %v442
        %v445 = vshrl.u32 %v444, 4
        %v446 = vmul.u32 %v445, 18
        %v447 = vsub.s32 %v441, %v446
        %v448 = vsub.s32 0, %v447
        %v449 = vsel %vm439, %v448, %v447
        %vm450 = vcmp.lt.s32.totalorder %v304, 0
        %v451 = vsub.s32 0, %v304
        %v452 = vsel %vm450, %v451, %v304
        %v453 = vmul.u32.u64.compose %v452, 3817748708
        %v454 = vextract.low.u32 %v453
        %v455 = vextract.high.u32 %v453
        %v456 = vshrl.u32 %v455, 4
        %v457 = vmul.u32 %v456, 18
        %v458 = vsub.s32 %v452, %v457
        %v459 = vsub.s32 0, %v458
        %v460 = vsel %vm450, %v459, %v458
        %vm461 = vcmp.lt.s32.totalorder %v305, 0
        %v462 = vsub.s32 0, %v305
        %v463 = vsel %vm461, %v462, %v305
        %v464 = vmul.u32.u64.compose %v463, 3817748708
        %v465 = vextract.low.u32 %v464
        %v466 = vextract.high.u32 %v464
        %v467 = vshrl.u32 %v466, 4
        %v468 = vmul.u32 %v467, 18
        %v469 = vsub.s32 %v463, %v468
        %v470 = vsub.s32 0, %v469
        %v471 = vsel %vm461, %v470, %v469
        %vm472 = vcmp.lt.s32.totalorder %v306, 0
        %v473 = vsub.s32 0, %v306
        %v474 = vsel %vm472, %v473, %v306
        %v475 = vmul.u32.u64.compose %v474, 3817748708
        %v476 = vextract.low.u32 %v475
        %v477 = vextract.high.u32 %v475
        %v478 = vshrl.u32 %v477, 4
        %v479 = vmul.u32 %v478, 18
        %v480 = vsub.s32 %v474, %v479
        %v481 = vsub.s32 0, %v480
        %v482 = vsel %vm472, %v481, %v480
        %vm483 = vcmp.lt.s32.totalorder %v307, 0
        %v484 = vsub.s32 0, %v307
        %v485 = vsel %vm483, %v484, %v307
        %v486 = vmul.u32.u64.compose %v485, 3817748708
        %v487 = vextract.low.u32 %v486
        %v488 = vextract.high.u32 %v486
        %v489 = vshrl.u32 %v488, 4
        %v490 = vmul.u32 %v489, 18
        %v491 = vsub.s32 %v485, %v490
        %v492 = vsub.s32 0, %v491
        %v493 = vsel %vm483, %v492, %v491
        %vm494 = vcmp.lt.s32.totalorder %v308, 0
        %v495 = vsub.s32 0, %v308
        %v496 = vsel %vm494, %v495, %v308
        %v497 = vmul.u32.u64.compose %v496, 3817748708
        %v498 = vextract.low.u32 %v497
        %v499 = vextract.high.u32 %v497
        %v500 = vshrl.u32 %v499, 4
        %v501 = vmul.u32 %v500, 18
        %v502 = vsub.s32 %v496, %v501
        %v503 = vsub.s32 0, %v502
        %v504 = vsel %vm494, %v503, %v502
        %vm505 = vcmp.lt.s32.totalorder %v309, 0
        %v506 = vsub.s32 0, %v309
        %v507 = vsel %vm505, %v506, %v309
        %v508 = vmul.u32.u64.compose %v507, 3817748708
        %v509 = vextract.low.u32 %v508
        %v510 = vextract.high.u32 %v508
        %v511 = vshrl.u32 %v510, 4
        %v512 = vmul.u32 %v511, 18
        %v513 = vsub.s32 %v507, %v512
        %v514 = vsub.s32 0, %v513
        %v515 = vsel %vm505, %v514, %v513
        %vm516 = vcmp.lt.s32.totalorder %v310, 0
        %v517 = vsub.s32 0, %v310
        %v518 = vsel %vm516, %v517, %v310
        %v519 = vmul.u32.u64.compose %v518, 3817748708
        %v520 = vextract.low.u32 %v519
        %v521 = vextract.high.u32 %v519
        %v522 = vshrl.u32 %v521, 4
        %v523 = vmul.u32 %v522, 18
        %v524 = vsub.s32 %v518, %v523
        %v525 = vsub.s32 0, %v524
        %v526 = vsel %vm516, %v525, %v524
        %vm527 = vcmp.lt.s32.totalorder %v311, 0
        %v528 = vsub.s32 0, %v311
        %v529 = vsel %vm527, %v528, %v311
        %v530 = vmul.u32.u64.compose %v529, 3817748708
        %v531 = vextract.low.u32 %v530
        %v532 = vextract.high.u32 %v530
        %v533 = vshrl.u32 %v532, 4
        %v534 = vmul.u32 %v533, 18
        %v535 = vsub.s32 %v529, %v534
        %v536 = vsub.s32 0, %v535
        %v537 = vsel %vm527, %v536, %v535
        %vm538 = vcmp.lt.s32.totalorder %v312, 0
        %v539 = vsub.s32 0, %v312
        %v540 = vsel %vm538, %v539, %v312
        %v541 = vmul.u32.u64.compose %v540, 3817748708
        %v542 = vextract.low.u32 %v541
        %v543 = vextract.high.u32 %v541
        %v544 = vshrl.u32 %v543, 4
        %v545 = vmul.u32 %v544, 18
        %v546 = vsub.s32 %v540, %v545
        %v547 = vsub.s32 0, %v546
        %v548 = vsel %vm538, %v547, %v546
        %vm549 = vcmp.lt.s32.totalorder %v313, 0
        %v550 = vsub.s32 0, %v313
        %v551 = vsel %vm549, %v550, %v313
        %v552 = vmul.u32.u64.compose %v551, 3817748708
        %v553 = vextract.low.u32 %v552
        %v554 = vextract.high.u32 %v552
        %v555 = vshrl.u32 %v554, 4
        %v556 = vmul.u32 %v555, 18
        %v557 = vsub.s32 %v551, %v556
        %v558 = vsub.s32 0, %v557
        %v559 = vsel %vm549, %v558, %v557
        %vm560 = vcmp.lt.s32.totalorder %v314, 0
        %v561 = vsub.s32 0, %v314
        %v562 = vsel %vm560, %v561, %v314
        %v563 = vmul.u32.u64.compose %v562, 3817748708
        %v564 = vextract.low.u32 %v563
        %v565 = vextract.high.u32 %v563
        %v566 = vshrl.u32 %v565, 4
        %v567 = vmul.u32 %v566, 18
        %v568 = vsub.s32 %v562, %v567
        %v569 = vsub.s32 0, %v568
        %v570 = vsel %vm560, %v569, %v568
        %vm571 = vcmp.lt.s32.totalorder %v315, 0
        %v572 = vsub.s32 0, %v315
        %v573 = vsel %vm571, %v572, %v315
        %v574 = vmul.u32.u64.compose %v573, 3817748708
        %v575 = vextract.low.u32 %v574
        %v576 = vextract.high.u32 %v574
        %v577 = vshrl.u32 %v576, 4
        %v578 = vmul.u32 %v577, 18
        %v579 = vsub.s32 %v573, %v578
        %v580 = vsub.s32 0, %v579
        %v581 = vsel %vm571, %v580, %v579
        %vm582 = vcmp.lt.s32.totalorder %v316, 0
        %v583 = vsub.s32 0, %v316
        %v584 = vsel %vm582, %v583, %v316
        %v585 = vmul.u32.u64.compose %v584, 3817748708
        %v586 = vextract.low.u32 %v585
        %v587 = vextract.high.u32 %v585
        %v588 = vshrl.u32 %v587, 4
        %v589 = vmul.u32 %v588, 18
        %v590 = vsub.s32 %v584, %v589
        %v591 = vsub.s32 0, %v590
        %v592 = vsel %vm582, %v591, %v590
        %vm593 = vcmp.lt.s32.totalorder %v317, 0
        %v594 = vsub.s32 0, %v317
        %v595 = vsel %vm593, %v594, %v317
        %v596 = vmul.u32.u64.compose %v595, 3817748708
        %v597 = vextract.low.u32 %v596
        %v598 = vextract.high.u32 %v596
        %v599 = vshrl.u32 %v598, 4
        %v600 = vmul.u32 %v599, 18
        %v601 = vsub.s32 %v595, %v600
        %v602 = vsub.s32 0, %v601
        %v603 = vsel %vm593, %v602, %v601
        %vm604 = vcmp.lt.s32.totalorder %v318, 0
        %v605 = vsub.s32 0, %v318
        %v606 = vsel %vm604, %v605, %v318
        %v607 = vmul.u32.u64.compose %v606, 3817748708
        %v608 = vextract.low.u32 %v607
        %v609 = vextract.high.u32 %v607
        %v610 = vshrl.u32 %v609, 4
        %v611 = vmul.u32 %v610, 18
        %v612 = vsub.s32 %v606, %v611
        %v613 = vsub.s32 0, %v612
        %v614 = vsel %vm604, %v613, %v612
        %vm615 = vcmp.lt.s32.totalorder %v319, 0
        %v616 = vsub.s32 0, %v319
        %v617 = vsel %vm615, %v616, %v319
        %v618 = vmul.u32.u64.compose %v617, 3817748708
        %v619 = vextract.low.u32 %v618
        %v620 = vextract.high.u32 %v618
        %v621 = vshrl.u32 %v620, 4
        %v622 = vmul.u32 %v621, 18
        %v623 = vsub.s32 %v617, %v622
        %v624 = vsub.s32 0, %v623
        %v625 = vsel %vm615, %v624, %v623
        %vm626 = vcmp.lt.s32.totalorder %v320, 0
        %v627 = vsub.s32 0, %v320
        %v628 = vsel %vm626, %v627, %v320
        %v629 = vmul.u32.u64.compose %v628, 3817748708
        %v630 = vextract.low.u32 %v629
        %v631 = vextract.high.u32 %v629
        %v632 = vshrl.u32 %v631, 4
        %v633 = vmul.u32 %v632, 18
        %v634 = vsub.s32 %v628, %v633
        %v635 = vsub.s32 0, %v634
        %v636 = vsel %vm626, %v635, %v634
        %vm637 = vcmp.lt.s32.totalorder %v321, 0
        %v638 = vsub.s32 0, %v321
        %v639 = vsel %vm637, %v638, %v321
        %v640 = vmul.u32.u64.compose %v639, 3817748708
        %v641 = vextract.low.u32 %v640
        %v642 = vextract.high.u32 %v640
        %v643 = vshrl.u32 %v642, 4
        %v644 = vmul.u32 %v643, 18
        %v645 = vsub.s32 %v639, %v644
        %v646 = vsub.s32 0, %v645
        %v647 = vsel %vm637, %v646, %v645
        %vm648 = vcmp.lt.s32.totalorder %v322, 0
        %v649 = vsub.s32 0, %v322
        %v650 = vsel %vm648, %v649, %v322
        %v651 = vmul.u32.u64.compose %v650, 3817748708
        %v652 = vextract.low.u32 %v651
        %v653 = vextract.high.u32 %v651
        %v654 = vshrl.u32 %v653, 4
        %v655 = vmul.u32 %v654, 18
        %v656 = vsub.s32 %v650, %v655
        %v657 = vsub.s32 0, %v656
        %v658 = vsel %vm648, %v657, %v656
        %vm659 = vcmp.lt.s32.totalorder %v323, 0
        %v660 = vsub.s32 0, %v323
        %v661 = vsel %vm659, %v660, %v323
        %v662 = vmul.u32.u64.compose %v661, 3817748708
        %v663 = vextract.low.u32 %v662
        %v664 = vextract.high.u32 %v662
        %v665 = vshrl.u32 %v664, 4
        %v666 = vmul.u32 %v665, 18
        %v667 = vsub.s32 %v661, %v666
        %v668 = vsub.s32 0, %v667
        %v669 = vsel %vm659, %v668, %v667
        %vm670 = vcmp.lt.s32.totalorder %v324, 0
        %v671 = vsub.s32 0, %v324
        %v672 = vsel %vm670, %v671, %v324
        %v673 = vmul.u32.u64.compose %v672, 3817748708
        %v674 = vextract.low.u32 %v673
        %v675 = vextract.high.u32 %v673
        %v676 = vshrl.u32 %v675, 4
        %v677 = vmul.u32 %v676, 18
        %v678 = vsub.s32 %v672, %v677
        %v679 = vsub.s32 0, %v678
        %v680 = vsel %vm670, %v679, %v678
        %vm681 = vcmp.lt.s32.totalorder %v325, 0
        %v682 = vsub.s32 0, %v325
        %v683 = vsel %vm681, %v682, %v325
        %v684 = vmul.u32.u64.compose %v683, 3817748708
        %v685 = vextract.low.u32 %v684
        %v686 = vextract.high.u32 %v684
        %v687 = vshrl.u32 %v686, 4
        %v688 = vmul.u32 %v687, 18
        %v689 = vsub.s32 %v683, %v688
        %v690 = vsub.s32 0, %v689
        %v691 = vsel %vm681, %v690, %v689
        %vm692 = vcmp.lt.s32.totalorder %v326, 0
        %v693 = vsub.s32 0, %v326
        %v694 = vsel %vm692, %v693, %v326
        %v695 = vmul.u32.u64.compose %v694, 3817748708
        %v696 = vextract.low.u32 %v695
        %v697 = vextract.high.u32 %v695
        %v698 = vshrl.u32 %v697, 4
        %v699 = vmul.u32 %v698, 18
        %v700 = vsub.s32 %v694, %v699
        %v701 = vsub.s32 0, %v700
        %v702 = vsel %vm692, %v701, %v700
        %vm703 = vcmp.lt.s32.totalorder %v327, 0
        %v704 = vsub.s32 0, %v327
        %v705 = vsel %vm703, %v704, %v327
        %v706 = vmul.u32.u64.compose %v705, 3817748708
        %v707 = vextract.low.u32 %v706
        %v708 = vextract.high.u32 %v706
        %v709 = vshrl.u32 %v708, 4
        %v710 = vmul.u32 %v709, 18
        %v711 = vsub.s32 %v705, %v710
        %v712 = vsub.s32 0, %v711
        %v713 = vsel %vm703, %v712, %v711
        %vm714 = vcmp.lt.s32.totalorder %v328, 0
        %v715 = vsub.s32 0, %v328
        %v716 = vsel %vm714, %v715, %v328
        %v717 = vmul.u32.u64.compose %v716, 3817748708
        %v718 = vextract.low.u32 %v717
        %v719 = vextract.high.u32 %v717
        %v720 = vshrl.u32 %v719, 4
        %v721 = vmul.u32 %v720, 18
        %v722 = vsub.s32 %v716, %v721
        %v723 = vsub.s32 0, %v722
        %v724 = vsel %vm714, %v723, %v722
        %vm725 = vcmp.ne.s32.totalorder %v339, 0
        %vm726 = vcmp.ne.s32.totalorder %v350, 0
        %vm727 = vcmp.ne.s32.totalorder %v361, 0
        %vm728 = vcmp.ne.s32.totalorder %v372, 0
        %vm729 = vcmp.ne.s32.totalorder %v383, 0
        %vm730 = vcmp.ne.s32.totalorder %v394, 0
        %vm731 = vcmp.ne.s32.totalorder %v405, 0
        %vm732 = vcmp.ne.s32.totalorder %v416, 0
        %vm733 = vcmp.ne.s32.totalorder %v427, 0
        %vm734 = vcmp.ne.s32.totalorder %v438, 0
        %vm735 = vcmp.ne.s32.totalorder %v449, 0
        %vm736 = vcmp.ne.s32.totalorder %v460, 0
        %vm737 = vcmp.ne.s32.totalorder %v471, 0
        %vm738 = vcmp.ne.s32.totalorder %v482, 0
        %vm739 = vcmp.ne.s32.totalorder %v493, 0
        %vm740 = vcmp.ne.s32.totalorder %v504, 0
        %vm741 = vcmp.ne.s32.totalorder %v515, 0
        %vm742 = vcmp.ne.s32.totalorder %v526, 0
        %vm743 = vcmp.ne.s32.totalorder %v537, 0
        %vm744 = vcmp.ne.s32.totalorder %v548, 0
        %vm745 = vcmp.ne.s32.totalorder %v559, 0
        %vm746 = vcmp.ne.s32.totalorder %v570, 0
        %vm747 = vcmp.ne.s32.totalorder %v581, 0
        %vm748 = vcmp.ne.s32.totalorder %v592, 0
        %vm749 = vcmp.ne.s32.totalorder %v603, 0
        %vm750 = vcmp.ne.s32.totalorder %v614, 0
        %vm751 = vcmp.ne.s32.totalorder %v625, 0
        %vm752 = vcmp.ne.s32.totalorder %v636, 0
        %vm753 = vcmp.ne.s32.totalorder %v647, 0
        %vm754 = vcmp.ne.s32.totalorder %v658, 0
        %vm755 = vcmp.ne.s32.totalorder %v669, 0
        %vm756 = vcmp.ne.s32.totalorder %v680, 0
        %vm757 = vcmp.ne.s32.totalorder %v691, 0
        %vm758 = vcmp.ne.s32.totalorder %v702, 0
        %vm759 = vcmp.ne.s32.totalorder %v713, 0
        %vm760 = vcmp.ne.s32.totalorder %v724, 0
        %vm761 = vcmp.lt.s32.totalorder %v339, 0
        %vm762 = vcmp.lt.s32.totalorder %v350, 0
        %vm763 = vcmp.lt.s32.totalorder %v361, 0
        %vm764 = vcmp.lt.s32.totalorder %v372, 0
        %vm765 = vcmp.lt.s32.totalorder %v383, 0
        %vm766 = vcmp.lt.s32.totalorder %v394, 0
        %vm767 = vcmp.lt.s32.totalorder %v405, 0
        %vm768 = vcmp.lt.s32.totalorder %v416, 0
        %vm769 = vcmp.lt.s32.totalorder %v427, 0
        %vm770 = vcmp.lt.s32.totalorder %v438, 0
        %vm771 = vcmp.lt.s32.totalorder %v449, 0
        %vm772 = vcmp.lt.s32.totalorder %v460, 0
        %vm773 = vcmp.lt.s32.totalorder %v471, 0
        %vm774 = vcmp.lt.s32.totalorder %v482, 0
        %vm775 = vcmp.lt.s32.totalorder %v493, 0
        %vm776 = vcmp.lt.s32.totalorder %v504, 0
        %vm777 = vcmp.lt.s32.totalorder %v515, 0
        %vm778 = vcmp.lt.s32.totalorder %v526, 0
        %vm779 = vcmp.lt.s32.totalorder %v537, 0
        %vm780 = vcmp.lt.s32.totalorder %v548, 0
        %vm781 = vcmp.lt.s32.totalorder %v559, 0
        %vm782 = vcmp.lt.s32.totalorder %v570, 0
        %vm783 = vcmp.lt.s32.totalorder %v581, 0
        %vm784 = vcmp.lt.s32.totalorder %v592, 0
        %vm785 = vcmp.lt.s32.totalorder %v603, 0
        %vm786 = vcmp.lt.s32.totalorder %v614, 0
        %vm787 = vcmp.lt.s32.totalorder %v625, 0
        %vm788 = vcmp.lt.s32.totalorder %v636, 0
        %vm789 = vcmp.lt.s32.totalorder %v647, 0
        %vm790 = vcmp.lt.s32.totalorder %v658, 0
        %vm791 = vcmp.lt.s32.totalorder %v669, 0
        %vm792 = vcmp.lt.s32.totalorder %v680, 0
        %vm793 = vcmp.lt.s32.totalorder %v691, 0
        %vm794 = vcmp.lt.s32.totalorder %v702, 0
        %vm795 = vcmp.lt.s32.totalorder %v713, 0
        %vm796 = vcmp.lt.s32.totalorder %v724, 0
        %vm797 = vmand %vm761, %vm725
        %vm798 = vmand %vm762, %vm726
        %vm799 = vmand %vm763, %vm727
        %vm800 = vmand %vm764, %vm728
        %vm801 = vmand %vm765, %vm729
        %vm802 = vmand %vm766, %vm730
        %vm803 = vmand %vm767, %vm731
        %vm804 = vmand %vm768, %vm732
        %vm805 = vmand %vm769, %vm733
        %vm806 = vmand %vm770, %vm734
        %vm807 = vmand %vm771, %vm735
        %vm808 = vmand %vm772, %vm736
        %vm809 = vmand %vm773, %vm737
        %vm810 = vmand %vm774, %vm738
        %vm811 = vmand %vm775, %vm739
        %vm812 = vmand %vm776, %vm740
        %vm813 = vmand %vm777, %vm741
        %vm814 = vmand %vm778, %vm742
        %vm815 = vmand %vm779, %vm743
        %vm816 = vmand %vm780, %vm744
        %vm817 = vmand %vm781, %vm745
        %vm818 = vmand %vm782, %vm746
        %vm819 = vmand %vm783, %vm747
        %vm820 = vmand %vm784, %vm748
        %vm821 = vmand %vm785, %vm749
        %vm822 = vmand %vm786, %vm750
        %vm823 = vmand %vm787, %vm751
        %vm824 = vmand %vm788, %vm752
        %vm825 = vmand %vm789, %vm753
        %vm826 = vmand %vm790, %vm754
        %vm827 = vmand %vm791, %vm755
        %vm828 = vmand %vm792, %vm756
        %vm829 = vmand %vm793, %vm757
        %vm830 = vmand %vm794, %vm758
        %vm831 = vmand %vm795, %vm759
        %vm832 = vmand %vm796, %vm760
        %v833 = vadd.s32 %v339, 18
        %v834 = vadd.s32 %v350, 18
        %v835 = vadd.s32 %v361, 18
        %v836 = vadd.s32 %v372, 18
        %v837 = vadd.s32 %v383, 18
        %v838 = vadd.s32 %v394, 18
        %v839 = vadd.s32 %v405, 18
        %v840 = vadd.s32 %v416, 18
        %v841 = vadd.s32 %v427, 18
        %v842 = vadd.s32 %v438, 18
        %v843 = vadd.s32 %v449, 18
        %v844 = vadd.s32 %v460, 18
        %v845 = vadd.s32 %v471, 18
        %v846 = vadd.s32 %v482, 18
        %v847 = vadd.s32 %v493, 18
        %v848 = vadd.s32 %v504, 18
        %v849 = vadd.s32 %v515, 18
        %v850 = vadd.s32 %v526, 18
        %v851 = vadd.s32 %v537, 18
        %v852 = vadd.s32 %v548, 18
        %v853 = vadd.s32 %v559, 18
        %v854 = vadd.s32 %v570, 18
        %v855 = vadd.s32 %v581, 18
        %v856 = vadd.s32 %v592, 18
        %v857 = vadd.s32 %v603, 18
        %v858 = vadd.s32 %v614, 18
        %v859 = vadd.s32 %v625, 18
        %v860 = vadd.s32 %v636, 18
        %v861 = vadd.s32 %v647, 18
        %v862 = vadd.s32 %v658, 18
        %v863 = vadd.s32 %v669, 18
        %v864 = vadd.s32 %v680, 18
        %v865 = vadd.s32 %v691, 18
        %v866 = vadd.s32 %v702, 18
        %v867 = vadd.s32 %v713, 18
        %v868 = vadd.s32 %v724, 18
        %v869 = vsel %vm797, %v833, %v339
        %v870 = vsel %vm798, %v834, %v350
        %v871 = vsel %vm799, %v835, %v361
        %v872 = vsel %vm800, %v836, %v372
        %v873 = vsel %vm801, %v837, %v383
        %v874 = vsel %vm802, %v838, %v394
        %v875 = vsel %vm803, %v839, %v405
        %v876 = vsel %vm804, %v840, %v416
        %v877 = vsel %vm805, %v841, %v427
        %v878 = vsel %vm806, %v842, %v438
        %v879 = vsel %vm807, %v843, %v449
        %v880 = vsel %vm808, %v844, %v460
        %v881 = vsel %vm809, %v845, %v471
        %v882 = vsel %vm810, %v846, %v482
        %v883 = vsel %vm811, %v847, %v493
        %v884 = vsel %vm812, %v848, %v504
        %v885 = vsel %vm813, %v849, %v515
        %v886 = vsel %vm814, %v850, %v526
        %v887 = vsel %vm815, %v851, %v537
        %v888 = vsel %vm816, %v852, %v548
        %v889 = vsel %vm817, %v853, %v559
        %v890 = vsel %vm818, %v854, %v570
        %v891 = vsel %vm819, %v855, %v581
        %v892 = vsel %vm820, %v856, %v592
        %v893 = vsel %vm821, %v857, %v603
        %v894 = vsel %vm822, %v858, %v614
        %v895 = vsel %vm823, %v859, %v625
        %v896 = vsel %vm824, %v860, %v636
        %v897 = vsel %vm825, %v861, %v647
        %v898 = vsel %vm826, %v862, %v658
        %v899 = vsel %vm827, %v863, %v669
        %v900 = vsel %vm828, %v864, %v680
        %v901 = vsel %vm829, %v865, %v691
        %v902 = vsel %vm830, %v866, %v702
        %v903 = vsel %vm831, %v867, %v713
        %v904 = vsel %vm832, %v868, %v724
        %vm905 = vcmp.lt.s32.totalorder %v869, 16
        %vm906 = vcmp.lt.s32.totalorder %v870, 16
        %vm907 = vcmp.lt.s32.totalorder %v871, 16
        %vm908 = vcmp.lt.s32.totalorder %v872, 16
        %vm909 = vcmp.lt.s32.totalorder %v873, 16
        %vm910 = vcmp.lt.s32.totalorder %v874, 16
        %vm911 = vcmp.lt.s32.totalorder %v875, 16
        %vm912 = vcmp.lt.s32.totalorder %v876, 16
        %vm913 = vcmp.lt.s32.totalorder %v877, 16
        %vm914 = vcmp.lt.s32.totalorder %v878, 16
        %vm915 = vcmp.lt.s32.totalorder %v879, 16
        %vm916 = vcmp.lt.s32.totalorder %v880, 16
        %vm917 = vcmp.lt.s32.totalorder %v881, 16
        %vm918 = vcmp.lt.s32.totalorder %v882, 16
        %vm919 = vcmp.lt.s32.totalorder %v883, 16
        %vm920 = vcmp.lt.s32.totalorder %v884, 16
        %vm921 = vcmp.lt.s32.totalorder %v885, 16
        %vm922 = vcmp.lt.s32.totalorder %v886, 16
        %vm923 = vcmp.lt.s32.totalorder %v887, 16
        %vm924 = vcmp.lt.s32.totalorder %v888, 16
        %vm925 = vcmp.lt.s32.totalorder %v889, 16
        %vm926 = vcmp.lt.s32.totalorder %v890, 16
        %vm927 = vcmp.lt.s32.totalorder %v891, 16
        %vm928 = vcmp.lt.s32.totalorder %v892, 16
        %vm929 = vcmp.lt.s32.totalorder %v893, 16
        %vm930 = vcmp.lt.s32.totalorder %v894, 16
        %vm931 = vcmp.lt.s32.totalorder %v895, 16
        %vm932 = vcmp.lt.s32.totalorder %v896, 16
        %vm933 = vcmp.lt.s32.totalorder %v897, 16
        %vm934 = vcmp.lt.s32.totalorder %v898, 16
        %vm935 = vcmp.lt.s32.totalorder %v899, 16
        %vm936 = vcmp.lt.s32.totalorder %v900, 16
        %vm937 = vcmp.lt.s32.totalorder %v901, 16
        %vm938 = vcmp.lt.s32.totalorder %v902, 16
        %vm939 = vcmp.lt.s32.totalorder %v903, 16
        %vm940 = vcmp.lt.s32.totalorder %v904, 16
        %941 = vst [vmem:[#allocation2] sm:$0xff] 0.0
        %942 = vst [vmem:[#allocation2 + $0x8] sm:$0xff] 0.0
        %943 = vst [vmem:[#allocation2 + $0x10] sm:$0xff] 0.0
        %944 = vst [vmem:[#allocation2 + $0x18] sm:$0xff] 0.0
        %945 = vst [vmem:[#allocation2 + $0x20] sm:$0xff] 0.0
        %946 = vst [vmem:[#allocation2 + $0x28] sm:$0xff] 0.0
        %947 = vst [vmem:[#allocation2 + $0x30] sm:$0xff] 0.0
        %948 = vst [vmem:[#allocation2 + $0x38] sm:$0xff] 0.0
        %949 = vst [vmem:[#allocation2 + $0x40] sm:$0xff] 0.0
        %950 = vst [vmem:[#allocation2 + $0x48] sm:$0xff] 0.0
        %951 = vst [vmem:[#allocation2 + $0x50] sm:$0xff] 0.0
        %952 = vst [vmem:[#allocation2 + $0x58] sm:$0xff] 0.0
        %953 = vst [vmem:[#allocation2 + $0x60] sm:$0xff] 0.0
        %954 = vst [vmem:[#allocation2 + $0x68] sm:$0xff] 0.0
        %955 = vst [vmem:[#allocation2 + $0x70] sm:$0xff] 0.0
        %956 = vst [vmem:[#allocation2 + $0x78] sm:$0xff] 0.0
        %957 = vst [vmem:[#allocation2 + $0x80] sm:$0xff] 0.0
        %958 = vst [vmem:[#allocation2 + $0x88] sm:$0xff] 0.0
        %959 = vst [vmem:[#allocation2 + $0x90] sm:$0xff] 0.0
        %960 = vst [vmem:[#allocation2 + $0x98] sm:$0xff] 0.0
        %961 = vst [vmem:[#allocation2 + $0xa0] sm:$0xff] 0.0
        %962 = vst [vmem:[#allocation2 + $0xa8] sm:$0xff] 0.0
        %963 = vst [vmem:[#allocation2 + $0xb0] sm:$0xff] 0.0
        %964 = vst [vmem:[#allocation2 + $0xb8] sm:$0xff] 0.0
        %965 = vst [vmem:[#allocation2 + $0xc0] sm:$0xff] 0.0
        %966 = vst [vmem:[#allocation2 + $0xc8] sm:$0xff] 0.0
        %967 = vst [vmem:[#allocation2 + $0xd0] sm:$0xff] 0.0
        %968 = vst [vmem:[#allocation2 + $0xd8] sm:$0xff] 0.0
        %969 = vst [vmem:[#allocation2 + $0xe0] sm:$0xff] 0.0
        %970 = vst [vmem:[#allocation2 + $0xe8] sm:$0xff] 0.0
        %971 = vst [vmem:[#allocation2 + $0xf0] sm:$0xff] 0.0
        %972 = vst [vmem:[#allocation2 + $0xf8] sm:$0xff] 0.0
        %973 = vst [vmem:[#allocation2 + $0x100] sm:$0xff] 0.0
        %974 = vst [vmem:[#allocation2 + $0x108] sm:$0xff] 0.0
        %975 = vst [vmem:[#allocation2 + $0x110] sm:$0xff] 0.0
        %976 = vst [vmem:[#allocation2 + $0x118] sm:$0xff] 0.0
        %977 = vst [vmem:[#allocation2 + $0x120] sm:$0xff] 0.0
        %978 = vst [vmem:[#allocation2 + $0x128] sm:$0xff] 0.0
        %979 = vst [vmem:[#allocation2 + $0x130] sm:$0xff] 0.0
        %980 = vst [vmem:[#allocation2 + $0x138] sm:$0xff] 0.0
        %981 = vst [vmem:[#allocation2 + $0x140] sm:$0xff] 0.0
        %v982 = vld [vmem:[%s2] sm:$0x1]
        %v983 = vld [vmem:[%s3] sm:$0x1]
        %v984 = vld [vmem:[%s291] sm:$0xff]
        %v985 = vld [vmem:[%s291 + $0x8] sm:$0xff]
        %v986 = vld [vmem:[%s291 + $0x10] sm:$0xff]
        %v987 = vld [vmem:[%s291 + $0x18] sm:$0xff]
        %v988 = vld [vmem:[%s291 + $0x20] sm:$0xff]
        %v989 = vld [vmem:[%s291 + $0x28] sm:$0xff]
        %v990 = vld [vmem:[%s291 + $0x30] sm:$0xff]
        %v991 = vld [vmem:[%s291 + $0x38] sm:$0xff]
        %v992 = vld [vmem:[%s291 + $0x40] sm:$0xff]
        %v993 = vld [vmem:[%s291 + $0x48] sm:$0xff]
        %v994 = vld [vmem:[%s291 + $0x50] sm:$0xff]
        %v995 = vld [vmem:[%s291 + $0x58] sm:$0xff]
        %v996 = vld [vmem:[%s291 + $0x60] sm:$0xff]
        %v997 = vld [vmem:[%s291 + $0x68] sm:$0xff]
        %v998 = vld [vmem:[%s291 + $0x70] sm:$0xff]
        %v999 = vld [vmem:[%s291 + $0x78] sm:$0xff]
        %v1000 = vld [vmem:[%s291 + $0x80] sm:$0xff]
        %v1001 = vld [vmem:[%s291 + $0x88] sm:$0xff]
        %v1002 = vld [vmem:[%s291 + $0x90] sm:$0xff]
        %v1003 = vld [vmem:[%s291 + $0x98] sm:$0xff]
        %v1004 = vld [vmem:[%s291 + $0xa0] sm:$0xff]
        %v1005 = vld [vmem:[%s291 + $0xa8] sm:$0xff]
        %v1006 = vld [vmem:[%s291 + $0xb0] sm:$0xff]
        %v1007 = vld [vmem:[%s291 + $0xb8] sm:$0xff]
        %v1008 = vld [vmem:[%s291 + $0xc0] sm:$0xff]
        %v1009 = vld [vmem:[%s291 + $0xc8] sm:$0xff]
        %v1010 = vld [vmem:[%s291 + $0xd0] sm:$0xff]
        %v1011 = vld [vmem:[%s291 + $0xd8] sm:$0xff]
        %v1012 = vld [vmem:[%s291 + $0xe0] sm:$0xff]
        %v1013 = vld [vmem:[%s291 + $0xe8] sm:$0xff]
        %v1014 = vld [vmem:[%s291 + $0xf0] sm:$0xff]
        %v1015 = vld [vmem:[%s291 + $0xf8] sm:$0xff]
        %v1016 = vld [vmem:[%s291 + $0x100] sm:$0xff]
        %v1017 = vld [vmem:[%s291 + $0x108] sm:$0xff]
        %v1018 = vld [vmem:[%s291 + $0x110] sm:$0xff]
        %v1019 = vld [vmem:[%s291 + $0x118] sm:$0xff]
        %v1020 = vld [vmem:[%s1] sm:$0xff]
        %v1021 = vld [vmem:[%s291 + $0x1] sm:$0xff]
        %v1022 = vld [vmem:[%s291 + $0x9] sm:$0xff]
        %v1023 = vld [vmem:[%s291 + $0x11] sm:$0xff]
        %v1024 = vld [vmem:[%s291 + $0x19] sm:$0xff]
        %v1025 = vld [vmem:[%s291 + $0x21] sm:$0xff]
        %v1026 = vld [vmem:[%s291 + $0x29] sm:$0xff]
        %v1027 = vld [vmem:[%s291 + $0x31] sm:$0xff]
        %v1028 = vld [vmem:[%s291 + $0x39] sm:$0xff]
        %v1029 = vld [vmem:[%s291 + $0x41] sm:$0xff]
        %v1030 = vld [vmem:[%s291 + $0x49] sm:$0xff]
        %v1031 = vld [vmem:[%s291 + $0x51] sm:$0xff]
        %v1032 = vld [vmem:[%s291 + $0x59] sm:$0xff]
        %v1033 = vld [vmem:[%s291 + $0x61] sm:$0xff]
        %v1034 = vld [vmem:[%s291 + $0x69] sm:$0xff]
        %v1035 = vld [vmem:[%s291 + $0x71] sm:$0xff]
        %v1036 = vld [vmem:[%s291 + $0x79] sm:$0xff]
        %v1037 = vld [vmem:[%s291 + $0x81] sm:$0xff]
        %v1038 = vld [vmem:[%s291 + $0x89] sm:$0xff]
        %v1039 = vld [vmem:[%s291 + $0x91] sm:$0xff]
        %v1040 = vld [vmem:[%s291 + $0x99] sm:$0xff]
        %v1041 = vld [vmem:[%s291 + $0xa1] sm:$0xff]
        %v1042 = vld [vmem:[%s291 + $0xa9] sm:$0xff]
        %v1043 = vld [vmem:[%s291 + $0xb1] sm:$0xff]
        %v1044 = vld [vmem:[%s291 + $0xb9] sm:$0xff]
        %v1045 = vld [vmem:[%s291 + $0xc1] sm:$0xff]
        %v1046 = vld [vmem:[%s291 + $0xc9] sm:$0xff]
        %v1047 = vld [vmem:[%s291 + $0xd1] sm:$0xff]
        %v1048 = vld [vmem:[%s291 + $0xd9] sm:$0xff]
        %v1049 = vld [vmem:[%s291 + $0xe1] sm:$0xff]
        %v1050 = vld [vmem:[%s291 + $0xe9] sm:$0xff]
        %v1051 = vld [vmem:[%s291 + $0xf1] sm:$0xff]
        %v1052 = vld [vmem:[%s291 + $0xf9] sm:$0xff]
        %v1053 = vld [vmem:[%s291 + $0x101] sm:$0xff]
        %v1054 = vld [vmem:[%s291 + $0x109] sm:$0xff]
        %v1055 = vld [vmem:[%s291 + $0x111] sm:$0xff]
        %v1056 = vld [vmem:[%s291 + $0x119] sm:$0xff]
        %s1057 = scalar_lea.vmem %s1, 8
        %v1058 = vld [vmem:[%s1057] sm:$0xff]
        %vm1059 = vcmask 64512
        %v1061 = vsel %vm1059, %v1021, 0
        %v1064 = vsel %vm1059, %v1022, 0
        %v1067 = vsel %vm1059, %v1023, 0
        %v1070 = vsel %vm1059, %v1024, 0
        %v1073 = vsel %vm1059, %v1025, 0
        %v1076 = vsel %vm1059, %v1026, 0
        %v1079 = vsel %vm1059, %v1027, 0
        %v1082 = vsel %vm1059, %v1028, 0
        %v1085 = vsel %vm1059, %v1029, 0
        %v1088 = vsel %vm1059, %v1030, 0
        %v1091 = vsel %vm1059, %v1031, 0
        %v1094 = vsel %vm1059, %v1032, 0
        %v1097 = vsel %vm1059, %v1033, 0
        %v1100 = vsel %vm1059, %v1034, 0
        %v1103 = vsel %vm1059, %v1035, 0
        %v1106 = vsel %vm1059, %v1036, 0
        %v1109 = vsel %vm1059, %v1037, 0
        %v1112 = vsel %vm1059, %v1038, 0
        %v1115 = vsel %vm1059, %v1039, 0
        %v1118 = vsel %vm1059, %v1040, 0
        %v1121 = vsel %vm1059, %v1041, 0
        %v1124 = vsel %vm1059, %v1042, 0
        %v1127 = vsel %vm1059, %v1043, 0
        %v1130 = vsel %vm1059, %v1044, 0
        %v1133 = vsel %vm1059, %v1045, 0
        %v1136 = vsel %vm1059, %v1046, 0
        %v1139 = vsel %vm1059, %v1047, 0
        %v1142 = vsel %vm1059, %v1048, 0
        %v1145 = vsel %vm1059, %v1049, 0
        %v1148 = vsel %vm1059, %v1050, 0
        %v1151 = vsel %vm1059, %v1051, 0
        %v1154 = vsel %vm1059, %v1052, 0
        %v1157 = vsel %vm1059, %v1053, 0
        %v1160 = vsel %vm1059, %v1054, 0
        %v1163 = vsel %vm1059, %v1055, 0
        %v1166 = vsel %vm1059, %v1056, 0
        %1168 = vmatprep.subr.mxu0 0.0
        %1169 = vmatpush1.msra.mxu0 %v1058
        %1170 = vmatprep.subr.mxu0 0.0
        %1171 = vmatpush1.msra.mxu0 0.0
        %1172 = vmatprep.subr.mxu0 0.0
        %1173 = vmatpush1.msra.mxu0 0.0
        %1174 = vmatprep.subr.mxu0 0.0
        %1175 = vmatpush1.msra.mxu0 0.0
        %1176 = vmatprep.subr.mxu0 0.0
        %1177 = vmatpush1.msra.mxu0 0.0
        %1178 = vmatprep.subr.mxu0 0.0
        %1179 = vmatpush1.msra.mxu0 0.0
        %1180 = vmatprep.subr.mxu0 0.0
        %1181 = vmatpush1.msra.mxu0 0.0
        %1182 = vmatprep.subr.mxu0 0.0
        %1183 = vmatpush1.msra.mxu0 0.0
        %1184 = vmatprep.subr.mxu0 0.0
        %1185 = vmatpush1.msra.mxu0 0.0
        %1186 = vmatprep.subr.mxu0 0.0
        %1187 = vmatpush1.msra.mxu0 0.0
        %1188 = vmatprep.subr.mxu0 0.0
        %1189 = vmatpush1.msra.mxu0 0.0
        %1190 = vmatprep.subr.mxu0 0.0
        %1191 = vmatpush1.msra.mxu0 0.0
        %1192 = vmatprep.subr.mxu0 0.0
        %1193 = vmatpush1.msra.mxu0 0.0
        %1194 = vmatprep.subr.mxu0 0.0
        %1195 = vmatpush1.msra.mxu0 0.0
        %1196 = vmatprep.subr.mxu0 0.0
        %1197 = vmatpush1.msra.mxu0 0.0
        %1198 = vmatprep.subr.mxu0 0.0
        %1199 = vmatpush1.msra.mxu0 0.0
        %1200 = vmatprep.subr.mxu0 0.0
        %1201 = vmatpush1.msra.mxu0 0.0
        %1202 = vmatprep.subr.mxu0 0.0
        %1203 = vmatpush1.msra.mxu0 0.0
        %1204 = vmatprep.subr.mxu0 0.0
        %1205 = vmatpush1.msra.mxu0 0.0
        %1206 = vmatprep.subr.mxu0 0.0
        %1207 = vmatpush1.msra.mxu0 0.0
        %1208 = vmatprep.subr.mxu0 0.0
        %1209 = vmatpush1.msra.mxu0 0.0
        %1210 = vmatprep.subr.mxu0 0.0
        %1211 = vmatpush1.msra.mxu0 0.0
        %1212 = vmatprep.subr.mxu0 0.0
        %1213 = vmatpush1.msra.mxu0 0.0
        %1214 = vmatprep.subr.mxu0 0.0
        %1215 = vmatpush1.msra.mxu0 0.0
        %1216 = vmatprep.subr.mxu0 0.0
        %1217 = vmatpush1.msra.mxu0 0.0
        %1218 = vmatprep.subr.mxu0 0.0
        %1219 = vmatpush1.msra.mxu0 0.0
        %1220 = vmatprep.subr.mxu0 0.0
        %1221 = vmatpush1.msra.mxu0 0.0
        %1222 = vmatprep.subr.mxu0 0.0
        %1223 = vmatpush1.msra.mxu0 0.0
        %1224 = vmatprep.subr.mxu0 0.0
        %1225 = vmatpush1.msra.mxu0 0.0
        %1226 = vmatprep.subr.mxu0 0.0
        %1227 = vmatpush1.msra.mxu0 0.0
        %1228 = vmatprep.subr.mxu0 0.0
        %1229 = vmatpush1.msra.mxu0 0.0
        %1230 = vmatprep.subr.mxu0 0.0
        %1231 = vmatpush1.msra.mxu0 0.0
        %1232 = vmatprep.mubr.f32.mxu0 0.0
        %1233 = vmatmul.mubr.f32.gmra.mrb[0].mxu0 %v1061
        %v1234 = vpop.f32.mrb[0].mxu0
        %v1235 = vadd.f32 0.0, %v1234
        %v1236 = vpop.f32.mrb[0].mxu0
        %1237 = vmatprep.mubr.f32.mxu0 0.0
        %1238 = vmatmul.mubr.f32.gmra.mrb[0].mxu0 %v1064
        %v1239 = vpop.f32.mrb[0].mxu0
        %v1240 = vadd.f32 0.0, %v1239
        %v1241 = vpop.f32.mrb[0].mxu0
        %1242 = vmatprep.mubr.f32.mxu0 0.0
        %1243 = vmatmul.mubr.f32.gmra.mrb[0].mxu0 %v1067
        %v1244 = vpop.f32.mrb[0].mxu0
        %v1245 = vadd.f32 0.0, %v1244
        %v1246 = vpop.f32.mrb[0].mxu0
        %1247 = vmatprep.mubr.f32.mxu0 0.0
        %1248 = vmatmul.mubr.f32.gmra.mrb[0].mxu0 %v1070
        %v1249 = vpop.f32.mrb[0].mxu0
        %v1250 = vadd.f32 0.0, %v1249
        %v1251 = vpop.f32.mrb[0].mxu0
        %1252 = vmatprep.mubr.f32.mxu0 0.0
        %1253 = vmatmul.mubr.f32.gmra.mrb[0].mxu0 %v1073
        %v1254 = vpop.f32.mrb[0].mxu0
        %v1255 = vadd.f32 0.0, %v1254
        %v1256 = vpop.f32.mrb[0].mxu0
        %1257 = vmatprep.mubr.f32.mxu0 0.0
        %1258 = vmatmul.mubr.f32.gmra.mrb[0].mxu0 %v1076
        %v1259 = vpop.f32.mrb[0].mxu0
        %v1260 = vadd.f32 0.0, %v1259
        %v1261 = vpop.f32.mrb[0].mxu0
        %1262 = vmatprep.mubr.f32.mxu0 0.0
        %1263 = vmatmul.mubr.f32.gmra.mrb[0].mxu0 %v1079
        %v1264 = vpop.f32.mrb[0].mxu0
        %v1265 = vadd.f32 0.0, %v1264
        %v1266 = vpop.f32.mrb[0].mxu0
        %1267 = vmatprep.mubr.f32.mxu0 0.0
        %1268 = vmatmul.mubr.f32.gmra.mrb[0].mxu0 %v1082
        %v1269 = vpop.f32.mrb[0].mxu0
        %v1270 = vadd.f32 0.0, %v1269
        %v1271 = vpop.f32.mrb[0].mxu0
        %1272 = vmatprep.mubr.f32.mxu0 0.0
        %1273 = vmatmul.mubr.f32.gmra.mrb[0].mxu0 %v1085
        %v1274 = vpop.f32.mrb[0].mxu0
        %v1275 = vadd.f32 0.0, %v1274
        %v1276 = vpop.f32.mrb[0].mxu0
        %1277 = vmatprep.mubr.f32.mxu0 0.0
        %1278 = vmatmul.mubr.f32.gmra.mrb[0].mxu0 %v1088
        %v1279 = vpop.f32.mrb[0].mxu0
        %v1280 = vadd.f32 0.0, %v1279
        %v1281 = vpop.f32.mrb[0].mxu0
        %1282 = vmatprep.mubr.f32.mxu0 0.0
        %1283 = vmatmul.mubr.f32.gmra.mrb[0].mxu0 %v1091
        %v1284 = vpop.f32.mrb[0].mxu0
        %v1285 = vadd.f32 0.0, %v1284
        %v1286 = vpop.f32.mrb[0].mxu0
        %1287 = vmatprep.mubr.f32.mxu0 0.0
        %1288 = vmatmul.mubr.f32.gmra.mrb[0].mxu0 %v1094
        %v1289 = vpop.f32.mrb[0].mxu0
        %v1290 = vadd.f32 0.0, %v1289
        %v1291 = vpop.f32.mrb[0].mxu0
        %1292 = vmatprep.mubr.f32.mxu0 0.0
        %1293 = vmatmul.mubr.f32.gmra.mrb[0].mxu0 %v1097
        %v1294 = vpop.f32.mrb[0].mxu0
        %v1295 = vadd.f32 0.0, %v1294
        %v1296 = vpop.f32.mrb[0].mxu0
        %1297 = vmatprep.mubr.f32.mxu0 0.0
        %1298 = vmatmul.mubr.f32.gmra.mrb[0].mxu0 %v1100
        %v1299 = vpop.f32.mrb[0].mxu0
        %v1300 = vadd.f32 0.0, %v1299
        %v1301 = vpop.f32.mrb[0].mxu0
        %1302 = vmatprep.mubr.f32.mxu0 0.0
        %1303 = vmatmul.mubr.f32.gmra.mrb[0].mxu0 %v1103
        %v1304 = vpop.f32.mrb[0].mxu0
        %v1305 = vadd.f32 0.0, %v1304
        %v1306 = vpop.f32.mrb[0].mxu0
        %1307 = vmatprep.mubr.f32.mxu0 0.0
        %1308 = vmatmul.mubr.f32.gmra.mrb[0].mxu0 %v1106
        %v1309 = vpop.f32.mrb[0].mxu0
        %v1310 = vadd.f32 0.0, %v1309
        %v1311 = vpop.f32.mrb[0].mxu0
        %1312 = vmatprep.mubr.f32.mxu0 0.0
        %1313 = vmatmul.mubr.f32.gmra.mrb[0].mxu0 %v1109
        %v1314 = vpop.f32.mrb[0].mxu0
        %v1315 = vadd.f32 0.0, %v1314
        %v1316 = vpop.f32.mrb[0].mxu0
        %1317 = vmatprep.mubr.f32.mxu0 0.0
        %1318 = vmatmul.mubr.f32.gmra.mrb[0].mxu0 %v1112
        %v1319 = vpop.f32.mrb[0].mxu0
        %v1320 = vadd.f32 0.0, %v1319
        %v1321 = vpop.f32.mrb[0].mxu0
        %1322 = vmatprep.mubr.f32.mxu0 0.0
        %1323 = vmatmul.mubr.f32.gmra.mrb[0].mxu0 %v1115
        %v1324 = vpop.f32.mrb[0].mxu0
        %v1325 = vadd.f32 0.0, %v1324
        %v1326 = vpop.f32.mrb[0].mxu0
        %1327 = vmatprep.mubr.f32.mxu0 0.0
        %1328 = vmatmul.mubr.f32.gmra.mrb[0].mxu0 %v1118
        %v1329 = vpop.f32.mrb[0].mxu0
        %v1330 = vadd.f32 0.0, %v1329
        %v1331 = vpop.f32.mrb[0].mxu0
        %1332 = vmatprep.mubr.f32.mxu0 0.0
        %1333 = vmatmul.mubr.f32.gmra.mrb[0].mxu0 %v1121
        %v1334 = vpop.f32.mrb[0].mxu0
        %v1335 = vadd.f32 0.0, %v1334
        %v1336 = vpop.f32.mrb[0].mxu0
        %1337 = vmatprep.mubr.f32.mxu0 0.0
        %1338 = vmatmul.mubr.f32.gmra.mrb[0].mxu0 %v1124
        %v1339 = vpop.f32.mrb[0].mxu0
        %v1340 = vadd.f32 0.0, %v1339
        %v1341 = vpop.f32.mrb[0].mxu0
        %1342 = vmatprep.mubr.f32.mxu0 0.0
        %1343 = vmatmul.mubr.f32.gmra.mrb[0].mxu0 %v1127
        %v1344 = vpop.f32.mrb[0].mxu0
        %v1345 = vadd.f32 0.0, %v1344
        %v1346 = vpop.f32.mrb[0].mxu0
        %1347 = vmatprep.mubr.f32.mxu0 0.0
        %1348 = vmatmul.mubr.f32.gmra.mrb[0].mxu0 %v1130
        %v1349 = vpop.f32.mrb[0].mxu0
        %v1350 = vadd.f32 0.0, %v1349
        %v1351 = vpop.f32.mrb[0].mxu0
        %1352 = vmatprep.mubr.f32.mxu0 0.0
        %1353 = vmatmul.mubr.f32.gmra.mrb[0].mxu0 %v1133
        %v1354 = vpop.f32.mrb[0].mxu0
        %v1355 = vadd.f32 0.0, %v1354
        %v1356 = vpop.f32.mrb[0].mxu0
        %1357 = vmatprep.mubr.f32.mxu0 0.0
        %1358 = vmatmul.mubr.f32.gmra.mrb[0].mxu0 %v1136
        %v1359 = vpop.f32.mrb[0].mxu0
        %v1360 = vadd.f32 0.0, %v1359
        %v1361 = vpop.f32.mrb[0].mxu0
        %1362 = vmatprep.mubr.f32.mxu0 0.0
        %1363 = vmatmul.mubr.f32.gmra.mrb[0].mxu0 %v1139
        %v1364 = vpop.f32.mrb[0].mxu0
        %v1365 = vadd.f32 0.0, %v1364
        %v1366 = vpop.f32.mrb[0].mxu0
        %1367 = vmatprep.mubr.f32.mxu0 0.0
        %1368 = vmatmul.mubr.f32.gmra.mrb[0].mxu0 %v1142
        %v1369 = vpop.f32.mrb[0].mxu0
        %v1370 = vadd.f32 0.0, %v1369
        %v1371 = vpop.f32.mrb[0].mxu0
        %1372 = vmatprep.mubr.f32.mxu0 0.0
        %1373 = vmatmul.mubr.f32.gmra.mrb[0].mxu0 %v1145
        %v1374 = vpop.f32.mrb[0].mxu0
        %v1375 = vadd.f32 0.0, %v1374
        %v1376 = vpop.f32.mrb[0].mxu0
        %1377 = vmatprep.mubr.f32.mxu0 0.0
        %1378 = vmatmul.mubr.f32.gmra.mrb[0].mxu0 %v1148
        %v1379 = vpop.f32.mrb[0].mxu0
        %v1380 = vadd.f32 0.0, %v1379
        %v1381 = vpop.f32.mrb[0].mxu0
        %1382 = vmatprep.mubr.f32.mxu0 0.0
        %1383 = vmatmul.mubr.f32.gmra.mrb[0].mxu0 %v1151
        %v1384 = vpop.f32.mrb[0].mxu0
        %v1385 = vadd.f32 0.0, %v1384
        %v1386 = vpop.f32.mrb[0].mxu0
        %1387 = vmatprep.mubr.f32.mxu0 0.0
        %1388 = vmatmul.mubr.f32.gmra.mrb[0].mxu0 %v1154
        %v1389 = vpop.f32.mrb[0].mxu0
        %v1390 = vadd.f32 0.0, %v1389
        %v1391 = vpop.f32.mrb[0].mxu0
        %1392 = vmatprep.mubr.f32.mxu0 0.0
        %1393 = vmatmul.mubr.f32.gmra.mrb[0].mxu0 %v1157
        %v1394 = vpop.f32.mrb[0].mxu0
        %v1395 = vadd.f32 0.0, %v1394
        %v1396 = vpop.f32.mrb[0].mxu0
        %1397 = vmatprep.mubr.f32.mxu0 0.0
        %1398 = vmatmul.mubr.f32.gmra.mrb[0].mxu0 %v1160
        %v1399 = vpop.f32.mrb[0].mxu0
        %v1400 = vadd.f32 0.0, %v1399
        %v1401 = vpop.f32.mrb[0].mxu0
        %1402 = vmatprep.mubr.f32.mxu0 0.0
        %1403 = vmatmul.mubr.f32.gmra.mrb[0].mxu0 %v1163
        %v1404 = vpop.f32.mrb[0].mxu0
        %v1405 = vadd.f32 0.0, %v1404
        %v1406 = vpop.f32.mrb[0].mxu0
        %1407 = vmatprep.mubr.f32.mxu0 0.0
        %1408 = vmatmul.mubr.f32.gmra.mrb[0].mxu0 %v1166
        %v1409 = vpop.f32.mrb[0].mxu0
        %v1410 = vadd.f32 0.0, %v1409
        %v1411 = vpop.f32.mrb[0].mxu0
        %1412 = vdwg.mxu0
        %v1414 = vsel %vm1059, %v984, 0
        %v1417 = vsel %vm1059, %v985, 0
        %v1420 = vsel %vm1059, %v986, 0
        %v1423 = vsel %vm1059, %v987, 0
        %v1426 = vsel %vm1059, %v988, 0
        %v1429 = vsel %vm1059, %v989, 0
        %v1432 = vsel %vm1059, %v990, 0
        %v1435 = vsel %vm1059, %v991, 0
        %v1438 = vsel %vm1059, %v992, 0
        %v1441 = vsel %vm1059, %v993, 0
        %v1444 = vsel %vm1059, %v994, 0
        %v1447 = vsel %vm1059, %v995, 0
        %v1450 = vsel %vm1059, %v996, 0
        %v1453 = vsel %vm1059, %v997, 0
        %v1456 = vsel %vm1059, %v998, 0
        %v1459 = vsel %vm1059, %v999, 0
        %v1462 = vsel %vm1059, %v1000, 0
        %v1465 = vsel %vm1059, %v1001, 0
        %v1468 = vsel %vm1059, %v1002, 0
        %v1471 = vsel %vm1059, %v1003, 0
        %v1474 = vsel %vm1059, %v1004, 0
        %v1477 = vsel %vm1059, %v1005, 0
        %v1480 = vsel %vm1059, %v1006, 0
        %v1483 = vsel %vm1059, %v1007, 0
        %v1486 = vsel %vm1059, %v1008, 0
        %v1489 = vsel %vm1059, %v1009, 0
        %v1492 = vsel %vm1059, %v1010, 0
        %v1495 = vsel %vm1059, %v1011, 0
        %v1498 = vsel %vm1059, %v1012, 0
        %v1501 = vsel %vm1059, %v1013, 0
        %v1504 = vsel %vm1059, %v1014, 0
        %v1507 = vsel %vm1059, %v1015, 0
        %v1510 = vsel %vm1059, %v1016, 0
        %v1513 = vsel %vm1059, %v1017, 0
        %v1516 = vsel %vm1059, %v1018, 0
        %v1519 = vsel %vm1059, %v1019, 0
        %1521 = vmatprep.subr.mxu0 0.0
        %1522 = vmatpush1.msra.mxu0 %v1020
        %1523 = vmatprep.subr.mxu0 0.0
        %1524 = vmatpush1.msra.mxu0 0.0
        %1525 = vmatprep.subr.mxu0 0.0
        %1526 = vmatpush1.msra.mxu0 0.0
        %1527 = vmatprep.subr.mxu0 0.0
        %1528 = vmatpush1.msra.mxu0 0.0
        %1529 = vmatprep.subr.mxu0 0.0
        %1530 = vmatpush1.msra.mxu0 0.0
        %1531 = vmatprep.subr.mxu0 0.0
        %1532 = vmatpush1.msra.mxu0 0.0
        %1533 = vmatprep.subr.mxu0 0.0
        %1534 = vmatpush1.msra.mxu0 0.0
        %1535 = vmatprep.subr.mxu0 0.0
        %1536 = vmatpush1.msra.mxu0 0.0
        %1537 = vmatprep.subr.mxu0 0.0
        %1538 = vmatpush1.msra.mxu0 0.0
        %1539 = vmatprep.subr.mxu0 0.0
        %1540 = vmatpush1.msra.mxu0 0.0
        %1541 = vmatprep.subr.mxu0 0.0
        %1542 = vmatpush1.msra.mxu0 0.0
        %1543 = vmatprep.subr.mxu0 0.0
        %1544 = vmatpush1.msra.mxu0 0.0
        %1545 = vmatprep.subr.mxu0 0.0
        %1546 = vmatpush1.msra.mxu0 0.0
        %1547 = vmatprep.subr.mxu0 0.0
        %1548 = vmatpush1.msra.mxu0 0.0
        %1549 = vmatprep.subr.mxu0 0.0
        %1550 = vmatpush1.msra.mxu0 0.0
        %1551 = vmatprep.subr.mxu0 0.0
        %1552 = vmatpush1.msra.mxu0 0.0
        %1553 = vmatprep.subr.mxu0 0.0
        %1554 = vmatpush1.msra.mxu0 0.0
        %1555 = vmatprep.subr.mxu0 0.0
        %1556 = vmatpush1.msra.mxu0 0.0
        %1557 = vmatprep.subr.mxu0 0.0
        %1558 = vmatpush1.msra.mxu0 0.0
        %1559 = vmatprep.subr.mxu0 0.0
        %1560 = vmatpush1.msra.mxu0 0.0
        %1561 = vmatprep.subr.mxu0 0.0
        %1562 = vmatpush1.msra.mxu0 0.0
        %1563 = vmatprep.subr.mxu0 0.0
        %1564 = vmatpush1.msra.mxu0 0.0
        %1565 = vmatprep.subr.mxu0 0.0
        %1566 = vmatpush1.msra.mxu0 0.0
        %1567 = vmatprep.subr.mxu0 0.0
        %1568 = vmatpush1.msra.mxu0 0.0
        %1569 = vmatprep.subr.mxu0 0.0
        %1570 = vmatpush1.msra.mxu0 0.0
        %1571 = vmatprep.subr.mxu0 0.0
        %1572 = vmatpush1.msra.mxu0 0.0
        %1573 = vmatprep.subr.mxu0 0.0
        %1574 = vmatpush1.msra.mxu0 0.0
        %1575 = vmatprep.subr.mxu0 0.0
        %1576 = vmatpush1.msra.mxu0 0.0
        %1577 = vmatprep.subr.mxu0 0.0
        %1578 = vmatpush1.msra.mxu0 0.0
        %1579 = vmatprep.subr.mxu0 0.0
        %1580 = vmatpush1.msra.mxu0 0.0
        %1581 = vmatprep.subr.mxu0 0.0
        %1582 = vmatpush1.msra.mxu0 0.0
        %1583 = vmatprep.subr.mxu0 0.0
        %1584 = vmatpush1.msra.mxu0 0.0
        %1585 = vmatprep.mubr.f32.mxu0 0.0
        %1586 = vmatmul.mubr.f32.gmra.mrb[0].mxu0 %v1414
        %v1587 = vpop.f32.mrb[0].mxu0
        %v1588 = vadd.f32 %v1235, %v1587
        %v1589 = vpop.f32.mrb[0].mxu0
        %1590 = vmatprep.mubr.f32.mxu0 0.0
        %1591 = vmatmul.mubr.f32.gmra.mrb[0].mxu0 %v1417
        %v1592 = vpop.f32.mrb[0].mxu0
        %v1593 = vadd.f32 %v1240, %v1592
        %v1594 = vpop.f32.mrb[0].mxu0
        %1595 = vmatprep.mubr.f32.mxu0 0.0
        %1596 = vmatmul.mubr.f32.gmra.mrb[0].mxu0 %v1420
        %v1597 = vpop.f32.mrb[0].mxu0
        %v1598 = vadd.f32 %v1245, %v1597
        %v1599 = vpop.f32.mrb[0].mxu0
        %1600 = vmatprep.mubr.f32.mxu0 0.0
        %1601 = vmatmul.mubr.f32.gmra.mrb[0].mxu0 %v1423
        %v1602 = vpop.f32.mrb[0].mxu0
        %v1603 = vadd.f32 %v1250, %v1602
        %v1604 = vpop.f32.mrb[0].mxu0
        %1605 = vmatprep.mubr.f32.mxu0 0.0
        %1606 = vmatmul.mubr.f32.gmra.mrb[0].mxu0 %v1426
        %v1607 = vpop.f32.mrb[0].mxu0
        %v1608 = vadd.f32 %v1255, %v1607
        %v1609 = vpop.f32.mrb[0].mxu0
        %1610 = vmatprep.mubr.f32.mxu0 0.0
        %1611 = vmatmul.mubr.f32.gmra.mrb[0].mxu0 %v1429
        %v1612 = vpop.f32.mrb[0].mxu0
        %v1613 = vadd.f32 %v1260, %v1612
        %v1614 = vpop.f32.mrb[0].mxu0
        %1615 = vmatprep.mubr.f32.mxu0 0.0
        %1616 = vmatmul.mubr.f32.gmra.mrb[0].mxu0 %v1432
        %v1617 = vpop.f32.mrb[0].mxu0
        %v1618 = vadd.f32 %v1265, %v1617
        %v1619 = vpop.f32.mrb[0].mxu0
        %1620 = vmatprep.mubr.f32.mxu0 0.0
        %1621 = vmatmul.mubr.f32.gmra.mrb[0].mxu0 %v1435
        %v1622 = vpop.f32.mrb[0].mxu0
        %v1623 = vadd.f32 %v1270, %v1622
        %v1624 = vpop.f32.mrb[0].mxu0
        %1625 = vmatprep.mubr.f32.mxu0 0.0
        %1626 = vmatmul.mubr.f32.gmra.mrb[0].mxu0 %v1438
        %v1627 = vpop.f32.mrb[0].mxu0
        %v1628 = vadd.f32 %v1275, %v1627
        %v1629 = vpop.f32.mrb[0].mxu0
        %1630 = vmatprep.mubr.f32.mxu0 0.0
        %1631 = vmatmul.mubr.f32.gmra.mrb[0].mxu0 %v1441
        %v1632 = vpop.f32.mrb[0].mxu0
        %v1633 = vadd.f32 %v1280, %v1632
        %v1634 = vpop.f32.mrb[0].mxu0
        %1635 = vmatprep.mubr.f32.mxu0 0.0
        %1636 = vmatmul.mubr.f32.gmra.mrb[0].mxu0 %v1444
        %v1637 = vpop.f32.mrb[0].mxu0
        %v1638 = vadd.f32 %v1285, %v1637
        %v1639 = vpop.f32.mrb[0].mxu0
        %1640 = vmatprep.mubr.f32.mxu0 0.0
        %1641 = vmatmul.mubr.f32.gmra.mrb[0].mxu0 %v1447
        %v1642 = vpop.f32.mrb[0].mxu0
        %v1643 = vadd.f32 %v1290, %v1642
        %v1644 = vpop.f32.mrb[0].mxu0
        %1645 = vmatprep.mubr.f32.mxu0 0.0
        %1646 = vmatmul.mubr.f32.gmra.mrb[0].mxu0 %v1450
        %v1647 = vpop.f32.mrb[0].mxu0
        %v1648 = vadd.f32 %v1295, %v1647
        %v1649 = vpop.f32.mrb[0].mxu0
        %1650 = vmatprep.mubr.f32.mxu0 0.0
        %1651 = vmatmul.mubr.f32.gmra.mrb[0].mxu0 %v1453
        %v1652 = vpop.f32.mrb[0].mxu0
        %v1653 = vadd.f32 %v1300, %v1652
        %v1654 = vpop.f32.mrb[0].mxu0
        %1655 = vmatprep.mubr.f32.mxu0 0.0
        %1656 = vmatmul.mubr.f32.gmra.mrb[0].mxu0 %v1456
        %v1657 = vpop.f32.mrb[0].mxu0
        %v1658 = vadd.f32 %v1305, %v1657
        %v1659 = vpop.f32.mrb[0].mxu0
        %1660 = vmatprep.mubr.f32.mxu0 0.0
        %1661 = vmatmul.mubr.f32.gmra.mrb[0].mxu0 %v1459
        %v1662 = vpop.f32.mrb[0].mxu0
        %v1663 = vadd.f32 %v1310, %v1662
        %v1664 = vpop.f32.mrb[0].mxu0
        %1665 = vmatprep.mubr.f32.mxu0 0.0
        %1666 = vmatmul.mubr.f32.gmra.mrb[0].mxu0 %v1462
        %v1667 = vpop.f32.mrb[0].mxu0
        %v1668 = vadd.f32 %v1315, %v1667
        %v1669 = vpop.f32.mrb[0].mxu0
        %1670 = vmatprep.mubr.f32.mxu0 0.0
        %1671 = vmatmul.mubr.f32.gmra.mrb[0].mxu0 %v1465
        %v1672 = vpop.f32.mrb[0].mxu0
        %v1673 = vadd.f32 %v1320, %v1672
        %v1674 = vpop.f32.mrb[0].mxu0
        %1675 = vmatprep.mubr.f32.mxu0 0.0
        %1676 = vmatmul.mubr.f32.gmra.mrb[0].mxu0 %v1468
        %v1677 = vpop.f32.mrb[0].mxu0
        %v1678 = vadd.f32 %v1325, %v1677
        %v1679 = vpop.f32.mrb[0].mxu0
        %1680 = vmatprep.mubr.f32.mxu0 0.0
        %1681 = vmatmul.mubr.f32.gmra.mrb[0].mxu0 %v1471
        %v1682 = vpop.f32.mrb[0].mxu0
        %v1683 = vadd.f32 %v1330, %v1682
        %v1684 = vpop.f32.mrb[0].mxu0
        %1685 = vmatprep.mubr.f32.mxu0 0.0
        %1686 = vmatmul.mubr.f32.gmra.mrb[0].mxu0 %v1474
        %v1687 = vpop.f32.mrb[0].mxu0
        %v1688 = vadd.f32 %v1335, %v1687
        %v1689 = vpop.f32.mrb[0].mxu0
        %1690 = vmatprep.mubr.f32.mxu0 0.0
        %1691 = vmatmul.mubr.f32.gmra.mrb[0].mxu0 %v1477
        %v1692 = vpop.f32.mrb[0].mxu0
        %v1693 = vadd.f32 %v1340, %v1692
        %v1694 = vpop.f32.mrb[0].mxu0
        %1695 = vmatprep.mubr.f32.mxu0 0.0
        %1696 = vmatmul.mubr.f32.gmra.mrb[0].mxu0 %v1480
        %v1697 = vpop.f32.mrb[0].mxu0
        %v1698 = vadd.f32 %v1345, %v1697
        %v1699 = vpop.f32.mrb[0].mxu0
        %1700 = vmatprep.mubr.f32.mxu0 0.0
        %1701 = vmatmul.mubr.f32.gmra.mrb[0].mxu0 %v1483
        %v1702 = vpop.f32.mrb[0].mxu0
        %v1703 = vadd.f32 %v1350, %v1702
        %v1704 = vpop.f32.mrb[0].mxu0
        %1705 = vmatprep.mubr.f32.mxu0 0.0
        %1706 = vmatmul.mubr.f32.gmra.mrb[0].mxu0 %v1486
        %v1707 = vpop.f32.mrb[0].mxu0
        %v1708 = vadd.f32 %v1355, %v1707
        %v1709 = vpop.f32.mrb[0].mxu0
        %1710 = vmatprep.mubr.f32.mxu0 0.0
        %1711 = vmatmul.mubr.f32.gmra.mrb[0].mxu0 %v1489
        %v1712 = vpop.f32.mrb[0].mxu0
        %v1713 = vadd.f32 %v1360, %v1712
        %v1714 = vpop.f32.mrb[0].mxu0
        %1715 = vmatprep.mubr.f32.mxu0 0.0
        %1716 = vmatmul.mubr.f32.gmra.mrb[0].mxu0 %v1492
        %v1717 = vpop.f32.mrb[0].mxu0
        %v1718 = vadd.f32 %v1365, %v1717
        %v1719 = vpop.f32.mrb[0].mxu0
        %1720 = vmatprep.mubr.f32.mxu0 0.0
        %1721 = vmatmul.mubr.f32.gmra.mrb[0].mxu0 %v1495
        %v1722 = vpop.f32.mrb[0].mxu0
        %v1723 = vadd.f32 %v1370, %v1722
        %v1724 = vpop.f32.mrb[0].mxu0
        %1725 = vmatprep.mubr.f32.mxu0 0.0
        %1726 = vmatmul.mubr.f32.gmra.mrb[0].mxu0 %v1498
        %v1727 = vpop.f32.mrb[0].mxu0
        %v1728 = vadd.f32 %v1375, %v1727
        %v1729 = vpop.f32.mrb[0].mxu0
        %1730 = vmatprep.mubr.f32.mxu0 0.0
        %1731 = vmatmul.mubr.f32.gmra.mrb[0].mxu0 %v1501
        %v1732 = vpop.f32.mrb[0].mxu0
        %v1733 = vadd.f32 %v1380, %v1732
        %v1734 = vpop.f32.mrb[0].mxu0
        %1735 = vmatprep.mubr.f32.mxu0 0.0
        %1736 = vmatmul.mubr.f32.gmra.mrb[0].mxu0 %v1504
        %v1737 = vpop.f32.mrb[0].mxu0
        %v1738 = vadd.f32 %v1385, %v1737
        %v1739 = vpop.f32.mrb[0].mxu0
        %1740 = vmatprep.mubr.f32.mxu0 0.0
        %1741 = vmatmul.mubr.f32.gmra.mrb[0].mxu0 %v1507
        %v1742 = vpop.f32.mrb[0].mxu0
        %v1743 = vadd.f32 %v1390, %v1742
        %v1744 = vpop.f32.mrb[0].mxu0
        %1745 = vmatprep.mubr.f32.mxu0 0.0
        %1746 = vmatmul.mubr.f32.gmra.mrb[0].mxu0 %v1510
        %v1747 = vpop.f32.mrb[0].mxu0
        %v1748 = vadd.f32 %v1395, %v1747
        %v1749 = vpop.f32.mrb[0].mxu0
        %1750 = vmatprep.mubr.f32.mxu0 0.0
        %1751 = vmatmul.mubr.f32.gmra.mrb[0].mxu0 %v1513
        %v1752 = vpop.f32.mrb[0].mxu0
        %v1753 = vadd.f32 %v1400, %v1752
        %v1754 = vpop.f32.mrb[0].mxu0
        %1755 = vmatprep.mubr.f32.mxu0 0.0
        %1756 = vmatmul.mubr.f32.gmra.mrb[0].mxu0 %v1516
        %v1757 = vpop.f32.mrb[0].mxu0
        %v1758 = vadd.f32 %v1405, %v1757
        %v1759 = vpop.f32.mrb[0].mxu0
        %1760 = vmatprep.mubr.f32.mxu0 0.0
        %1761 = vmatmul.mubr.f32.gmra.mrb[0].mxu0 %v1519
        %v1762 = vpop.f32.mrb[0].mxu0
        %v1763 = vadd.f32 %v1410, %v1762
        %v1764 = vpop.f32.mrb[0].mxu0
        %1765 = vdwg.mxu0
        %v1766 = vld [vmem:[%s291 + $0x2] sm:$0xff]
        %v1767 = vld [vmem:[%s291 + $0xa] sm:$0xff]
        %v1768 = vld [vmem:[%s291 + $0x12] sm:$0xff]
        %v1769 = vld [vmem:[%s291 + $0x1a] sm:$0xff]
        %v1770 = vld [vmem:[%s291 + $0x22] sm:$0xff]
        %v1771 = vld [vmem:[%s291 + $0x2a] sm:$0xff]
        %v1772 = vld [vmem:[%s291 + $0x32] sm:$0xff]
        %v1773 = vld [vmem:[%s291 + $0x3a] sm:$0xff]
        %v1774 = vld [vmem:[%s291 + $0x42] sm:$0xff]
        %v1775 = vld [vmem:[%s291 + $0x4a] sm:$0xff]
        %v1776 = vld [vmem:[%s291 + $0x52] sm:$0xff]
        %v1777 = vld [vmem:[%s291 + $0x5a] sm:$0xff]
        %v1778 = vld [vmem:[%s291 + $0x62] sm:$0xff]
        %v1779 = vld [vmem:[%s291 + $0x6a] sm:$0xff]
        %v1780 = vld [vmem:[%s291 + $0x72] sm:$0xff]
        %v1781 = vld [vmem:[%s291 + $0x7a] sm:$0xff]
        %v1782 = vld [vmem:[%s291 + $0x82] sm:$0xff]
        %v1783 = vld [vmem:[%s291 + $0x8a] sm:$0xff]
        %v1784 = vld [vmem:[%s291 + $0x92] sm:$0xff]
        %v1785 = vld [vmem:[%s291 + $0x9a] sm:$0xff]
        %v1786 = vld [vmem:[%s291 + $0xa2] sm:$0xff]
        %v1787 = vld [vmem:[%s291 + $0xaa] sm:$0xff]
        %v1788 = vld [vmem:[%s291 + $0xb2] sm:$0xff]
        %v1789 = vld [vmem:[%s291 + $0xba] sm:$0xff]
        %v1790 = vld [vmem:[%s291 + $0xc2] sm:$0xff]
        %v1791 = vld [vmem:[%s291 + $0xca] sm:$0xff]
        %v1792 = vld [vmem:[%s291 + $0xd2] sm:$0xff]
        %v1793 = vld [vmem:[%s291 + $0xda] sm:$0xff]
        %v1794 = vld [vmem:[%s291 + $0xe2] sm:$0xff]
        %v1795 = vld [vmem:[%s291 + $0xea] sm:$0xff]
        %v1796 = vld [vmem:[%s291 + $0xf2] sm:$0xff]
        %v1797 = vld [vmem:[%s291 + $0xfa] sm:$0xff]
        %v1798 = vld [vmem:[%s291 + $0x102] sm:$0xff]
        %v1799 = vld [vmem:[%s291 + $0x10a] sm:$0xff]
        %v1800 = vld [vmem:[%s291 + $0x112] sm:$0xff]
        %v1801 = vld [vmem:[%s291 + $0x11a] sm:$0xff]
        %s1802 = scalar_lea.vmem %s1, 16
        %v1803 = vld [vmem:[%s1802] sm:$0xff]
        %v1805 = vsel %vm1059, %v1766, 0
        %v1808 = vsel %vm1059, %v1767, 0
        %v1811 = vsel %vm1059, %v1768, 0
        %v1814 = vsel %vm1059, %v1769, 0
        %v1817 = vsel %vm1059, %v1770, 0
        %v1820 = vsel %vm1059, %v1771, 0
        %v1823 = vsel %vm1059, %v1772, 0
        %v1826 = vsel %vm1059, %v1773, 0
        %v1829 = vsel %vm1059, %v1774, 0
        %v1832 = vsel %vm1059, %v1775, 0
        %v1835 = vsel %vm1059, %v1776, 0
        %v1838 = vsel %vm1059, %v1777, 0
        %v1841 = vsel %vm1059, %v1778, 0
        %v1844 = vsel %vm1059, %v1779, 0
        %v1847 = vsel %vm1059, %v1780, 0
        %v1850 = vsel %vm1059, %v1781, 0
        %v1853 = vsel %vm1059, %v1782, 0
        %v1856 = vsel %vm1059, %v1783, 0
        %v1859 = vsel %vm1059, %v1784, 0
        %v1862 = vsel %vm1059, %v1785, 0
        %v1865 = vsel %vm1059, %v1786, 0
        %v1868 = vsel %vm1059, %v1787, 0
        %v1871 = vsel %vm1059, %v1788, 0
        %v1874 = vsel %vm1059, %v1789, 0
        %v1877 = vsel %vm1059, %v1790, 0
        %v1880 = vsel %vm1059, %v1791, 0
        %v1883 = vsel %vm1059, %v1792, 0
        %v1886 = vsel %vm1059, %v1793, 0
        %v1889 = vsel %vm1059, %v1794, 0
        %v1892 = vsel %vm1059, %v1795, 0
        %v1895 = vsel %vm1059, %v1796, 0
        %v1898 = vsel %vm1059, %v1797, 0
        %v1901 = vsel %vm1059, %v1798, 0
        %v1904 = vsel %vm1059, %v1799, 0
        %v1907 = vsel %vm1059, %v1800, 0
        %v1910 = vsel %vm1059, %v1801, 0
        %1912 = vmatprep.subr.mxu0 0.0
        %1913 = vmatpush1.msra.mxu0 %v1803
        %1914 = vmatprep.subr.mxu0 0.0
        %1915 = vmatpush1.msra.mxu0 0.0
        %1916 = vmatprep.subr.mxu0 0.0
        %1917 = vmatpush1.msra.mxu0 0.0
        %1918 = vmatprep.subr.mxu0 0.0
        %1919 = vmatpush1.msra.mxu0 0.0
        %1920 = vmatprep.subr.mxu0 0.0
        %1921 = vmatpush1.msra.mxu0 0.0
        %1922 = vmatprep.subr.mxu0 0.0
        %1923 = vmatpush1.msra.mxu0 0.0
        %1924 = vmatprep.subr.mxu0 0.0
        %1925 = vmatpush1.msra.mxu0 0.0
        %1926 = vmatprep.subr.mxu0 0.0
        %1927 = vmatpush1.msra.mxu0 0.0
        %1928 = vmatprep.subr.mxu0 0.0
        %1929 = vmatpush1.msra.mxu0 0.0
        %1930 = vmatprep.subr.mxu0 0.0
        %1931 = vmatpush1.msra.mxu0 0.0
        %1932 = vmatprep.subr.mxu0 0.0
        %1933 = vmatpush1.msra.mxu0 0.0
        %1934 = vmatprep.subr.mxu0 0.0
        %1935 = vmatpush1.msra.mxu0 0.0
        %1936 = vmatprep.subr.mxu0 0.0
        %1937 = vmatpush1.msra.mxu0 0.0
        %1938 = vmatprep.subr.mxu0 0.0
        %1939 = vmatpush1.msra.mxu0 0.0
        %1940 = vmatprep.subr.mxu0 0.0
        %1941 = vmatpush1.msra.mxu0 0.0
        %1942 = vmatprep.subr.mxu0 0.0
        %1943 = vmatpush1.msra.mxu0 0.0
        %1944 = vmatprep.subr.mxu0 0.0
        %1945 = vmatpush1.msra.mxu0 0.0
        %1946 = vmatprep.subr.mxu0 0.0
        %1947 = vmatpush1.msra.mxu0 0.0
        %1948 = vmatprep.subr.mxu0 0.0
        %1949 = vmatpush1.msra.mxu0 0.0
        %1950 = vmatprep.subr.mxu0 0.0
        %1951 = vmatpush1.msra.mxu0 0.0
        %1952 = vmatprep.subr.mxu0 0.0
        %1953 = vmatpush1.msra.mxu0 0.0
        %1954 = vmatprep.subr.mxu0 0.0
        %1955 = vmatpush1.msra.mxu0 0.0
        %1956 = vmatprep.subr.mxu0 0.0
        %1957 = vmatpush1.msra.mxu0 0.0
        %1958 = vmatprep.subr.mxu0 0.0
        %1959 = vmatpush1.msra.mxu0 0.0
        %1960 = vmatprep.subr.mxu0 0.0
        %1961 = vmatpush1.msra.mxu0 0.0
        %1962 = vmatprep.subr.mxu0 0.0
        %1963 = vmatpush1.msra.mxu0 0.0
        %1964 = vmatprep.subr.mxu0 0.0
        %1965 = vmatpush1.msra.mxu0 0.0
        %1966 = vmatprep.subr.mxu0 0.0
        %1967 = vmatpush1.msra.mxu0 0.0
        %1968 = vmatprep.subr.mxu0 0.0
        %1969 = vmatpush1.msra.mxu0 0.0
        %1970 = vmatprep.subr.mxu0 0.0
        %1971 = vmatpush1.msra.mxu0 0.0
        %1972 = vmatprep.subr.mxu0 0.0
        %1973 = vmatpush1.msra.mxu0 0.0
        %1974 = vmatprep.subr.mxu0 0.0
        %1975 = vmatpush1.msra.mxu0 0.0
        %1976 = vmatprep.mubr.f32.mxu0 0.0
        %1977 = vmatmul.mubr.f32.gmra.mrb[0].mxu0 %v1805
        %v1978 = vpop.f32.mrb[0].mxu0
        %v1979 = vadd.f32 0.0, %v1978
        %v1980 = vpop.f32.mrb[0].mxu0
        %1981 = vmatprep.mubr.f32.mxu0 0.0
        %1982 = vmatmul.mubr.f32.gmra.mrb[0].mxu0 %v1808
        %v1983 = vpop.f32.mrb[0].mxu0
        %v1984 = vadd.f32 0.0, %v1983
        %v1985 = vpop.f32.mrb[0].mxu0
        %1986 = vmatprep.mubr.f32.mxu0 0.0
        %1987 = vmatmul.mubr.f32.gmra.mrb[0].mxu0 %v1811
        %v1988 = vpop.f32.mrb[0].mxu0
        %v1989 = vadd.f32 0.0, %v1988
        %v1990 = vpop.f32.mrb[0].mxu0
        %1991 = vmatprep.mubr.f32.mxu0 0.0
        %1992 = vmatmul.mubr.f32.gmra.mrb[0].mxu0 %v1814
        %v1993 = vpop.f32.mrb[0].mxu0
        %v1994 = vadd.f32 0.0, %v1993
        %v1995 = vpop.f32.mrb[0].mxu0
        %1996 = vmatprep.mubr.f32.mxu0 0.0
        %1997 = vmatmul.mubr.f32.gmra.mrb[0].mxu0 %v1817
        %v1998 = vpop.f32.mrb[0].mxu0
        %v1999 = vadd.f32 0.0, %v1998
        %v2000 = vpop.f32.mrb[0].mxu0
        %2001 = vmatprep.mubr.f32.mxu0 0.0
        %2002 = vmatmul.mubr.f32.gmra.mrb[0].mxu0 %v1820
        %v2003 = vpop.f32.mrb[0].mxu0
        %v2004 = vadd.f32 0.0, %v2003
        %v2005 = vpop.f32.mrb[0].mxu0
        %2006 = vmatprep.mubr.f32.mxu0 0.0
        %2007 = vmatmul.mubr.f32.gmra.mrb[0].mxu0 %v1823
        %v2008 = vpop.f32.mrb[0].mxu0
        %v2009 = vadd.f32 0.0, %v2008
        %v2010 = vpop.f32.mrb[0].mxu0
        %2011 = vmatprep.mubr.f32.mxu0 0.0
        %2012 = vmatmul.mubr.f32.gmra.mrb[0].mxu0 %v1826
        %v2013 = vpop.f32.mrb[0].mxu0
        %v2014 = vadd.f32 0.0, %v2013
        %v2015 = vpop.f32.mrb[0].mxu0
        %2016 = vmatprep.mubr.f32.mxu0 0.0
        %2017 = vmatmul.mubr.f32.gmra.mrb[0].mxu0 %v1829
        %v2018 = vpop.f32.mrb[0].mxu0
        %v2019 = vadd.f32 0.0, %v2018
        %v2020 = vpop.f32.mrb[0].mxu0
        %2021 = vmatprep.mubr.f32.mxu0 0.0
        %2022 = vmatmul.mubr.f32.gmra.mrb[0].mxu0 %v1832
        %v2023 = vpop.f32.mrb[0].mxu0
        %v2024 = vadd.f32 0.0, %v2023
        %v2025 = vpop.f32.mrb[0].mxu0
        %2026 = vmatprep.mubr.f32.mxu0 0.0
        %2027 = vmatmul.mubr.f32.gmra.mrb[0].mxu0 %v1835
        %v2028 = vpop.f32.mrb[0].mxu0
        %v2029 = vadd.f32 0.0, %v2028
        %v2030 = vpop.f32.mrb[0].mxu0
        %2031 = vmatprep.mubr.f32.mxu0 0.0
        %2032 = vmatmul.mubr.f32.gmra.mrb[0].mxu0 %v1838
        %v2033 = vpop.f32.mrb[0].mxu0
        %v2034 = vadd.f32 0.0, %v2033
        %v2035 = vpop.f32.mrb[0].mxu0
        %2036 = vmatprep.mubr.f32.mxu0 0.0
        %2037 = vmatmul.mubr.f32.gmra.mrb[0].mxu0 %v1841
        %v2038 = vpop.f32.mrb[0].mxu0
        %v2039 = vadd.f32 0.0, %v2038
        %v2040 = vpop.f32.mrb[0].mxu0
        %2041 = vmatprep.mubr.f32.mxu0 0.0
        %2042 = vmatmul.mubr.f32.gmra.mrb[0].mxu0 %v1844
        %v2043 = vpop.f32.mrb[0].mxu0
        %v2044 = vadd.f32 0.0, %v2043
        %v2045 = vpop.f32.mrb[0].mxu0
        %2046 = vmatprep.mubr.f32.mxu0 0.0
        %2047 = vmatmul.mubr.f32.gmra.mrb[0].mxu0 %v1847
        %v2048 = vpop.f32.mrb[0].mxu0
        %v2049 = vadd.f32 0.0, %v2048
        %v2050 = vpop.f32.mrb[0].mxu0
        %2051 = vmatprep.mubr.f32.mxu0 0.0
        %2052 = vmatmul.mubr.f32.gmra.mrb[0].mxu0 %v1850
        %v2053 = vpop.f32.mrb[0].mxu0
        %v2054 = vadd.f32 0.0, %v2053
        %v2055 = vpop.f32.mrb[0].mxu0
        %2056 = vmatprep.mubr.f32.mxu0 0.0
        %2057 = vmatmul.mubr.f32.gmra.mrb[0].mxu0 %v1853
        %v2058 = vpop.f32.mrb[0].mxu0
        %v2059 = vadd.f32 0.0, %v2058
        %v2060 = vpop.f32.mrb[0].mxu0
        %2061 = vmatprep.mubr.f32.mxu0 0.0
        %2062 = vmatmul.mubr.f32.gmra.mrb[0].mxu0 %v1856
        %v2063 = vpop.f32.mrb[0].mxu0
        %v2064 = vadd.f32 0.0, %v2063
        %v2065 = vpop.f32.mrb[0].mxu0
        %2066 = vmatprep.mubr.f32.mxu0 0.0
        %2067 = vmatmul.mubr.f32.gmra.mrb[0].mxu0 %v1859
        %v2068 = vpop.f32.mrb[0].mxu0
        %v2069 = vadd.f32 0.0, %v2068
        %v2070 = vpop.f32.mrb[0].mxu0
        %2071 = vmatprep.mubr.f32.mxu0 0.0
        %2072 = vmatmul.mubr.f32.gmra.mrb[0].mxu0 %v1862
        %v2073 = vpop.f32.mrb[0].mxu0
        %v2074 = vadd.f32 0.0, %v2073
        %v2075 = vpop.f32.mrb[0].mxu0
        %2076 = vmatprep.mubr.f32.mxu0 0.0
        %2077 = vmatmul.mubr.f32.gmra.mrb[0].mxu0 %v1865
        %v2078 = vpop.f32.mrb[0].mxu0
        %v2079 = vadd.f32 0.0, %v2078
        %v2080 = vpop.f32.mrb[0].mxu0
        %2081 = vmatprep.mubr.f32.mxu0 0.0
        %2082 = vmatmul.mubr.f32.gmra.mrb[0].mxu0 %v1868
        %v2083 = vpop.f32.mrb[0].mxu0
        %v2084 = vadd.f32 0.0, %v2083
        %v2085 = vpop.f32.mrb[0].mxu0
        %2086 = vmatprep.mubr.f32.mxu0 0.0
        %2087 = vmatmul.mubr.f32.gmra.mrb[0].mxu0 %v1871
        %v2088 = vpop.f32.mrb[0].mxu0
        %v2089 = vadd.f32 0.0, %v2088
        %v2090 = vpop.f32.mrb[0].mxu0
        %2091 = vmatprep.mubr.f32.mxu0 0.0
        %2092 = vmatmul.mubr.f32.gmra.mrb[0].mxu0 %v1874
        %v2093 = vpop.f32.mrb[0].mxu0
        %v2094 = vadd.f32 0.0, %v2093
        %v2095 = vpop.f32.mrb[0].mxu0
        %2096 = vmatprep.mubr.f32.mxu0 0.0
        %2097 = vmatmul.mubr.f32.gmra.mrb[0].mxu0 %v1877
        %v2098 = vpop.f32.mrb[0].mxu0
        %v2099 = vadd.f32 0.0, %v2098
        %v2100 = vpop.f32.mrb[0].mxu0
        %2101 = vmatprep.mubr.f32.mxu0 0.0
        %2102 = vmatmul.mubr.f32.gmra.mrb[0].mxu0 %v1880
        %v2103 = vpop.f32.mrb[0].mxu0
        %v2104 = vadd.f32 0.0, %v2103
        %v2105 = vpop.f32.mrb[0].mxu0
        %2106 = vmatprep.mubr.f32.mxu0 0.0
        %2107 = vmatmul.mubr.f32.gmra.mrb[0].mxu0 %v1883
        %v2108 = vpop.f32.mrb[0].mxu0
        %v2109 = vadd.f32 0.0, %v2108
        %v2110 = vpop.f32.mrb[0].mxu0
        %2111 = vmatprep.mubr.f32.mxu0 0.0
        %2112 = vmatmul.mubr.f32.gmra.mrb[0].mxu0 %v1886
        %v2113 = vpop.f32.mrb[0].mxu0
        %v2114 = vadd.f32 0.0, %v2113
        %v2115 = vpop.f32.mrb[0].mxu0
        %2116 = vmatprep.mubr.f32.mxu0 0.0
        %2117 = vmatmul.mubr.f32.gmra.mrb[0].mxu0 %v1889
        %v2118 = vpop.f32.mrb[0].mxu0
        %v2119 = vadd.f32 0.0, %v2118
        %v2120 = vpop.f32.mrb[0].mxu0
        %2121 = vmatprep.mubr.f32.mxu0 0.0
        %2122 = vmatmul.mubr.f32.gmra.mrb[0].mxu0 %v1892
        %v2123 = vpop.f32.mrb[0].mxu0
        %v2124 = vadd.f32 0.0, %v2123
        %v2125 = vpop.f32.mrb[0].mxu0
        %2126 = vmatprep.mubr.f32.mxu0 0.0
        %2127 = vmatmul.mubr.f32.gmra.mrb[0].mxu0 %v1895
        %v2128 = vpop.f32.mrb[0].mxu0
        %v2129 = vadd.f32 0.0, %v2128
        %v2130 = vpop.f32.mrb[0].mxu0
        %2131 = vmatprep.mubr.f32.mxu0 0.0
        %2132 = vmatmul.mubr.f32.gmra.mrb[0].mxu0 %v1898
        %v2133 = vpop.f32.mrb[0].mxu0
        %v2134 = vadd.f32 0.0, %v2133
        %v2135 = vpop.f32.mrb[0].mxu0
        %2136 = vmatprep.mubr.f32.mxu0 0.0
        %2137 = vmatmul.mubr.f32.gmra.mrb[0].mxu0 %v1901
        %v2138 = vpop.f32.mrb[0].mxu0
        %v2139 = vadd.f32 0.0, %v2138
        %v2140 = vpop.f32.mrb[0].mxu0
        %2141 = vmatprep.mubr.f32.mxu0 0.0
        %2142 = vmatmul.mubr.f32.gmra.mrb[0].mxu0 %v1904
        %v2143 = vpop.f32.mrb[0].mxu0
        %v2144 = vadd.f32 0.0, %v2143
        %v2145 = vpop.f32.mrb[0].mxu0
        %2146 = vmatprep.mubr.f32.mxu0 0.0
        %2147 = vmatmul.mubr.f32.gmra.mrb[0].mxu0 %v1907
        %v2148 = vpop.f32.mrb[0].mxu0
        %v2149 = vadd.f32 0.0, %v2148
        %v2150 = vpop.f32.mrb[0].mxu0
        %2151 = vmatprep.mubr.f32.mxu0 0.0
        %2152 = vmatmul.mubr.f32.gmra.mrb[0].mxu0 %v1910
        %v2153 = vpop.f32.mrb[0].mxu0
        %v2154 = vadd.f32 0.0, %v2153
        %v2155 = vpop.f32.mrb[0].mxu0
        %2156 = vdwg.mxu0
        %v2157 = vadd.f32 %v1588, %v1979
        %v2158 = vadd.f32 %v1593, %v1984
        %v2159 = vadd.f32 %v1598, %v1989
        %v2160 = vadd.f32 %v1603, %v1994
        %v2161 = vadd.f32 %v1608, %v1999
        %v2162 = vadd.f32 %v1613, %v2004
        %v2163 = vadd.f32 %v1618, %v2009
        %v2164 = vadd.f32 %v1623, %v2014
        %v2165 = vadd.f32 %v1628, %v2019
        %v2166 = vadd.f32 %v1633, %v2024
        %v2167 = vadd.f32 %v1638, %v2029
        %v2168 = vadd.f32 %v1643, %v2034
        %v2169 = vadd.f32 %v1648, %v2039
        %v2170 = vadd.f32 %v1653, %v2044
        %v2171 = vadd.f32 %v1658, %v2049
        %v2172 = vadd.f32 %v1663, %v2054
        %v2173 = vadd.f32 %v1668, %v2059
        %v2174 = vadd.f32 %v1673, %v2064
        %v2175 = vadd.f32 %v1678, %v2069
        %v2176 = vadd.f32 %v1683, %v2074
        %v2177 = vadd.f32 %v1688, %v2079
        %v2178 = vadd.f32 %v1693, %v2084
        %v2179 = vadd.f32 %v1698, %v2089
        %v2180 = vadd.f32 %v1703, %v2094
        %v2181 = vadd.f32 %v1708, %v2099
        %v2182 = vadd.f32 %v1713, %v2104
        %v2183 = vadd.f32 %v1718, %v2109
        %v2184 = vadd.f32 %v1723, %v2114
        %v2185 = vadd.f32 %v1728, %v2119
        %v2186 = vadd.f32 %v1733, %v2124
        %v2187 = vadd.f32 %v1738, %v2129
        %v2188 = vadd.f32 %v1743, %v2134
        %v2189 = vadd.f32 %v1748, %v2139
        %v2190 = vadd.f32 %v1753, %v2144
        %v2191 = vadd.f32 %v1758, %v2149
        %v2192 = vadd.f32 %v1763, %v2154
        %v2193 = vld [vmem:[%s291 + $0x12] sm:$0xff]
        %v2194 = vld [vmem:[%s291 + $0x1a] sm:$0xff]
        %v2195 = vld [vmem:[%s291 + $0x22] sm:$0xff]
        %v2196 = vld [vmem:[%s291 + $0x2a] sm:$0xff]
        %v2197 = vld [vmem:[%s291 + $0x32] sm:$0xff]
        %v2198 = vld [vmem:[%s291 + $0x3a] sm:$0xff]
        %v2199 = vld [vmem:[%s291 + $0x42] sm:$0xff]
        %v2200 = vld [vmem:[%s291 + $0x4a] sm:$0xff]
        %v2201 = vld [vmem:[%s291 + $0x52] sm:$0xff]
        %v2202 = vld [vmem:[%s291 + $0x5a] sm:$0xff]
        %v2203 = vld [vmem:[%s291 + $0x62] sm:$0xff]
        %v2204 = vld [vmem:[%s291 + $0x6a] sm:$0xff]
        %v2205 = vld [vmem:[%s291 + $0x72] sm:$0xff]
        %v2206 = vld [vmem:[%s291 + $0x7a] sm:$0xff]
        %v2207 = vld [vmem:[%s291 + $0x82] sm:$0xff]
        %v2208 = vld [vmem:[%s291 + $0x8a] sm:$0xff]
        %v2209 = vld [vmem:[%s291 + $0x92] sm:$0xff]
        %v2210 = vld [vmem:[%s291 + $0x9a] sm:$0xff]
        %v2211 = vld [vmem:[%s291 + $0xa2] sm:$0xff]
        %v2212 = vld [vmem:[%s291 + $0xaa] sm:$0xff]
        %v2213 = vld [vmem:[%s291 + $0xb2] sm:$0xff]
        %v2214 = vld [vmem:[%s291 + $0xba] sm:$0xff]
        %v2215 = vld [vmem:[%s291 + $0xc2] sm:$0xff]
        %v2216 = vld [vmem:[%s291 + $0xca] sm:$0xff]
        %v2217 = vld [vmem:[%s291 + $0xd2] sm:$0xff]
        %v2218 = vld [vmem:[%s291 + $0xda] sm:$0xff]
        %v2219 = vld [vmem:[%s291 + $0xe2] sm:$0xff]
        %v2220 = vld [vmem:[%s291 + $0xea] sm:$0xff]
        %v2221 = vld [vmem:[%s291 + $0xf2] sm:$0xff]
        %v2222 = vld [vmem:[%s291 + $0xfa] sm:$0xff]
        %v2223 = vld [vmem:[%s291 + $0x102] sm:$0xff]
        %v2224 = vld [vmem:[%s291 + $0x10a] sm:$0xff]
        %v2225 = vld [vmem:[%s291 + $0x112] sm:$0xff]
        %v2226 = vld [vmem:[%s291 + $0x11a] sm:$0xff]
        %v2227 = vld [vmem:[%s291 + $0x122] sm:$0xff]
        %v2228 = vld [vmem:[%s291 + $0x12a] sm:$0xff]
        %s2229 = scalar_lea.vmem %s1, 24
        %v2230 = vld [vmem:[%s2229] sm:$0xff]
        %v2232 = vsel %vm1059, %v2193, 0
        %v2235 = vsel %vm1059, %v2194, 0
        %v2238 = vsel %vm1059, %v2195, 0
        %v2241 = vsel %vm1059, %v2196, 0
        %v2244 = vsel %vm1059, %v2197, 0
        %v2247 = vsel %vm1059, %v2198, 0
        %v2250 = vsel %vm1059, %v2199, 0
        %v2253 = vsel %vm1059, %v2200, 0
        %v2256 = vsel %vm1059, %v2201, 0
        %v2259 = vsel %vm1059, %v2202, 0
        %v2262 = vsel %vm1059, %v2203, 0
        %v2265 = vsel %vm1059, %v2204, 0
        %v2268 = vsel %vm1059, %v2205, 0
        %v2271 = vsel %vm1059, %v2206, 0
        %v2274 = vsel %vm1059, %v2207, 0
        %v2277 = vsel %vm1059, %v2208, 0
        %v2280 = vsel %vm1059, %v2209, 0
        %v2283 = vsel %vm1059, %v2210, 0
        %v2286 = vsel %vm1059, %v2211, 0
        %v2289 = vsel %vm1059, %v2212, 0
        %v2292 = vsel %vm1059, %v2213, 0
        %v2295 = vsel %vm1059, %v2214, 0
        %v2298 = vsel %vm1059, %v2215, 0
        %v2301 = vsel %vm1059, %v2216, 0
        %v2304 = vsel %vm1059, %v2217, 0
        %v2307 = vsel %vm1059, %v2218, 0
        %v2310 = vsel %vm1059, %v2219, 0
        %v2313 = vsel %vm1059, %v2220, 0
        %v2316 = vsel %vm1059, %v2221, 0
        %v2319 = vsel %vm1059, %v2222, 0
        %v2322 = vsel %vm1059, %v2223, 0
        %v2325 = vsel %vm1059, %v2224, 0
        %v2328 = vsel %vm1059, %v2225, 0
        %v2331 = vsel %vm1059, %v2226, 0
        %v2334 = vsel %vm1059, %v2227, 0
        %v2337 = vsel %vm1059, %v2228, 0
        %2339 = vmatprep.subr.mxu0 0.0
        %2340 = vmatpush1.msra.mxu0 %v2230
        %2341 = vmatprep.subr.mxu0 0.0
        %2342 = vmatpush1.msra.mxu0 0.0
        %2343 = vmatprep.subr.mxu0 0.0
        %2344 = vmatpush1.msra.mxu0 0.0
        %2345 = vmatprep.subr.mxu0 0.0
        %2346 = vmatpush1.msra.mxu0 0.0
        %2347 = vmatprep.subr.mxu0 0.0
        %2348 = vmatpush1.msra.mxu0 0.0
        %2349 = vmatprep.subr.mxu0 0.0
        %2350 = vmatpush1.msra.mxu0 0.0
        %2351 = vmatprep.subr.mxu0 0.0
        %2352 = vmatpush1.msra.mxu0 0.0
        %2353 = vmatprep.subr.mxu0 0.0
        %2354 = vmatpush1.msra.mxu0 0.0
        %2355 = vmatprep.subr.mxu0 0.0
        %2356 = vmatpush1.msra.mxu0 0.0
        %2357 = vmatprep.subr.mxu0 0.0
        %2358 = vmatpush1.msra.mxu0 0.0
        %2359 = vmatprep.subr.mxu0 0.0
        %2360 = vmatpush1.msra.mxu0 0.0
        %2361 = vmatprep.subr.mxu0 0.0
        %2362 = vmatpush1.msra.mxu0 0.0
        %2363 = vmatprep.subr.mxu0 0.0
        %2364 = vmatpush1.msra.mxu0 0.0
        %2365 = vmatprep.subr.mxu0 0.0
        %2366 = vmatpush1.msra.mxu0 0.0
        %2367 = vmatprep.subr.mxu0 0.0
        %2368 = vmatpush1.msra.mxu0 0.0
        %2369 = vmatprep.subr.mxu0 0.0
        %2370 = vmatpush1.msra.mxu0 0.0
        %2371 = vmatprep.subr.mxu0 0.0
        %2372 = vmatpush1.msra.mxu0 0.0
        %2373 = vmatprep.subr.mxu0 0.0
        %2374 = vmatpush1.msra.mxu0 0.0
        %2375 = vmatprep.subr.mxu0 0.0
        %2376 = vmatpush1.msra.mxu0 0.0
        %2377 = vmatprep.subr.mxu0 0.0
        %2378 = vmatpush1.msra.mxu0 0.0
        %2379 = vmatprep.subr.mxu0 0.0
        %2380 = vmatpush1.msra.mxu0 0.0
        %2381 = vmatprep.subr.mxu0 0.0
        %2382 = vmatpush1.msra.mxu0 0.0
        %2383 = vmatprep.subr.mxu0 0.0
        %2384 = vmatpush1.msra.mxu0 0.0
        %2385 = vmatprep.subr.mxu0 0.0
        %2386 = vmatpush1.msra.mxu0 0.0
        %2387 = vmatprep.subr.mxu0 0.0
        %2388 = vmatpush1.msra.mxu0 0.0
        %2389 = vmatprep.subr.mxu0 0.0
        %2390 = vmatpush1.msra.mxu0 0.0
        %2391 = vmatprep.subr.mxu0 0.0
        %2392 = vmatpush1.msra.mxu0 0.0
        %2393 = vmatprep.subr.mxu0 0.0
        %2394 = vmatpush1.msra.mxu0 0.0
        %2395 = vmatprep.subr.mxu0 0.0
        %2396 = vmatpush1.msra.mxu0 0.0
        %2397 = vmatprep.subr.mxu0 0.0
        %2398 = vmatpush1.msra.mxu0 0.0
        %2399 = vmatprep.subr.mxu0 0.0
        %2400 = vmatpush1.msra.mxu0 0.0
        %2401 = vmatprep.subr.mxu0 0.0
        %2402 = vmatpush1.msra.mxu0 0.0
        %2403 = vmatprep.mubr.f32.mxu0 0.0
        %2404 = vmatmul.mubr.f32.gmra.mrb[0].mxu0 %v2232
        %v2405 = vpop.f32.mrb[0].mxu0
        %v2406 = vadd.f32 0.0, %v2405
        %v2407 = vpop.f32.mrb[0].mxu0
        %2408 = vmatprep.mubr.f32.mxu0 0.0
        %2409 = vmatmul.mubr.f32.gmra.mrb[0].mxu0 %v2235
        %v2410 = vpop.f32.mrb[0].mxu0
        %v2411 = vadd.f32 0.0, %v2410
        %v2412 = vpop.f32.mrb[0].mxu0
        %2413 = vmatprep.mubr.f32.mxu0 0.0
        %2414 = vmatmul.mubr.f32.gmra.mrb[0].mxu0 %v2238
        %v2415 = vpop.f32.mrb[0].mxu0
        %v2416 = vadd.f32 0.0, %v2415
        %v2417 = vpop.f32.mrb[0].mxu0
        %2418 = vmatprep.mubr.f32.mxu0 0.0
        %2419 = vmatmul.mubr.f32.gmra.mrb[0].mxu0 %v2241
        %v2420 = vpop.f32.mrb[0].mxu0
        %v2421 = vadd.f32 0.0, %v2420
        %v2422 = vpop.f32.mrb[0].mxu0
        %2423 = vmatprep.mubr.f32.mxu0 0.0
        %2424 = vmatmul.mubr.f32.gmra.mrb[0].mxu0 %v2244
        %v2425 = vpop.f32.mrb[0].mxu0
        %v2426 = vadd.f32 0.0, %v2425
        %v2427 = vpop.f32.mrb[0].mxu0
        %2428 = vmatprep.mubr.f32.mxu0 0.0
        %2429 = vmatmul.mubr.f32.gmra.mrb[0].mxu0 %v2247
        %v2430 = vpop.f32.mrb[0].mxu0
        %v2431 = vadd.f32 0.0, %v2430
        %v2432 = vpop.f32.mrb[0].mxu0
        %2433 = vmatprep.mubr.f32.mxu0 0.0
        %2434 = vmatmul.mubr.f32.gmra.mrb[0].mxu0 %v2250
        %v2435 = vpop.f32.mrb[0].mxu0
        %v2436 = vadd.f32 0.0, %v2435
        %v2437 = vpop.f32.mrb[0].mxu0
        %2438 = vmatprep.mubr.f32.mxu0 0.0
        %2439 = vmatmul.mubr.f32.gmra.mrb[0].mxu0 %v2253
        %v2440 = vpop.f32.mrb[0].mxu0
        %v2441 = vadd.f32 0.0, %v2440
        %v2442 = vpop.f32.mrb[0].mxu0
        %2443 = vmatprep.mubr.f32.mxu0 0.0
        %2444 = vmatmul.mubr.f32.gmra.mrb[0].mxu0 %v2256
        %v2445 = vpop.f32.mrb[0].mxu0
        %v2446 = vadd.f32 0.0, %v2445
        %v2447 = vpop.f32.mrb[0].mxu0
        %2448 = vmatprep.mubr.f32.mxu0 0.0
        %2449 = vmatmul.mubr.f32.gmra.mrb[0].mxu0 %v2259
        %v2450 = vpop.f32.mrb[0].mxu0
        %v2451 = vadd.f32 0.0, %v2450
        %v2452 = vpop.f32.mrb[0].mxu0
        %2453 = vmatprep.mubr.f32.mxu0 0.0
        %2454 = vmatmul.mubr.f32.gmra.mrb[0].mxu0 %v2262
        %v2455 = vpop.f32.mrb[0].mxu0
        %v2456 = vadd.f32 0.0, %v2455
        %v2457 = vpop.f32.mrb[0].mxu0
        %2458 = vmatprep.mubr.f32.mxu0 0.0
        %2459 = vmatmul.mubr.f32.gmra.mrb[0].mxu0 %v2265
        %v2460 = vpop.f32.mrb[0].mxu0
        %v2461 = vadd.f32 0.0, %v2460
        %v2462 = vpop.f32.mrb[0].mxu0
        %2463 = vmatprep.mubr.f32.mxu0 0.0
        %2464 = vmatmul.mubr.f32.gmra.mrb[0].mxu0 %v2268
        %v2465 = vpop.f32.mrb[0].mxu0
        %v2466 = vadd.f32 0.0, %v2465
        %v2467 = vpop.f32.mrb[0].mxu0
        %2468 = vmatprep.mubr.f32.mxu0 0.0
        %2469 = vmatmul.mubr.f32.gmra.mrb[0].mxu0 %v2271
        %v2470 = vpop.f32.mrb[0].mxu0
        %v2471 = vadd.f32 0.0, %v2470
        %v2472 = vpop.f32.mrb[0].mxu0
        %2473 = vmatprep.mubr.f32.mxu0 0.0
        %2474 = vmatmul.mubr.f32.gmra.mrb[0].mxu0 %v2274
        %v2475 = vpop.f32.mrb[0].mxu0
        %v2476 = vadd.f32 0.0, %v2475
        %v2477 = vpop.f32.mrb[0].mxu0
        %2478 = vmatprep.mubr.f32.mxu0 0.0
        %2479 = vmatmul.mubr.f32.gmra.mrb[0].mxu0 %v2277
        %v2480 = vpop.f32.mrb[0].mxu0
        %v2481 = vadd.f32 0.0, %v2480
        %v2482 = vpop.f32.mrb[0].mxu0
        %2483 = vmatprep.mubr.f32.mxu0 0.0
        %2484 = vmatmul.mubr.f32.gmra.mrb[0].mxu0 %v2280
        %v2485 = vpop.f32.mrb[0].mxu0
        %v2486 = vadd.f32 0.0, %v2485
        %v2487 = vpop.f32.mrb[0].mxu0
        %2488 = vmatprep.mubr.f32.mxu0 0.0
        %2489 = vmatmul.mubr.f32.gmra.mrb[0].mxu0 %v2283
        %v2490 = vpop.f32.mrb[0].mxu0
        %v2491 = vadd.f32 0.0, %v2490
        %v2492 = vpop.f32.mrb[0].mxu0
        %2493 = vmatprep.mubr.f32.mxu0 0.0
        %2494 = vmatmul.mubr.f32.gmra.mrb[0].mxu0 %v2286
        %v2495 = vpop.f32.mrb[0].mxu0
        %v2496 = vadd.f32 0.0, %v2495
        %v2497 = vpop.f32.mrb[0].mxu0
        %2498 = vmatprep.mubr.f32.mxu0 0.0
        %2499 = vmatmul.mubr.f32.gmra.mrb[0].mxu0 %v2289
        %v2500 = vpop.f32.mrb[0].mxu0
        %v2501 = vadd.f32 0.0, %v2500
        %v2502 = vpop.f32.mrb[0].mxu0
        %2503 = vmatprep.mubr.f32.mxu0 0.0
        %2504 = vmatmul.mubr.f32.gmra.mrb[0].mxu0 %v2292
        %v2505 = vpop.f32.mrb[0].mxu0
        %v2506 = vadd.f32 0.0, %v2505
        %v2507 = vpop.f32.mrb[0].mxu0
        %2508 = vmatprep.mubr.f32.mxu0 0.0
        %2509 = vmatmul.mubr.f32.gmra.mrb[0].mxu0 %v2295
        %v2510 = vpop.f32.mrb[0].mxu0
        %v2511 = vadd.f32 0.0, %v2510
        %v2512 = vpop.f32.mrb[0].mxu0
        %2513 = vmatprep.mubr.f32.mxu0 0.0
        %2514 = vmatmul.mubr.f32.gmra.mrb[0].mxu0 %v2298
        %v2515 = vpop.f32.mrb[0].mxu0
        %v2516 = vadd.f32 0.0, %v2515
        %v2517 = vpop.f32.mrb[0].mxu0
        %2518 = vmatprep.mubr.f32.mxu0 0.0
        %2519 = vmatmul.mubr.f32.gmra.mrb[0].mxu0 %v2301
        %v2520 = vpop.f32.mrb[0].mxu0
        %v2521 = vadd.f32 0.0, %v2520
        %v2522 = vpop.f32.mrb[0].mxu0
        %2523 = vmatprep.mubr.f32.mxu0 0.0
        %2524 = vmatmul.mubr.f32.gmra.mrb[0].mxu0 %v2304
        %v2525 = vpop.f32.mrb[0].mxu0
        %v2526 = vadd.f32 0.0, %v2525
        %v2527 = vpop.f32.mrb[0].mxu0
        %2528 = vmatprep.mubr.f32.mxu0 0.0
        %2529 = vmatmul.mubr.f32.gmra.mrb[0].mxu0 %v2307
        %v2530 = vpop.f32.mrb[0].mxu0
        %v2531 = vadd.f32 0.0, %v2530
        %v2532 = vpop.f32.mrb[0].mxu0
        %2533 = vmatprep.mubr.f32.mxu0 0.0
        %2534 = vmatmul.mubr.f32.gmra.mrb[0].mxu0 %v2310
        %v2535 = vpop.f32.mrb[0].mxu0
        %v2536 = vadd.f32 0.0, %v2535
        %v2537 = vpop.f32.mrb[0].mxu0
        %2538 = vmatprep.mubr.f32.mxu0 0.0
        %2539 = vmatmul.mubr.f32.gmra.mrb[0].mxu0 %v2313
        %v2540 = vpop.f32.mrb[0].mxu0
        %v2541 = vadd.f32 0.0, %v2540
        %v2542 = vpop.f32.mrb[0].mxu0
        %2543 = vmatprep.mubr.f32.mxu0 0.0
        %2544 = vmatmul.mubr.f32.gmra.mrb[0].mxu0 %v2316
        %v2545 = vpop.f32.mrb[0].mxu0
        %v2546 = vadd.f32 0.0, %v2545
        %v2547 = vpop.f32.mrb[0].mxu0
        %2548 = vmatprep.mubr.f32.mxu0 0.0
        %2549 = vmatmul.mubr.f32.gmra.mrb[0].mxu0 %v2319
        %v2550 = vpop.f32.mrb[0].mxu0
        %v2551 = vadd.f32 0.0, %v2550
        %v2552 = vpop.f32.mrb[0].mxu0
        %2553 = vmatprep.mubr.f32.mxu0 0.0
        %2554 = vmatmul.mubr.f32.gmra.mrb[0].mxu0 %v2322
        %v2555 = vpop.f32.mrb[0].mxu0
        %v2556 = vadd.f32 0.0, %v2555
        %v2557 = vpop.f32.mrb[0].mxu0
        %2558 = vmatprep.mubr.f32.mxu0 0.0
        %2559 = vmatmul.mubr.f32.gmra.mrb[0].mxu0 %v2325
        %v2560 = vpop.f32.mrb[0].mxu0
        %v2561 = vadd.f32 0.0, %v2560
        %v2562 = vpop.f32.mrb[0].mxu0
        %2563 = vmatprep.mubr.f32.mxu0 0.0
        %2564 = vmatmul.mubr.f32.gmra.mrb[0].mxu0 %v2328
        %v2565 = vpop.f32.mrb[0].mxu0
        %v2566 = vadd.f32 0.0, %v2565
        %v2567 = vpop.f32.mrb[0].mxu0
        %2568 = vmatprep.mubr.f32.mxu0 0.0
        %2569 = vmatmul.mubr.f32.gmra.mrb[0].mxu0 %v2331
        %v2570 = vpop.f32.mrb[0].mxu0
        %v2571 = vadd.f32 0.0, %v2570
        %v2572 = vpop.f32.mrb[0].mxu0
        %2573 = vmatprep.mubr.f32.mxu0 0.0
        %2574 = vmatmul.mubr.f32.gmra.mrb[0].mxu0 %v2334
        %v2575 = vpop.f32.mrb[0].mxu0
        %v2576 = vadd.f32 0.0, %v2575
        %v2577 = vpop.f32.mrb[0].mxu0
        %2578 = vmatprep.mubr.f32.mxu0 0.0
        %2579 = vmatmul.mubr.f32.gmra.mrb[0].mxu0 %v2337
        %v2580 = vpop.f32.mrb[0].mxu0
        %v2581 = vadd.f32 0.0, %v2580
        %v2582 = vpop.f32.mrb[0].mxu0
        %2583 = vdwg.mxu0
        %v2584 = vadd.f32 %v2157, %v2406
        %v2585 = vadd.f32 %v2158, %v2411
        %v2586 = vadd.f32 %v2159, %v2416
        %v2587 = vadd.f32 %v2160, %v2421
        %v2588 = vadd.f32 %v2161, %v2426
        %v2589 = vadd.f32 %v2162, %v2431
        %v2590 = vadd.f32 %v2163, %v2436
        %v2591 = vadd.f32 %v2164, %v2441
        %v2592 = vadd.f32 %v2165, %v2446
        %v2593 = vadd.f32 %v2166, %v2451
        %v2594 = vadd.f32 %v2167, %v2456
        %v2595 = vadd.f32 %v2168, %v2461
        %v2596 = vadd.f32 %v2169, %v2466
        %v2597 = vadd.f32 %v2170, %v2471
        %v2598 = vadd.f32 %v2171, %v2476
        %v2599 = vadd.f32 %v2172, %v2481
        %v2600 = vadd.f32 %v2173, %v2486
        %v2601 = vadd.f32 %v2174, %v2491
        %v2602 = vadd.f32 %v2175, %v2496
        %v2603 = vadd.f32 %v2176, %v2501
        %v2604 = vadd.f32 %v2177, %v2506
        %v2605 = vadd.f32 %v2178, %v2511
        %v2606 = vadd.f32 %v2179, %v2516
        %v2607 = vadd.f32 %v2180, %v2521
        %v2608 = vadd.f32 %v2181, %v2526
        %v2609 = vadd.f32 %v2182, %v2531
        %v2610 = vadd.f32 %v2183, %v2536
        %v2611 = vadd.f32 %v2184, %v2541
        %v2612 = vadd.f32 %v2185, %v2546
        %v2613 = vadd.f32 %v2186, %v2551
        %v2614 = vadd.f32 %v2187, %v2556
        %v2615 = vadd.f32 %v2188, %v2561
        %v2616 = vadd.f32 %v2189, %v2566
        %v2617 = vadd.f32 %v2190, %v2571
        %v2618 = vadd.f32 %v2191, %v2576
        %v2619 = vadd.f32 %v2192, %v2581
        %v2620 = vld [vmem:[%s291 + $0x13] sm:$0xff]
        %v2621 = vld [vmem:[%s291 + $0x1b] sm:$0xff]
        %v2622 = vld [vmem:[%s291 + $0x23] sm:$0xff]
        %v2623 = vld [vmem:[%s291 + $0x2b] sm:$0xff]
        %v2624 = vld [vmem:[%s291 + $0x33] sm:$0xff]
        %v2625 = vld [vmem:[%s291 + $0x3b] sm:$0xff]
        %v2626 = vld [vmem:[%s291 + $0x43] sm:$0xff]
        %v2627 = vld [vmem:[%s291 + $0x4b] sm:$0xff]
        %v2628 = vld [vmem:[%s291 + $0x53] sm:$0xff]
        %v2629 = vld [vmem:[%s291 + $0x5b] sm:$0xff]
        %v2630 = vld [vmem:[%s291 + $0x63] sm:$0xff]
        %v2631 = vld [vmem:[%s291 + $0x6b] sm:$0xff]
        %v2632 = vld [vmem:[%s291 + $0x73] sm:$0xff]
        %v2633 = vld [vmem:[%s291 + $0x7b] sm:$0xff]
        %v2634 = vld [vmem:[%s291 + $0x83] sm:$0xff]
        %v2635 = vld [vmem:[%s291 + $0x8b] sm:$0xff]
        %v2636 = vld [vmem:[%s291 + $0x93] sm:$0xff]
        %v2637 = vld [vmem:[%s291 + $0x9b] sm:$0xff]
        %v2638 = vld [vmem:[%s291 + $0xa3] sm:$0xff]
        %v2639 = vld [vmem:[%s291 + $0xab] sm:$0xff]
        %v2640 = vld [vmem:[%s291 + $0xb3] sm:$0xff]
        %v2641 = vld [vmem:[%s291 + $0xbb] sm:$0xff]
        %v2642 = vld [vmem:[%s291 + $0xc3] sm:$0xff]
        %v2643 = vld [vmem:[%s291 + $0xcb] sm:$0xff]
        %v2644 = vld [vmem:[%s291 + $0xd3] sm:$0xff]
        %v2645 = vld [vmem:[%s291 + $0xdb] sm:$0xff]
        %v2646 = vld [vmem:[%s291 + $0xe3] sm:$0xff]
        %v2647 = vld [vmem:[%s291 + $0xeb] sm:$0xff]
        %v2648 = vld [vmem:[%s291 + $0xf3] sm:$0xff]
        %v2649 = vld [vmem:[%s291 + $0xfb] sm:$0xff]
        %v2650 = vld [vmem:[%s291 + $0x103] sm:$0xff]
        %v2651 = vld [vmem:[%s291 + $0x10b] sm:$0xff]
        %v2652 = vld [vmem:[%s291 + $0x113] sm:$0xff]
        %v2653 = vld [vmem:[%s291 + $0x11b] sm:$0xff]
        %v2654 = vld [vmem:[%s291 + $0x123] sm:$0xff]
        %v2655 = vld [vmem:[%s291 + $0x12b] sm:$0xff]
        %s2656 = scalar_lea.vmem %s1, 32
        %v2657 = vld [vmem:[%s2656] sm:$0xff]
        %v2659 = vsel %vm1059, %v2620, 0
        %v2662 = vsel %vm1059, %v2621, 0
        %v2665 = vsel %vm1059, %v2622, 0
        %v2668 = vsel %vm1059, %v2623, 0
        %v2671 = vsel %vm1059, %v2624, 0
        %v2674 = vsel %vm1059, %v2625, 0
        %v2677 = vsel %vm1059, %v2626, 0
        %v2680 = vsel %vm1059, %v2627, 0
        %v2683 = vsel %vm1059, %v2628, 0
        %v2686 = vsel %vm1059, %v2629, 0
        %v2689 = vsel %vm1059, %v2630, 0
        %v2692 = vsel %vm1059, %v2631, 0
        %v2695 = vsel %vm1059, %v2632, 0
        %v2698 = vsel %vm1059, %v2633, 0
        %v2701 = vsel %vm1059, %v2634, 0
        %v2704 = vsel %vm1059, %v2635, 0
        %v2707 = vsel %vm1059, %v2636, 0
        %v2710 = vsel %vm1059, %v2637, 0
        %v2713 = vsel %vm1059, %v2638, 0
        %v2716 = vsel %vm1059, %v2639, 0
        %v2719 = vsel %vm1059, %v2640, 0
        %v2722 = vsel %vm1059, %v2641, 0
        %v2725 = vsel %vm1059, %v2642, 0
        %v2728 = vsel %vm1059, %v2643, 0
        %v2731 = vsel %vm1059, %v2644, 0
        %v2734 = vsel %vm1059, %v2645, 0
        %v2737 = vsel %vm1059, %v2646, 0
        %v2740 = vsel %vm1059, %v2647, 0
        %v2743 = vsel %vm1059, %v2648, 0
        %v2746 = vsel %vm1059, %v2649, 0
        %v2749 = vsel %vm1059, %v2650, 0
        %v2752 = vsel %vm1059, %v2651, 0
        %v2755 = vsel %vm1059, %v2652, 0
        %v2758 = vsel %vm1059, %v2653, 0
        %v2761 = vsel %vm1059, %v2654, 0
        %v2764 = vsel %vm1059, %v2655, 0
        %2766 = vmatprep.subr.mxu0 0.0
        %2767 = vmatpush1.msra.mxu0 %v2657
        %2768 = vmatprep.subr.mxu0 0.0
        %2769 = vmatpush1.msra.mxu0 0.0
        %2770 = vmatprep.subr.mxu0 0.0
        %2771 = vmatpush1.msra.mxu0 0.0
        %2772 = vmatprep.subr.mxu0 0.0
        %2773 = vmatpush1.msra.mxu0 0.0
        %2774 = vmatprep.subr.mxu0 0.0
        %2775 = vmatpush1.msra.mxu0 0.0
        %2776 = vmatprep.subr.mxu0 0.0
        %2777 = vmatpush1.msra.mxu0 0.0
        %2778 = vmatprep.subr.mxu0 0.0
        %2779 = vmatpush1.msra.mxu0 0.0
        %2780 = vmatprep.subr.mxu0 0.0
        %2781 = vmatpush1.msra.mxu0 0.0
        %2782 = vmatprep.subr.mxu0 0.0
        %2783 = vmatpush1.msra.mxu0 0.0
        %2784 = vmatprep.subr.mxu0 0.0
        %2785 = vmatpush1.msra.mxu0 0.0
        %2786 = vmatprep.subr.mxu0 0.0
        %2787 = vmatpush1.msra.mxu0 0.0
        %2788 = vmatprep.subr.mxu0 0.0
        %2789 = vmatpush1.msra.mxu0 0.0
        %2790 = vmatprep.subr.mxu0 0.0
        %2791 = vmatpush1.msra.mxu0 0.0
        %2792 = vmatprep.subr.mxu0 0.0
        %2793 = vmatpush1.msra.mxu0 0.0
        %2794 = vmatprep.subr.mxu0 0.0
        %2795 = vmatpush1.msra.mxu0 0.0
        %2796 = vmatprep.subr.mxu0 0.0
        %2797 = vmatpush1.msra.mxu0 0.0
        %2798 = vmatprep.subr.mxu0 0.0
        %2799 = vmatpush1.msra.mxu0 0.0
        %2800 = vmatprep.subr.mxu0 0.0
        %2801 = vmatpush1.msra.mxu0 0.0
        %2802 = vmatprep.subr.mxu0 0.0
        %2803 = vmatpush1.msra.mxu0 0.0
        %2804 = vmatprep.subr.mxu0 0.0
        %2805 = vmatpush1.msra.mxu0 0.0
        %2806 = vmatprep.subr.mxu0 0.0
        %2807 = vmatpush1.msra.mxu0 0.0
        %2808 = vmatprep.subr.mxu0 0.0
        %2809 = vmatpush1.msra.mxu0 0.0
        %2810 = vmatprep.subr.mxu0 0.0
        %2811 = vmatpush1.msra.mxu0 0.0
        %2812 = vmatprep.subr.mxu0 0.0
        %2813 = vmatpush1.msra.mxu0 0.0
        %2814 = vmatprep.subr.mxu0 0.0
        %2815 = vmatpush1.msra.mxu0 0.0
        %2816 = vmatprep.subr.mxu0 0.0
        %2817 = vmatpush1.msra.mxu0 0.0
        %2818 = vmatprep.subr.mxu0 0.0
        %2819 = vmatpush1.msra.mxu0 0.0
        %2820 = vmatprep.subr.mxu0 0.0
        %2821 = vmatpush1.msra.mxu0 0.0
        %2822 = vmatprep.subr.mxu0 0.0
        %2823 = vmatpush1.msra.mxu0 0.0
        %2824 = vmatprep.subr.mxu0 0.0
        %2825 = vmatpush1.msra.mxu0 0.0
        %2826 = vmatprep.subr.mxu0 0.0
        %2827 = vmatpush1.msra.mxu0 0.0
        %2828 = vmatprep.subr.mxu0 0.0
        %2829 = vmatpush1.msra.mxu0 0.0
        %2830 = vmatprep.mubr.f32.mxu0 0.0
        %2831 = vmatmul.mubr.f32.gmra.mrb[0].mxu0 %v2659
        %v2832 = vpop.f32.mrb[0].mxu0
        %v2833 = vadd.f32 0.0, %v2832
        %v2834 = vpop.f32.mrb[0].mxu0
        %2835 = vmatprep.mubr.f32.mxu0 0.0
        %2836 = vmatmul.mubr.f32.gmra.mrb[0].mxu0 %v2662
        %v2837 = vpop.f32.mrb[0].mxu0
        %v2838 = vadd.f32 0.0, %v2837
        %v2839 = vpop.f32.mrb[0].mxu0
        %2840 = vmatprep.mubr.f32.mxu0 0.0
        %2841 = vmatmul.mubr.f32.gmra.mrb[0].mxu0 %v2665
        %v2842 = vpop.f32.mrb[0].mxu0
        %v2843 = vadd.f32 0.0, %v2842
        %v2844 = vpop.f32.mrb[0].mxu0
        %2845 = vmatprep.mubr.f32.mxu0 0.0
        %2846 = vmatmul.mubr.f32.gmra.mrb[0].mxu0 %v2668
        %v2847 = vpop.f32.mrb[0].mxu0
        %v2848 = vadd.f32 0.0, %v2847
        %v2849 = vpop.f32.mrb[0].mxu0
        %2850 = vmatprep.mubr.f32.mxu0 0.0
        %2851 = vmatmul.mubr.f32.gmra.mrb[0].mxu0 %v2671
        %v2852 = vpop.f32.mrb[0].mxu0
        %v2853 = vadd.f32 0.0, %v2852
        %v2854 = vpop.f32.mrb[0].mxu0
        %2855 = vmatprep.mubr.f32.mxu0 0.0
        %2856 = vmatmul.mubr.f32.gmra.mrb[0].mxu0 %v2674
        %v2857 = vpop.f32.mrb[0].mxu0
        %v2858 = vadd.f32 0.0, %v2857
        %v2859 = vpop.f32.mrb[0].mxu0
        %2860 = vmatprep.mubr.f32.mxu0 0.0
        %2861 = vmatmul.mubr.f32.gmra.mrb[0].mxu0 %v2677
        %v2862 = vpop.f32.mrb[0].mxu0
        %v2863 = vadd.f32 0.0, %v2862
        %v2864 = vpop.f32.mrb[0].mxu0
        %2865 = vmatprep.mubr.f32.mxu0 0.0
        %2866 = vmatmul.mubr.f32.gmra.mrb[0].mxu0 %v2680
        %v2867 = vpop.f32.mrb[0].mxu0
        %v2868 = vadd.f32 0.0, %v2867
        %v2869 = vpop.f32.mrb[0].mxu0
        %2870 = vmatprep.mubr.f32.mxu0 0.0
        %2871 = vmatmul.mubr.f32.gmra.mrb[0].mxu0 %v2683
        %v2872 = vpop.f32.mrb[0].mxu0
        %v2873 = vadd.f32 0.0, %v2872
        %v2874 = vpop.f32.mrb[0].mxu0
        %2875 = vmatprep.mubr.f32.mxu0 0.0
        %2876 = vmatmul.mubr.f32.gmra.mrb[0].mxu0 %v2686
        %v2877 = vpop.f32.mrb[0].mxu0
        %v2878 = vadd.f32 0.0, %v2877
        %v2879 = vpop.f32.mrb[0].mxu0
        %2880 = vmatprep.mubr.f32.mxu0 0.0
        %2881 = vmatmul.mubr.f32.gmra.mrb[0].mxu0 %v2689
        %v2882 = vpop.f32.mrb[0].mxu0
        %v2883 = vadd.f32 0.0, %v2882
        %v2884 = vpop.f32.mrb[0].mxu0
        %2885 = vmatprep.mubr.f32.mxu0 0.0
        %2886 = vmatmul.mubr.f32.gmra.mrb[0].mxu0 %v2692
        %v2887 = vpop.f32.mrb[0].mxu0
        %v2888 = vadd.f32 0.0, %v2887
        %v2889 = vpop.f32.mrb[0].mxu0
        %2890 = vmatprep.mubr.f32.mxu0 0.0
        %2891 = vmatmul.mubr.f32.gmra.mrb[0].mxu0 %v2695
        %v2892 = vpop.f32.mrb[0].mxu0
        %v2893 = vadd.f32 0.0, %v2892
        %v2894 = vpop.f32.mrb[0].mxu0
        %2895 = vmatprep.mubr.f32.mxu0 0.0
        %2896 = vmatmul.mubr.f32.gmra.mrb[0].mxu0 %v2698
        %v2897 = vpop.f32.mrb[0].mxu0
        %v2898 = vadd.f32 0.0, %v2897
        %v2899 = vpop.f32.mrb[0].mxu0
        %2900 = vmatprep.mubr.f32.mxu0 0.0
        %2901 = vmatmul.mubr.f32.gmra.mrb[0].mxu0 %v2701
        %v2902 = vpop.f32.mrb[0].mxu0
        %v2903 = vadd.f32 0.0, %v2902
        %v2904 = vpop.f32.mrb[0].mxu0
        %2905 = vmatprep.mubr.f32.mxu0 0.0
        %2906 = vmatmul.mubr.f32.gmra.mrb[0].mxu0 %v2704
        %v2907 = vpop.f32.mrb[0].mxu0
        %v2908 = vadd.f32 0.0, %v2907
        %v2909 = vpop.f32.mrb[0].mxu0
        %2910 = vmatprep.mubr.f32.mxu0 0.0
        %2911 = vmatmul.mubr.f32.gmra.mrb[0].mxu0 %v2707
        %v2912 = vpop.f32.mrb[0].mxu0
        %v2913 = vadd.f32 0.0, %v2912
        %v2914 = vpop.f32.mrb[0].mxu0
        %2915 = vmatprep.mubr.f32.mxu0 0.0
        %2916 = vmatmul.mubr.f32.gmra.mrb[0].mxu0 %v2710
        %v2917 = vpop.f32.mrb[0].mxu0
        %v2918 = vadd.f32 0.0, %v2917
        %v2919 = vpop.f32.mrb[0].mxu0
        %2920 = vmatprep.mubr.f32.mxu0 0.0
        %2921 = vmatmul.mubr.f32.gmra.mrb[0].mxu0 %v2713
        %v2922 = vpop.f32.mrb[0].mxu0
        %v2923 = vadd.f32 0.0, %v2922
        %v2924 = vpop.f32.mrb[0].mxu0
        %2925 = vmatprep.mubr.f32.mxu0 0.0
        %2926 = vmatmul.mubr.f32.gmra.mrb[0].mxu0 %v2716
        %v2927 = vpop.f32.mrb[0].mxu0
        %v2928 = vadd.f32 0.0, %v2927
        %v2929 = vpop.f32.mrb[0].mxu0
        %2930 = vmatprep.mubr.f32.mxu0 0.0
        %2931 = vmatmul.mubr.f32.gmra.mrb[0].mxu0 %v2719
        %v2932 = vpop.f32.mrb[0].mxu0
        %v2933 = vadd.f32 0.0, %v2932
        %v2934 = vpop.f32.mrb[0].mxu0
        %2935 = vmatprep.mubr.f32.mxu0 0.0
        %2936 = vmatmul.mubr.f32.gmra.mrb[0].mxu0 %v2722
        %v2937 = vpop.f32.mrb[0].mxu0
        %v2938 = vadd.f32 0.0, %v2937
        %v2939 = vpop.f32.mrb[0].mxu0
        %2940 = vmatprep.mubr.f32.mxu0 0.0
        %2941 = vmatmul.mubr.f32.gmra.mrb[0].mxu0 %v2725
        %v2942 = vpop.f32.mrb[0].mxu0
        %v2943 = vadd.f32 0.0, %v2942
        %v2944 = vpop.f32.mrb[0].mxu0
        %2945 = vmatprep.mubr.f32.mxu0 0.0
        %2946 = vmatmul.mubr.f32.gmra.mrb[0].mxu0 %v2728
        %v2947 = vpop.f32.mrb[0].mxu0
        %v2948 = vadd.f32 0.0, %v2947
        %v2949 = vpop.f32.mrb[0].mxu0
        %2950 = vmatprep.mubr.f32.mxu0 0.0
        %2951 = vmatmul.mubr.f32.gmra.mrb[0].mxu0 %v2731
        %v2952 = vpop.f32.mrb[0].mxu0
        %v2953 = vadd.f32 0.0, %v2952
        %v2954 = vpop.f32.mrb[0].mxu0
        %2955 = vmatprep.mubr.f32.mxu0 0.0
        %2956 = vmatmul.mubr.f32.gmra.mrb[0].mxu0 %v2734
        %v2957 = vpop.f32.mrb[0].mxu0
        %v2958 = vadd.f32 0.0, %v2957
        %v2959 = vpop.f32.mrb[0].mxu0
        %2960 = vmatprep.mubr.f32.mxu0 0.0
        %2961 = vmatmul.mubr.f32.gmra.mrb[0].mxu0 %v2737
        %v2962 = vpop.f32.mrb[0].mxu0
        %v2963 = vadd.f32 0.0, %v2962
        %v2964 = vpop.f32.mrb[0].mxu0
        %2965 = vmatprep.mubr.f32.mxu0 0.0
        %2966 = vmatmul.mubr.f32.gmra.mrb[0].mxu0 %v2740
        %v2967 = vpop.f32.mrb[0].mxu0
        %v2968 = vadd.f32 0.0, %v2967
        %v2969 = vpop.f32.mrb[0].mxu0
        %2970 = vmatprep.mubr.f32.mxu0 0.0
        %2971 = vmatmul.mubr.f32.gmra.mrb[0].mxu0 %v2743
        %v2972 = vpop.f32.mrb[0].mxu0
        %v2973 = vadd.f32 0.0, %v2972
        %v2974 = vpop.f32.mrb[0].mxu0
        %2975 = vmatprep.mubr.f32.mxu0 0.0
        %2976 = vmatmul.mubr.f32.gmra.mrb[0].mxu0 %v2746
        %v2977 = vpop.f32.mrb[0].mxu0
        %v2978 = vadd.f32 0.0, %v2977
        %v2979 = vpop.f32.mrb[0].mxu0
        %2980 = vmatprep.mubr.f32.mxu0 0.0
        %2981 = vmatmul.mubr.f32.gmra.mrb[0].mxu0 %v2749
        %v2982 = vpop.f32.mrb[0].mxu0
        %v2983 = vadd.f32 0.0, %v2982
        %v2984 = vpop.f32.mrb[0].mxu0
        %2985 = vmatprep.mubr.f32.mxu0 0.0
        %2986 = vmatmul.mubr.f32.gmra.mrb[0].mxu0 %v2752
        %v2987 = vpop.f32.mrb[0].mxu0
        %v2988 = vadd.f32 0.0, %v2987
        %v2989 = vpop.f32.mrb[0].mxu0
        %2990 = vmatprep.mubr.f32.mxu0 0.0
        %2991 = vmatmul.mubr.f32.gmra.mrb[0].mxu0 %v2755
        %v2992 = vpop.f32.mrb[0].mxu0
        %v2993 = vadd.f32 0.0, %v2992
        %v2994 = vpop.f32.mrb[0].mxu0
        %2995 = vmatprep.mubr.f32.mxu0 0.0
        %2996 = vmatmul.mubr.f32.gmra.mrb[0].mxu0 %v2758
        %v2997 = vpop.f32.mrb[0].mxu0
        %v2998 = vadd.f32 0.0, %v2997
        %v2999 = vpop.f32.mrb[0].mxu0
        %3000 = vmatprep.mubr.f32.mxu0 0.0
        %3001 = vmatmul.mubr.f32.gmra.mrb[0].mxu0 %v2761
        %v3002 = vpop.f32.mrb[0].mxu0
        %v3003 = vadd.f32 0.0, %v3002
        %v3004 = vpop.f32.mrb[0].mxu0
        %3005 = vmatprep.mubr.f32.mxu0 0.0
        %3006 = vmatmul.mubr.f32.gmra.mrb[0].mxu0 %v2764
        %v3007 = vpop.f32.mrb[0].mxu0
        %v3008 = vadd.f32 0.0, %v3007
        %v3009 = vpop.f32.mrb[0].mxu0
        %3010 = vdwg.mxu0
        %v3011 = vadd.f32 %v2584, %v2833
        %v3012 = vadd.f32 %v2585, %v2838
        %v3013 = vadd.f32 %v2586, %v2843
        %v3014 = vadd.f32 %v2587, %v2848
        %v3015 = vadd.f32 %v2588, %v2853
        %v3016 = vadd.f32 %v2589, %v2858
        %v3017 = vadd.f32 %v2590, %v2863
        %v3018 = vadd.f32 %v2591, %v2868
        %v3019 = vadd.f32 %v2592, %v2873
        %v3020 = vadd.f32 %v2593, %v2878
        %v3021 = vadd.f32 %v2594, %v2883
        %v3022 = vadd.f32 %v2595, %v2888
        %v3023 = vadd.f32 %v2596, %v2893
        %v3024 = vadd.f32 %v2597, %v2898
        %v3025 = vadd.f32 %v2598, %v2903
        %v3026 = vadd.f32 %v2599, %v2908
        %v3027 = vadd.f32 %v2600, %v2913
        %v3028 = vadd.f32 %v2601, %v2918
        %v3029 = vadd.f32 %v2602, %v2923
        %v3030 = vadd.f32 %v2603, %v2928
        %v3031 = vadd.f32 %v2604, %v2933
        %v3032 = vadd.f32 %v2605, %v2938
        %v3033 = vadd.f32 %v2606, %v2943
        %v3034 = vadd.f32 %v2607, %v2948
        %v3035 = vadd.f32 %v2608, %v2953
        %v3036 = vadd.f32 %v2609, %v2958
        %v3037 = vadd.f32 %v2610, %v2963
        %v3038 = vadd.f32 %v2611, %v2968
        %v3039 = vadd.f32 %v2612, %v2973
        %v3040 = vadd.f32 %v2613, %v2978
        %v3041 = vadd.f32 %v2614, %v2983
        %v3042 = vadd.f32 %v2615, %v2988
        %v3043 = vadd.f32 %v2616, %v2993
        %v3044 = vadd.f32 %v2617, %v2998
        %v3045 = vadd.f32 %v2618, %v3003
        %v3046 = vadd.f32 %v2619, %v3008
        %v3047 = vld [vmem:[%s291 + $0x14] sm:$0xff]
        %v3048 = vld [vmem:[%s291 + $0x1c] sm:$0xff]
        %v3049 = vld [vmem:[%s291 + $0x24] sm:$0xff]
        %v3050 = vld [vmem:[%s291 + $0x2c] sm:$0xff]
        %v3051 = vld [vmem:[%s291 + $0x34] sm:$0xff]
        %v3052 = vld [vmem:[%s291 + $0x3c] sm:$0xff]
        %v3053 = vld [vmem:[%s291 + $0x44] sm:$0xff]
        %v3054 = vld [vmem:[%s291 + $0x4c] sm:$0xff]
        %v3055 = vld [vmem:[%s291 + $0x54] sm:$0xff]
        %v3056 = vld [vmem:[%s291 + $0x5c] sm:$0xff]
        %v3057 = vld [vmem:[%s291 + $0x64] sm:$0xff]
        %v3058 = vld [vmem:[%s291 + $0x6c] sm:$0xff]
        %v3059 = vld [vmem:[%s291 + $0x74] sm:$0xff]
        %v3060 = vld [vmem:[%s291 + $0x7c] sm:$0xff]
        %v3061 = vld [vmem:[%s291 + $0x84] sm:$0xff]
        %v3062 = vld [vmem:[%s291 + $0x8c] sm:$0xff]
        %v3063 = vld [vmem:[%s291 + $0x94] sm:$0xff]
        %v3064 = vld [vmem:[%s291 + $0x9c] sm:$0xff]
        %v3065 = vld [vmem:[%s291 + $0xa4] sm:$0xff]
        %v3066 = vld [vmem:[%s291 + $0xac] sm:$0xff]
        %v3067 = vld [vmem:[%s291 + $0xb4] sm:$0xff]
        %v3068 = vld [vmem:[%s291 + $0xbc] sm:$0xff]
        %v3069 = vld [vmem:[%s291 + $0xc4] sm:$0xff]
        %v3070 = vld [vmem:[%s291 + $0xcc] sm:$0xff]
        %v3071 = vld [vmem:[%s291 + $0xd4] sm:$0xff]
        %v3072 = vld [vmem:[%s291 + $0xdc] sm:$0xff]
        %v3073 = vld [vmem:[%s291 + $0xe4] sm:$0xff]
        %v3074 = vld [vmem:[%s291 + $0xec] sm:$0xff]
        %v3075 = vld [vmem:[%s291 + $0xf4] sm:$0xff]
        %v3076 = vld [vmem:[%s291 + $0xfc] sm:$0xff]
        %v3077 = vld [vmem:[%s291 + $0x104] sm:$0xff]
        %v3078 = vld [vmem:[%s291 + $0x10c] sm:$0xff]
        %v3079 = vld [vmem:[%s291 + $0x114] sm:$0xff]
        %v3080 = vld [vmem:[%s291 + $0x11c] sm:$0xff]
        %v3081 = vld [vmem:[%s291 + $0x124] sm:$0xff]
        %v3082 = vld [vmem:[%s291 + $0x12c] sm:$0xff]
        %s3083 = scalar_lea.vmem %s1, 40
        %v3084 = vld [vmem:[%s3083] sm:$0xff]
        %v3086 = vsel %vm1059, %v3047, 0
        %v3089 = vsel %vm1059, %v3048, 0
        %v3092 = vsel %vm1059, %v3049, 0
        %v3095 = vsel %vm1059, %v3050, 0
        %v3098 = vsel %vm1059, %v3051, 0
        %v3101 = vsel %vm1059, %v3052, 0
        %v3104 = vsel %vm1059, %v3053, 0
        %v3107 = vsel %vm1059, %v3054, 0
        %v3110 = vsel %vm1059, %v3055, 0
        %v3113 = vsel %vm1059, %v3056, 0
        %v3116 = vsel %vm1059, %v3057, 0
        %v3119 = vsel %vm1059, %v3058, 0
        %v3122 = vsel %vm1059, %v3059, 0
        %v3125 = vsel %vm1059, %v3060, 0
        %v3128 = vsel %vm1059, %v3061, 0
        %v3131 = vsel %vm1059, %v3062, 0
        %v3134 = vsel %vm1059, %v3063, 0
        %v3137 = vsel %vm1059, %v3064, 0
        %v3140 = vsel %vm1059, %v3065, 0
        %v3143 = vsel %vm1059, %v3066, 0
        %v3146 = vsel %vm1059, %v3067, 0
        %v3149 = vsel %vm1059, %v3068, 0
        %v3152 = vsel %vm1059, %v3069, 0
        %v3155 = vsel %vm1059, %v3070, 0
        %v3158 = vsel %vm1059, %v3071, 0
        %v3161 = vsel %vm1059, %v3072, 0
        %v3164 = vsel %vm1059, %v3073, 0
        %v3167 = vsel %vm1059, %v3074, 0
        %v3170 = vsel %vm1059, %v3075, 0
        %v3173 = vsel %vm1059, %v3076, 0
        %v3176 = vsel %vm1059, %v3077, 0
        %v3179 = vsel %vm1059, %v3078, 0
        %v3182 = vsel %vm1059, %v3079, 0
        %v3185 = vsel %vm1059, %v3080, 0
        %v3188 = vsel %vm1059, %v3081, 0
        %v3191 = vsel %vm1059, %v3082, 0
        %3193 = vmatprep.subr.mxu0 0.0
        %3194 = vmatpush1.msra.mxu0 %v3084
        %3195 = vmatprep.subr.mxu0 0.0
        %3196 = vmatpush1.msra.mxu0 0.0
        %3197 = vmatprep.subr.mxu0 0.0
        %3198 = vmatpush1.msra.mxu0 0.0
        %3199 = vmatprep.subr.mxu0 0.0
        %3200 = vmatpush1.msra.mxu0 0.0
        %3201 = vmatprep.subr.mxu0 0.0
        %3202 = vmatpush1.msra.mxu0 0.0
        %3203 = vmatprep.subr.mxu0 0.0
        %3204 = vmatpush1.msra.mxu0 0.0
        %3205 = vmatprep.subr.mxu0 0.0
        %3206 = vmatpush1.msra.mxu0 0.0
        %3207 = vmatprep.subr.mxu0 0.0
        %3208 = vmatpush1.msra.mxu0 0.0
        %3209 = vmatprep.subr.mxu0 0.0
        %3210 = vmatpush1.msra.mxu0 0.0
        %3211 = vmatprep.subr.mxu0 0.0
        %3212 = vmatpush1.msra.mxu0 0.0
        %3213 = vmatprep.subr.mxu0 0.0
        %3214 = vmatpush1.msra.mxu0 0.0
        %3215 = vmatprep.subr.mxu0 0.0
        %3216 = vmatpush1.msra.mxu0 0.0
        %3217 = vmatprep.subr.mxu0 0.0
        %3218 = vmatpush1.msra.mxu0 0.0
        %3219 = vmatprep.subr.mxu0 0.0
        %3220 = vmatpush1.msra.mxu0 0.0
        %3221 = vmatprep.subr.mxu0 0.0
        %3222 = vmatpush1.msra.mxu0 0.0
        %3223 = vmatprep.subr.mxu0 0.0
        %3224 = vmatpush1.msra.mxu0 0.0
        %3225 = vmatprep.subr.mxu0 0.0
        %3226 = vmatpush1.msra.mxu0 0.0
        %3227 = vmatprep.subr.mxu0 0.0
        %3228 = vmatpush1.msra.mxu0 0.0
        %3229 = vmatprep.subr.mxu0 0.0
        %3230 = vmatpush1.msra.mxu0 0.0
        %3231 = vmatprep.subr.mxu0 0.0
        %3232 = vmatpush1.msra.mxu0 0.0
        %3233 = vmatprep.subr.mxu0 0.0
        %3234 = vmatpush1.msra.mxu0 0.0
        %3235 = vmatprep.subr.mxu0 0.0
        %3236 = vmatpush1.msra.mxu0 0.0
        %3237 = vmatprep.subr.mxu0 0.0
        %3238 = vmatpush1.msra.mxu0 0.0
        %3239 = vmatprep.subr.mxu0 0.0
        %3240 = vmatpush1.msra.mxu0 0.0
        %3241 = vmatprep.subr.mxu0 0.0
        %3242 = vmatpush1.msra.mxu0 0.0
        %3243 = vmatprep.subr.mxu0 0.0
        %3244 = vmatpush1.msra.mxu0 0.0
        %3245 = vmatprep.subr.mxu0 0.0
        %3246 = vmatpush1.msra.mxu0 0.0
        %3247 = vmatprep.subr.mxu0 0.0
        %3248 = vmatpush1.msra.mxu0 0.0
        %3249 = vmatprep.subr.mxu0 0.0
        %3250 = vmatpush1.msra.mxu0 0.0
        %3251 = vmatprep.subr.mxu0 0.0
        %3252 = vmatpush1.msra.mxu0 0.0
        %3253 = vmatprep.subr.mxu0 0.0
        %3254 = vmatpush1.msra.mxu0 0.0
        %3255 = vmatprep.subr.mxu0 0.0
        %3256 = vmatpush1.msra.mxu0 0.0
        %3257 = vmatprep.mubr.f32.mxu0 0.0
        %3258 = vmatmul.mubr.f32.gmra.mrb[0].mxu0 %v3086
        %v3259 = vpop.f32.mrb[0].mxu0
        %v3260 = vadd.f32 0.0, %v3259
        %v3261 = vpop.f32.mrb[0].mxu0
        %3262 = vmatprep.mubr.f32.mxu0 0.0
        %3263 = vmatmul.mubr.f32.gmra.mrb[0].mxu0 %v3089
        %v3264 = vpop.f32.mrb[0].mxu0
        %v3265 = vadd.f32 0.0, %v3264
        %v3266 = vpop.f32.mrb[0].mxu0
        %3267 = vmatprep.mubr.f32.mxu0 0.0
        %3268 = vmatmul.mubr.f32.gmra.mrb[0].mxu0 %v3092
        %v3269 = vpop.f32.mrb[0].mxu0
        %v3270 = vadd.f32 0.0, %v3269
        %v3271 = vpop.f32.mrb[0].mxu0
        %3272 = vmatprep.mubr.f32.mxu0 0.0
        %3273 = vmatmul.mubr.f32.gmra.mrb[0].mxu0 %v3095
        %v3274 = vpop.f32.mrb[0].mxu0
        %v3275 = vadd.f32 0.0, %v3274
        %v3276 = vpop.f32.mrb[0].mxu0
        %3277 = vmatprep.mubr.f32.mxu0 0.0
        %3278 = vmatmul.mubr.f32.gmra.mrb[0].mxu0 %v3098
        %v3279 = vpop.f32.mrb[0].mxu0
        %v3280 = vadd.f32 0.0, %v3279
        %v3281 = vpop.f32.mrb[0].mxu0
        %3282 = vmatprep.mubr.f32.mxu0 0.0
        %3283 = vmatmul.mubr.f32.gmra.mrb[0].mxu0 %v3101
        %v3284 = vpop.f32.mrb[0].mxu0
        %v3285 = vadd.f32 0.0, %v3284
        %v3286 = vpop.f32.mrb[0].mxu0
        %3287 = vmatprep.mubr.f32.mxu0 0.0
        %3288 = vmatmul.mubr.f32.gmra.mrb[0].mxu0 %v3104
        %v3289 = vpop.f32.mrb[0].mxu0
        %v3290 = vadd.f32 0.0, %v3289
        %v3291 = vpop.f32.mrb[0].mxu0
        %3292 = vmatprep.mubr.f32.mxu0 0.0
        %3293 = vmatmul.mubr.f32.gmra.mrb[0].mxu0 %v3107
        %v3294 = vpop.f32.mrb[0].mxu0
        %v3295 = vadd.f32 0.0, %v3294
        %v3296 = vpop.f32.mrb[0].mxu0
        %3297 = vmatprep.mubr.f32.mxu0 0.0
        %3298 = vmatmul.mubr.f32.gmra.mrb[0].mxu0 %v3110
        %v3299 = vpop.f32.mrb[0].mxu0
        %v3300 = vadd.f32 0.0, %v3299
        %v3301 = vpop.f32.mrb[0].mxu0
        %3302 = vmatprep.mubr.f32.mxu0 0.0
        %3303 = vmatmul.mubr.f32.gmra.mrb[0].mxu0 %v3113
        %v3304 = vpop.f32.mrb[0].mxu0
        %v3305 = vadd.f32 0.0, %v3304
        %v3306 = vpop.f32.mrb[0].mxu0
        %3307 = vmatprep.mubr.f32.mxu0 0.0
        %3308 = vmatmul.mubr.f32.gmra.mrb[0].mxu0 %v3116
        %v3309 = vpop.f32.mrb[0].mxu0
        %v3310 = vadd.f32 0.0, %v3309
        %v3311 = vpop.f32.mrb[0].mxu0
        %3312 = vmatprep.mubr.f32.mxu0 0.0
        %3313 = vmatmul.mubr.f32.gmra.mrb[0].mxu0 %v3119
        %v3314 = vpop.f32.mrb[0].mxu0
        %v3315 = vadd.f32 0.0, %v3314
        %v3316 = vpop.f32.mrb[0].mxu0
        %3317 = vmatprep.mubr.f32.mxu0 0.0
        %3318 = vmatmul.mubr.f32.gmra.mrb[0].mxu0 %v3122
        %v3319 = vpop.f32.mrb[0].mxu0
        %v3320 = vadd.f32 0.0, %v3319
        %v3321 = vpop.f32.mrb[0].mxu0
        %3322 = vmatprep.mubr.f32.mxu0 0.0
        %3323 = vmatmul.mubr.f32.gmra.mrb[0].mxu0 %v3125
        %v3324 = vpop.f32.mrb[0].mxu0
        %v3325 = vadd.f32 0.0, %v3324
        %v3326 = vpop.f32.mrb[0].mxu0
        %3327 = vmatprep.mubr.f32.mxu0 0.0
        %3328 = vmatmul.mubr.f32.gmra.mrb[0].mxu0 %v3128
        %v3329 = vpop.f32.mrb[0].mxu0
        %v3330 = vadd.f32 0.0, %v3329
        %v3331 = vpop.f32.mrb[0].mxu0
        %3332 = vmatprep.mubr.f32.mxu0 0.0
        %3333 = vmatmul.mubr.f32.gmra.mrb[0].mxu0 %v3131
        %v3334 = vpop.f32.mrb[0].mxu0
        %v3335 = vadd.f32 0.0, %v3334
        %v3336 = vpop.f32.mrb[0].mxu0
        %3337 = vmatprep.mubr.f32.mxu0 0.0
        %3338 = vmatmul.mubr.f32.gmra.mrb[0].mxu0 %v3134
        %v3339 = vpop.f32.mrb[0].mxu0
        %v3340 = vadd.f32 0.0, %v3339
        %v3341 = vpop.f32.mrb[0].mxu0
        %3342 = vmatprep.mubr.f32.mxu0 0.0
        %3343 = vmatmul.mubr.f32.gmra.mrb[0].mxu0 %v3137
        %v3344 = vpop.f32.mrb[0].mxu0
        %v3345 = vadd.f32 0.0, %v3344
        %v3346 = vpop.f32.mrb[0].mxu0
        %3347 = vmatprep.mubr.f32.mxu0 0.0
        %3348 = vmatmul.mubr.f32.gmra.mrb[0].mxu0 %v3140
        %v3349 = vpop.f32.mrb[0].mxu0
        %v3350 = vadd.f32 0.0, %v3349
        %v3351 = vpop.f32.mrb[0].mxu0
        %3352 = vmatprep.mubr.f32.mxu0 0.0
        %3353 = vmatmul.mubr.f32.gmra.mrb[0].mxu0 %v3143
        %v3354 = vpop.f32.mrb[0].mxu0
        %v3355 = vadd.f32 0.0, %v3354
        %v3356 = vpop.f32.mrb[0].mxu0
        %3357 = vmatprep.mubr.f32.mxu0 0.0
        %3358 = vmatmul.mubr.f32.gmra.mrb[0].mxu0 %v3146
        %v3359 = vpop.f32.mrb[0].mxu0
        %v3360 = vadd.f32 0.0, %v3359
        %v3361 = vpop.f32.mrb[0].mxu0
        %3362 = vmatprep.mubr.f32.mxu0 0.0
        %3363 = vmatmul.mubr.f32.gmra.mrb[0].mxu0 %v3149
        %v3364 = vpop.f32.mrb[0].mxu0
        %v3365 = vadd.f32 0.0, %v3364
        %v3366 = vpop.f32.mrb[0].mxu0
        %3367 = vmatprep.mubr.f32.mxu0 0.0
        %3368 = vmatmul.mubr.f32.gmra.mrb[0].mxu0 %v3152
        %v3369 = vpop.f32.mrb[0].mxu0
        %v3370 = vadd.f32 0.0, %v3369
        %v3371 = vpop.f32.mrb[0].mxu0
        %3372 = vmatprep.mubr.f32.mxu0 0.0
        %3373 = vmatmul.mubr.f32.gmra.mrb[0].mxu0 %v3155
        %v3374 = vpop.f32.mrb[0].mxu0
        %v3375 = vadd.f32 0.0, %v3374
        %v3376 = vpop.f32.mrb[0].mxu0
        %3377 = vmatprep.mubr.f32.mxu0 0.0
        %3378 = vmatmul.mubr.f32.gmra.mrb[0].mxu0 %v3158
        %v3379 = vpop.f32.mrb[0].mxu0
        %v3380 = vadd.f32 0.0, %v3379
        %v3381 = vpop.f32.mrb[0].mxu0
        %3382 = vmatprep.mubr.f32.mxu0 0.0
        %3383 = vmatmul.mubr.f32.gmra.mrb[0].mxu0 %v3161
        %v3384 = vpop.f32.mrb[0].mxu0
        %v3385 = vadd.f32 0.0, %v3384
        %v3386 = vpop.f32.mrb[0].mxu0
        %3387 = vmatprep.mubr.f32.mxu0 0.0
        %3388 = vmatmul.mubr.f32.gmra.mrb[0].mxu0 %v3164
        %v3389 = vpop.f32.mrb[0].mxu0
        %v3390 = vadd.f32 0.0, %v3389
        %v3391 = vpop.f32.mrb[0].mxu0
        %3392 = vmatprep.mubr.f32.mxu0 0.0
        %3393 = vmatmul.mubr.f32.gmra.mrb[0].mxu0 %v3167
        %v3394 = vpop.f32.mrb[0].mxu0
        %v3395 = vadd.f32 0.0, %v3394
        %v3396 = vpop.f32.mrb[0].mxu0
        %3397 = vmatprep.mubr.f32.mxu0 0.0
        %3398 = vmatmul.mubr.f32.gmra.mrb[0].mxu0 %v3170
        %v3399 = vpop.f32.mrb[0].mxu0
        %v3400 = vadd.f32 0.0, %v3399
        %v3401 = vpop.f32.mrb[0].mxu0
        %3402 = vmatprep.mubr.f32.mxu0 0.0
        %3403 = vmatmul.mubr.f32.gmra.mrb[0].mxu0 %v3173
        %v3404 = vpop.f32.mrb[0].mxu0
        %v3405 = vadd.f32 0.0, %v3404
        %v3406 = vpop.f32.mrb[0].mxu0
        %3407 = vmatprep.mubr.f32.mxu0 0.0
        %3408 = vmatmul.mubr.f32.gmra.mrb[0].mxu0 %v3176
        %v3409 = vpop.f32.mrb[0].mxu0
        %v3410 = vadd.f32 0.0, %v3409
        %v3411 = vpop.f32.mrb[0].mxu0
        %3412 = vmatprep.mubr.f32.mxu0 0.0
        %3413 = vmatmul.mubr.f32.gmra.mrb[0].mxu0 %v3179
        %v3414 = vpop.f32.mrb[0].mxu0
        %v3415 = vadd.f32 0.0, %v3414
        %v3416 = vpop.f32.mrb[0].mxu0
        %3417 = vmatprep.mubr.f32.mxu0 0.0
        %3418 = vmatmul.mubr.f32.gmra.mrb[0].mxu0 %v3182
        %v3419 = vpop.f32.mrb[0].mxu0
        %v3420 = vadd.f32 0.0, %v3419
        %v3421 = vpop.f32.mrb[0].mxu0
        %3422 = vmatprep.mubr.f32.mxu0 0.0
        %3423 = vmatmul.mubr.f32.gmra.mrb[0].mxu0 %v3185
        %v3424 = vpop.f32.mrb[0].mxu0
        %v3425 = vadd.f32 0.0, %v3424
        %v3426 = vpop.f32.mrb[0].mxu0
        %3427 = vmatprep.mubr.f32.mxu0 0.0
        %3428 = vmatmul.mubr.f32.gmra.mrb[0].mxu0 %v3188
        %v3429 = vpop.f32.mrb[0].mxu0
        %v3430 = vadd.f32 0.0, %v3429
        %v3431 = vpop.f32.mrb[0].mxu0
        %3432 = vmatprep.mubr.f32.mxu0 0.0
        %3433 = vmatmul.mubr.f32.gmra.mrb[0].mxu0 %v3191
        %v3434 = vpop.f32.mrb[0].mxu0
        %v3435 = vadd.f32 0.0, %v3434
        %v3436 = vpop.f32.mrb[0].mxu0
        %3437 = vdwg.mxu0
        %v3438 = vadd.f32 %v3011, %v3260
        %v3439 = vadd.f32 %v3012, %v3265
        %v3440 = vadd.f32 %v3013, %v3270
        %v3441 = vadd.f32 %v3014, %v3275
        %v3442 = vadd.f32 %v3015, %v3280
        %v3443 = vadd.f32 %v3016, %v3285
        %v3444 = vadd.f32 %v3017, %v3290
        %v3445 = vadd.f32 %v3018, %v3295
        %v3446 = vadd.f32 %v3019, %v3300
        %v3447 = vadd.f32 %v3020, %v3305
        %v3448 = vadd.f32 %v3021, %v3310
        %v3449 = vadd.f32 %v3022, %v3315
        %v3450 = vadd.f32 %v3023, %v3320
        %v3451 = vadd.f32 %v3024, %v3325
        %v3452 = vadd.f32 %v3025, %v3330
        %v3453 = vadd.f32 %v3026, %v3335
        %v3454 = vadd.f32 %v3027, %v3340
        %v3455 = vadd.f32 %v3028, %v3345
        %v3456 = vadd.f32 %v3029, %v3350
        %v3457 = vadd.f32 %v3030, %v3355
        %v3458 = vadd.f32 %v3031, %v3360
        %v3459 = vadd.f32 %v3032, %v3365
        %v3460 = vadd.f32 %v3033, %v3370
        %v3461 = vadd.f32 %v3034, %v3375
        %v3462 = vadd.f32 %v3035, %v3380
        %v3463 = vadd.f32 %v3036, %v3385
        %v3464 = vadd.f32 %v3037, %v3390
        %v3465 = vadd.f32 %v3038, %v3395
        %v3466 = vadd.f32 %v3039, %v3400
        %v3467 = vadd.f32 %v3040, %v3405
        %v3468 = vadd.f32 %v3041, %v3410
        %v3469 = vadd.f32 %v3042, %v3415
        %v3470 = vadd.f32 %v3043, %v3420
        %v3471 = vadd.f32 %v3044, %v3425
        %v3472 = vadd.f32 %v3045, %v3430
        %v3473 = vadd.f32 %v3046, %v3435
        %v3474 = vld [vmem:[%s291 + $0x24] sm:$0xff]
        %v3475 = vld [vmem:[%s291 + $0x2c] sm:$0xff]
        %v3476 = vld [vmem:[%s291 + $0x34] sm:$0xff]
        %v3477 = vld [vmem:[%s291 + $0x3c] sm:$0xff]
        %v3478 = vld [vmem:[%s291 + $0x44] sm:$0xff]
        %v3479 = vld [vmem:[%s291 + $0x4c] sm:$0xff]
        %v3480 = vld [vmem:[%s291 + $0x54] sm:$0xff]
        %v3481 = vld [vmem:[%s291 + $0x5c] sm:$0xff]
        %v3482 = vld [vmem:[%s291 + $0x64] sm:$0xff]
        %v3483 = vld [vmem:[%s291 + $0x6c] sm:$0xff]
        %v3484 = vld [vmem:[%s291 + $0x74] sm:$0xff]
        %v3485 = vld [vmem:[%s291 + $0x7c] sm:$0xff]
        %v3486 = vld [vmem:[%s291 + $0x84] sm:$0xff]
        %v3487 = vld [vmem:[%s291 + $0x8c] sm:$0xff]
        %v3488 = vld [vmem:[%s291 + $0x94] sm:$0xff]
        %v3489 = vld [vmem:[%s291 + $0x9c] sm:$0xff]
        %v3490 = vld [vmem:[%s291 + $0xa4] sm:$0xff]
        %v3491 = vld [vmem:[%s291 + $0xac] sm:$0xff]
        %v3492 = vld [vmem:[%s291 + $0xb4] sm:$0xff]
        %v3493 = vld [vmem:[%s291 + $0xbc] sm:$0xff]
        %v3494 = vld [vmem:[%s291 + $0xc4] sm:$0xff]
        %v3495 = vld [vmem:[%s291 + $0xcc] sm:$0xff]
        %v3496 = vld [vmem:[%s291 + $0xd4] sm:$0xff]
        %v3497 = vld [vmem:[%s291 + $0xdc] sm:$0xff]
        %v3498 = vld [vmem:[%s291 + $0xe4] sm:$0xff]
        %v3499 = vld [vmem:[%s291 + $0xec] sm:$0xff]
        %v3500 = vld [vmem:[%s291 + $0xf4] sm:$0xff]
        %v3501 = vld [vmem:[%s291 + $0xfc] sm:$0xff]
        %v3502 = vld [vmem:[%s291 + $0x104] sm:$0xff]
        %v3503 = vld [vmem:[%s291 + $0x10c] sm:$0xff]
        %v3504 = vld [vmem:[%s291 + $0x114] sm:$0xff]
        %v3505 = vld [vmem:[%s291 + $0x11c] sm:$0xff]
        %v3506 = vld [vmem:[%s291 + $0x124] sm:$0xff]
        %v3507 = vld [vmem:[%s291 + $0x12c] sm:$0xff]
        %v3508 = vld [vmem:[%s291 + $0x134] sm:$0xff]
        %v3509 = vld [vmem:[%s291 + $0x13c] sm:$0xff]
        %s3510 = scalar_lea.vmem %s1, 48
        %v3511 = vld [vmem:[%s3510] sm:$0xff]
        %v3513 = vsel %vm1059, %v3474, 0
        %v3516 = vsel %vm1059, %v3475, 0
        %v3519 = vsel %vm1059, %v3476, 0
        %v3522 = vsel %vm1059, %v3477, 0
        %v3525 = vsel %vm1059, %v3478, 0
        %v3528 = vsel %vm1059, %v3479, 0
        %v3531 = vsel %vm1059, %v3480, 0
        %v3534 = vsel %vm1059, %v3481, 0
        %v3537 = vsel %vm1059, %v3482, 0
        %v3540 = vsel %vm1059, %v3483, 0
        %v3543 = vsel %vm1059, %v3484, 0
        %v3546 = vsel %vm1059, %v3485, 0
        %v3549 = vsel %vm1059, %v3486, 0
        %v3552 = vsel %vm1059, %v3487, 0
        %v3555 = vsel %vm1059, %v3488, 0
        %v3558 = vsel %vm1059, %v3489, 0
        %v3561 = vsel %vm1059, %v3490, 0
        %v3564 = vsel %vm1059, %v3491, 0
        %v3567 = vsel %vm1059, %v3492, 0
        %v3570 = vsel %vm1059, %v3493, 0
        %v3573 = vsel %vm1059, %v3494, 0
        %v3576 = vsel %vm1059, %v3495, 0
        %v3579 = vsel %vm1059, %v3496, 0
        %v3582 = vsel %vm1059, %v3497, 0
        %v3585 = vsel %vm1059, %v3498, 0
        %v3588 = vsel %vm1059, %v3499, 0
        %v3591 = vsel %vm1059, %v3500, 0
        %v3594 = vsel %vm1059, %v3501, 0
        %v3597 = vsel %vm1059, %v3502, 0
        %v3600 = vsel %vm1059, %v3503, 0
        %v3603 = vsel %vm1059, %v3504, 0
        %v3606 = vsel %vm1059, %v3505, 0
        %v3609 = vsel %vm1059, %v3506, 0
        %v3612 = vsel %vm1059, %v3507, 0
        %v3615 = vsel %vm1059, %v3508, 0
        %v3618 = vsel %vm1059, %v3509, 0
        %3620 = vmatprep.subr.mxu0 0.0
        %3621 = vmatpush1.msra.mxu0 %v3511
        %3622 = vmatprep.subr.mxu0 0.0
        %3623 = vmatpush1.msra.mxu0 0.0
        %3624 = vmatprep.subr.mxu0 0.0
        %3625 = vmatpush1.msra.mxu0 0.0
        %3626 = vmatprep.subr.mxu0 0.0
        %3627 = vmatpush1.msra.mxu0 0.0
        %3628 = vmatprep.subr.mxu0 0.0
        %3629 = vmatpush1.msra.mxu0 0.0
        %3630 = vmatprep.subr.mxu0 0.0
        %3631 = vmatpush1.msra.mxu0 0.0
        %3632 = vmatprep.subr.mxu0 0.0
        %3633 = vmatpush1.msra.mxu0 0.0
        %3634 = vmatprep.subr.mxu0 0.0
        %3635 = vmatpush1.msra.mxu0 0.0
        %3636 = vmatprep.subr.mxu0 0.0
        %3637 = vmatpush1.msra.mxu0 0.0
        %3638 = vmatprep.subr.mxu0 0.0
        %3639 = vmatpush1.msra.mxu0 0.0
        %3640 = vmatprep.subr.mxu0 0.0
        %3641 = vmatpush1.msra.mxu0 0.0
        %3642 = vmatprep.subr.mxu0 0.0
        %3643 = vmatpush1.msra.mxu0 0.0
        %3644 = vmatprep.subr.mxu0 0.0
        %3645 = vmatpush1.msra.mxu0 0.0
        %3646 = vmatprep.subr.mxu0 0.0
        %3647 = vmatpush1.msra.mxu0 0.0
        %3648 = vmatprep.subr.mxu0 0.0
        %3649 = vmatpush1.msra.mxu0 0.0
        %3650 = vmatprep.subr.mxu0 0.0
        %3651 = vmatpush1.msra.mxu0 0.0
        %3652 = vmatprep.subr.mxu0 0.0
        %3653 = vmatpush1.msra.mxu0 0.0
        %3654 = vmatprep.subr.mxu0 0.0
        %3655 = vmatpush1.msra.mxu0 0.0
        %3656 = vmatprep.subr.mxu0 0.0
        %3657 = vmatpush1.msra.mxu0 0.0
        %3658 = vmatprep.subr.mxu0 0.0
        %3659 = vmatpush1.msra.mxu0 0.0
        %3660 = vmatprep.subr.mxu0 0.0
        %3661 = vmatpush1.msra.mxu0 0.0
        %3662 = vmatprep.subr.mxu0 0.0
        %3663 = vmatpush1.msra.mxu0 0.0
        %3664 = vmatprep.subr.mxu0 0.0
        %3665 = vmatpush1.msra.mxu0 0.0
        %3666 = vmatprep.subr.mxu0 0.0
        %3667 = vmatpush1.msra.mxu0 0.0
        %3668 = vmatprep.subr.mxu0 0.0
        %3669 = vmatpush1.msra.mxu0 0.0
        %3670 = vmatprep.subr.mxu0 0.0
        %3671 = vmatpush1.msra.mxu0 0.0
        %3672 = vmatprep.subr.mxu0 0.0
        %3673 = vmatpush1.msra.mxu0 0.0
        %3674 = vmatprep.subr.mxu0 0.0
        %3675 = vmatpush1.msra.mxu0 0.0
        %3676 = vmatprep.subr.mxu0 0.0
        %3677 = vmatpush1.msra.mxu0 0.0
        %3678 = vmatprep.subr.mxu0 0.0
        %3679 = vmatpush1.msra.mxu0 0.0
        %3680 = vmatprep.subr.mxu0 0.0
        %3681 = vmatpush1.msra.mxu0 0.0
        %3682 = vmatprep.subr.mxu0 0.0
        %3683 = vmatpush1.msra.mxu0 0.0
        %3684 = vmatprep.mubr.f32.mxu0 0.0
        %3685 = vmatmul.mubr.f32.gmra.mrb[0].mxu0 %v3513
        %v3686 = vpop.f32.mrb[0].mxu0
        %v3687 = vadd.f32 0.0, %v3686
        %v3688 = vpop.f32.mrb[0].mxu0
        %3689 = vmatprep.mubr.f32.mxu0 0.0
        %3690 = vmatmul.mubr.f32.gmra.mrb[0].mxu0 %v3516
        %v3691 = vpop.f32.mrb[0].mxu0
        %v3692 = vadd.f32 0.0, %v3691
        %v3693 = vpop.f32.mrb[0].mxu0
        %3694 = vmatprep.mubr.f32.mxu0 0.0
        %3695 = vmatmul.mubr.f32.gmra.mrb[0].mxu0 %v3519
        %v3696 = vpop.f32.mrb[0].mxu0
        %v3697 = vadd.f32 0.0, %v3696
        %v3698 = vpop.f32.mrb[0].mxu0
        %3699 = vmatprep.mubr.f32.mxu0 0.0
        %3700 = vmatmul.mubr.f32.gmra.mrb[0].mxu0 %v3522
        %v3701 = vpop.f32.mrb[0].mxu0
        %v3702 = vadd.f32 0.0, %v3701
        %v3703 = vpop.f32.mrb[0].mxu0
        %3704 = vmatprep.mubr.f32.mxu0 0.0
        %3705 = vmatmul.mubr.f32.gmra.mrb[0].mxu0 %v3525
        %v3706 = vpop.f32.mrb[0].mxu0
        %v3707 = vadd.f32 0.0, %v3706
        %v3708 = vpop.f32.mrb[0].mxu0
        %3709 = vmatprep.mubr.f32.mxu0 0.0
        %3710 = vmatmul.mubr.f32.gmra.mrb[0].mxu0 %v3528
        %v3711 = vpop.f32.mrb[0].mxu0
        %v3712 = vadd.f32 0.0, %v3711
        %v3713 = vpop.f32.mrb[0].mxu0
        %3714 = vmatprep.mubr.f32.mxu0 0.0
        %3715 = vmatmul.mubr.f32.gmra.mrb[0].mxu0 %v3531
        %v3716 = vpop.f32.mrb[0].mxu0
        %v3717 = vadd.f32 0.0, %v3716
        %v3718 = vpop.f32.mrb[0].mxu0
        %3719 = vmatprep.mubr.f32.mxu0 0.0
        %3720 = vmatmul.mubr.f32.gmra.mrb[0].mxu0 %v3534
        %v3721 = vpop.f32.mrb[0].mxu0
        %v3722 = vadd.f32 0.0, %v3721
        %v3723 = vpop.f32.mrb[0].mxu0
        %3724 = vmatprep.mubr.f32.mxu0 0.0
        %3725 = vmatmul.mubr.f32.gmra.mrb[0].mxu0 %v3537
        %v3726 = vpop.f32.mrb[0].mxu0
        %v3727 = vadd.f32 0.0, %v3726
        %v3728 = vpop.f32.mrb[0].mxu0
        %3729 = vmatprep.mubr.f32.mxu0 0.0
        %3730 = vmatmul.mubr.f32.gmra.mrb[0].mxu0 %v3540
        %v3731 = vpop.f32.mrb[0].mxu0
        %v3732 = vadd.f32 0.0, %v3731
        %v3733 = vpop.f32.mrb[0].mxu0
        %3734 = vmatprep.mubr.f32.mxu0 0.0
        %3735 = vmatmul.mubr.f32.gmra.mrb[0].mxu0 %v3543
        %v3736 = vpop.f32.mrb[0].mxu0
        %v3737 = vadd.f32 0.0, %v3736
        %v3738 = vpop.f32.mrb[0].mxu0
        %3739 = vmatprep.mubr.f32.mxu0 0.0
        %3740 = vmatmul.mubr.f32.gmra.mrb[0].mxu0 %v3546
        %v3741 = vpop.f32.mrb[0].mxu0
        %v3742 = vadd.f32 0.0, %v3741
        %v3743 = vpop.f32.mrb[0].mxu0
        %3744 = vmatprep.mubr.f32.mxu0 0.0
        %3745 = vmatmul.mubr.f32.gmra.mrb[0].mxu0 %v3549
        %v3746 = vpop.f32.mrb[0].mxu0
        %v3747 = vadd.f32 0.0, %v3746
        %v3748 = vpop.f32.mrb[0].mxu0
        %3749 = vmatprep.mubr.f32.mxu0 0.0
        %3750 = vmatmul.mubr.f32.gmra.mrb[0].mxu0 %v3552
        %v3751 = vpop.f32.mrb[0].mxu0
        %v3752 = vadd.f32 0.0, %v3751
        %v3753 = vpop.f32.mrb[0].mxu0
        %3754 = vmatprep.mubr.f32.mxu0 0.0
        %3755 = vmatmul.mubr.f32.gmra.mrb[0].mxu0 %v3555
        %v3756 = vpop.f32.mrb[0].mxu0
        %v3757 = vadd.f32 0.0, %v3756
        %v3758 = vpop.f32.mrb[0].mxu0
        %3759 = vmatprep.mubr.f32.mxu0 0.0
        %3760 = vmatmul.mubr.f32.gmra.mrb[0].mxu0 %v3558
        %v3761 = vpop.f32.mrb[0].mxu0
        %v3762 = vadd.f32 0.0, %v3761
        %v3763 = vpop.f32.mrb[0].mxu0
        %3764 = vmatprep.mubr.f32.mxu0 0.0
        %3765 = vmatmul.mubr.f32.gmra.mrb[0].mxu0 %v3561
        %v3766 = vpop.f32.mrb[0].mxu0
        %v3767 = vadd.f32 0.0, %v3766
        %v3768 = vpop.f32.mrb[0].mxu0
        %3769 = vmatprep.mubr.f32.mxu0 0.0
        %3770 = vmatmul.mubr.f32.gmra.mrb[0].mxu0 %v3564
        %v3771 = vpop.f32.mrb[0].mxu0
        %v3772 = vadd.f32 0.0, %v3771
        %v3773 = vpop.f32.mrb[0].mxu0
        %3774 = vmatprep.mubr.f32.mxu0 0.0
        %3775 = vmatmul.mubr.f32.gmra.mrb[0].mxu0 %v3567
        %v3776 = vpop.f32.mrb[0].mxu0
        %v3777 = vadd.f32 0.0, %v3776
        %v3778 = vpop.f32.mrb[0].mxu0
        %3779 = vmatprep.mubr.f32.mxu0 0.0
        %3780 = vmatmul.mubr.f32.gmra.mrb[0].mxu0 %v3570
        %v3781 = vpop.f32.mrb[0].mxu0
        %v3782 = vadd.f32 0.0, %v3781
        %v3783 = vpop.f32.mrb[0].mxu0
        %3784 = vmatprep.mubr.f32.mxu0 0.0
        %3785 = vmatmul.mubr.f32.gmra.mrb[0].mxu0 %v3573
        %v3786 = vpop.f32.mrb[0].mxu0
        %v3787 = vadd.f32 0.0, %v3786
        %v3788 = vpop.f32.mrb[0].mxu0
        %3789 = vmatprep.mubr.f32.mxu0 0.0
        %3790 = vmatmul.mubr.f32.gmra.mrb[0].mxu0 %v3576
        %v3791 = vpop.f32.mrb[0].mxu0
        %v3792 = vadd.f32 0.0, %v3791
        %v3793 = vpop.f32.mrb[0].mxu0
        %3794 = vmatprep.mubr.f32.mxu0 0.0
        %3795 = vmatmul.mubr.f32.gmra.mrb[0].mxu0 %v3579
        %v3796 = vpop.f32.mrb[0].mxu0
        %v3797 = vadd.f32 0.0, %v3796
        %v3798 = vpop.f32.mrb[0].mxu0
        %3799 = vmatprep.mubr.f32.mxu0 0.0
        %3800 = vmatmul.mubr.f32.gmra.mrb[0].mxu0 %v3582
        %v3801 = vpop.f32.mrb[0].mxu0
        %v3802 = vadd.f32 0.0, %v3801
        %v3803 = vpop.f32.mrb[0].mxu0
        %3804 = vmatprep.mubr.f32.mxu0 0.0
        %3805 = vmatmul.mubr.f32.gmra.mrb[0].mxu0 %v3585
        %v3806 = vpop.f32.mrb[0].mxu0
        %v3807 = vadd.f32 0.0, %v3806
        %v3808 = vpop.f32.mrb[0].mxu0
        %3809 = vmatprep.mubr.f32.mxu0 0.0
        %3810 = vmatmul.mubr.f32.gmra.mrb[0].mxu0 %v3588
        %v3811 = vpop.f32.mrb[0].mxu0
        %v3812 = vadd.f32 0.0, %v3811
        %v3813 = vpop.f32.mrb[0].mxu0
        %3814 = vmatprep.mubr.f32.mxu0 0.0
        %3815 = vmatmul.mubr.f32.gmra.mrb[0].mxu0 %v3591
        %v3816 = vpop.f32.mrb[0].mxu0
        %v3817 = vadd.f32 0.0, %v3816
        %v3818 = vpop.f32.mrb[0].mxu0
        %3819 = vmatprep.mubr.f32.mxu0 0.0
        %3820 = vmatmul.mubr.f32.gmra.mrb[0].mxu0 %v3594
        %v3821 = vpop.f32.mrb[0].mxu0
        %v3822 = vadd.f32 0.0, %v3821
        %v3823 = vpop.f32.mrb[0].mxu0
        %3824 = vmatprep.mubr.f32.mxu0 0.0
        %3825 = vmatmul.mubr.f32.gmra.mrb[0].mxu0 %v3597
        %v3826 = vpop.f32.mrb[0].mxu0
        %v3827 = vadd.f32 0.0, %v3826
        %v3828 = vpop.f32.mrb[0].mxu0
        %3829 = vmatprep.mubr.f32.mxu0 0.0
        %3830 = vmatmul.mubr.f32.gmra.mrb[0].mxu0 %v3600
        %v3831 = vpop.f32.mrb[0].mxu0
        %v3832 = vadd.f32 0.0, %v3831
        %v3833 = vpop.f32.mrb[0].mxu0
        %3834 = vmatprep.mubr.f32.mxu0 0.0
        %3835 = vmatmul.mubr.f32.gmra.mrb[0].mxu0 %v3603
        %v3836 = vpop.f32.mrb[0].mxu0
        %v3837 = vadd.f32 0.0, %v3836
        %v3838 = vpop.f32.mrb[0].mxu0
        %3839 = vmatprep.mubr.f32.mxu0 0.0
        %3840 = vmatmul.mubr.f32.gmra.mrb[0].mxu0 %v3606
        %v3841 = vpop.f32.mrb[0].mxu0
        %v3842 = vadd.f32 0.0, %v3841
        %v3843 = vpop.f32.mrb[0].mxu0
        %3844 = vmatprep.mubr.f32.mxu0 0.0
        %3845 = vmatmul.mubr.f32.gmra.mrb[0].mxu0 %v3609
        %v3846 = vpop.f32.mrb[0].mxu0
        %v3847 = vadd.f32 0.0, %v3846
        %v3848 = vpop.f32.mrb[0].mxu0
        %3849 = vmatprep.mubr.f32.mxu0 0.0
        %3850 = vmatmul.mubr.f32.gmra.mrb[0].mxu0 %v3612
        %v3851 = vpop.f32.mrb[0].mxu0
        %v3852 = vadd.f32 0.0, %v3851
        %v3853 = vpop.f32.mrb[0].mxu0
        %3854 = vmatprep.mubr.f32.mxu0 0.0
        %3855 = vmatmul.mubr.f32.gmra.mrb[0].mxu0 %v3615
        %v3856 = vpop.f32.mrb[0].mxu0
        %v3857 = vadd.f32 0.0, %v3856
        %v3858 = vpop.f32.mrb[0].mxu0
        %3859 = vmatprep.mubr.f32.mxu0 0.0
        %3860 = vmatmul.mubr.f32.gmra.mrb[0].mxu0 %v3618
        %v3861 = vpop.f32.mrb[0].mxu0
        %v3862 = vadd.f32 0.0, %v3861
        %v3863 = vpop.f32.mrb[0].mxu0
        %3864 = vdwg.mxu0
        %v3865 = vadd.f32 %v3438, %v3687
        %v3866 = vadd.f32 %v3439, %v3692
        %v3867 = vadd.f32 %v3440, %v3697
        %v3868 = vadd.f32 %v3441, %v3702
        %v3869 = vadd.f32 %v3442, %v3707
        %v3870 = vadd.f32 %v3443, %v3712
        %v3871 = vadd.f32 %v3444, %v3717
        %v3872 = vadd.f32 %v3445, %v3722
        %v3873 = vadd.f32 %v3446, %v3727
        %v3874 = vadd.f32 %v3447, %v3732
        %v3875 = vadd.f32 %v3448, %v3737
        %v3876 = vadd.f32 %v3449, %v3742
        %v3877 = vadd.f32 %v3450, %v3747
        %v3878 = vadd.f32 %v3451, %v3752
        %v3879 = vadd.f32 %v3452, %v3757
        %v3880 = vadd.f32 %v3453, %v3762
        %v3881 = vadd.f32 %v3454, %v3767
        %v3882 = vadd.f32 %v3455, %v3772
        %v3883 = vadd.f32 %v3456, %v3777
        %v3884 = vadd.f32 %v3457, %v3782
        %v3885 = vadd.f32 %v3458, %v3787
        %v3886 = vadd.f32 %v3459, %v3792
        %v3887 = vadd.f32 %v3460, %v3797
        %v3888 = vadd.f32 %v3461, %v3802
        %v3889 = vadd.f32 %v3462, %v3807
        %v3890 = vadd.f32 %v3463, %v3812
        %v3891 = vadd.f32 %v3464, %v3817
        %v3892 = vadd.f32 %v3465, %v3822
        %v3893 = vadd.f32 %v3466, %v3827
        %v3894 = vadd.f32 %v3467, %v3832
        %v3895 = vadd.f32 %v3468, %v3837
        %v3896 = vadd.f32 %v3469, %v3842
        %v3897 = vadd.f32 %v3470, %v3847
        %v3898 = vadd.f32 %v3471, %v3852
        %v3899 = vadd.f32 %v3472, %v3857
        %v3900 = vadd.f32 %v3473, %v3862
        %v3901 = vld [vmem:[%s291 + $0x25] sm:$0xff]
        %v3902 = vld [vmem:[%s291 + $0x2d] sm:$0xff]
        %v3903 = vld [vmem:[%s291 + $0x35] sm:$0xff]
        %v3904 = vld [vmem:[%s291 + $0x3d] sm:$0xff]
        %v3905 = vld [vmem:[%s291 + $0x45] sm:$0xff]
        %v3906 = vld [vmem:[%s291 + $0x4d] sm:$0xff]
        %v3907 = vld [vmem:[%s291 + $0x55] sm:$0xff]
        %v3908 = vld [vmem:[%s291 + $0x5d] sm:$0xff]
        %v3909 = vld [vmem:[%s291 + $0x65] sm:$0xff]
        %v3910 = vld [vmem:[%s291 + $0x6d] sm:$0xff]
        %v3911 = vld [vmem:[%s291 + $0x75] sm:$0xff]
        %v3912 = vld [vmem:[%s291 + $0x7d] sm:$0xff]
        %v3913 = vld [vmem:[%s291 + $0x85] sm:$0xff]
        %v3914 = vld [vmem:[%s291 + $0x8d] sm:$0xff]
        %v3915 = vld [vmem:[%s291 + $0x95] sm:$0xff]
        %v3916 = vld [vmem:[%s291 + $0x9d] sm:$0xff]
        %v3917 = vld [vmem:[%s291 + $0xa5] sm:$0xff]
        %v3918 = vld [vmem:[%s291 + $0xad] sm:$0xff]
        %v3919 = vld [vmem:[%s291 + $0xb5] sm:$0xff]
        %v3920 = vld [vmem:[%s291 + $0xbd] sm:$0xff]
        %v3921 = vld [vmem:[%s291 + $0xc5] sm:$0xff]
        %v3922 = vld [vmem:[%s291 + $0xcd] sm:$0xff]
        %v3923 = vld [vmem:[%s291 + $0xd5] sm:$0xff]
        %v3924 = vld [vmem:[%s291 + $0xdd] sm:$0xff]
        %v3925 = vld [vmem:[%s291 + $0xe5] sm:$0xff]
        %v3926 = vld [vmem:[%s291 + $0xed] sm:$0xff]
        %v3927 = vld [vmem:[%s291 + $0xf5] sm:$0xff]
        %v3928 = vld [vmem:[%s291 + $0xfd] sm:$0xff]
        %v3929 = vld [vmem:[%s291 + $0x105] sm:$0xff]
        %v3930 = vld [vmem:[%s291 + $0x10d] sm:$0xff]
        %v3931 = vld [vmem:[%s291 + $0x115] sm:$0xff]
        %v3932 = vld [vmem:[%s291 + $0x11d] sm:$0xff]
        %v3933 = vld [vmem:[%s291 + $0x125] sm:$0xff]
        %v3934 = vld [vmem:[%s291 + $0x12d] sm:$0xff]
        %v3935 = vld [vmem:[%s291 + $0x135] sm:$0xff]
        %v3936 = vld [vmem:[%s291 + $0x13d] sm:$0xff]
        %s3937 = scalar_lea.vmem %s1, 56
        %v3938 = vld [vmem:[%s3937] sm:$0xff]
        %v3940 = vsel %vm1059, %v3901, 0
        %v3943 = vsel %vm1059, %v3902, 0
        %v3946 = vsel %vm1059, %v3903, 0
        %v3949 = vsel %vm1059, %v3904, 0
        %v3952 = vsel %vm1059, %v3905, 0
        %v3955 = vsel %vm1059, %v3906, 0
        %v3958 = vsel %vm1059, %v3907, 0
        %v3961 = vsel %vm1059, %v3908, 0
        %v3964 = vsel %vm1059, %v3909, 0
        %v3967 = vsel %vm1059, %v3910, 0
        %v3970 = vsel %vm1059, %v3911, 0
        %v3973 = vsel %vm1059, %v3912, 0
        %v3976 = vsel %vm1059, %v3913, 0
        %v3979 = vsel %vm1059, %v3914, 0
        %v3982 = vsel %vm1059, %v3915, 0
        %v3985 = vsel %vm1059, %v3916, 0
        %v3988 = vsel %vm1059, %v3917, 0
        %v3991 = vsel %vm1059, %v3918, 0
        %v3994 = vsel %vm1059, %v3919, 0
        %v3997 = vsel %vm1059, %v3920, 0
        %v4000 = vsel %vm1059, %v3921, 0
        %v4003 = vsel %vm1059, %v3922, 0
        %v4006 = vsel %vm1059, %v3923, 0
        %v4009 = vsel %vm1059, %v3924, 0
        %v4012 = vsel %vm1059, %v3925, 0
        %v4015 = vsel %vm1059, %v3926, 0
        %v4018 = vsel %vm1059, %v3927, 0
        %v4021 = vsel %vm1059, %v3928, 0
        %v4024 = vsel %vm1059, %v3929, 0
        %v4027 = vsel %vm1059, %v3930, 0
        %v4030 = vsel %vm1059, %v3931, 0
        %v4033 = vsel %vm1059, %v3932, 0
        %v4036 = vsel %vm1059, %v3933, 0
        %v4039 = vsel %vm1059, %v3934, 0
        %v4042 = vsel %vm1059, %v3935, 0
        %v4045 = vsel %vm1059, %v3936, 0
        %4047 = vmatprep.subr.mxu0 0.0
        %4048 = vmatpush1.msra.mxu0 %v3938
        %4049 = vmatprep.subr.mxu0 0.0
        %4050 = vmatpush1.msra.mxu0 0.0
        %4051 = vmatprep.subr.mxu0 0.0
        %4052 = vmatpush1.msra.mxu0 0.0
        %4053 = vmatprep.subr.mxu0 0.0
        %4054 = vmatpush1.msra.mxu0 0.0
        %4055 = vmatprep.subr.mxu0 0.0
        %4056 = vmatpush1.msra.mxu0 0.0
        %4057 = vmatprep.subr.mxu0 0.0
        %4058 = vmatpush1.msra.mxu0 0.0
        %4059 = vmatprep.subr.mxu0 0.0
        %4060 = vmatpush1.msra.mxu0 0.0
        %4061 = vmatprep.subr.mxu0 0.0
        %4062 = vmatpush1.msra.mxu0 0.0
        %4063 = vmatprep.subr.mxu0 0.0
        %4064 = vmatpush1.msra.mxu0 0.0
        %4065 = vmatprep.subr.mxu0 0.0
        %4066 = vmatpush1.msra.mxu0 0.0
        %4067 = vmatprep.subr.mxu0 0.0
        %4068 = vmatpush1.msra.mxu0 0.0
        %4069 = vmatprep.subr.mxu0 0.0
        %4070 = vmatpush1.msra.mxu0 0.0
        %4071 = vmatprep.subr.mxu0 0.0
        %4072 = vmatpush1.msra.mxu0 0.0
        %4073 = vmatprep.subr.mxu0 0.0
        %4074 = vmatpush1.msra.mxu0 0.0
        %4075 = vmatprep.subr.mxu0 0.0
        %4076 = vmatpush1.msra.mxu0 0.0
        %4077 = vmatprep.subr.mxu0 0.0
        %4078 = vmatpush1.msra.mxu0 0.0
        %4079 = vmatprep.subr.mxu0 0.0
        %4080 = vmatpush1.msra.mxu0 0.0
        %4081 = vmatprep.subr.mxu0 0.0
        %4082 = vmatpush1.msra.mxu0 0.0
        %4083 = vmatprep.subr.mxu0 0.0
        %4084 = vmatpush1.msra.mxu0 0.0
        %4085 = vmatprep.subr.mxu0 0.0
        %4086 = vmatpush1.msra.mxu0 0.0
        %4087 = vmatprep.subr.mxu0 0.0
        %4088 = vmatpush1.msra.mxu0 0.0
        %4089 = vmatprep.subr.mxu0 0.0
        %4090 = vmatpush1.msra.mxu0 0.0
        %4091 = vmatprep.subr.mxu0 0.0
        %4092 = vmatpush1.msra.mxu0 0.0
        %4093 = vmatprep.subr.mxu0 0.0
        %4094 = vmatpush1.msra.mxu0 0.0
        %4095 = vmatprep.subr.mxu0 0.0
        %4096 = vmatpush1.msra.mxu0 0.0
        %4097 = vmatprep.subr.mxu0 0.0
        %4098 = vmatpush1.msra.mxu0 0.0
        %4099 = vmatprep.subr.mxu0 0.0
        %4100 = vmatpush1.msra.mxu0 0.0
        %4101 = vmatprep.subr.mxu0 0.0
        %4102 = vmatpush1.msra.mxu0 0.0
        %4103 = vmatprep.subr.mxu0 0.0
        %4104 = vmatpush1.msra.mxu0 0.0
        %4105 = vmatprep.subr.mxu0 0.0
        %4106 = vmatpush1.msra.mxu0 0.0
        %4107 = vmatprep.subr.mxu0 0.0
        %4108 = vmatpush1.msra.mxu0 0.0
        %4109 = vmatprep.subr.mxu0 0.0
        %4110 = vmatpush1.msra.mxu0 0.0
        %4111 = vmatprep.mubr.f32.mxu0 0.0
        %4112 = vmatmul.mubr.f32.gmra.mrb[0].mxu0 %v3940
        %v4113 = vpop.f32.mrb[0].mxu0
        %v4114 = vadd.f32 0.0, %v4113
        %v4115 = vpop.f32.mrb[0].mxu0
        %4116 = vmatprep.mubr.f32.mxu0 0.0
        %4117 = vmatmul.mubr.f32.gmra.mrb[0].mxu0 %v3943
        %v4118 = vpop.f32.mrb[0].mxu0
        %v4119 = vadd.f32 0.0, %v4118
        %v4120 = vpop.f32.mrb[0].mxu0
        %4121 = vmatprep.mubr.f32.mxu0 0.0
        %4122 = vmatmul.mubr.f32.gmra.mrb[0].mxu0 %v3946
        %v4123 = vpop.f32.mrb[0].mxu0
        %v4124 = vadd.f32 0.0, %v4123
        %v4125 = vpop.f32.mrb[0].mxu0
        %4126 = vmatprep.mubr.f32.mxu0 0.0
        %4127 = vmatmul.mubr.f32.gmra.mrb[0].mxu0 %v3949
        %v4128 = vpop.f32.mrb[0].mxu0
        %v4129 = vadd.f32 0.0, %v4128
        %v4130 = vpop.f32.mrb[0].mxu0
        %4131 = vmatprep.mubr.f32.mxu0 0.0
        %4132 = vmatmul.mubr.f32.gmra.mrb[0].mxu0 %v3952
        %v4133 = vpop.f32.mrb[0].mxu0
        %v4134 = vadd.f32 0.0, %v4133
        %v4135 = vpop.f32.mrb[0].mxu0
        %4136 = vmatprep.mubr.f32.mxu0 0.0
        %4137 = vmatmul.mubr.f32.gmra.mrb[0].mxu0 %v3955
        %v4138 = vpop.f32.mrb[0].mxu0
        %v4139 = vadd.f32 0.0, %v4138
        %v4140 = vpop.f32.mrb[0].mxu0
        %4141 = vmatprep.mubr.f32.mxu0 0.0
        %4142 = vmatmul.mubr.f32.gmra.mrb[0].mxu0 %v3958
        %v4143 = vpop.f32.mrb[0].mxu0
        %v4144 = vadd.f32 0.0, %v4143
        %v4145 = vpop.f32.mrb[0].mxu0
        %4146 = vmatprep.mubr.f32.mxu0 0.0
        %4147 = vmatmul.mubr.f32.gmra.mrb[0].mxu0 %v3961
        %v4148 = vpop.f32.mrb[0].mxu0
        %v4149 = vadd.f32 0.0, %v4148
        %v4150 = vpop.f32.mrb[0].mxu0
        %4151 = vmatprep.mubr.f32.mxu0 0.0
        %4152 = vmatmul.mubr.f32.gmra.mrb[0].mxu0 %v3964
        %v4153 = vpop.f32.mrb[0].mxu0
        %v4154 = vadd.f32 0.0, %v4153
        %v4155 = vpop.f32.mrb[0].mxu0
        %4156 = vmatprep.mubr.f32.mxu0 0.0
        %4157 = vmatmul.mubr.f32.gmra.mrb[0].mxu0 %v3967
        %v4158 = vpop.f32.mrb[0].mxu0
        %v4159 = vadd.f32 0.0, %v4158
        %v4160 = vpop.f32.mrb[0].mxu0
        %4161 = vmatprep.mubr.f32.mxu0 0.0
        %4162 = vmatmul.mubr.f32.gmra.mrb[0].mxu0 %v3970
        %v4163 = vpop.f32.mrb[0].mxu0
        %v4164 = vadd.f32 0.0, %v4163
        %v4165 = vpop.f32.mrb[0].mxu0
        %4166 = vmatprep.mubr.f32.mxu0 0.0
        %4167 = vmatmul.mubr.f32.gmra.mrb[0].mxu0 %v3973
        %v4168 = vpop.f32.mrb[0].mxu0
        %v4169 = vadd.f32 0.0, %v4168
        %v4170 = vpop.f32.mrb[0].mxu0
        %4171 = vmatprep.mubr.f32.mxu0 0.0
        %4172 = vmatmul.mubr.f32.gmra.mrb[0].mxu0 %v3976
        %v4173 = vpop.f32.mrb[0].mxu0
        %v4174 = vadd.f32 0.0, %v4173
        %v4175 = vpop.f32.mrb[0].mxu0
        %4176 = vmatprep.mubr.f32.mxu0 0.0
        %4177 = vmatmul.mubr.f32.gmra.mrb[0].mxu0 %v3979
        %v4178 = vpop.f32.mrb[0].mxu0
        %v4179 = vadd.f32 0.0, %v4178
        %v4180 = vpop.f32.mrb[0].mxu0
        %4181 = vmatprep.mubr.f32.mxu0 0.0
        %4182 = vmatmul.mubr.f32.gmra.mrb[0].mxu0 %v3982
        %v4183 = vpop.f32.mrb[0].mxu0
        %v4184 = vadd.f32 0.0, %v4183
        %v4185 = vpop.f32.mrb[0].mxu0
        %4186 = vmatprep.mubr.f32.mxu0 0.0
        %4187 = vmatmul.mubr.f32.gmra.mrb[0].mxu0 %v3985
        %v4188 = vpop.f32.mrb[0].mxu0
        %v4189 = vadd.f32 0.0, %v4188
        %v4190 = vpop.f32.mrb[0].mxu0
        %4191 = vmatprep.mubr.f32.mxu0 0.0
        %4192 = vmatmul.mubr.f32.gmra.mrb[0].mxu0 %v3988
        %v4193 = vpop.f32.mrb[0].mxu0
        %v4194 = vadd.f32 0.0, %v4193
        %v4195 = vpop.f32.mrb[0].mxu0
        %4196 = vmatprep.mubr.f32.mxu0 0.0
        %4197 = vmatmul.mubr.f32.gmra.mrb[0].mxu0 %v3991
        %v4198 = vpop.f32.mrb[0].mxu0
        %v4199 = vadd.f32 0.0, %v4198
        %v4200 = vpop.f32.mrb[0].mxu0
        %4201 = vmatprep.mubr.f32.mxu0 0.0
        %4202 = vmatmul.mubr.f32.gmra.mrb[0].mxu0 %v3994
        %v4203 = vpop.f32.mrb[0].mxu0
        %v4204 = vadd.f32 0.0, %v4203
        %v4205 = vpop.f32.mrb[0].mxu0
        %4206 = vmatprep.mubr.f32.mxu0 0.0
        %4207 = vmatmul.mubr.f32.gmra.mrb[0].mxu0 %v3997
        %v4208 = vpop.f32.mrb[0].mxu0
        %v4209 = vadd.f32 0.0, %v4208
        %v4210 = vpop.f32.mrb[0].mxu0
        %4211 = vmatprep.mubr.f32.mxu0 0.0
        %4212 = vmatmul.mubr.f32.gmra.mrb[0].mxu0 %v4000
        %v4213 = vpop.f32.mrb[0].mxu0
        %v4214 = vadd.f32 0.0, %v4213
        %v4215 = vpop.f32.mrb[0].mxu0
        %4216 = vmatprep.mubr.f32.mxu0 0.0
        %4217 = vmatmul.mubr.f32.gmra.mrb[0].mxu0 %v4003
        %v4218 = vpop.f32.mrb[0].mxu0
        %v4219 = vadd.f32 0.0, %v4218
        %v4220 = vpop.f32.mrb[0].mxu0
        %4221 = vmatprep.mubr.f32.mxu0 0.0
        %4222 = vmatmul.mubr.f32.gmra.mrb[0].mxu0 %v4006
        %v4223 = vpop.f32.mrb[0].mxu0
        %v4224 = vadd.f32 0.0, %v4223
        %v4225 = vpop.f32.mrb[0].mxu0
        %4226 = vmatprep.mubr.f32.mxu0 0.0
        %4227 = vmatmul.mubr.f32.gmra.mrb[0].mxu0 %v4009
        %v4228 = vpop.f32.mrb[0].mxu0
        %v4229 = vadd.f32 0.0, %v4228
        %v4230 = vpop.f32.mrb[0].mxu0
        %4231 = vmatprep.mubr.f32.mxu0 0.0
        %4232 = vmatmul.mubr.f32.gmra.mrb[0].mxu0 %v4012
        %v4233 = vpop.f32.mrb[0].mxu0
        %v4234 = vadd.f32 0.0, %v4233
        %v4235 = vpop.f32.mrb[0].mxu0
        %4236 = vmatprep.mubr.f32.mxu0 0.0
        %4237 = vmatmul.mubr.f32.gmra.mrb[0].mxu0 %v4015
        %v4238 = vpop.f32.mrb[0].mxu0
        %v4239 = vadd.f32 0.0, %v4238
        %v4240 = vpop.f32.mrb[0].mxu0
        %4241 = vmatprep.mubr.f32.mxu0 0.0
        %4242 = vmatmul.mubr.f32.gmra.mrb[0].mxu0 %v4018
        %v4243 = vpop.f32.mrb[0].mxu0
        %v4244 = vadd.f32 0.0, %v4243
        %v4245 = vpop.f32.mrb[0].mxu0
        %4246 = vmatprep.mubr.f32.mxu0 0.0
        %4247 = vmatmul.mubr.f32.gmra.mrb[0].mxu0 %v4021
        %v4248 = vpop.f32.mrb[0].mxu0
        %v4249 = vadd.f32 0.0, %v4248
        %v4250 = vpop.f32.mrb[0].mxu0
        %4251 = vmatprep.mubr.f32.mxu0 0.0
        %4252 = vmatmul.mubr.f32.gmra.mrb[0].mxu0 %v4024
        %v4253 = vpop.f32.mrb[0].mxu0
        %v4254 = vadd.f32 0.0, %v4253
        %v4255 = vpop.f32.mrb[0].mxu0
        %4256 = vmatprep.mubr.f32.mxu0 0.0
        %4257 = vmatmul.mubr.f32.gmra.mrb[0].mxu0 %v4027
        %v4258 = vpop.f32.mrb[0].mxu0
        %v4259 = vadd.f32 0.0, %v4258
        %v4260 = vpop.f32.mrb[0].mxu0
        %4261 = vmatprep.mubr.f32.mxu0 0.0
        %4262 = vmatmul.mubr.f32.gmra.mrb[0].mxu0 %v4030
        %v4263 = vpop.f32.mrb[0].mxu0
        %v4264 = vadd.f32 0.0, %v4263
        %v4265 = vpop.f32.mrb[0].mxu0
        %4266 = vmatprep.mubr.f32.mxu0 0.0
        %4267 = vmatmul.mubr.f32.gmra.mrb[0].mxu0 %v4033
        %v4268 = vpop.f32.mrb[0].mxu0
        %v4269 = vadd.f32 0.0, %v4268
        %v4270 = vpop.f32.mrb[0].mxu0
        %4271 = vmatprep.mubr.f32.mxu0 0.0
        %4272 = vmatmul.mubr.f32.gmra.mrb[0].mxu0 %v4036
        %v4273 = vpop.f32.mrb[0].mxu0
        %v4274 = vadd.f32 0.0, %v4273
        %v4275 = vpop.f32.mrb[0].mxu0
        %4276 = vmatprep.mubr.f32.mxu0 0.0
        %4277 = vmatmul.mubr.f32.gmra.mrb[0].mxu0 %v4039
        %v4278 = vpop.f32.mrb[0].mxu0
        %v4279 = vadd.f32 0.0, %v4278
        %v4280 = vpop.f32.mrb[0].mxu0
        %4281 = vmatprep.mubr.f32.mxu0 0.0
        %4282 = vmatmul.mubr.f32.gmra.mrb[0].mxu0 %v4042
        %v4283 = vpop.f32.mrb[0].mxu0
        %v4284 = vadd.f32 0.0, %v4283
        %v4285 = vpop.f32.mrb[0].mxu0
        %4286 = vmatprep.mubr.f32.mxu0 0.0
        %4287 = vmatmul.mubr.f32.gmra.mrb[0].mxu0 %v4045
        %v4288 = vpop.f32.mrb[0].mxu0
        %v4289 = vadd.f32 0.0, %v4288
        %v4290 = vpop.f32.mrb[0].mxu0
        %4291 = vdwg.mxu0
        %v4292 = vadd.f32 %v3865, %v4114
        %v4293 = vadd.f32 %v3866, %v4119
        %v4294 = vadd.f32 %v3867, %v4124
        %v4295 = vadd.f32 %v3868, %v4129
        %v4296 = vadd.f32 %v3869, %v4134
        %v4297 = vadd.f32 %v3870, %v4139
        %v4298 = vadd.f32 %v3871, %v4144
        %v4299 = vadd.f32 %v3872, %v4149
        %v4300 = vadd.f32 %v3873, %v4154
        %v4301 = vadd.f32 %v3874, %v4159
        %v4302 = vadd.f32 %v3875, %v4164
        %v4303 = vadd.f32 %v3876, %v4169
        %v4304 = vadd.f32 %v3877, %v4174
        %v4305 = vadd.f32 %v3878, %v4179
        %v4306 = vadd.f32 %v3879, %v4184
        %v4307 = vadd.f32 %v3880, %v4189
        %v4308 = vadd.f32 %v3881, %v4194
        %v4309 = vadd.f32 %v3882, %v4199
        %v4310 = vadd.f32 %v3883, %v4204
        %v4311 = vadd.f32 %v3884, %v4209
        %v4312 = vadd.f32 %v3885, %v4214
        %v4313 = vadd.f32 %v3886, %v4219
        %v4314 = vadd.f32 %v3887, %v4224
        %v4315 = vadd.f32 %v3888, %v4229
        %v4316 = vadd.f32 %v3889, %v4234
        %v4317 = vadd.f32 %v3890, %v4239
        %v4318 = vadd.f32 %v3891, %v4244
        %v4319 = vadd.f32 %v3892, %v4249
        %v4320 = vadd.f32 %v3893, %v4254
        %v4321 = vadd.f32 %v3894, %v4259
        %v4322 = vadd.f32 %v3895, %v4264
        %v4323 = vadd.f32 %v3896, %v4269
        %v4324 = vadd.f32 %v3897, %v4274
        %v4325 = vadd.f32 %v3898, %v4279
        %v4326 = vadd.f32 %v3899, %v4284
        %v4327 = vadd.f32 %v3900, %v4289
        %v4328 = vld [vmem:[%s291 + $0x26] sm:$0xff]
        %v4329 = vld [vmem:[%s291 + $0x2e] sm:$0xff]
        %v4330 = vld [vmem:[%s291 + $0x36] sm:$0xff]
        %v4331 = vld [vmem:[%s291 + $0x3e] sm:$0xff]
        %v4332 = vld [vmem:[%s291 + $0x46] sm:$0xff]
        %v4333 = vld [vmem:[%s291 + $0x4e] sm:$0xff]
        %v4334 = vld [vmem:[%s291 + $0x56] sm:$0xff]
        %v4335 = vld [vmem:[%s291 + $0x5e] sm:$0xff]
        %v4336 = vld [vmem:[%s291 + $0x66] sm:$0xff]
        %v4337 = vld [vmem:[%s291 + $0x6e] sm:$0xff]
        %v4338 = vld [vmem:[%s291 + $0x76] sm:$0xff]
        %v4339 = vld [vmem:[%s291 + $0x7e] sm:$0xff]
        %v4340 = vld [vmem:[%s291 + $0x86] sm:$0xff]
        %v4341 = vld [vmem:[%s291 + $0x8e] sm:$0xff]
        %v4342 = vld [vmem:[%s291 + $0x96] sm:$0xff]
        %v4343 = vld [vmem:[%s291 + $0x9e] sm:$0xff]
        %v4344 = vld [vmem:[%s291 + $0xa6] sm:$0xff]
        %v4345 = vld [vmem:[%s291 + $0xae] sm:$0xff]
        %v4346 = vld [vmem:[%s291 + $0xb6] sm:$0xff]
        %v4347 = vld [vmem:[%s291 + $0xbe] sm:$0xff]
        %v4348 = vld [vmem:[%s291 + $0xc6] sm:$0xff]
        %v4349 = vld [vmem:[%s291 + $0xce] sm:$0xff]
        %v4350 = vld [vmem:[%s291 + $0xd6] sm:$0xff]
        %v4351 = vld [vmem:[%s291 + $0xde] sm:$0xff]
        %v4352 = vld [vmem:[%s291 + $0xe6] sm:$0xff]
        %v4353 = vld [vmem:[%s291 + $0xee] sm:$0xff]
        %v4354 = vld [vmem:[%s291 + $0xf6] sm:$0xff]
        %v4355 = vld [vmem:[%s291 + $0xfe] sm:$0xff]
        %v4356 = vld [vmem:[%s291 + $0x106] sm:$0xff]
        %v4357 = vld [vmem:[%s291 + $0x10e] sm:$0xff]
        %v4358 = vld [vmem:[%s291 + $0x116] sm:$0xff]
        %v4359 = vld [vmem:[%s291 + $0x11e] sm:$0xff]
        %v4360 = vld [vmem:[%s291 + $0x126] sm:$0xff]
        %v4361 = vld [vmem:[%s291 + $0x12e] sm:$0xff]
        %v4362 = vld [vmem:[%s291 + $0x136] sm:$0xff]
        %v4363 = vld [vmem:[%s291 + $0x13e] sm:$0xff]
        %s4364 = scalar_lea.vmem %s1, 64
        %v4365 = vld [vmem:[%s4364] sm:$0xff]
        %v4367 = vsel %vm1059, %v4328, 0
        %v4370 = vsel %vm1059, %v4329, 0
        %v4373 = vsel %vm1059, %v4330, 0
        %v4376 = vsel %vm1059, %v4331, 0
        %v4379 = vsel %vm1059, %v4332, 0
        %v4382 = vsel %vm1059, %v4333, 0
        %v4385 = vsel %vm1059, %v4334, 0
        %v4388 = vsel %vm1059, %v4335, 0
        %v4391 = vsel %vm1059, %v4336, 0
        %v4394 = vsel %vm1059, %v4337, 0
        %v4397 = vsel %vm1059, %v4338, 0
        %v4400 = vsel %vm1059, %v4339, 0
        %v4403 = vsel %vm1059, %v4340, 0
        %v4406 = vsel %vm1059, %v4341, 0
        %v4409 = vsel %vm1059, %v4342, 0
        %v4412 = vsel %vm1059, %v4343, 0
        %v4415 = vsel %vm1059, %v4344, 0
        %v4418 = vsel %vm1059, %v4345, 0
        %v4421 = vsel %vm1059, %v4346, 0
        %v4424 = vsel %vm1059, %v4347, 0
        %v4427 = vsel %vm1059, %v4348, 0
        %v4430 = vsel %vm1059, %v4349, 0
        %v4433 = vsel %vm1059, %v4350, 0
        %v4436 = vsel %vm1059, %v4351, 0
        %v4439 = vsel %vm1059, %v4352, 0
        %v4442 = vsel %vm1059, %v4353, 0
        %v4445 = vsel %vm1059, %v4354, 0
        %v4448 = vsel %vm1059, %v4355, 0
        %v4451 = vsel %vm1059, %v4356, 0
        %v4454 = vsel %vm1059, %v4357, 0
        %v4457 = vsel %vm1059, %v4358, 0
        %v4460 = vsel %vm1059, %v4359, 0
        %v4463 = vsel %vm1059, %v4360, 0
        %v4466 = vsel %vm1059, %v4361, 0
        %v4469 = vsel %vm1059, %v4362, 0
        %v4472 = vsel %vm1059, %v4363, 0
        %4474 = vmatprep.subr.mxu0 0.0
        %4475 = vmatpush1.msra.mxu0 %v4365
        %4476 = vmatprep.subr.mxu0 0.0
        %4477 = vmatpush1.msra.mxu0 0.0
        %4478 = vmatprep.subr.mxu0 0.0
        %4479 = vmatpush1.msra.mxu0 0.0
        %4480 = vmatprep.subr.mxu0 0.0
        %4481 = vmatpush1.msra.mxu0 0.0
        %4482 = vmatprep.subr.mxu0 0.0
        %4483 = vmatpush1.msra.mxu0 0.0
        %4484 = vmatprep.subr.mxu0 0.0
        %4485 = vmatpush1.msra.mxu0 0.0
        %4486 = vmatprep.subr.mxu0 0.0
        %4487 = vmatpush1.msra.mxu0 0.0
        %4488 = vmatprep.subr.mxu0 0.0
        %4489 = vmatpush1.msra.mxu0 0.0
        %4490 = vmatprep.subr.mxu0 0.0
        %4491 = vmatpush1.msra.mxu0 0.0
        %4492 = vmatprep.subr.mxu0 0.0
        %4493 = vmatpush1.msra.mxu0 0.0
        %4494 = vmatprep.subr.mxu0 0.0
        %4495 = vmatpush1.msra.mxu0 0.0
        %4496 = vmatprep.subr.mxu0 0.0
        %4497 = vmatpush1.msra.mxu0 0.0
        %4498 = vmatprep.subr.mxu0 0.0
        %4499 = vmatpush1.msra.mxu0 0.0
        %4500 = vmatprep.subr.mxu0 0.0
        %4501 = vmatpush1.msra.mxu0 0.0
        %4502 = vmatprep.subr.mxu0 0.0
        %4503 = vmatpush1.msra.mxu0 0.0
        %4504 = vmatprep.subr.mxu0 0.0
        %4505 = vmatpush1.msra.mxu0 0.0
        %4506 = vmatprep.subr.mxu0 0.0
        %4507 = vmatpush1.msra.mxu0 0.0
        %4508 = vmatprep.subr.mxu0 0.0
        %4509 = vmatpush1.msra.mxu0 0.0
        %4510 = vmatprep.subr.mxu0 0.0
        %4511 = vmatpush1.msra.mxu0 0.0
        %4512 = vmatprep.subr.mxu0 0.0
        %4513 = vmatpush1.msra.mxu0 0.0
        %4514 = vmatprep.subr.mxu0 0.0
        %4515 = vmatpush1.msra.mxu0 0.0
        %4516 = vmatprep.subr.mxu0 0.0
        %4517 = vmatpush1.msra.mxu0 0.0
        %4518 = vmatprep.subr.mxu0 0.0
        %4519 = vmatpush1.msra.mxu0 0.0
        %4520 = vmatprep.subr.mxu0 0.0
        %4521 = vmatpush1.msra.mxu0 0.0
        %4522 = vmatprep.subr.mxu0 0.0
        %4523 = vmatpush1.msra.mxu0 0.0
        %4524 = vmatprep.subr.mxu0 0.0
        %4525 = vmatpush1.msra.mxu0 0.0
        %4526 = vmatprep.subr.mxu0 0.0
        %4527 = vmatpush1.msra.mxu0 0.0
        %4528 = vmatprep.subr.mxu0 0.0
        %4529 = vmatpush1.msra.mxu0 0.0
        %4530 = vmatprep.subr.mxu0 0.0
        %4531 = vmatpush1.msra.mxu0 0.0
        %4532 = vmatprep.subr.mxu0 0.0
        %4533 = vmatpush1.msra.mxu0 0.0
        %4534 = vmatprep.subr.mxu0 0.0
        %4535 = vmatpush1.msra.mxu0 0.0
        %4536 = vmatprep.subr.mxu0 0.0
        %4537 = vmatpush1.msra.mxu0 0.0
        %4538 = vmatprep.mubr.f32.mxu0 0.0
        %4539 = vmatmul.mubr.f32.gmra.mrb[0].mxu0 %v4367
        %v4540 = vpop.f32.mrb[0].mxu0
        %v4541 = vadd.f32 0.0, %v4540
        %v4542 = vpop.f32.mrb[0].mxu0
        %4543 = vmatprep.mubr.f32.mxu0 0.0
        %4544 = vmatmul.mubr.f32.gmra.mrb[0].mxu0 %v4370
        %v4545 = vpop.f32.mrb[0].mxu0
        %v4546 = vadd.f32 0.0, %v4545
        %v4547 = vpop.f32.mrb[0].mxu0
        %4548 = vmatprep.mubr.f32.mxu0 0.0
        %4549 = vmatmul.mubr.f32.gmra.mrb[0].mxu0 %v4373
        %v4550 = vpop.f32.mrb[0].mxu0
        %v4551 = vadd.f32 0.0, %v4550
        %v4552 = vpop.f32.mrb[0].mxu0
        %4553 = vmatprep.mubr.f32.mxu0 0.0
        %4554 = vmatmul.mubr.f32.gmra.mrb[0].mxu0 %v4376
        %v4555 = vpop.f32.mrb[0].mxu0
        %v4556 = vadd.f32 0.0, %v4555
        %v4557 = vpop.f32.mrb[0].mxu0
        %4558 = vmatprep.mubr.f32.mxu0 0.0
        %4559 = vmatmul.mubr.f32.gmra.mrb[0].mxu0 %v4379
        %v4560 = vpop.f32.mrb[0].mxu0
        %v4561 = vadd.f32 0.0, %v4560
        %v4562 = vpop.f32.mrb[0].mxu0
        %4563 = vmatprep.mubr.f32.mxu0 0.0
        %4564 = vmatmul.mubr.f32.gmra.mrb[0].mxu0 %v4382
        %v4565 = vpop.f32.mrb[0].mxu0
        %v4566 = vadd.f32 0.0, %v4565
        %v4567 = vpop.f32.mrb[0].mxu0
        %4568 = vmatprep.mubr.f32.mxu0 0.0
        %4569 = vmatmul.mubr.f32.gmra.mrb[0].mxu0 %v4385
        %v4570 = vpop.f32.mrb[0].mxu0
        %v4571 = vadd.f32 0.0, %v4570
        %v4572 = vpop.f32.mrb[0].mxu0
        %4573 = vmatprep.mubr.f32.mxu0 0.0
        %4574 = vmatmul.mubr.f32.gmra.mrb[0].mxu0 %v4388
        %v4575 = vpop.f32.mrb[0].mxu0
        %v4576 = vadd.f32 0.0, %v4575
        %v4577 = vpop.f32.mrb[0].mxu0
        %4578 = vmatprep.mubr.f32.mxu0 0.0
        %4579 = vmatmul.mubr.f32.gmra.mrb[0].mxu0 %v4391
        %v4580 = vpop.f32.mrb[0].mxu0
        %v4581 = vadd.f32 0.0, %v4580
        %v4582 = vpop.f32.mrb[0].mxu0
        %4583 = vmatprep.mubr.f32.mxu0 0.0
        %4584 = vmatmul.mubr.f32.gmra.mrb[0].mxu0 %v4394
        %v4585 = vpop.f32.mrb[0].mxu0
        %v4586 = vadd.f32 0.0, %v4585
        %v4587 = vpop.f32.mrb[0].mxu0
        %4588 = vmatprep.mubr.f32.mxu0 0.0
        %4589 = vmatmul.mubr.f32.gmra.mrb[0].mxu0 %v4397
        %v4590 = vpop.f32.mrb[0].mxu0
        %v4591 = vadd.f32 0.0, %v4590
        %v4592 = vpop.f32.mrb[0].mxu0
        %4593 = vmatprep.mubr.f32.mxu0 0.0
        %4594 = vmatmul.mubr.f32.gmra.mrb[0].mxu0 %v4400
        %v4595 = vpop.f32.mrb[0].mxu0
        %v4596 = vadd.f32 0.0, %v4595
        %v4597 = vpop.f32.mrb[0].mxu0
        %4598 = vmatprep.mubr.f32.mxu0 0.0
        %4599 = vmatmul.mubr.f32.gmra.mrb[0].mxu0 %v4403
        %v4600 = vpop.f32.mrb[0].mxu0
        %v4601 = vadd.f32 0.0, %v4600
        %v4602 = vpop.f32.mrb[0].mxu0
        %4603 = vmatprep.mubr.f32.mxu0 0.0
        %4604 = vmatmul.mubr.f32.gmra.mrb[0].mxu0 %v4406
        %v4605 = vpop.f32.mrb[0].mxu0
        %v4606 = vadd.f32 0.0, %v4605
        %v4607 = vpop.f32.mrb[0].mxu0
        %4608 = vmatprep.mubr.f32.mxu0 0.0
        %4609 = vmatmul.mubr.f32.gmra.mrb[0].mxu0 %v4409
        %v4610 = vpop.f32.mrb[0].mxu0
        %v4611 = vadd.f32 0.0, %v4610
        %v4612 = vpop.f32.mrb[0].mxu0
        %4613 = vmatprep.mubr.f32.mxu0 0.0
        %4614 = vmatmul.mubr.f32.gmra.mrb[0].mxu0 %v4412
        %v4615 = vpop.f32.mrb[0].mxu0
        %v4616 = vadd.f32 0.0, %v4615
        %v4617 = vpop.f32.mrb[0].mxu0
        %4618 = vmatprep.mubr.f32.mxu0 0.0
        %4619 = vmatmul.mubr.f32.gmra.mrb[0].mxu0 %v4415
        %v4620 = vpop.f32.mrb[0].mxu0
        %v4621 = vadd.f32 0.0, %v4620
        %v4622 = vpop.f32.mrb[0].mxu0
        %4623 = vmatprep.mubr.f32.mxu0 0.0
        %4624 = vmatmul.mubr.f32.gmra.mrb[0].mxu0 %v4418
        %v4625 = vpop.f32.mrb[0].mxu0
        %v4626 = vadd.f32 0.0, %v4625
        %v4627 = vpop.f32.mrb[0].mxu0
        %4628 = vmatprep.mubr.f32.mxu0 0.0
        %4629 = vmatmul.mubr.f32.gmra.mrb[0].mxu0 %v4421
        %v4630 = vpop.f32.mrb[0].mxu0
        %v4631 = vadd.f32 0.0, %v4630
        %v4632 = vpop.f32.mrb[0].mxu0
        %4633 = vmatprep.mubr.f32.mxu0 0.0
        %4634 = vmatmul.mubr.f32.gmra.mrb[0].mxu0 %v4424
        %v4635 = vpop.f32.mrb[0].mxu0
        %v4636 = vadd.f32 0.0, %v4635
        %v4637 = vpop.f32.mrb[0].mxu0
        %4638 = vmatprep.mubr.f32.mxu0 0.0
        %4639 = vmatmul.mubr.f32.gmra.mrb[0].mxu0 %v4427
        %v4640 = vpop.f32.mrb[0].mxu0
        %v4641 = vadd.f32 0.0, %v4640
        %v4642 = vpop.f32.mrb[0].mxu0
        %4643 = vmatprep.mubr.f32.mxu0 0.0
        %4644 = vmatmul.mubr.f32.gmra.mrb[0].mxu0 %v4430
        %v4645 = vpop.f32.mrb[0].mxu0
        %v4646 = vadd.f32 0.0, %v4645
        %v4647 = vpop.f32.mrb[0].mxu0
        %4648 = vmatprep.mubr.f32.mxu0 0.0
        %4649 = vmatmul.mubr.f32.gmra.mrb[0].mxu0 %v4433
        %v4650 = vpop.f32.mrb[0].mxu0
        %v4651 = vadd.f32 0.0, %v4650
        %v4652 = vpop.f32.mrb[0].mxu0
        %4653 = vmatprep.mubr.f32.mxu0 0.0
        %4654 = vmatmul.mubr.f32.gmra.mrb[0].mxu0 %v4436
        %v4655 = vpop.f32.mrb[0].mxu0
        %v4656 = vadd.f32 0.0, %v4655
        %v4657 = vpop.f32.mrb[0].mxu0
        %4658 = vmatprep.mubr.f32.mxu0 0.0
        %4659 = vmatmul.mubr.f32.gmra.mrb[0].mxu0 %v4439
        %v4660 = vpop.f32.mrb[0].mxu0
        %v4661 = vadd.f32 0.0, %v4660
        %v4662 = vpop.f32.mrb[0].mxu0
        %4663 = vmatprep.mubr.f32.mxu0 0.0
        %4664 = vmatmul.mubr.f32.gmra.mrb[0].mxu0 %v4442
        %v4665 = vpop.f32.mrb[0].mxu0
        %v4666 = vadd.f32 0.0, %v4665
        %v4667 = vpop.f32.mrb[0].mxu0
        %4668 = vmatprep.mubr.f32.mxu0 0.0
        %4669 = vmatmul.mubr.f32.gmra.mrb[0].mxu0 %v4445
        %v4670 = vpop.f32.mrb[0].mxu0
        %v4671 = vadd.f32 0.0, %v4670
        %v4672 = vpop.f32.mrb[0].mxu0
        %4673 = vmatprep.mubr.f32.mxu0 0.0
        %4674 = vmatmul.mubr.f32.gmra.mrb[0].mxu0 %v4448
        %v4675 = vpop.f32.mrb[0].mxu0
        %v4676 = vadd.f32 0.0, %v4675
        %v4677 = vpop.f32.mrb[0].mxu0
        %4678 = vmatprep.mubr.f32.mxu0 0.0
        %4679 = vmatmul.mubr.f32.gmra.mrb[0].mxu0 %v4451
        %v4680 = vpop.f32.mrb[0].mxu0
        %v4681 = vadd.f32 0.0, %v4680
        %v4682 = vpop.f32.mrb[0].mxu0
        %4683 = vmatprep.mubr.f32.mxu0 0.0
        %4684 = vmatmul.mubr.f32.gmra.mrb[0].mxu0 %v4454
        %v4685 = vpop.f32.mrb[0].mxu0
        %v4686 = vadd.f32 0.0, %v4685
        %v4687 = vpop.f32.mrb[0].mxu0
        %4688 = vmatprep.mubr.f32.mxu0 0.0
        %4689 = vmatmul.mubr.f32.gmra.mrb[0].mxu0 %v4457
        %v4690 = vpop.f32.mrb[0].mxu0
        %v4691 = vadd.f32 0.0, %v4690
        %v4692 = vpop.f32.mrb[0].mxu0
        %4693 = vmatprep.mubr.f32.mxu0 0.0
        %4694 = vmatmul.mubr.f32.gmra.mrb[0].mxu0 %v4460
        %v4695 = vpop.f32.mrb[0].mxu0
        %v4696 = vadd.f32 0.0, %v4695
        %v4697 = vpop.f32.mrb[0].mxu0
        %4698 = vmatprep.mubr.f32.mxu0 0.0
        %4699 = vmatmul.mubr.f32.gmra.mrb[0].mxu0 %v4463
        %v4700 = vpop.f32.mrb[0].mxu0
        %v4701 = vadd.f32 0.0, %v4700
        %v4702 = vpop.f32.mrb[0].mxu0
        %4703 = vmatprep.mubr.f32.mxu0 0.0
        %4704 = vmatmul.mubr.f32.gmra.mrb[0].mxu0 %v4466
        %v4705 = vpop.f32.mrb[0].mxu0
        %v4706 = vadd.f32 0.0, %v4705
        %v4707 = vpop.f32.mrb[0].mxu0
        %4708 = vmatprep.mubr.f32.mxu0 0.0
        %4709 = vmatmul.mubr.f32.gmra.mrb[0].mxu0 %v4469
        %v4710 = vpop.f32.mrb[0].mxu0
        %v4711 = vadd.f32 0.0, %v4710
        %v4712 = vpop.f32.mrb[0].mxu0
        %4713 = vmatprep.mubr.f32.mxu0 0.0
        %4714 = vmatmul.mubr.f32.gmra.mrb[0].mxu0 %v4472
        %v4715 = vpop.f32.mrb[0].mxu0
        %v4716 = vadd.f32 0.0, %v4715
        %v4717 = vpop.f32.mrb[0].mxu0
        %4718 = vdwg.mxu0
        %v4719 = vadd.f32 %v4292, %v4541
        %v4720 = vadd.f32 %v4293, %v4546
        %v4721 = vadd.f32 %v4294, %v4551
        %v4722 = vadd.f32 %v4295, %v4556
        %v4723 = vadd.f32 %v4296, %v4561
        %v4724 = vadd.f32 %v4297, %v4566
        %v4725 = vadd.f32 %v4298, %v4571
        %v4726 = vadd.f32 %v4299, %v4576
        %v4727 = vadd.f32 %v4300, %v4581
        %v4728 = vadd.f32 %v4301, %v4586
        %v4729 = vadd.f32 %v4302, %v4591
        %v4730 = vadd.f32 %v4303, %v4596
        %v4731 = vadd.f32 %v4304, %v4601
        %v4732 = vadd.f32 %v4305, %v4606
        %v4733 = vadd.f32 %v4306, %v4611
        %v4734 = vadd.f32 %v4307, %v4616
        %v4735 = vadd.f32 %v4308, %v4621
        %v4736 = vadd.f32 %v4309, %v4626
        %v4737 = vadd.f32 %v4310, %v4631
        %v4738 = vadd.f32 %v4311, %v4636
        %v4739 = vadd.f32 %v4312, %v4641
        %v4740 = vadd.f32 %v4313, %v4646
        %v4741 = vadd.f32 %v4314, %v4651
        %v4742 = vadd.f32 %v4315, %v4656
        %v4743 = vadd.f32 %v4316, %v4661
        %v4744 = vadd.f32 %v4317, %v4666
        %v4745 = vadd.f32 %v4318, %v4671
        %v4746 = vadd.f32 %v4319, %v4676
        %v4747 = vadd.f32 %v4320, %v4681
        %v4748 = vadd.f32 %v4321, %v4686
        %v4749 = vadd.f32 %v4322, %v4691
        %v4750 = vadd.f32 %v4323, %v4696
        %v4751 = vadd.f32 %v4324, %v4701
        %v4752 = vadd.f32 %v4325, %v4706
        %v4753 = vadd.f32 %v4326, %v4711
        %v4754 = vadd.f32 %v4327, %v4716
        %v4756 = vlaneseq
        %v4757 = vshrl.u32 %v4756, 7
        %v4758 = vsub.s32 0, %v4757
        %v4759 = vrot.slane %v982, %v4758
        %v4761 = vmul.f32 %v4719, %v4759
        %v4762 = vmul.f32 %v4720, %v4759
        %v4763 = vmul.f32 %v4721, %v4759
        %v4764 = vmul.f32 %v4722, %v4759
        %v4765 = vmul.f32 %v4723, %v4759
        %v4766 = vmul.f32 %v4724, %v4759
        %v4767 = vmul.f32 %v4725, %v4759
        %v4768 = vmul.f32 %v4726, %v4759
        %v4769 = vmul.f32 %v4727, %v4759
        %v4770 = vmul.f32 %v4728, %v4759
        %v4771 = vmul.f32 %v4729, %v4759
        %v4772 = vmul.f32 %v4730, %v4759
        %v4773 = vmul.f32 %v4731, %v4759
        %v4774 = vmul.f32 %v4732, %v4759
        %v4775 = vmul.f32 %v4733, %v4759
        %v4776 = vmul.f32 %v4734, %v4759
        %v4777 = vmul.f32 %v4735, %v4759
        %v4778 = vmul.f32 %v4736, %v4759
        %v4779 = vmul.f32 %v4737, %v4759
        %v4780 = vmul.f32 %v4738, %v4759
        %v4781 = vmul.f32 %v4739, %v4759
        %v4782 = vmul.f32 %v4740, %v4759
        %v4783 = vmul.f32 %v4741, %v4759
        %v4784 = vmul.f32 %v4742, %v4759
        %v4785 = vmul.f32 %v4743, %v4759
        %v4786 = vmul.f32 %v4744, %v4759
        %v4787 = vmul.f32 %v4745, %v4759
        %v4788 = vmul.f32 %v4746, %v4759
        %v4789 = vmul.f32 %v4747, %v4759
        %v4790 = vmul.f32 %v4748, %v4759
        %v4791 = vmul.f32 %v4749, %v4759
        %v4792 = vmul.f32 %v4750, %v4759
        %v4793 = vmul.f32 %v4751, %v4759
        %v4794 = vmul.f32 %v4752, %v4759
        %v4795 = vmul.f32 %v4753, %v4759
        %v4796 = vmul.f32 %v4754, %v4759
        %v4798 = vlaneseq
        %v4799 = vshrl.u32 %v4798, 7
        %v4800 = vsub.s32 0, %v4799
        %v4801 = vrot.slane %v983, %v4800
        %v4803 = vadd.f32 %v4761, %v4801
        %v4804 = vadd.f32 %v4762, %v4801
        %v4805 = vadd.f32 %v4763, %v4801
        %v4806 = vadd.f32 %v4764, %v4801
        %v4807 = vadd.f32 %v4765, %v4801
        %v4808 = vadd.f32 %v4766, %v4801
        %v4809 = vadd.f32 %v4767, %v4801
        %v4810 = vadd.f32 %v4768, %v4801
        %v4811 = vadd.f32 %v4769, %v4801
        %v4812 = vadd.f32 %v4770, %v4801
        %v4813 = vadd.f32 %v4771, %v4801
        %v4814 = vadd.f32 %v4772, %v4801
        %v4815 = vadd.f32 %v4773, %v4801
        %v4816 = vadd.f32 %v4774, %v4801
        %v4817 = vadd.f32 %v4775, %v4801
        %v4818 = vadd.f32 %v4776, %v4801
        %v4819 = vadd.f32 %v4777, %v4801
        %v4820 = vadd.f32 %v4778, %v4801
        %v4821 = vadd.f32 %v4779, %v4801
        %v4822 = vadd.f32 %v4780, %v4801
        %v4823 = vadd.f32 %v4781, %v4801
        %v4824 = vadd.f32 %v4782, %v4801
        %v4825 = vadd.f32 %v4783, %v4801
        %v4826 = vadd.f32 %v4784, %v4801
        %v4827 = vadd.f32 %v4785, %v4801
        %v4828 = vadd.f32 %v4786, %v4801
        %v4829 = vadd.f32 %v4787, %v4801
        %v4830 = vadd.f32 %v4788, %v4801
        %v4831 = vadd.f32 %v4789, %v4801
        %v4832 = vadd.f32 %v4790, %v4801
        %v4833 = vadd.f32 %v4791, %v4801
        %v4834 = vadd.f32 %v4792, %v4801
        %v4835 = vadd.f32 %v4793, %v4801
        %v4836 = vadd.f32 %v4794, %v4801
        %v4837 = vadd.f32 %v4795, %v4801
        %v4838 = vadd.f32 %v4796, %v4801
        %v4839 = vmax.f32 %v4803, 0.0
        %v4840 = vmax.f32 %v4804, 0.0
        %v4841 = vmax.f32 %v4805, 0.0
        %v4842 = vmax.f32 %v4806, 0.0
        %v4843 = vmax.f32 %v4807, 0.0
        %v4844 = vmax.f32 %v4808, 0.0
        %v4845 = vmax.f32 %v4809, 0.0
        %v4846 = vmax.f32 %v4810, 0.0
        %v4847 = vmax.f32 %v4811, 0.0
        %v4848 = vmax.f32 %v4812, 0.0
        %v4849 = vmax.f32 %v4813, 0.0
        %v4850 = vmax.f32 %v4814, 0.0
        %v4851 = vmax.f32 %v4815, 0.0
        %v4852 = vmax.f32 %v4816, 0.0
        %v4853 = vmax.f32 %v4817, 0.0
        %v4854 = vmax.f32 %v4818, 0.0
        %v4855 = vmax.f32 %v4819, 0.0
        %v4856 = vmax.f32 %v4820, 0.0
        %v4857 = vmax.f32 %v4821, 0.0
        %v4858 = vmax.f32 %v4822, 0.0
        %v4859 = vmax.f32 %v4823, 0.0
        %v4860 = vmax.f32 %v4824, 0.0
        %v4861 = vmax.f32 %v4825, 0.0
        %v4862 = vmax.f32 %v4826, 0.0
        %v4863 = vmax.f32 %v4827, 0.0
        %v4864 = vmax.f32 %v4828, 0.0
        %v4865 = vmax.f32 %v4829, 0.0
        %v4866 = vmax.f32 %v4830, 0.0
        %v4867 = vmax.f32 %v4831, 0.0
        %v4868 = vmax.f32 %v4832, 0.0
        %v4869 = vmax.f32 %v4833, 0.0
        %v4870 = vmax.f32 %v4834, 0.0
        %v4871 = vmax.f32 %v4835, 0.0
        %v4872 = vmax.f32 %v4836, 0.0
        %v4873 = vmax.f32 %v4837, 0.0
        %v4874 = vmax.f32 %v4838, 0.0
        %v4875 = vsel %vm905, 1, 0
        %v4876 = vsel %vm906, 1, 0
        %v4877 = vsel %vm907, 1, 0
        %v4878 = vsel %vm908, 1, 0
        %v4879 = vsel %vm909, 1, 0
        %v4880 = vsel %vm910, 1, 0
        %v4881 = vsel %vm911, 1, 0
        %v4882 = vsel %vm912, 1, 0
        %v4883 = vsel %vm913, 1, 0
        %v4884 = vsel %vm914, 1, 0
        %v4885 = vsel %vm915, 1, 0
        %v4886 = vsel %vm916, 1, 0
        %v4887 = vsel %vm917, 1, 0
        %v4888 = vsel %vm918, 1, 0
        %v4889 = vsel %vm919, 1, 0
        %v4890 = vsel %vm920, 1, 0
        %v4891 = vsel %vm921, 1, 0
        %v4892 = vsel %vm922, 1, 0
        %v4893 = vsel %vm923, 1, 0
        %v4894 = vsel %vm924, 1, 0
        %v4895 = vsel %vm925, 1, 0
        %v4896 = vsel %vm926, 1, 0
        %v4897 = vsel %vm927, 1, 0
        %v4898 = vsel %vm928, 1, 0
        %v4899 = vsel %vm929, 1, 0
        %v4900 = vsel %vm930, 1, 0
        %v4901 = vsel %vm931, 1, 0
        %v4902 = vsel %vm932, 1, 0
        %v4903 = vsel %vm933, 1, 0
        %v4904 = vsel %vm934, 1, 0
        %v4905 = vsel %vm935, 1, 0
        %v4906 = vsel %vm936, 1, 0
        %v4907 = vsel %vm937, 1, 0
        %v4908 = vsel %vm938, 1, 0
        %v4909 = vsel %vm939, 1, 0
        %v4910 = vsel %vm940, 1, 0
        %vm4911 = vcmp.eq.s32.totalorder %v4875, 1
        %vm4912 = vcmp.eq.s32.totalorder %v4876, 1
        %vm4913 = vcmp.eq.s32.totalorder %v4877, 1
        %vm4914 = vcmp.eq.s32.totalorder %v4878, 1
        %vm4915 = vcmp.eq.s32.totalorder %v4879, 1
        %vm4916 = vcmp.eq.s32.totalorder %v4880, 1
        %vm4917 = vcmp.eq.s32.totalorder %v4881, 1
        %vm4918 = vcmp.eq.s32.totalorder %v4882, 1
        %vm4919 = vcmp.eq.s32.totalorder %v4883, 1
        %vm4920 = vcmp.eq.s32.totalorder %v4884, 1
        %vm4921 = vcmp.eq.s32.totalorder %v4885, 1
        %vm4922 = vcmp.eq.s32.totalorder %v4886, 1
        %vm4923 = vcmp.eq.s32.totalorder %v4887, 1
        %vm4924 = vcmp.eq.s32.totalorder %v4888, 1
        %vm4925 = vcmp.eq.s32.totalorder %v4889, 1
        %vm4926 = vcmp.eq.s32.totalorder %v4890, 1
        %vm4927 = vcmp.eq.s32.totalorder %v4891, 1
        %vm4928 = vcmp.eq.s32.totalorder %v4892, 1
        %vm4929 = vcmp.eq.s32.totalorder %v4893, 1
        %vm4930 = vcmp.eq.s32.totalorder %v4894, 1
        %vm4931 = vcmp.eq.s32.totalorder %v4895, 1
        %vm4932 = vcmp.eq.s32.totalorder %v4896, 1
        %vm4933 = vcmp.eq.s32.totalorder %v4897, 1
        %vm4934 = vcmp.eq.s32.totalorder %v4898, 1
        %vm4935 = vcmp.eq.s32.totalorder %v4899, 1
        %vm4936 = vcmp.eq.s32.totalorder %v4900, 1
        %vm4937 = vcmp.eq.s32.totalorder %v4901, 1
        %vm4938 = vcmp.eq.s32.totalorder %v4902, 1
        %vm4939 = vcmp.eq.s32.totalorder %v4903, 1
        %vm4940 = vcmp.eq.s32.totalorder %v4904, 1
        %vm4941 = vcmp.eq.s32.totalorder %v4905, 1
        %vm4942 = vcmp.eq.s32.totalorder %v4906, 1
        %vm4943 = vcmp.eq.s32.totalorder %v4907, 1
        %vm4944 = vcmp.eq.s32.totalorder %v4908, 1
        %vm4945 = vcmp.eq.s32.totalorder %v4909, 1
        %vm4946 = vcmp.eq.s32.totalorder %v4910, 1
        %v4947 = vsel %vm4911, %v4839, 0.0
        %v4948 = vsel %vm4912, %v4840, 0.0
        %v4949 = vsel %vm4913, %v4841, 0.0
        %v4950 = vsel %vm4914, %v4842, 0.0
        %v4951 = vsel %vm4915, %v4843, 0.0
        %v4952 = vsel %vm4916, %v4844, 0.0
        %v4953 = vsel %vm4917, %v4845, 0.0
        %v4954 = vsel %vm4918, %v4846, 0.0
        %v4955 = vsel %vm4919, %v4847, 0.0
        %v4956 = vsel %vm4920, %v4848, 0.0
        %v4957 = vsel %vm4921, %v4849, 0.0
        %v4958 = vsel %vm4922, %v4850, 0.0
        %v4959 = vsel %vm4923, %v4851, 0.0
        %v4960 = vsel %vm4924, %v4852, 0.0
        %v4961 = vsel %vm4925, %v4853, 0.0
        %v4962 = vsel %vm4926, %v4854, 0.0
        %v4963 = vsel %vm4927, %v4855, 0.0
        %v4964 = vsel %vm4928, %v4856, 0.0
        %v4965 = vsel %vm4929, %v4857, 0.0
        %v4966 = vsel %vm4930, %v4858, 0.0
        %v4967 = vsel %vm4931, %v4859, 0.0
        %v4968 = vsel %vm4932, %v4860, 0.0
        %v4969 = vsel %vm4933, %v4861, 0.0
        %v4970 = vsel %vm4934, %v4862, 0.0
        %v4971 = vsel %vm4935, %v4863, 0.0
        %v4972 = vsel %vm4936, %v4864, 0.0
        %v4973 = vsel %vm4937, %v4865, 0.0
        %v4974 = vsel %vm4938, %v4866, 0.0
        %v4975 = vsel %vm4939, %v4867, 0.0
        %v4976 = vsel %vm4940, %v4868, 0.0
        %v4977 = vsel %vm4941, %v4869, 0.0
        %v4978 = vsel %vm4942, %v4870, 0.0
        %v4979 = vsel %vm4943, %v4871, 0.0
        %v4980 = vsel %vm4944, %v4872, 0.0
        %v4981 = vsel %vm4945, %v4873, 0.0
        %v4982 = vsel %vm4946, %v4874, 0.0
        %4983 = vst [vmem:[#allocation2 + $0x13] sm:$0xff] %v4947
        %4984 = vst [vmem:[#allocation2 + $0x1b] sm:$0xff] %v4948
        %4985 = vst [vmem:[#allocation2 + $0x23] sm:$0xff] %v4949
        %4986 = vst [vmem:[#allocation2 + $0x2b] sm:$0xff] %v4950
        %4987 = vst [vmem:[#allocation2 + $0x33] sm:$0xff] %v4951
        %4988 = vst [vmem:[#allocation2 + $0x3b] sm:$0xff] %v4952
        %4989 = vst [vmem:[#allocation2 + $0x43] sm:$0xff] %v4953
        %4990 = vst [vmem:[#allocation2 + $0x4b] sm:$0xff] %v4954
        %4991 = vst [vmem:[#allocation2 + $0x53] sm:$0xff] %v4955
        %4992 = vst [vmem:[#allocation2 + $0x5b] sm:$0xff] %v4956
        %4993 = vst [vmem:[#allocation2 + $0x63] sm:$0xff] %v4957
        %4994 = vst [vmem:[#allocation2 + $0x6b] sm:$0xff] %v4958
        %4995 = vst [vmem:[#allocation2 + $0x73] sm:$0xff] %v4959
        %4996 = vst [vmem:[#allocation2 + $0x7b] sm:$0xff] %v4960
        %4997 = vst [vmem:[#allocation2 + $0x83] sm:$0xff] %v4961
        %4998 = vst [vmem:[#allocation2 + $0x8b] sm:$0xff] %v4962
        %4999 = vst [vmem:[#allocation2 + $0x93] sm:$0xff] %v4963
        %5000 = vst [vmem:[#allocation2 + $0x9b] sm:$0xff] %v4964
        %5001 = vst [vmem:[#allocation2 + $0xa3] sm:$0xff] %v4965
        %5002 = vst [vmem:[#allocation2 + $0xab] sm:$0xff] %v4966
        %5003 = vst [vmem:[#allocation2 + $0xb3] sm:$0xff] %v4967
        %5004 = vst [vmem:[#allocation2 + $0xbb] sm:$0xff] %v4968
        %5005 = vst [vmem:[#allocation2 + $0xc3] sm:$0xff] %v4969
        %5006 = vst [vmem:[#allocation2 + $0xcb] sm:$0xff] %v4970
        %5007 = vst [vmem:[#allocation2 + $0xd3] sm:$0xff] %v4971
        %5008 = vst [vmem:[#allocation2 + $0xdb] sm:$0xff] %v4972
        %5009 = vst [vmem:[#allocation2 + $0xe3] sm:$0xff] %v4973
        %5010 = vst [vmem:[#allocation2 + $0xeb] sm:$0xff] %v4974
        %5011 = vst [vmem:[#allocation2 + $0xf3] sm:$0xff] %v4975
        %5012 = vst [vmem:[#allocation2 + $0xfb] sm:$0xff] %v4976
        %5013 = vst [vmem:[#allocation2 + $0x103] sm:$0xff] %v4977
        %5014 = vst [vmem:[#allocation2 + $0x10b] sm:$0xff] %v4978
        %5015 = vst [vmem:[#allocation2 + $0x113] sm:$0xff] %v4979
        %5016 = vst [vmem:[#allocation2 + $0x11b] sm:$0xff] %v4980
        %5017 = vst [vmem:[#allocation2 + $0x123] sm:$0xff] %v4981
        %5018 = vst [vmem:[#allocation2 + $0x12b] sm:$0xff] %v4982
        %v5019 = vld [vmem:[%s5] sm:$0x1]
        %v5020 = vld [vmem:[%s6] sm:$0x1]
        %v5021 = vld [vmem:[#allocation2] sm:$0xff]
        %v5022 = vld [vmem:[#allocation2 + $0x8] sm:$0xff]
        %v5023 = vld [vmem:[#allocation2 + $0x10] sm:$0xff]
        %v5024 = vld [vmem:[#allocation2 + $0x18] sm:$0xff]
        %v5025 = vld [vmem:[#allocation2 + $0x20] sm:$0xff]
        %v5026 = vld [vmem:[#allocation2 + $0x28] sm:$0xff]
        %v5027 = vld [vmem:[#allocation2 + $0x30] sm:$0xff]
        %v5028 = vld [vmem:[#allocation2 + $0x38] sm:$0xff]
        %v5029 = vld [vmem:[#allocation2 + $0x40] sm:$0xff]
        %v5030 = vld [vmem:[#allocation2 + $0x48] sm:$0xff]
        %v5031 = vld [vmem:[#allocation2 + $0x50] sm:$0xff]
        %v5032 = vld [vmem:[#allocation2 + $0x58] sm:$0xff]
        %v5033 = vld [vmem:[#allocation2 + $0x60] sm:$0xff]
        %v5034 = vld [vmem:[#allocation2 + $0x68] sm:$0xff]
        %v5035 = vld [vmem:[#allocation2 + $0x70] sm:$0xff]
        %v5036 = vld [vmem:[#allocation2 + $0x78] sm:$0xff]
        %v5037 = vld [vmem:[#allocation2 + $0x80] sm:$0xff]
        %v5038 = vld [vmem:[#allocation2 + $0x88] sm:$0xff]
        %v5039 = vld [vmem:[#allocation2 + $0x90] sm:$0xff]
        %v5040 = vld [vmem:[#allocation2 + $0x98] sm:$0xff]
        %v5041 = vld [vmem:[#allocation2 + $0xa0] sm:$0xff]
        %v5042 = vld [vmem:[#allocation2 + $0xa8] sm:$0xff]
        %v5043 = vld [vmem:[#allocation2 + $0xb0] sm:$0xff]
        %v5044 = vld [vmem:[#allocation2 + $0xb8] sm:$0xff]
        %v5045 = vld [vmem:[#allocation2 + $0xc0] sm:$0xff]
        %v5046 = vld [vmem:[#allocation2 + $0xc8] sm:$0xff]
        %v5047 = vld [vmem:[#allocation2 + $0xd0] sm:$0xff]
        %v5048 = vld [vmem:[#allocation2 + $0xd8] sm:$0xff]
        %v5049 = vld [vmem:[#allocation2 + $0xe0] sm:$0xff]
        %v5050 = vld [vmem:[#allocation2 + $0xe8] sm:$0xff]
        %v5051 = vld [vmem:[#allocation2 + $0xf0] sm:$0xff]
        %v5052 = vld [vmem:[#allocation2 + $0xf8] sm:$0xff]
        %v5053 = vld [vmem:[#allocation2 + $0x100] sm:$0xff]
        %v5054 = vld [vmem:[#allocation2 + $0x108] sm:$0xff]
        %v5055 = vld [vmem:[#allocation2 + $0x110] sm:$0xff]
        %v5056 = vld [vmem:[#allocation2 + $0x118] sm:$0xff]
        %v5057 = vld [vmem:[#allocation3] sm:$0xff]
        %v5058 = vld [vmem:[#allocation3 + $0x8] sm:$0xff]
        %v5059 = vld [vmem:[#allocation3 + $0x10] sm:$0xff]
        %v5060 = vld [vmem:[#allocation3 + $0x18] sm:$0xff]
        %v5061 = vld [vmem:[#allocation3 + $0x20] sm:$0xff]
        %v5062 = vld [vmem:[#allocation3 + $0x28] sm:$0xff]
        %v5063 = vld [vmem:[#allocation3 + $0x30] sm:$0xff]
        %v5064 = vld [vmem:[#allocation3 + $0x38] sm:$0xff]
        %v5065 = vld [vmem:[#allocation3 + $0x40] sm:$0xff]
        %v5066 = vld [vmem:[#allocation3 + $0x48] sm:$0xff]
        %v5067 = vld [vmem:[#allocation3 + $0x50] sm:$0xff]
        %v5068 = vld [vmem:[#allocation3 + $0x58] sm:$0xff]
        %v5069 = vld [vmem:[#allocation3 + $0x60] sm:$0xff]
        %v5070 = vld [vmem:[#allocation3 + $0x68] sm:$0xff]
        %v5071 = vld [vmem:[#allocation3 + $0x70] sm:$0xff]
        %v5072 = vld [vmem:[#allocation3 + $0x78] sm:$0xff]
        %v5073 = vld [vmem:[#allocation2 + $0x1] sm:$0xff]
        %v5074 = vld [vmem:[#allocation2 + $0x9] sm:$0xff]
        %v5075 = vld [vmem:[#allocation2 + $0x11] sm:$0xff]
        %v5076 = vld [vmem:[#allocation2 + $0x19] sm:$0xff]
        %v5077 = vld [vmem:[#allocation2 + $0x21] sm:$0xff]
        %v5078 = vld [vmem:[#allocation2 + $0x29] sm:$0xff]
        %v5079 = vld [vmem:[#allocation2 + $0x31] sm:$0xff]
        %v5080 = vld [vmem:[#allocation2 + $0x39] sm:$0xff]
        %v5081 = vld [vmem:[#allocation2 + $0x41] sm:$0xff]
        %v5082 = vld [vmem:[#allocation2 + $0x49] sm:$0xff]
        %v5083 = vld [vmem:[#allocation2 + $0x51] sm:$0xff]
        %v5084 = vld [vmem:[#allocation2 + $0x59] sm:$0xff]
        %v5085 = vld [vmem:[#allocation2 + $0x61] sm:$0xff]
        %v5086 = vld [vmem:[#allocation2 + $0x69] sm:$0xff]
        %v5087 = vld [vmem:[#allocation2 + $0x71] sm:$0xff]
        %v5088 = vld [vmem:[#allocation2 + $0x79] sm:$0xff]
        %v5089 = vld [vmem:[#allocation2 + $0x81] sm:$0xff]
        %v5090 = vld [vmem:[#allocation2 + $0x89] sm:$0xff]
        %v5091 = vld [vmem:[#allocation2 + $0x91] sm:$0xff]
        %v5092 = vld [vmem:[#allocation2 + $0x99] sm:$0xff]
        %v5093 = vld [vmem:[#allocation2 + $0xa1] sm:$0xff]
        %v5094 = vld [vmem:[#allocation2 + $0xa9] sm:$0xff]
        %v5095 = vld [vmem:[#allocation2 + $0xb1] sm:$0xff]
        %v5096 = vld [vmem:[#allocation2 + $0xb9] sm:$0xff]
        %v5097 = vld [vmem:[#allocation2 + $0xc1] sm:$0xff]
        %v5098 = vld [vmem:[#allocation2 + $0xc9] sm:$0xff]
        %v5099 = vld [vmem:[#allocation2 + $0xd1] sm:$0xff]
        %v5100 = vld [vmem:[#allocation2 + $0xd9] sm:$0xff]
        %v5101 = vld [vmem:[#allocation2 + $0xe1] sm:$0xff]
        %v5102 = vld [vmem:[#allocation2 + $0xe9] sm:$0xff]
        %v5103 = vld [vmem:[#allocation2 + $0xf1] sm:$0xff]
        %v5104 = vld [vmem:[#allocation2 + $0xf9] sm:$0xff]
        %v5105 = vld [vmem:[#allocation2 + $0x101] sm:$0xff]
        %v5106 = vld [vmem:[#allocation2 + $0x109] sm:$0xff]
        %v5107 = vld [vmem:[#allocation2 + $0x111] sm:$0xff]
        %v5108 = vld [vmem:[#allocation2 + $0x119] sm:$0xff]
        %s5109 = scalar_lea.vmem [#allocation3], 128
        %v5110 = vld [vmem:[%s5109] sm:$0xff]
        %v5111 = vld [vmem:[%s5109 + $0x8] sm:$0xff]
        %v5112 = vld [vmem:[%s5109 + $0x10] sm:$0xff]
        %v5113 = vld [vmem:[%s5109 + $0x18] sm:$0xff]
        %v5114 = vld [vmem:[%s5109 + $0x20] sm:$0xff]
        %v5115 = vld [vmem:[%s5109 + $0x28] sm:$0xff]
        %v5116 = vld [vmem:[%s5109 + $0x30] sm:$0xff]
        %v5117 = vld [vmem:[%s5109 + $0x38] sm:$0xff]
        %v5118 = vld [vmem:[%s5109 + $0x40] sm:$0xff]
        %v5119 = vld [vmem:[%s5109 + $0x48] sm:$0xff]
        %v5120 = vld [vmem:[%s5109 + $0x50] sm:$0xff]
        %v5121 = vld [vmem:[%s5109 + $0x58] sm:$0xff]
        %v5122 = vld [vmem:[%s5109 + $0x60] sm:$0xff]
        %v5123 = vld [vmem:[%s5109 + $0x68] sm:$0xff]
        %v5124 = vld [vmem:[%s5109 + $0x70] sm:$0xff]
        %v5125 = vld [vmem:[%s5109 + $0x78] sm:$0xff]
        %5126 = vmatprep.subr.mxu0 0.0
        %5127 = vmatpush1.msra.mxu0 %v5110
        %5128 = vmatprep.subr.mxu0 0.0
        %5129 = vmatpush1.msra.mxu0 %v5111
        %5130 = vmatprep.subr.mxu0 0.0
        %5131 = vmatpush1.msra.mxu0 %v5112
        %5132 = vmatprep.subr.mxu0 0.0
        %5133 = vmatpush1.msra.mxu0 %v5113
        %5134 = vmatprep.subr.mxu0 0.0
        %5135 = vmatpush1.msra.mxu0 %v5114
        %5136 = vmatprep.subr.mxu0 0.0
        %5137 = vmatpush1.msra.mxu0 %v5115
        %5138 = vmatprep.subr.mxu0 0.0
        %5139 = vmatpush1.msra.mxu0 %v5116
        %5140 = vmatprep.subr.mxu0 0.0
        %5141 = vmatpush1.msra.mxu0 %v5117
        %5142 = vmatprep.subr.mxu0 0.0
        %5143 = vmatpush1.msra.mxu0 %v5118
        %5144 = vmatprep.subr.mxu0 0.0
        %5145 = vmatpush1.msra.mxu0 %v5119
        %5146 = vmatprep.subr.mxu0 0.0
        %5147 = vmatpush1.msra.mxu0 %v5120
        %5148 = vmatprep.subr.mxu0 0.0
        %5149 = vmatpush1.msra.mxu0 %v5121
        %5150 = vmatprep.subr.mxu0 0.0
        %5151 = vmatpush1.msra.mxu0 %v5122
        %5152 = vmatprep.subr.mxu0 0.0
        %5153 = vmatpush1.msra.mxu0 %v5123
        %5154 = vmatprep.subr.mxu0 0.0
        %5155 = vmatpush1.msra.mxu0 %v5124
        %5156 = vmatprep.subr.mxu0 0.0
        %5157 = vmatpush1.msra.mxu0 %v5125
        %5158 = vmatprep.subr.mxu0 0.0
        %5159 = vmatpush1.msra.mxu0 0.0
        %5160 = vmatprep.subr.mxu0 0.0
        %5161 = vmatpush1.msra.mxu0 0.0
        %5162 = vmatprep.subr.mxu0 0.0
        %5163 = vmatpush1.msra.mxu0 0.0
        %5164 = vmatprep.subr.mxu0 0.0
        %5165 = vmatpush1.msra.mxu0 0.0
        %5166 = vmatprep.subr.mxu0 0.0
        %5167 = vmatpush1.msra.mxu0 0.0
        %5168 = vmatprep.subr.mxu0 0.0
        %5169 = vmatpush1.msra.mxu0 0.0
        %5170 = vmatprep.subr.mxu0 0.0
        %5171 = vmatpush1.msra.mxu0 0.0
        %5172 = vmatprep.subr.mxu0 0.0
        %5173 = vmatpush1.msra.mxu0 0.0
        %5174 = vmatprep.subr.mxu0 0.0
        %5175 = vmatpush1.msra.mxu0 0.0
        %5176 = vmatprep.subr.mxu0 0.0
        %5177 = vmatpush1.msra.mxu0 0.0
        %5178 = vmatprep.subr.mxu0 0.0
        %5179 = vmatpush1.msra.mxu0 0.0
        %5180 = vmatprep.subr.mxu0 0.0
        %5181 = vmatpush1.msra.mxu0 0.0
        %5182 = vmatprep.subr.mxu0 0.0
        %5183 = vmatpush1.msra.mxu0 0.0
        %5184 = vmatprep.subr.mxu0 0.0
        %5185 = vmatpush1.msra.mxu0 0.0
        %5186 = vmatprep.subr.mxu0 0.0
        %5187 = vmatpush1.msra.mxu0 0.0
        %5188 = vmatprep.subr.mxu0 0.0
        %5189 = vmatpush1.msra.mxu0 0.0
        %5190 = vmatprep.mubr.f32.mxu0 0.0
        %5191 = vmatmul.mubr.f32.gmra.mrb[0].mxu0 %v5073
        %v5192 = vpop.f32.mrb[0].mxu0
        %v5193 = vadd.f32 0.0, %v5192
        %v5194 = vpop.f32.mrb[0].mxu0
        %5195 = vmatprep.mubr.f32.mxu0 0.0
        %5196 = vmatmul.mubr.f32.gmra.mrb[0].mxu0 %v5074
        %v5197 = vpop.f32.mrb[0].mxu0
        %v5198 = vadd.f32 0.0, %v5197
        %v5199 = vpop.f32.mrb[0].mxu0
        %5200 = vmatprep.mubr.f32.mxu0 0.0
        %5201 = vmatmul.mubr.f32.gmra.mrb[0].mxu0 %v5075
        %v5202 = vpop.f32.mrb[0].mxu0
        %v5203 = vadd.f32 0.0, %v5202
        %v5204 = vpop.f32.mrb[0].mxu0
        %5205 = vmatprep.mubr.f32.mxu0 0.0
        %5206 = vmatmul.mubr.f32.gmra.mrb[0].mxu0 %v5076
        %v5207 = vpop.f32.mrb[0].mxu0
        %v5208 = vadd.f32 0.0, %v5207
        %v5209 = vpop.f32.mrb[0].mxu0
        %5210 = vmatprep.mubr.f32.mxu0 0.0
        %5211 = vmatmul.mubr.f32.gmra.mrb[0].mxu0 %v5077
        %v5212 = vpop.f32.mrb[0].mxu0
        %v5213 = vadd.f32 0.0, %v5212
        %v5214 = vpop.f32.mrb[0].mxu0
        %5215 = vmatprep.mubr.f32.mxu0 0.0
        %5216 = vmatmul.mubr.f32.gmra.mrb[0].mxu0 %v5078
        %v5217 = vpop.f32.mrb[0].mxu0
        %v5218 = vadd.f32 0.0, %v5217
        %v5219 = vpop.f32.mrb[0].mxu0
        %5220 = vmatprep.mubr.f32.mxu0 0.0
        %5221 = vmatmul.mubr.f32.gmra.mrb[0].mxu0 %v5079
        %v5222 = vpop.f32.mrb[0].mxu0
        %v5223 = vadd.f32 0.0, %v5222
        %v5224 = vpop.f32.mrb[0].mxu0
        %5225 = vmatprep.mubr.f32.mxu0 0.0
        %5226 = vmatmul.mubr.f32.gmra.mrb[0].mxu0 %v5080
        %v5227 = vpop.f32.mrb[0].mxu0
        %v5228 = vadd.f32 0.0, %v5227
        %v5229 = vpop.f32.mrb[0].mxu0
        %5230 = vmatprep.mubr.f32.mxu0 0.0
        %5231 = vmatmul.mubr.f32.gmra.mrb[0].mxu0 %v5081
        %v5232 = vpop.f32.mrb[0].mxu0
        %v5233 = vadd.f32 0.0, %v5232
        %v5234 = vpop.f32.mrb[0].mxu0
        %5235 = vmatprep.mubr.f32.mxu0 0.0
        %5236 = vmatmul.mubr.f32.gmra.mrb[0].mxu0 %v5082
        %v5237 = vpop.f32.mrb[0].mxu0
        %v5238 = vadd.f32 0.0, %v5237
        %v5239 = vpop.f32.mrb[0].mxu0
        %5240 = vmatprep.mubr.f32.mxu0 0.0
        %5241 = vmatmul.mubr.f32.gmra.mrb[0].mxu0 %v5083
        %v5242 = vpop.f32.mrb[0].mxu0
        %v5243 = vadd.f32 0.0, %v5242
        %v5244 = vpop.f32.mrb[0].mxu0
        %5245 = vmatprep.mubr.f32.mxu0 0.0
        %5246 = vmatmul.mubr.f32.gmra.mrb[0].mxu0 %v5084
        %v5247 = vpop.f32.mrb[0].mxu0
        %v5248 = vadd.f32 0.0, %v5247
        %v5249 = vpop.f32.mrb[0].mxu0
        %5250 = vmatprep.mubr.f32.mxu0 0.0
        %5251 = vmatmul.mubr.f32.gmra.mrb[0].mxu0 %v5085
        %v5252 = vpop.f32.mrb[0].mxu0
        %v5253 = vadd.f32 0.0, %v5252
        %v5254 = vpop.f32.mrb[0].mxu0
        %5255 = vmatprep.mubr.f32.mxu0 0.0
        %5256 = vmatmul.mubr.f32.gmra.mrb[0].mxu0 %v5086
        %v5257 = vpop.f32.mrb[0].mxu0
        %v5258 = vadd.f32 0.0, %v5257
        %v5259 = vpop.f32.mrb[0].mxu0
        %5260 = vmatprep.mubr.f32.mxu0 0.0
        %5261 = vmatmul.mubr.f32.gmra.mrb[0].mxu0 %v5087
        %v5262 = vpop.f32.mrb[0].mxu0
        %v5263 = vadd.f32 0.0, %v5262
        %v5264 = vpop.f32.mrb[0].mxu0
        %5265 = vmatprep.mubr.f32.mxu0 0.0
        %5266 = vmatmul.mubr.f32.gmra.mrb[0].mxu0 %v5088
        %v5267 = vpop.f32.mrb[0].mxu0
        %v5268 = vadd.f32 0.0, %v5267
        %v5269 = vpop.f32.mrb[0].mxu0
        %5270 = vmatprep.mubr.f32.mxu0 0.0
        %5271 = vmatmul.mubr.f32.gmra.mrb[0].mxu0 %v5089
        %v5272 = vpop.f32.mrb[0].mxu0
        %v5273 = vadd.f32 0.0, %v5272
        %v5274 = vpop.f32.mrb[0].mxu0
        %5275 = vmatprep.mubr.f32.mxu0 0.0
        %5276 = vmatmul.mubr.f32.gmra.mrb[0].mxu0 %v5090
        %v5277 = vpop.f32.mrb[0].mxu0
        %v5278 = vadd.f32 0.0, %v5277
        %v5279 = vpop.f32.mrb[0].mxu0
        %5280 = vmatprep.mubr.f32.mxu0 0.0
        %5281 = vmatmul.mubr.f32.gmra.mrb[0].mxu0 %v5091
        %v5282 = vpop.f32.mrb[0].mxu0
        %v5283 = vadd.f32 0.0, %v5282
        %v5284 = vpop.f32.mrb[0].mxu0
        %5285 = vmatprep.mubr.f32.mxu0 0.0
        %5286 = vmatmul.mubr.f32.gmra.mrb[0].mxu0 %v5092
        %v5287 = vpop.f32.mrb[0].mxu0
        %v5288 = vadd.f32 0.0, %v5287
        %v5289 = vpop.f32.mrb[0].mxu0
        %5290 = vmatprep.mubr.f32.mxu0 0.0
        %5291 = vmatmul.mubr.f32.gmra.mrb[0].mxu0 %v5093
        %v5292 = vpop.f32.mrb[0].mxu0
        %v5293 = vadd.f32 0.0, %v5292
        %v5294 = vpop.f32.mrb[0].mxu0
        %5295 = vmatprep.mubr.f32.mxu0 0.0
        %5296 = vmatmul.mubr.f32.gmra.mrb[0].mxu0 %v5094
        %v5297 = vpop.f32.mrb[0].mxu0
        %v5298 = vadd.f32 0.0, %v5297
        %v5299 = vpop.f32.mrb[0].mxu0
        %5300 = vmatprep.mubr.f32.mxu0 0.0
        %5301 = vmatmul.mubr.f32.gmra.mrb[0].mxu0 %v5095
        %v5302 = vpop.f32.mrb[0].mxu0
        %v5303 = vadd.f32 0.0, %v5302
        %v5304 = vpop.f32.mrb[0].mxu0
        %5305 = vmatprep.mubr.f32.mxu0 0.0
        %5306 = vmatmul.mubr.f32.gmra.mrb[0].mxu0 %v5096
        %v5307 = vpop.f32.mrb[0].mxu0
        %v5308 = vadd.f32 0.0, %v5307
        %v5309 = vpop.f32.mrb[0].mxu0
        %5310 = vmatprep.mubr.f32.mxu0 0.0
        %5311 = vmatmul.mubr.f32.gmra.mrb[0].mxu0 %v5097
        %v5312 = vpop.f32.mrb[0].mxu0
        %v5313 = vadd.f32 0.0, %v5312
        %v5314 = vpop.f32.mrb[0].mxu0
        %5315 = vmatprep.mubr.f32.mxu0 0.0
        %5316 = vmatmul.mubr.f32.gmra.mrb[0].mxu0 %v5098
        %v5317 = vpop.f32.mrb[0].mxu0
        %v5318 = vadd.f32 0.0, %v5317
        %v5319 = vpop.f32.mrb[0].mxu0
        %5320 = vmatprep.mubr.f32.mxu0 0.0
        %5321 = vmatmul.mubr.f32.gmra.mrb[0].mxu0 %v5099
        %v5322 = vpop.f32.mrb[0].mxu0
        %v5323 = vadd.f32 0.0, %v5322
        %v5324 = vpop.f32.mrb[0].mxu0
        %5325 = vmatprep.mubr.f32.mxu0 0.0
        %5326 = vmatmul.mubr.f32.gmra.mrb[0].mxu0 %v5100
        %v5327 = vpop.f32.mrb[0].mxu0
        %v5328 = vadd.f32 0.0, %v5327
        %v5329 = vpop.f32.mrb[0].mxu0
        %5330 = vmatprep.mubr.f32.mxu0 0.0
        %5331 = vmatmul.mubr.f32.gmra.mrb[0].mxu0 %v5101
        %v5332 = vpop.f32.mrb[0].mxu0
        %v5333 = vadd.f32 0.0, %v5332
        %v5334 = vpop.f32.mrb[0].mxu0
        %5335 = vmatprep.mubr.f32.mxu0 0.0
        %5336 = vmatmul.mubr.f32.gmra.mrb[0].mxu0 %v5102
        %v5337 = vpop.f32.mrb[0].mxu0
        %v5338 = vadd.f32 0.0, %v5337
        %v5339 = vpop.f32.mrb[0].mxu0
        %5340 = vmatprep.mubr.f32.mxu0 0.0
        %5341 = vmatmul.mubr.f32.gmra.mrb[0].mxu0 %v5103
        %v5342 = vpop.f32.mrb[0].mxu0
        %v5343 = vadd.f32 0.0, %v5342
        %v5344 = vpop.f32.mrb[0].mxu0
        %5345 = vmatprep.mubr.f32.mxu0 0.0
        %5346 = vmatmul.mubr.f32.gmra.mrb[0].mxu0 %v5104
        %v5347 = vpop.f32.mrb[0].mxu0
        %v5348 = vadd.f32 0.0, %v5347
        %v5349 = vpop.f32.mrb[0].mxu0
        %5350 = vmatprep.mubr.f32.mxu0 0.0
        %5351 = vmatmul.mubr.f32.gmra.mrb[0].mxu0 %v5105
        %v5352 = vpop.f32.mrb[0].mxu0
        %v5353 = vadd.f32 0.0, %v5352
        %v5354 = vpop.f32.mrb[0].mxu0
        %5355 = vmatprep.mubr.f32.mxu0 0.0
        %5356 = vmatmul.mubr.f32.gmra.mrb[0].mxu0 %v5106
        %v5357 = vpop.f32.mrb[0].mxu0
        %v5358 = vadd.f32 0.0, %v5357
        %v5359 = vpop.f32.mrb[0].mxu0
        %5360 = vmatprep.mubr.f32.mxu0 0.0
        %5361 = vmatmul.mubr.f32.gmra.mrb[0].mxu0 %v5107
        %v5362 = vpop.f32.mrb[0].mxu0
        %v5363 = vadd.f32 0.0, %v5362
        %v5364 = vpop.f32.mrb[0].mxu0
        %5365 = vmatprep.mubr.f32.mxu0 0.0
        %5366 = vmatmul.mubr.f32.gmra.mrb[0].mxu0 %v5108
        %v5367 = vpop.f32.mrb[0].mxu0
        %v5368 = vadd.f32 0.0, %v5367
        %v5369 = vpop.f32.mrb[0].mxu0
        %5370 = vdwg.mxu0
        %5371 = vmatprep.subr.mxu0 0.0
        %5372 = vmatpush1.msra.mxu0 %v5057
        %5373 = vmatprep.subr.mxu0 0.0
        %5374 = vmatpush1.msra.mxu0 %v5058
        %5375 = vmatprep.subr.mxu0 0.0
        %5376 = vmatpush1.msra.mxu0 %v5059
        %5377 = vmatprep.subr.mxu0 0.0
        %5378 = vmatpush1.msra.mxu0 %v5060
        %5379 = vmatprep.subr.mxu0 0.0
        %5380 = vmatpush1.msra.mxu0 %v5061
        %5381 = vmatprep.subr.mxu0 0.0
        %5382 = vmatpush1.msra.mxu0 %v5062
        %5383 = vmatprep.subr.mxu0 0.0
        %5384 = vmatpush1.msra.mxu0 %v5063
        %5385 = vmatprep.subr.mxu0 0.0
        %5386 = vmatpush1.msra.mxu0 %v5064
        %5387 = vmatprep.subr.mxu0 0.0
        %5388 = vmatpush1.msra.mxu0 %v5065
        %5389 = vmatprep.subr.mxu0 0.0
        %5390 = vmatpush1.msra.mxu0 %v5066
        %5391 = vmatprep.subr.mxu0 0.0
        %5392 = vmatpush1.msra.mxu0 %v5067
        %5393 = vmatprep.subr.mxu0 0.0
        %5394 = vmatpush1.msra.mxu0 %v5068
        %5395 = vmatprep.subr.mxu0 0.0
        %5396 = vmatpush1.msra.mxu0 %v5069
        %5397 = vmatprep.subr.mxu0 0.0
        %5398 = vmatpush1.msra.mxu0 %v5070
        %5399 = vmatprep.subr.mxu0 0.0
        %5400 = vmatpush1.msra.mxu0 %v5071
        %5401 = vmatprep.subr.mxu0 0.0
        %5402 = vmatpush1.msra.mxu0 %v5072
        %5403 = vmatprep.subr.mxu0 0.0
        %5404 = vmatpush1.msra.mxu0 0.0
        %5405 = vmatprep.subr.mxu0 0.0
        %5406 = vmatpush1.msra.mxu0 0.0
        %5407 = vmatprep.subr.mxu0 0.0
        %5408 = vmatpush1.msra.mxu0 0.0
        %5409 = vmatprep.subr.mxu0 0.0
        %5410 = vmatpush1.msra.mxu0 0.0
        %5411 = vmatprep.subr.mxu0 0.0
        %5412 = vmatpush1.msra.mxu0 0.0
        %5413 = vmatprep.subr.mxu0 0.0
        %5414 = vmatpush1.msra.mxu0 0.0
        %5415 = vmatprep.subr.mxu0 0.0
        %5416 = vmatpush1.msra.mxu0 0.0
        %5417 = vmatprep.subr.mxu0 0.0
        %5418 = vmatpush1.msra.mxu0 0.0
        %5419 = vmatprep.subr.mxu0 0.0
        %5420 = vmatpush1.msra.mxu0 0.0
        %5421 = vmatprep.subr.mxu0 0.0
        %5422 = vmatpush1.msra.mxu0 0.0
        %5423 = vmatprep.subr.mxu0 0.0
        %5424 = vmatpush1.msra.mxu0 0.0
        %5425 = vmatprep.subr.mxu0 0.0
        %5426 = vmatpush1.msra.mxu0 0.0
        %5427 = vmatprep.subr.mxu0 0.0
        %5428 = vmatpush1.msra.mxu0 0.0
        %5429 = vmatprep.subr.mxu0 0.0
        %5430 = vmatpush1.msra.mxu0 0.0
        %5431 = vmatprep.subr.mxu0 0.0
        %5432 = vmatpush1.msra.mxu0 0.0
        %5433 = vmatprep.subr.mxu0 0.0
        %5434 = vmatpush1.msra.mxu0 0.0
        %5435 = vmatprep.mubr.f32.mxu0 0.0
        %5436 = vmatmul.mubr.f32.gmra.mrb[0].mxu0 %v5021
        %v5437 = vpop.f32.mrb[0].mxu0
        %v5438 = vadd.f32 %v5193, %v5437
        %v5439 = vpop.f32.mrb[0].mxu0
        %5440 = vmatprep.mubr.f32.mxu0 0.0
        %5441 = vmatmul.mubr.f32.gmra.mrb[0].mxu0 %v5022
        %v5442 = vpop.f32.mrb[0].mxu0
        %v5443 = vadd.f32 %v5198, %v5442
        %v5444 = vpop.f32.mrb[0].mxu0
        %5445 = vmatprep.mubr.f32.mxu0 0.0
        %5446 = vmatmul.mubr.f32.gmra.mrb[0].mxu0 %v5023
        %v5447 = vpop.f32.mrb[0].mxu0
        %v5448 = vadd.f32 %v5203, %v5447
        %v5449 = vpop.f32.mrb[0].mxu0
        %5450 = vmatprep.mubr.f32.mxu0 0.0
        %5451 = vmatmul.mubr.f32.gmra.mrb[0].mxu0 %v5024
        %v5452 = vpop.f32.mrb[0].mxu0
        %v5453 = vadd.f32 %v5208, %v5452
        %v5454 = vpop.f32.mrb[0].mxu0
        %5455 = vmatprep.mubr.f32.mxu0 0.0
        %5456 = vmatmul.mubr.f32.gmra.mrb[0].mxu0 %v5025
        %v5457 = vpop.f32.mrb[0].mxu0
        %v5458 = vadd.f32 %v5213, %v5457
        %v5459 = vpop.f32.mrb[0].mxu0
        %5460 = vmatprep.mubr.f32.mxu0 0.0
        %5461 = vmatmul.mubr.f32.gmra.mrb[0].mxu0 %v5026
        %v5462 = vpop.f32.mrb[0].mxu0
        %v5463 = vadd.f32 %v5218, %v5462
        %v5464 = vpop.f32.mrb[0].mxu0
        %5465 = vmatprep.mubr.f32.mxu0 0.0
        %5466 = vmatmul.mubr.f32.gmra.mrb[0].mxu0 %v5027
        %v5467 = vpop.f32.mrb[0].mxu0
        %v5468 = vadd.f32 %v5223, %v5467
        %v5469 = vpop.f32.mrb[0].mxu0
        %5470 = vmatprep.mubr.f32.mxu0 0.0
        %5471 = vmatmul.mubr.f32.gmra.mrb[0].mxu0 %v5028
        %v5472 = vpop.f32.mrb[0].mxu0
        %v5473 = vadd.f32 %v5228, %v5472
        %v5474 = vpop.f32.mrb[0].mxu0
        %5475 = vmatprep.mubr.f32.mxu0 0.0
        %5476 = vmatmul.mubr.f32.gmra.mrb[0].mxu0 %v5029
        %v5477 = vpop.f32.mrb[0].mxu0
        %v5478 = vadd.f32 %v5233, %v5477
        %v5479 = vpop.f32.mrb[0].mxu0
        %5480 = vmatprep.mubr.f32.mxu0 0.0
        %5481 = vmatmul.mubr.f32.gmra.mrb[0].mxu0 %v5030
        %v5482 = vpop.f32.mrb[0].mxu0
        %v5483 = vadd.f32 %v5238, %v5482
        %v5484 = vpop.f32.mrb[0].mxu0
        %5485 = vmatprep.mubr.f32.mxu0 0.0
        %5486 = vmatmul.mubr.f32.gmra.mrb[0].mxu0 %v5031
        %v5487 = vpop.f32.mrb[0].mxu0
        %v5488 = vadd.f32 %v5243, %v5487
        %v5489 = vpop.f32.mrb[0].mxu0
        %5490 = vmatprep.mubr.f32.mxu0 0.0
        %5491 = vmatmul.mubr.f32.gmra.mrb[0].mxu0 %v5032
        %v5492 = vpop.f32.mrb[0].mxu0
        %v5493 = vadd.f32 %v5248, %v5492
        %v5494 = vpop.f32.mrb[0].mxu0
        %5495 = vmatprep.mubr.f32.mxu0 0.0
        %5496 = vmatmul.mubr.f32.gmra.mrb[0].mxu0 %v5033
        %v5497 = vpop.f32.mrb[0].mxu0
        %v5498 = vadd.f32 %v5253, %v5497
        %v5499 = vpop.f32.mrb[0].mxu0
        %5500 = vmatprep.mubr.f32.mxu0 0.0
        %5501 = vmatmul.mubr.f32.gmra.mrb[0].mxu0 %v5034
        %v5502 = vpop.f32.mrb[0].mxu0
        %v5503 = vadd.f32 %v5258, %v5502
        %v5504 = vpop.f32.mrb[0].mxu0
        %5505 = vmatprep.mubr.f32.mxu0 0.0
        %5506 = vmatmul.mubr.f32.gmra.mrb[0].mxu0 %v5035
        %v5507 = vpop.f32.mrb[0].mxu0
        %v5508 = vadd.f32 %v5263, %v5507
        %v5509 = vpop.f32.mrb[0].mxu0
        %5510 = vmatprep.mubr.f32.mxu0 0.0
        %5511 = vmatmul.mubr.f32.gmra.mrb[0].mxu0 %v5036
        %v5512 = vpop.f32.mrb[0].mxu0
        %v5513 = vadd.f32 %v5268, %v5512
        %v5514 = vpop.f32.mrb[0].mxu0
        %5515 = vmatprep.mubr.f32.mxu0 0.0
        %5516 = vmatmul.mubr.f32.gmra.mrb[0].mxu0 %v5037
        %v5517 = vpop.f32.mrb[0].mxu0
        %v5518 = vadd.f32 %v5273, %v5517
        %v5519 = vpop.f32.mrb[0].mxu0
        %5520 = vmatprep.mubr.f32.mxu0 0.0
        %5521 = vmatmul.mubr.f32.gmra.mrb[0].mxu0 %v5038
        %v5522 = vpop.f32.mrb[0].mxu0
        %v5523 = vadd.f32 %v5278, %v5522
        %v5524 = vpop.f32.mrb[0].mxu0
        %5525 = vmatprep.mubr.f32.mxu0 0.0
        %5526 = vmatmul.mubr.f32.gmra.mrb[0].mxu0 %v5039
        %v5527 = vpop.f32.mrb[0].mxu0
        %v5528 = vadd.f32 %v5283, %v5527
        %v5529 = vpop.f32.mrb[0].mxu0
        %5530 = vmatprep.mubr.f32.mxu0 0.0
        %5531 = vmatmul.mubr.f32.gmra.mrb[0].mxu0 %v5040
        %v5532 = vpop.f32.mrb[0].mxu0
        %v5533 = vadd.f32 %v5288, %v5532
        %v5534 = vpop.f32.mrb[0].mxu0
        %5535 = vmatprep.mubr.f32.mxu0 0.0
        %5536 = vmatmul.mubr.f32.gmra.mrb[0].mxu0 %v5041
        %v5537 = vpop.f32.mrb[0].mxu0
        %v5538 = vadd.f32 %v5293, %v5537
        %v5539 = vpop.f32.mrb[0].mxu0
        %5540 = vmatprep.mubr.f32.mxu0 0.0
        %5541 = vmatmul.mubr.f32.gmra.mrb[0].mxu0 %v5042
        %v5542 = vpop.f32.mrb[0].mxu0
        %v5543 = vadd.f32 %v5298, %v5542
        %v5544 = vpop.f32.mrb[0].mxu0
        %5545 = vmatprep.mubr.f32.mxu0 0.0
        %5546 = vmatmul.mubr.f32.gmra.mrb[0].mxu0 %v5043
        %v5547 = vpop.f32.mrb[0].mxu0
        %v5548 = vadd.f32 %v5303, %v5547
        %v5549 = vpop.f32.mrb[0].mxu0
        %5550 = vmatprep.mubr.f32.mxu0 0.0
        %5551 = vmatmul.mubr.f32.gmra.mrb[0].mxu0 %v5044
        %v5552 = vpop.f32.mrb[0].mxu0
        %v5553 = vadd.f32 %v5308, %v5552
        %v5554 = vpop.f32.mrb[0].mxu0
        %5555 = vmatprep.mubr.f32.mxu0 0.0
        %5556 = vmatmul.mubr.f32.gmra.mrb[0].mxu0 %v5045
        %v5557 = vpop.f32.mrb[0].mxu0
        %v5558 = vadd.f32 %v5313, %v5557
        %v5559 = vpop.f32.mrb[0].mxu0
        %5560 = vmatprep.mubr.f32.mxu0 0.0
        %5561 = vmatmul.mubr.f32.gmra.mrb[0].mxu0 %v5046
        %v5562 = vpop.f32.mrb[0].mxu0
        %v5563 = vadd.f32 %v5318, %v5562
        %v5564 = vpop.f32.mrb[0].mxu0
        %5565 = vmatprep.mubr.f32.mxu0 0.0
        %5566 = vmatmul.mubr.f32.gmra.mrb[0].mxu0 %v5047
        %v5567 = vpop.f32.mrb[0].mxu0
        %v5568 = vadd.f32 %v5323, %v5567
        %v5569 = vpop.f32.mrb[0].mxu0
        %5570 = vmatprep.mubr.f32.mxu0 0.0
        %5571 = vmatmul.mubr.f32.gmra.mrb[0].mxu0 %v5048
        %v5572 = vpop.f32.mrb[0].mxu0
        %v5573 = vadd.f32 %v5328, %v5572
        %v5574 = vpop.f32.mrb[0].mxu0
        %5575 = vmatprep.mubr.f32.mxu0 0.0
        %5576 = vmatmul.mubr.f32.gmra.mrb[0].mxu0 %v5049
        %v5577 = vpop.f32.mrb[0].mxu0
        %v5578 = vadd.f32 %v5333, %v5577
        %v5579 = vpop.f32.mrb[0].mxu0
        %5580 = vmatprep.mubr.f32.mxu0 0.0
        %5581 = vmatmul.mubr.f32.gmra.mrb[0].mxu0 %v5050
        %v5582 = vpop.f32.mrb[0].mxu0
        %v5583 = vadd.f32 %v5338, %v5582
        %v5584 = vpop.f32.mrb[0].mxu0
        %5585 = vmatprep.mubr.f32.mxu0 0.0
        %5586 = vmatmul.mubr.f32.gmra.mrb[0].mxu0 %v5051
        %v5587 = vpop.f32.mrb[0].mxu0
        %v5588 = vadd.f32 %v5343, %v5587
        %v5589 = vpop.f32.mrb[0].mxu0
        %5590 = vmatprep.mubr.f32.mxu0 0.0
        %5591 = vmatmul.mubr.f32.gmra.mrb[0].mxu0 %v5052
        %v5592 = vpop.f32.mrb[0].mxu0
        %v5593 = vadd.f32 %v5348, %v5592
        %v5594 = vpop.f32.mrb[0].mxu0
        %5595 = vmatprep.mubr.f32.mxu0 0.0
        %5596 = vmatmul.mubr.f32.gmra.mrb[0].mxu0 %v5053
        %v5597 = vpop.f32.mrb[0].mxu0
        %v5598 = vadd.f32 %v5353, %v5597
        %v5599 = vpop.f32.mrb[0].mxu0
        %5600 = vmatprep.mubr.f32.mxu0 0.0
        %5601 = vmatmul.mubr.f32.gmra.mrb[0].mxu0 %v5054
        %v5602 = vpop.f32.mrb[0].mxu0
        %v5603 = vadd.f32 %v5358, %v5602
        %v5604 = vpop.f32.mrb[0].mxu0
        %5605 = vmatprep.mubr.f32.mxu0 0.0
        %5606 = vmatmul.mubr.f32.gmra.mrb[0].mxu0 %v5055
        %v5607 = vpop.f32.mrb[0].mxu0
        %v5608 = vadd.f32 %v5363, %v5607
        %v5609 = vpop.f32.mrb[0].mxu0
        %5610 = vmatprep.mubr.f32.mxu0 0.0
        %5611 = vmatmul.mubr.f32.gmra.mrb[0].mxu0 %v5056
        %v5612 = vpop.f32.mrb[0].mxu0
        %v5613 = vadd.f32 %v5368, %v5612
        %v5614 = vpop.f32.mrb[0].mxu0
        %5615 = vdwg.mxu0
        %v5616 = vld [vmem:[#allocation2 + $0x2] sm:$0xff]
        %v5617 = vld [vmem:[#allocation2 + $0xa] sm:$0xff]
        %v5618 = vld [vmem:[#allocation2 + $0x12] sm:$0xff]
        %v5619 = vld [vmem:[#allocation2 + $0x1a] sm:$0xff]
        %v5620 = vld [vmem:[#allocation2 + $0x22] sm:$0xff]
        %v5621 = vld [vmem:[#allocation2 + $0x2a] sm:$0xff]
        %v5622 = vld [vmem:[#allocation2 + $0x32] sm:$0xff]
        %v5623 = vld [vmem:[#allocation2 + $0x3a] sm:$0xff]
        %v5624 = vld [vmem:[#allocation2 + $0x42] sm:$0xff]
        %v5625 = vld [vmem:[#allocation2 + $0x4a] sm:$0xff]
        %v5626 = vld [vmem:[#allocation2 + $0x52] sm:$0xff]
        %v5627 = vld [vmem:[#allocation2 + $0x5a] sm:$0xff]
        %v5628 = vld [vmem:[#allocation2 + $0x62] sm:$0xff]
        %v5629 = vld [vmem:[#allocation2 + $0x6a] sm:$0xff]
        %v5630 = vld [vmem:[#allocation2 + $0x72] sm:$0xff]
        %v5631 = vld [vmem:[#allocation2 + $0x7a] sm:$0xff]
        %v5632 = vld [vmem:[#allocation2 + $0x82] sm:$0xff]
        %v5633 = vld [vmem:[#allocation2 + $0x8a] sm:$0xff]
        %v5634 = vld [vmem:[#allocation2 + $0x92] sm:$0xff]
        %v5635 = vld [vmem:[#allocation2 + $0x9a] sm:$0xff]
        %v5636 = vld [vmem:[#allocation2 + $0xa2] sm:$0xff]
        %v5637 = vld [vmem:[#allocation2 + $0xaa] sm:$0xff]
        %v5638 = vld [vmem:[#allocation2 + $0xb2] sm:$0xff]
        %v5639 = vld [vmem:[#allocation2 + $0xba] sm:$0xff]
        %v5640 = vld [vmem:[#allocation2 + $0xc2] sm:$0xff]
        %v5641 = vld [vmem:[#allocation2 + $0xca] sm:$0xff]
        %v5642 = vld [vmem:[#allocation2 + $0xd2] sm:$0xff]
        %v5643 = vld [vmem:[#allocation2 + $0xda] sm:$0xff]
        %v5644 = vld [vmem:[#allocation2 + $0xe2] sm:$0xff]
        %v5645 = vld [vmem:[#allocation2 + $0xea] sm:$0xff]
        %v5646 = vld [vmem:[#allocation2 + $0xf2] sm:$0xff]
        %v5647 = vld [vmem:[#allocation2 + $0xfa] sm:$0xff]
        %v5648 = vld [vmem:[#allocation2 + $0x102] sm:$0xff]
        %v5649 = vld [vmem:[#allocation2 + $0x10a] sm:$0xff]
        %v5650 = vld [vmem:[#allocation2 + $0x112] sm:$0xff]
        %v5651 = vld [vmem:[#allocation2 + $0x11a] sm:$0xff]
        %s5652 = scalar_lea.vmem [#allocation3], 256
        %v5653 = vld [vmem:[%s5652] sm:$0xff]
        %v5654 = vld [vmem:[%s5652 + $0x8] sm:$0xff]
        %v5655 = vld [vmem:[%s5652 + $0x10] sm:$0xff]
        %v5656 = vld [vmem:[%s5652 + $0x18] sm:$0xff]
        %v5657 = vld [vmem:[%s5652 + $0x20] sm:$0xff]
        %v5658 = vld [vmem:[%s5652 + $0x28] sm:$0xff]
        %v5659 = vld [vmem:[%s5652 + $0x30] sm:$0xff]
        %v5660 = vld [vmem:[%s5652 + $0x38] sm:$0xff]
        %v5661 = vld [vmem:[%s5652 + $0x40] sm:$0xff]
        %v5662 = vld [vmem:[%s5652 + $0x48] sm:$0xff]
        %v5663 = vld [vmem:[%s5652 + $0x50] sm:$0xff]
        %v5664 = vld [vmem:[%s5652 + $0x58] sm:$0xff]
        %v5665 = vld [vmem:[%s5652 + $0x60] sm:$0xff]
        %v5666 = vld [vmem:[%s5652 + $0x68] sm:$0xff]
        %v5667 = vld [vmem:[%s5652 + $0x70] sm:$0xff]
        %v5668 = vld [vmem:[%s5652 + $0x78] sm:$0xff]
        %5669 = vmatprep.subr.mxu0 0.0
        %5670 = vmatpush1.msra.mxu0 %v5653
        %5671 = vmatprep.subr.mxu0 0.0
        %5672 = vmatpush1.msra.mxu0 %v5654
        %5673 = vmatprep.subr.mxu0 0.0
        %5674 = vmatpush1.msra.mxu0 %v5655
        %5675 = vmatprep.subr.mxu0 0.0
        %5676 = vmatpush1.msra.mxu0 %v5656
        %5677 = vmatprep.subr.mxu0 0.0
        %5678 = vmatpush1.msra.mxu0 %v5657
        %5679 = vmatprep.subr.mxu0 0.0
        %5680 = vmatpush1.msra.mxu0 %v5658
        %5681 = vmatprep.subr.mxu0 0.0
        %5682 = vmatpush1.msra.mxu0 %v5659
        %5683 = vmatprep.subr.mxu0 0.0
        %5684 = vmatpush1.msra.mxu0 %v5660
        %5685 = vmatprep.subr.mxu0 0.0
        %5686 = vmatpush1.msra.mxu0 %v5661
        %5687 = vmatprep.subr.mxu0 0.0
        %5688 = vmatpush1.msra.mxu0 %v5662
        %5689 = vmatprep.subr.mxu0 0.0
        %5690 = vmatpush1.msra.mxu0 %v5663
        %5691 = vmatprep.subr.mxu0 0.0
        %5692 = vmatpush1.msra.mxu0 %v5664
        %5693 = vmatprep.subr.mxu0 0.0
        %5694 = vmatpush1.msra.mxu0 %v5665
        %5695 = vmatprep.subr.mxu0 0.0
        %5696 = vmatpush1.msra.mxu0 %v5666
        %5697 = vmatprep.subr.mxu0 0.0
        %5698 = vmatpush1.msra.mxu0 %v5667
        %5699 = vmatprep.subr.mxu0 0.0
        %5700 = vmatpush1.msra.mxu0 %v5668
        %5701 = vmatprep.subr.mxu0 0.0
        %5702 = vmatpush1.msra.mxu0 0.0
        %5703 = vmatprep.subr.mxu0 0.0
        %5704 = vmatpush1.msra.mxu0 0.0
        %5705 = vmatprep.subr.mxu0 0.0
        %5706 = vmatpush1.msra.mxu0 0.0
        %5707 = vmatprep.subr.mxu0 0.0
        %5708 = vmatpush1.msra.mxu0 0.0
        %5709 = vmatprep.subr.mxu0 0.0
        %5710 = vmatpush1.msra.mxu0 0.0
        %5711 = vmatprep.subr.mxu0 0.0
        %5712 = vmatpush1.msra.mxu0 0.0
        %5713 = vmatprep.subr.mxu0 0.0
        %5714 = vmatpush1.msra.mxu0 0.0
        %5715 = vmatprep.subr.mxu0 0.0
        %5716 = vmatpush1.msra.mxu0 0.0
        %5717 = vmatprep.subr.mxu0 0.0
        %5718 = vmatpush1.msra.mxu0 0.0
        %5719 = vmatprep.subr.mxu0 0.0
        %5720 = vmatpush1.msra.mxu0 0.0
        %5721 = vmatprep.subr.mxu0 0.0
        %5722 = vmatpush1.msra.mxu0 0.0
        %5723 = vmatprep.subr.mxu0 0.0
        %5724 = vmatpush1.msra.mxu0 0.0
        %5725 = vmatprep.subr.mxu0 0.0
        %5726 = vmatpush1.msra.mxu0 0.0
        %5727 = vmatprep.subr.mxu0 0.0
        %5728 = vmatpush1.msra.mxu0 0.0
        %5729 = vmatprep.subr.mxu0 0.0
        %5730 = vmatpush1.msra.mxu0 0.0
        %5731 = vmatprep.subr.mxu0 0.0
        %5732 = vmatpush1.msra.mxu0 0.0
        %5733 = vmatprep.mubr.f32.mxu0 0.0
        %5734 = vmatmul.mubr.f32.gmra.mrb[0].mxu0 %v5616
        %v5735 = vpop.f32.mrb[0].mxu0
        %v5736 = vadd.f32 0.0, %v5735
        %v5737 = vpop.f32.mrb[0].mxu0
        %5738 = vmatprep.mubr.f32.mxu0 0.0
        %5739 = vmatmul.mubr.f32.gmra.mrb[0].mxu0 %v5617
        %v5740 = vpop.f32.mrb[0].mxu0
        %v5741 = vadd.f32 0.0, %v5740
        %v5742 = vpop.f32.mrb[0].mxu0
        %5743 = vmatprep.mubr.f32.mxu0 0.0
        %5744 = vmatmul.mubr.f32.gmra.mrb[0].mxu0 %v5618
        %v5745 = vpop.f32.mrb[0].mxu0
        %v5746 = vadd.f32 0.0, %v5745
        %v5747 = vpop.f32.mrb[0].mxu0
        %5748 = vmatprep.mubr.f32.mxu0 0.0
        %5749 = vmatmul.mubr.f32.gmra.mrb[0].mxu0 %v5619
        %v5750 = vpop.f32.mrb[0].mxu0
        %v5751 = vadd.f32 0.0, %v5750
        %v5752 = vpop.f32.mrb[0].mxu0
        %5753 = vmatprep.mubr.f32.mxu0 0.0
        %5754 = vmatmul.mubr.f32.gmra.mrb[0].mxu0 %v5620
        %v5755 = vpop.f32.mrb[0].mxu0
        %v5756 = vadd.f32 0.0, %v5755
        %v5757 = vpop.f32.mrb[0].mxu0
        %5758 = vmatprep.mubr.f32.mxu0 0.0
        %5759 = vmatmul.mubr.f32.gmra.mrb[0].mxu0 %v5621
        %v5760 = vpop.f32.mrb[0].mxu0
        %v5761 = vadd.f32 0.0, %v5760
        %v5762 = vpop.f32.mrb[0].mxu0
        %5763 = vmatprep.mubr.f32.mxu0 0.0
        %5764 = vmatmul.mubr.f32.gmra.mrb[0].mxu0 %v5622
        %v5765 = vpop.f32.mrb[0].mxu0
        %v5766 = vadd.f32 0.0, %v5765
        %v5767 = vpop.f32.mrb[0].mxu0
        %5768 = vmatprep.mubr.f32.mxu0 0.0
        %5769 = vmatmul.mubr.f32.gmra.mrb[0].mxu0 %v5623
        %v5770 = vpop.f32.mrb[0].mxu0
        %v5771 = vadd.f32 0.0, %v5770
        %v5772 = vpop.f32.mrb[0].mxu0
        %5773 = vmatprep.mubr.f32.mxu0 0.0
        %5774 = vmatmul.mubr.f32.gmra.mrb[0].mxu0 %v5624
        %v5775 = vpop.f32.mrb[0].mxu0
        %v5776 = vadd.f32 0.0, %v5775
        %v5777 = vpop.f32.mrb[0].mxu0
        %5778 = vmatprep.mubr.f32.mxu0 0.0
        %5779 = vmatmul.mubr.f32.gmra.mrb[0].mxu0 %v5625
        %v5780 = vpop.f32.mrb[0].mxu0
        %v5781 = vadd.f32 0.0, %v5780
        %v5782 = vpop.f32.mrb[0].mxu0
        %5783 = vmatprep.mubr.f32.mxu0 0.0
        %5784 = vmatmul.mubr.f32.gmra.mrb[0].mxu0 %v5626
        %v5785 = vpop.f32.mrb[0].mxu0
        %v5786 = vadd.f32 0.0, %v5785
        %v5787 = vpop.f32.mrb[0].mxu0
        %5788 = vmatprep.mubr.f32.mxu0 0.0
        %5789 = vmatmul.mubr.f32.gmra.mrb[0].mxu0 %v5627
        %v5790 = vpop.f32.mrb[0].mxu0
        %v5791 = vadd.f32 0.0, %v5790
        %v5792 = vpop.f32.mrb[0].mxu0
        %5793 = vmatprep.mubr.f32.mxu0 0.0
        %5794 = vmatmul.mubr.f32.gmra.mrb[0].mxu0 %v5628
        %v5795 = vpop.f32.mrb[0].mxu0
        %v5796 = vadd.f32 0.0, %v5795
        %v5797 = vpop.f32.mrb[0].mxu0
        %5798 = vmatprep.mubr.f32.mxu0 0.0
        %5799 = vmatmul.mubr.f32.gmra.mrb[0].mxu0 %v5629
        %v5800 = vpop.f32.mrb[0].mxu0
        %v5801 = vadd.f32 0.0, %v5800
        %v5802 = vpop.f32.mrb[0].mxu0
        %5803 = vmatprep.mubr.f32.mxu0 0.0
        %5804 = vmatmul.mubr.f32.gmra.mrb[0].mxu0 %v5630
        %v5805 = vpop.f32.mrb[0].mxu0
        %v5806 = vadd.f32 0.0, %v5805
        %v5807 = vpop.f32.mrb[0].mxu0
        %5808 = vmatprep.mubr.f32.mxu0 0.0
        %5809 = vmatmul.mubr.f32.gmra.mrb[0].mxu0 %v5631
        %v5810 = vpop.f32.mrb[0].mxu0
        %v5811 = vadd.f32 0.0, %v5810
        %v5812 = vpop.f32.mrb[0].mxu0
        %5813 = vmatprep.mubr.f32.mxu0 0.0
        %5814 = vmatmul.mubr.f32.gmra.mrb[0].mxu0 %v5632
        %v5815 = vpop.f32.mrb[0].mxu0
        %v5816 = vadd.f32 0.0, %v5815
        %v5817 = vpop.f32.mrb[0].mxu0
        %5818 = vmatprep.mubr.f32.mxu0 0.0
        %5819 = vmatmul.mubr.f32.gmra.mrb[0].mxu0 %v5633
        %v5820 = vpop.f32.mrb[0].mxu0
        %v5821 = vadd.f32 0.0, %v5820
        %v5822 = vpop.f32.mrb[0].mxu0
        %5823 = vmatprep.mubr.f32.mxu0 0.0
        %5824 = vmatmul.mubr.f32.gmra.mrb[0].mxu0 %v5634
        %v5825 = vpop.f32.mrb[0].mxu0
        %v5826 = vadd.f32 0.0, %v5825
        %v5827 = vpop.f32.mrb[0].mxu0
        %5828 = vmatprep.mubr.f32.mxu0 0.0
        %5829 = vmatmul.mubr.f32.gmra.mrb[0].mxu0 %v5635
        %v5830 = vpop.f32.mrb[0].mxu0
        %v5831 = vadd.f32 0.0, %v5830
        %v5832 = vpop.f32.mrb[0].mxu0
        %5833 = vmatprep.mubr.f32.mxu0 0.0
        %5834 = vmatmul.mubr.f32.gmra.mrb[0].mxu0 %v5636
        %v5835 = vpop.f32.mrb[0].mxu0
        %v5836 = vadd.f32 0.0, %v5835
        %v5837 = vpop.f32.mrb[0].mxu0
        %5838 = vmatprep.mubr.f32.mxu0 0.0
        %5839 = vmatmul.mubr.f32.gmra.mrb[0].mxu0 %v5637
        %v5840 = vpop.f32.mrb[0].mxu0
        %v5841 = vadd.f32 0.0, %v5840
        %v5842 = vpop.f32.mrb[0].mxu0
        %5843 = vmatprep.mubr.f32.mxu0 0.0
        %5844 = vmatmul.mubr.f32.gmra.mrb[0].mxu0 %v5638
        %v5845 = vpop.f32.mrb[0].mxu0
        %v5846 = vadd.f32 0.0, %v5845
        %v5847 = vpop.f32.mrb[0].mxu0
        %5848 = vmatprep.mubr.f32.mxu0 0.0
        %5849 = vmatmul.mubr.f32.gmra.mrb[0].mxu0 %v5639
        %v5850 = vpop.f32.mrb[0].mxu0
        %v5851 = vadd.f32 0.0, %v5850
        %v5852 = vpop.f32.mrb[0].mxu0
        %5853 = vmatprep.mubr.f32.mxu0 0.0
        %5854 = vmatmul.mubr.f32.gmra.mrb[0].mxu0 %v5640
        %v5855 = vpop.f32.mrb[0].mxu0
        %v5856 = vadd.f32 0.0, %v5855
        %v5857 = vpop.f32.mrb[0].mxu0
        %5858 = vmatprep.mubr.f32.mxu0 0.0
        %5859 = vmatmul.mubr.f32.gmra.mrb[0].mxu0 %v5641
        %v5860 = vpop.f32.mrb[0].mxu0
        %v5861 = vadd.f32 0.0, %v5860
        %v5862 = vpop.f32.mrb[0].mxu0
        %5863 = vmatprep.mubr.f32.mxu0 0.0
        %5864 = vmatmul.mubr.f32.gmra.mrb[0].mxu0 %v5642
        %v5865 = vpop.f32.mrb[0].mxu0
        %v5866 = vadd.f32 0.0, %v5865
        %v5867 = vpop.f32.mrb[0].mxu0
        %5868 = vmatprep.mubr.f32.mxu0 0.0
        %5869 = vmatmul.mubr.f32.gmra.mrb[0].mxu0 %v5643
        %v5870 = vpop.f32.mrb[0].mxu0
        %v5871 = vadd.f32 0.0, %v5870
        %v5872 = vpop.f32.mrb[0].mxu0
        %5873 = vmatprep.mubr.f32.mxu0 0.0
        %5874 = vmatmul.mubr.f32.gmra.mrb[0].mxu0 %v5644
        %v5875 = vpop.f32.mrb[0].mxu0
        %v5876 = vadd.f32 0.0, %v5875
        %v5877 = vpop.f32.mrb[0].mxu0
        %5878 = vmatprep.mubr.f32.mxu0 0.0
        %5879 = vmatmul.mubr.f32.gmra.mrb[0].mxu0 %v5645
        %v5880 = vpop.f32.mrb[0].mxu0
        %v5881 = vadd.f32 0.0, %v5880
        %v5882 = vpop.f32.mrb[0].mxu0
        %5883 = vmatprep.mubr.f32.mxu0 0.0
        %5884 = vmatmul.mubr.f32.gmra.mrb[0].mxu0 %v5646
        %v5885 = vpop.f32.mrb[0].mxu0
        %v5886 = vadd.f32 0.0, %v5885
        %v5887 = vpop.f32.mrb[0].mxu0
        %5888 = vmatprep.mubr.f32.mxu0 0.0
        %5889 = vmatmul.mubr.f32.gmra.mrb[0].mxu0 %v5647
        %v5890 = vpop.f32.mrb[0].mxu0
        %v5891 = vadd.f32 0.0, %v5890
        %v5892 = vpop.f32.mrb[0].mxu0
        %5893 = vmatprep.mubr.f32.mxu0 0.0
        %5894 = vmatmul.mubr.f32.gmra.mrb[0].mxu0 %v5648
        %v5895 = vpop.f32.mrb[0].mxu0
        %v5896 = vadd.f32 0.0, %v5895
        %v5897 = vpop.f32.mrb[0].mxu0
        %5898 = vmatprep.mubr.f32.mxu0 0.0
        %5899 = vmatmul.mubr.f32.gmra.mrb[0].mxu0 %v5649
        %v5900 = vpop.f32.mrb[0].mxu0
        %v5901 = vadd.f32 0.0, %v5900
        %v5902 = vpop.f32.mrb[0].mxu0
        %5903 = vmatprep.mubr.f32.mxu0 0.0
        %5904 = vmatmul.mubr.f32.gmra.mrb[0].mxu0 %v5650
        %v5905 = vpop.f32.mrb[0].mxu0
        %v5906 = vadd.f32 0.0, %v5905
        %v5907 = vpop.f32.mrb[0].mxu0
        %5908 = vmatprep.mubr.f32.mxu0 0.0
        %5909 = vmatmul.mubr.f32.gmra.mrb[0].mxu0 %v5651
        %v5910 = vpop.f32.mrb[0].mxu0
        %v5911 = vadd.f32 0.0, %v5910
        %v5912 = vpop.f32.mrb[0].mxu0
        %5913 = vdwg.mxu0
        %v5914 = vadd.f32 %v5438, %v5736
        %v5915 = vadd.f32 %v5443, %v5741
        %v5916 = vadd.f32 %v5448, %v5746
        %v5917 = vadd.f32 %v5453, %v5751
        %v5918 = vadd.f32 %v5458, %v5756
        %v5919 = vadd.f32 %v5463, %v5761
        %v5920 = vadd.f32 %v5468, %v5766
        %v5921 = vadd.f32 %v5473, %v5771
        %v5922 = vadd.f32 %v5478, %v5776
        %v5923 = vadd.f32 %v5483, %v5781
        %v5924 = vadd.f32 %v5488, %v5786
        %v5925 = vadd.f32 %v5493, %v5791
        %v5926 = vadd.f32 %v5498, %v5796
        %v5927 = vadd.f32 %v5503, %v5801
        %v5928 = vadd.f32 %v5508, %v5806
        %v5929 = vadd.f32 %v5513, %v5811
        %v5930 = vadd.f32 %v5518, %v5816
        %v5931 = vadd.f32 %v5523, %v5821
        %v5932 = vadd.f32 %v5528, %v5826
        %v5933 = vadd.f32 %v5533, %v5831
        %v5934 = vadd.f32 %v5538, %v5836
        %v5935 = vadd.f32 %v5543, %v5841
        %v5936 = vadd.f32 %v5548, %v5846
        %v5937 = vadd.f32 %v5553, %v5851
        %v5938 = vadd.f32 %v5558, %v5856
        %v5939 = vadd.f32 %v5563, %v5861
        %v5940 = vadd.f32 %v5568, %v5866
        %v5941 = vadd.f32 %v5573, %v5871
        %v5942 = vadd.f32 %v5578, %v5876
        %v5943 = vadd.f32 %v5583, %v5881
        %v5944 = vadd.f32 %v5588, %v5886
        %v5945 = vadd.f32 %v5593, %v5891
        %v5946 = vadd.f32 %v5598, %v5896
        %v5947 = vadd.f32 %v5603, %v5901
        %v5948 = vadd.f32 %v5608, %v5906
        %v5949 = vadd.f32 %v5613, %v5911
        %v5950 = vld [vmem:[#allocation2 + $0x12] sm:$0xff]
        %v5951 = vld [vmem:[#allocation2 + $0x1a] sm:$0xff]
        %v5952 = vld [vmem:[#allocation2 + $0x22] sm:$0xff]
        %v5953 = vld [vmem:[#allocation2 + $0x2a] sm:$0xff]
        %v5954 = vld [vmem:[#allocation2 + $0x32] sm:$0xff]
        %v5955 = vld [vmem:[#allocation2 + $0x3a] sm:$0xff]
        %v5956 = vld [vmem:[#allocation2 + $0x42] sm:$0xff]
        %v5957 = vld [vmem:[#allocation2 + $0x4a] sm:$0xff]
        %v5958 = vld [vmem:[#allocation2 + $0x52] sm:$0xff]
        %v5959 = vld [vmem:[#allocation2 + $0x5a] sm:$0xff]
        %v5960 = vld [vmem:[#allocation2 + $0x62] sm:$0xff]
        %v5961 = vld [vmem:[#allocation2 + $0x6a] sm:$0xff]
        %v5962 = vld [vmem:[#allocation2 + $0x72] sm:$0xff]
        %v5963 = vld [vmem:[#allocation2 + $0x7a] sm:$0xff]
        %v5964 = vld [vmem:[#allocation2 + $0x82] sm:$0xff]
        %v5965 = vld [vmem:[#allocation2 + $0x8a] sm:$0xff]
        %v5966 = vld [vmem:[#allocation2 + $0x92] sm:$0xff]
        %v5967 = vld [vmem:[#allocation2 + $0x9a] sm:$0xff]
        %v5968 = vld [vmem:[#allocation2 + $0xa2] sm:$0xff]
        %v5969 = vld [vmem:[#allocation2 + $0xaa] sm:$0xff]
        %v5970 = vld [vmem:[#allocation2 + $0xb2] sm:$0xff]
        %v5971 = vld [vmem:[#allocation2 + $0xba] sm:$0xff]
        %v5972 = vld [vmem:[#allocation2 + $0xc2] sm:$0xff]
        %v5973 = vld [vmem:[#allocation2 + $0xca] sm:$0xff]
        %v5974 = vld [vmem:[#allocation2 + $0xd2] sm:$0xff]
        %v5975 = vld [vmem:[#allocation2 + $0xda] sm:$0xff]
        %v5976 = vld [vmem:[#allocation2 + $0xe2] sm:$0xff]
        %v5977 = vld [vmem:[#allocation2 + $0xea] sm:$0xff]
        %v5978 = vld [vmem:[#allocation2 + $0xf2] sm:$0xff]
        %v5979 = vld [vmem:[#allocation2 + $0xfa] sm:$0xff]
        %v5980 = vld [vmem:[#allocation2 + $0x102] sm:$0xff]
        %v5981 = vld [vmem:[#allocation2 + $0x10a] sm:$0xff]
        %v5982 = vld [vmem:[#allocation2 + $0x112] sm:$0xff]
        %v5983 = vld [vmem:[#allocation2 + $0x11a] sm:$0xff]
        %v5984 = vld [vmem:[#allocation2 + $0x122] sm:$0xff]
        %v5985 = vld [vmem:[#allocation2 + $0x12a] sm:$0xff]
        %s5986 = scalar_lea.vmem [#allocation3], 384
        %v5987 = vld [vmem:[%s5986] sm:$0xff]
        %v5988 = vld [vmem:[%s5986 + $0x8] sm:$0xff]
        %v5989 = vld [vmem:[%s5986 + $0x10] sm:$0xff]
        %v5990 = vld [vmem:[%s5986 + $0x18] sm:$0xff]
        %v5991 = vld [vmem:[%s5986 + $0x20] sm:$0xff]
        %v5992 = vld [vmem:[%s5986 + $0x28] sm:$0xff]
        %v5993 = vld [vmem:[%s5986 + $0x30] sm:$0xff]
        %v5994 = vld [vmem:[%s5986 + $0x38] sm:$0xff]
        %v5995 = vld [vmem:[%s5986 + $0x40] sm:$0xff]
        %v5996 = vld [vmem:[%s5986 + $0x48] sm:$0xff]
        %v5997 = vld [vmem:[%s5986 + $0x50] sm:$0xff]
        %v5998 = vld [vmem:[%s5986 + $0x58] sm:$0xff]
        %v5999 = vld [vmem:[%s5986 + $0x60] sm:$0xff]
        %v6000 = vld [vmem:[%s5986 + $0x68] sm:$0xff]
        %v6001 = vld [vmem:[%s5986 + $0x70] sm:$0xff]
        %v6002 = vld [vmem:[%s5986 + $0x78] sm:$0xff]
        %6003 = vmatprep.subr.mxu0 0.0
        %6004 = vmatpush1.msra.mxu0 %v5987
        %6005 = vmatprep.subr.mxu0 0.0
        %6006 = vmatpush1.msra.mxu0 %v5988
        %6007 = vmatprep.subr.mxu0 0.0
        %6008 = vmatpush1.msra.mxu0 %v5989
        %6009 = vmatprep.subr.mxu0 0.0
        %6010 = vmatpush1.msra.mxu0 %v5990
        %6011 = vmatprep.subr.mxu0 0.0
        %6012 = vmatpush1.msra.mxu0 %v5991
        %6013 = vmatprep.subr.mxu0 0.0
        %6014 = vmatpush1.msra.mxu0 %v5992
        %6015 = vmatprep.subr.mxu0 0.0
        %6016 = vmatpush1.msra.mxu0 %v5993
        %6017 = vmatprep.subr.mxu0 0.0
        %6018 = vmatpush1.msra.mxu0 %v5994
        %6019 = vmatprep.subr.mxu0 0.0
        %6020 = vmatpush1.msra.mxu0 %v5995
        %6021 = vmatprep.subr.mxu0 0.0
        %6022 = vmatpush1.msra.mxu0 %v5996
        %6023 = vmatprep.subr.mxu0 0.0
        %6024 = vmatpush1.msra.mxu0 %v5997
        %6025 = vmatprep.subr.mxu0 0.0
        %6026 = vmatpush1.msra.mxu0 %v5998
        %6027 = vmatprep.subr.mxu0 0.0
        %6028 = vmatpush1.msra.mxu0 %v5999
        %6029 = vmatprep.subr.mxu0 0.0
        %6030 = vmatpush1.msra.mxu0 %v6000
        %6031 = vmatprep.subr.mxu0 0.0
        %6032 = vmatpush1.msra.mxu0 %v6001
        %6033 = vmatprep.subr.mxu0 0.0
        %6034 = vmatpush1.msra.mxu0 %v6002
        %6035 = vmatprep.subr.mxu0 0.0
        %6036 = vmatpush1.msra.mxu0 0.0
        %6037 = vmatprep.subr.mxu0 0.0
        %6038 = vmatpush1.msra.mxu0 0.0
        %6039 = vmatprep.subr.mxu0 0.0
        %6040 = vmatpush1.msra.mxu0 0.0
        %6041 = vmatprep.subr.mxu0 0.0
        %6042 = vmatpush1.msra.mxu0 0.0
        %6043 = vmatprep.subr.mxu0 0.0
        %6044 = vmatpush1.msra.mxu0 0.0
        %6045 = vmatprep.subr.mxu0 0.0
        %6046 = vmatpush1.msra.mxu0 0.0
        %6047 = vmatprep.subr.mxu0 0.0
        %6048 = vmatpush1.msra.mxu0 0.0
        %6049 = vmatprep.subr.mxu0 0.0
        %6050 = vmatpush1.msra.mxu0 0.0
        %6051 = vmatprep.subr.mxu0 0.0
        %6052 = vmatpush1.msra.mxu0 0.0
        %6053 = vmatprep.subr.mxu0 0.0
        %6054 = vmatpush1.msra.mxu0 0.0
        %6055 = vmatprep.subr.mxu0 0.0
        %6056 = vmatpush1.msra.mxu0 0.0
        %6057 = vmatprep.subr.mxu0 0.0
        %6058 = vmatpush1.msra.mxu0 0.0
        %6059 = vmatprep.subr.mxu0 0.0
        %6060 = vmatpush1.msra.mxu0 0.0
        %6061 = vmatprep.subr.mxu0 0.0
        %6062 = vmatpush1.msra.mxu0 0.0
        %6063 = vmatprep.subr.mxu0 0.0
        %6064 = vmatpush1.msra.mxu0 0.0
        %6065 = vmatprep.subr.mxu0 0.0
        %6066 = vmatpush1.msra.mxu0 0.0
        %6067 = vmatprep.mubr.f32.mxu0 0.0
        %6068 = vmatmul.mubr.f32.gmra.mrb[0].mxu0 %v5950
        %v6069 = vpop.f32.mrb[0].mxu0
        %v6070 = vadd.f32 0.0, %v6069
        %v6071 = vpop.f32.mrb[0].mxu0
        %6072 = vmatprep.mubr.f32.mxu0 0.0
        %6073 = vmatmul.mubr.f32.gmra.mrb[0].mxu0 %v5951
        %v6074 = vpop.f32.mrb[0].mxu0
        %v6075 = vadd.f32 0.0, %v6074
        %v6076 = vpop.f32.mrb[0].mxu0
        %6077 = vmatprep.mubr.f32.mxu0 0.0
        %6078 = vmatmul.mubr.f32.gmra.mrb[0].mxu0 %v5952
        %v6079 = vpop.f32.mrb[0].mxu0
        %v6080 = vadd.f32 0.0, %v6079
        %v6081 = vpop.f32.mrb[0].mxu0
        %6082 = vmatprep.mubr.f32.mxu0 0.0
        %6083 = vmatmul.mubr.f32.gmra.mrb[0].mxu0 %v5953
        %v6084 = vpop.f32.mrb[0].mxu0
        %v6085 = vadd.f32 0.0, %v6084
        %v6086 = vpop.f32.mrb[0].mxu0
        %6087 = vmatprep.mubr.f32.mxu0 0.0
        %6088 = vmatmul.mubr.f32.gmra.mrb[0].mxu0 %v5954
        %v6089 = vpop.f32.mrb[0].mxu0
        %v6090 = vadd.f32 0.0, %v6089
        %v6091 = vpop.f32.mrb[0].mxu0
        %6092 = vmatprep.mubr.f32.mxu0 0.0
        %6093 = vmatmul.mubr.f32.gmra.mrb[0].mxu0 %v5955
        %v6094 = vpop.f32.mrb[0].mxu0
        %v6095 = vadd.f32 0.0, %v6094
        %v6096 = vpop.f32.mrb[0].mxu0
        %6097 = vmatprep.mubr.f32.mxu0 0.0
        %6098 = vmatmul.mubr.f32.gmra.mrb[0].mxu0 %v5956
        %v6099 = vpop.f32.mrb[0].mxu0
        %v6100 = vadd.f32 0.0, %v6099
        %v6101 = vpop.f32.mrb[0].mxu0
        %6102 = vmatprep.mubr.f32.mxu0 0.0
        %6103 = vmatmul.mubr.f32.gmra.mrb[0].mxu0 %v5957
        %v6104 = vpop.f32.mrb[0].mxu0
        %v6105 = vadd.f32 0.0, %v6104
        %v6106 = vpop.f32.mrb[0].mxu0
        %6107 = vmatprep.mubr.f32.mxu0 0.0
        %6108 = vmatmul.mubr.f32.gmra.mrb[0].mxu0 %v5958
        %v6109 = vpop.f32.mrb[0].mxu0
        %v6110 = vadd.f32 0.0, %v6109
        %v6111 = vpop.f32.mrb[0].mxu0
        %6112 = vmatprep.mubr.f32.mxu0 0.0
        %6113 = vmatmul.mubr.f32.gmra.mrb[0].mxu0 %v5959
        %v6114 = vpop.f32.mrb[0].mxu0
        %v6115 = vadd.f32 0.0, %v6114
        %v6116 = vpop.f32.mrb[0].mxu0
        %6117 = vmatprep.mubr.f32.mxu0 0.0
        %6118 = vmatmul.mubr.f32.gmra.mrb[0].mxu0 %v5960
        %v6119 = vpop.f32.mrb[0].mxu0
        %v6120 = vadd.f32 0.0, %v6119
        %v6121 = vpop.f32.mrb[0].mxu0
        %6122 = vmatprep.mubr.f32.mxu0 0.0
        %6123 = vmatmul.mubr.f32.gmra.mrb[0].mxu0 %v5961
        %v6124 = vpop.f32.mrb[0].mxu0
        %v6125 = vadd.f32 0.0, %v6124
        %v6126 = vpop.f32.mrb[0].mxu0
        %6127 = vmatprep.mubr.f32.mxu0 0.0
        %6128 = vmatmul.mubr.f32.gmra.mrb[0].mxu0 %v5962
        %v6129 = vpop.f32.mrb[0].mxu0
        %v6130 = vadd.f32 0.0, %v6129
        %v6131 = vpop.f32.mrb[0].mxu0
        %6132 = vmatprep.mubr.f32.mxu0 0.0
        %6133 = vmatmul.mubr.f32.gmra.mrb[0].mxu0 %v5963
        %v6134 = vpop.f32.mrb[0].mxu0
        %v6135 = vadd.f32 0.0, %v6134
        %v6136 = vpop.f32.mrb[0].mxu0
        %6137 = vmatprep.mubr.f32.mxu0 0.0
        %6138 = vmatmul.mubr.f32.gmra.mrb[0].mxu0 %v5964
        %v6139 = vpop.f32.mrb[0].mxu0
        %v6140 = vadd.f32 0.0, %v6139
        %v6141 = vpop.f32.mrb[0].mxu0
        %6142 = vmatprep.mubr.f32.mxu0 0.0
        %6143 = vmatmul.mubr.f32.gmra.mrb[0].mxu0 %v5965
        %v6144 = vpop.f32.mrb[0].mxu0
        %v6145 = vadd.f32 0.0, %v6144
        %v6146 = vpop.f32.mrb[0].mxu0
        %6147 = vmatprep.mubr.f32.mxu0 0.0
        %6148 = vmatmul.mubr.f32.gmra.mrb[0].mxu0 %v5966
        %v6149 = vpop.f32.mrb[0].mxu0
        %v6150 = vadd.f32 0.0, %v6149
        %v6151 = vpop.f32.mrb[0].mxu0
        %6152 = vmatprep.mubr.f32.mxu0 0.0
        %6153 = vmatmul.mubr.f32.gmra.mrb[0].mxu0 %v5967
        %v6154 = vpop.f32.mrb[0].mxu0
        %v6155 = vadd.f32 0.0, %v6154
        %v6156 = vpop.f32.mrb[0].mxu0
        %6157 = vmatprep.mubr.f32.mxu0 0.0
        %6158 = vmatmul.mubr.f32.gmra.mrb[0].mxu0 %v5968
        %v6159 = vpop.f32.mrb[0].mxu0
        %v6160 = vadd.f32 0.0, %v6159
        %v6161 = vpop.f32.mrb[0].mxu0
        %6162 = vmatprep.mubr.f32.mxu0 0.0
        %6163 = vmatmul.mubr.f32.gmra.mrb[0].mxu0 %v5969
        %v6164 = vpop.f32.mrb[0].mxu0
        %v6165 = vadd.f32 0.0, %v6164
        %v6166 = vpop.f32.mrb[0].mxu0
        %6167 = vmatprep.mubr.f32.mxu0 0.0
        %6168 = vmatmul.mubr.f32.gmra.mrb[0].mxu0 %v5970
        %v6169 = vpop.f32.mrb[0].mxu0
        %v6170 = vadd.f32 0.0, %v6169
        %v6171 = vpop.f32.mrb[0].mxu0
        %6172 = vmatprep.mubr.f32.mxu0 0.0
        %6173 = vmatmul.mubr.f32.gmra.mrb[0].mxu0 %v5971
        %v6174 = vpop.f32.mrb[0].mxu0
        %v6175 = vadd.f32 0.0, %v6174
        %v6176 = vpop.f32.mrb[0].mxu0
        %6177 = vmatprep.mubr.f32.mxu0 0.0
        %6178 = vmatmul.mubr.f32.gmra.mrb[0].mxu0 %v5972
        %v6179 = vpop.f32.mrb[0].mxu0
        %v6180 = vadd.f32 0.0, %v6179
        %v6181 = vpop.f32.mrb[0].mxu0
        %6182 = vmatprep.mubr.f32.mxu0 0.0
        %6183 = vmatmul.mubr.f32.gmra.mrb[0].mxu0 %v5973
        %v6184 = vpop.f32.mrb[0].mxu0
        %v6185 = vadd.f32 0.0, %v6184
        %v6186 = vpop.f32.mrb[0].mxu0
        %6187 = vmatprep.mubr.f32.mxu0 0.0
        %6188 = vmatmul.mubr.f32.gmra.mrb[0].mxu0 %v5974
        %v6189 = vpop.f32.mrb[0].mxu0
        %v6190 = vadd.f32 0.0, %v6189
        %v6191 = vpop.f32.mrb[0].mxu0
        %6192 = vmatprep.mubr.f32.mxu0 0.0
        %6193 = vmatmul.mubr.f32.gmra.mrb[0].mxu0 %v5975
        %v6194 = vpop.f32.mrb[0].mxu0
        %v6195 = vadd.f32 0.0, %v6194
        %v6196 = vpop.f32.mrb[0].mxu0
        %6197 = vmatprep.mubr.f32.mxu0 0.0
        %6198 = vmatmul.mubr.f32.gmra.mrb[0].mxu0 %v5976
        %v6199 = vpop.f32.mrb[0].mxu0
        %v6200 = vadd.f32 0.0, %v6199
        %v6201 = vpop.f32.mrb[0].mxu0
        %6202 = vmatprep.mubr.f32.mxu0 0.0
        %6203 = vmatmul.mubr.f32.gmra.mrb[0].mxu0 %v5977
        %v6204 = vpop.f32.mrb[0].mxu0
        %v6205 = vadd.f32 0.0, %v6204
        %v6206 = vpop.f32.mrb[0].mxu0
        %6207 = vmatprep.mubr.f32.mxu0 0.0
        %6208 = vmatmul.mubr.f32.gmra.mrb[0].mxu0 %v5978
        %v6209 = vpop.f32.mrb[0].mxu0
        %v6210 = vadd.f32 0.0, %v6209
        %v6211 = vpop.f32.mrb[0].mxu0
        %6212 = vmatprep.mubr.f32.mxu0 0.0
        %6213 = vmatmul.mubr.f32.gmra.mrb[0].mxu0 %v5979
        %v6214 = vpop.f32.mrb[0].mxu0
        %v6215 = vadd.f32 0.0, %v6214
        %v6216 = vpop.f32.mrb[0].mxu0
        %6217 = vmatprep.mubr.f32.mxu0 0.0
        %6218 = vmatmul.mubr.f32.gmra.mrb[0].mxu0 %v5980
        %v6219 = vpop.f32.mrb[0].mxu0
        %v6220 = vadd.f32 0.0, %v6219
        %v6221 = vpop.f32.mrb[0].mxu0
        %6222 = vmatprep.mubr.f32.mxu0 0.0
        %6223 = vmatmul.mubr.f32.gmra.mrb[0].mxu0 %v5981
        %v6224 = vpop.f32.mrb[0].mxu0
        %v6225 = vadd.f32 0.0, %v6224
        %v6226 = vpop.f32.mrb[0].mxu0
        %6227 = vmatprep.mubr.f32.mxu0 0.0
        %6228 = vmatmul.mubr.f32.gmra.mrb[0].mxu0 %v5982
        %v6229 = vpop.f32.mrb[0].mxu0
        %v6230 = vadd.f32 0.0, %v6229
        %v6231 = vpop.f32.mrb[0].mxu0
        %6232 = vmatprep.mubr.f32.mxu0 0.0
        %6233 = vmatmul.mubr.f32.gmra.mrb[0].mxu0 %v5983
        %v6234 = vpop.f32.mrb[0].mxu0
        %v6235 = vadd.f32 0.0, %v6234
        %v6236 = vpop.f32.mrb[0].mxu0
        %6237 = vmatprep.mubr.f32.mxu0 0.0
        %6238 = vmatmul.mubr.f32.gmra.mrb[0].mxu0 %v5984
        %v6239 = vpop.f32.mrb[0].mxu0
        %v6240 = vadd.f32 0.0, %v6239
        %v6241 = vpop.f32.mrb[0].mxu0
        %6242 = vmatprep.mubr.f32.mxu0 0.0
        %6243 = vmatmul.mubr.f32.gmra.mrb[0].mxu0 %v5985
        %v6244 = vpop.f32.mrb[0].mxu0
        %v6245 = vadd.f32 0.0, %v6244
        %v6246 = vpop.f32.mrb[0].mxu0
        %6247 = vdwg.mxu0
        %v6248 = vadd.f32 %v5914, %v6070
        %v6249 = vadd.f32 %v5915, %v6075
        %v6250 = vadd.f32 %v5916, %v6080
        %v6251 = vadd.f32 %v5917, %v6085
        %v6252 = vadd.f32 %v5918, %v6090
        %v6253 = vadd.f32 %v5919, %v6095
        %v6254 = vadd.f32 %v5920, %v6100
        %v6255 = vadd.f32 %v5921, %v6105
        %v6256 = vadd.f32 %v5922, %v6110
        %v6257 = vadd.f32 %v5923, %v6115
        %v6258 = vadd.f32 %v5924, %v6120
        %v6259 = vadd.f32 %v5925, %v6125
        %v6260 = vadd.f32 %v5926, %v6130
        %v6261 = vadd.f32 %v5927, %v6135
        %v6262 = vadd.f32 %v5928, %v6140
        %v6263 = vadd.f32 %v5929, %v6145
        %v6264 = vadd.f32 %v5930, %v6150
        %v6265 = vadd.f32 %v5931, %v6155
        %v6266 = vadd.f32 %v5932, %v6160
        %v6267 = vadd.f32 %v5933, %v6165
        %v6268 = vadd.f32 %v5934, %v6170
        %v6269 = vadd.f32 %v5935, %v6175
        %v6270 = vadd.f32 %v5936, %v6180
        %v6271 = vadd.f32 %v5937, %v6185
        %v6272 = vadd.f32 %v5938, %v6190
        %v6273 = vadd.f32 %v5939, %v6195
        %v6274 = vadd.f32 %v5940, %v6200
        %v6275 = vadd.f32 %v5941, %v6205
        %v6276 = vadd.f32 %v5942, %v6210
        %v6277 = vadd.f32 %v5943, %v6215
        %v6278 = vadd.f32 %v5944, %v6220
        %v6279 = vadd.f32 %v5945, %v6225
        %v6280 = vadd.f32 %v5946, %v6230
        %v6281 = vadd.f32 %v5947, %v6235
        %v6282 = vadd.f32 %v5948, %v6240
        %v6283 = vadd.f32 %v5949, %v6245
        %v6284 = vld [vmem:[#allocation2 + $0x13] sm:$0xff]
        %v6285 = vld [vmem:[#allocation2 + $0x1b] sm:$0xff]
        %v6286 = vld [vmem:[#allocation2 + $0x23] sm:$0xff]
        %v6287 = vld [vmem:[#allocation2 + $0x2b] sm:$0xff]
        %v6288 = vld [vmem:[#allocation2 + $0x33] sm:$0xff]
        %v6289 = vld [vmem:[#allocation2 + $0x3b] sm:$0xff]
        %v6290 = vld [vmem:[#allocation2 + $0x43] sm:$0xff]
        %v6291 = vld [vmem:[#allocation2 + $0x4b] sm:$0xff]
        %v6292 = vld [vmem:[#allocation2 + $0x53] sm:$0xff]
        %v6293 = vld [vmem:[#allocation2 + $0x5b] sm:$0xff]
        %v6294 = vld [vmem:[#allocation2 + $0x63] sm:$0xff]
        %v6295 = vld [vmem:[#allocation2 + $0x6b] sm:$0xff]
        %v6296 = vld [vmem:[#allocation2 + $0x73] sm:$0xff]
        %v6297 = vld [vmem:[#allocation2 + $0x7b] sm:$0xff]
        %v6298 = vld [vmem:[#allocation2 + $0x83] sm:$0xff]
        %v6299 = vld [vmem:[#allocation2 + $0x8b] sm:$0xff]
        %v6300 = vld [vmem:[#allocation2 + $0x93] sm:$0xff]
        %v6301 = vld [vmem:[#allocation2 + $0x9b] sm:$0xff]
        %v6302 = vld [vmem:[#allocation2 + $0xa3] sm:$0xff]
        %v6303 = vld [vmem:[#allocation2 + $0xab] sm:$0xff]
        %v6304 = vld [vmem:[#allocation2 + $0xb3] sm:$0xff]
        %v6305 = vld [vmem:[#allocation2 + $0xbb] sm:$0xff]
        %v6306 = vld [vmem:[#allocation2 + $0xc3] sm:$0xff]
        %v6307 = vld [vmem:[#allocation2 + $0xcb] sm:$0xff]
        %v6308 = vld [vmem:[#allocation2 + $0xd3] sm:$0xff]
        %v6309 = vld [vmem:[#allocation2 + $0xdb] sm:$0xff]
        %v6310 = vld [vmem:[#allocation2 + $0xe3] sm:$0xff]
        %v6311 = vld [vmem:[#allocation2 + $0xeb] sm:$0xff]
        %v6312 = vld [vmem:[#allocation2 + $0xf3] sm:$0xff]
        %v6313 = vld [vmem:[#allocation2 + $0xfb] sm:$0xff]
        %v6314 = vld [vmem:[#allocation2 + $0x103] sm:$0xff]
        %v6315 = vld [vmem:[#allocation2 + $0x10b] sm:$0xff]
        %v6316 = vld [vmem:[#allocation2 + $0x113] sm:$0xff]
        %v6317 = vld [vmem:[#allocation2 + $0x11b] sm:$0xff]
        %v6318 = vld [vmem:[#allocation2 + $0x123] sm:$0xff]
        %v6319 = vld [vmem:[#allocation2 + $0x12b] sm:$0xff]
        %s6320 = scalar_lea.vmem [#allocation3], 512
        %v6321 = vld [vmem:[%s6320] sm:$0xff]
        %v6322 = vld [vmem:[%s6320 + $0x8] sm:$0xff]
        %v6323 = vld [vmem:[%s6320 + $0x10] sm:$0xff]
        %v6324 = vld [vmem:[%s6320 + $0x18] sm:$0xff]
        %v6325 = vld [vmem:[%s6320 + $0x20] sm:$0xff]
        %v6326 = vld [vmem:[%s6320 + $0x28] sm:$0xff]
        %v6327 = vld [vmem:[%s6320 + $0x30] sm:$0xff]
        %v6328 = vld [vmem:[%s6320 + $0x38] sm:$0xff]
        %v6329 = vld [vmem:[%s6320 + $0x40] sm:$0xff]
        %v6330 = vld [vmem:[%s6320 + $0x48] sm:$0xff]
        %v6331 = vld [vmem:[%s6320 + $0x50] sm:$0xff]
        %v6332 = vld [vmem:[%s6320 + $0x58] sm:$0xff]
        %v6333 = vld [vmem:[%s6320 + $0x60] sm:$0xff]
        %v6334 = vld [vmem:[%s6320 + $0x68] sm:$0xff]
        %v6335 = vld [vmem:[%s6320 + $0x70] sm:$0xff]
        %v6336 = vld [vmem:[%s6320 + $0x78] sm:$0xff]
        %6337 = vmatprep.subr.mxu0 0.0
        %6338 = vmatpush1.msra.mxu0 %v6321
        %6339 = vmatprep.subr.mxu0 0.0
        %6340 = vmatpush1.msra.mxu0 %v6322
        %6341 = vmatprep.subr.mxu0 0.0
        %6342 = vmatpush1.msra.mxu0 %v6323
        %6343 = vmatprep.subr.mxu0 0.0
        %6344 = vmatpush1.msra.mxu0 %v6324
        %6345 = vmatprep.subr.mxu0 0.0
        %6346 = vmatpush1.msra.mxu0 %v6325
        %6347 = vmatprep.subr.mxu0 0.0
        %6348 = vmatpush1.msra.mxu0 %v6326
        %6349 = vmatprep.subr.mxu0 0.0
        %6350 = vmatpush1.msra.mxu0 %v6327
        %6351 = vmatprep.subr.mxu0 0.0
        %6352 = vmatpush1.msra.mxu0 %v6328
        %6353 = vmatprep.subr.mxu0 0.0
        %6354 = vmatpush1.msra.mxu0 %v6329
        %6355 = vmatprep.subr.mxu0 0.0
        %6356 = vmatpush1.msra.mxu0 %v6330
        %6357 = vmatprep.subr.mxu0 0.0
        %6358 = vmatpush1.msra.mxu0 %v6331
        %6359 = vmatprep.subr.mxu0 0.0
        %6360 = vmatpush1.msra.mxu0 %v6332
        %6361 = vmatprep.subr.mxu0 0.0
        %6362 = vmatpush1.msra.mxu0 %v6333
        %6363 = vmatprep.subr.mxu0 0.0
        %6364 = vmatpush1.msra.mxu0 %v6334
        %6365 = vmatprep.subr.mxu0 0.0
        %6366 = vmatpush1.msra.mxu0 %v6335
        %6367 = vmatprep.subr.mxu0 0.0
        %6368 = vmatpush1.msra.mxu0 %v6336
        %6369 = vmatprep.subr.mxu0 0.0
        %6370 = vmatpush1.msra.mxu0 0.0
        %6371 = vmatprep.subr.mxu0 0.0
        %6372 = vmatpush1.msra.mxu0 0.0
        %6373 = vmatprep.subr.mxu0 0.0
        %6374 = vmatpush1.msra.mxu0 0.0
        %6375 = vmatprep.subr.mxu0 0.0
        %6376 = vmatpush1.msra.mxu0 0.0
        %6377 = vmatprep.subr.mxu0 0.0
        %6378 = vmatpush1.msra.mxu0 0.0
        %6379 = vmatprep.subr.mxu0 0.0
        %6380 = vmatpush1.msra.mxu0 0.0
        %6381 = vmatprep.subr.mxu0 0.0
        %6382 = vmatpush1.msra.mxu0 0.0
        %6383 = vmatprep.subr.mxu0 0.0
        %6384 = vmatpush1.msra.mxu0 0.0
        %6385 = vmatprep.subr.mxu0 0.0
        %6386 = vmatpush1.msra.mxu0 0.0
        %6387 = vmatprep.subr.mxu0 0.0
        %6388 = vmatpush1.msra.mxu0 0.0
        %6389 = vmatprep.subr.mxu0 0.0
        %6390 = vmatpush1.msra.mxu0 0.0
        %6391 = vmatprep.subr.mxu0 0.0
        %6392 = vmatpush1.msra.mxu0 0.0
        %6393 = vmatprep.subr.mxu0 0.0
        %6394 = vmatpush1.msra.mxu0 0.0
        %6395 = vmatprep.subr.mxu0 0.0
        %6396 = vmatpush1.msra.mxu0 0.0
        %6397 = vmatprep.subr.mxu0 0.0
        %6398 = vmatpush1.msra.mxu0 0.0
        %6399 = vmatprep.subr.mxu0 0.0
        %6400 = vmatpush1.msra.mxu0 0.0
        %6401 = vmatprep.mubr.f32.mxu0 0.0
        %6402 = vmatmul.mubr.f32.gmra.mrb[0].mxu0 %v6284
        %v6403 = vpop.f32.mrb[0].mxu0
        %v6404 = vadd.f32 0.0, %v6403
        %v6405 = vpop.f32.mrb[0].mxu0
        %6406 = vmatprep.mubr.f32.mxu0 0.0
        %6407 = vmatmul.mubr.f32.gmra.mrb[0].mxu0 %v6285
        %v6408 = vpop.f32.mrb[0].mxu0
        %v6409 = vadd.f32 0.0, %v6408
        %v6410 = vpop.f32.mrb[0].mxu0
        %6411 = vmatprep.mubr.f32.mxu0 0.0
        %6412 = vmatmul.mubr.f32.gmra.mrb[0].mxu0 %v6286
        %v6413 = vpop.f32.mrb[0].mxu0
        %v6414 = vadd.f32 0.0, %v6413
        %v6415 = vpop.f32.mrb[0].mxu0
        %6416 = vmatprep.mubr.f32.mxu0 0.0
        %6417 = vmatmul.mubr.f32.gmra.mrb[0].mxu0 %v6287
        %v6418 = vpop.f32.mrb[0].mxu0
        %v6419 = vadd.f32 0.0, %v6418
        %v6420 = vpop.f32.mrb[0].mxu0
        %6421 = vmatprep.mubr.f32.mxu0 0.0
        %6422 = vmatmul.mubr.f32.gmra.mrb[0].mxu0 %v6288
        %v6423 = vpop.f32.mrb[0].mxu0
        %v6424 = vadd.f32 0.0, %v6423
        %v6425 = vpop.f32.mrb[0].mxu0
        %6426 = vmatprep.mubr.f32.mxu0 0.0
        %6427 = vmatmul.mubr.f32.gmra.mrb[0].mxu0 %v6289
        %v6428 = vpop.f32.mrb[0].mxu0
        %v6429 = vadd.f32 0.0, %v6428
        %v6430 = vpop.f32.mrb[0].mxu0
        %6431 = vmatprep.mubr.f32.mxu0 0.0
        %6432 = vmatmul.mubr.f32.gmra.mrb[0].mxu0 %v6290
        %v6433 = vpop.f32.mrb[0].mxu0
        %v6434 = vadd.f32 0.0, %v6433
        %v6435 = vpop.f32.mrb[0].mxu0
        %6436 = vmatprep.mubr.f32.mxu0 0.0
        %6437 = vmatmul.mubr.f32.gmra.mrb[0].mxu0 %v6291
        %v6438 = vpop.f32.mrb[0].mxu0
        %v6439 = vadd.f32 0.0, %v6438
        %v6440 = vpop.f32.mrb[0].mxu0
        %6441 = vmatprep.mubr.f32.mxu0 0.0
        %6442 = vmatmul.mubr.f32.gmra.mrb[0].mxu0 %v6292
        %v6443 = vpop.f32.mrb[0].mxu0
        %v6444 = vadd.f32 0.0, %v6443
        %v6445 = vpop.f32.mrb[0].mxu0
        %6446 = vmatprep.mubr.f32.mxu0 0.0
        %6447 = vmatmul.mubr.f32.gmra.mrb[0].mxu0 %v6293
        %v6448 = vpop.f32.mrb[0].mxu0
        %v6449 = vadd.f32 0.0, %v6448
        %v6450 = vpop.f32.mrb[0].mxu0
        %6451 = vmatprep.mubr.f32.mxu0 0.0
        %6452 = vmatmul.mubr.f32.gmra.mrb[0].mxu0 %v6294
        %v6453 = vpop.f32.mrb[0].mxu0
        %v6454 = vadd.f32 0.0, %v6453
        %v6455 = vpop.f32.mrb[0].mxu0
        %6456 = vmatprep.mubr.f32.mxu0 0.0
        %6457 = vmatmul.mubr.f32.gmra.mrb[0].mxu0 %v6295
        %v6458 = vpop.f32.mrb[0].mxu0
        %v6459 = vadd.f32 0.0, %v6458
        %v6460 = vpop.f32.mrb[0].mxu0
        %6461 = vmatprep.mubr.f32.mxu0 0.0
        %6462 = vmatmul.mubr.f32.gmra.mrb[0].mxu0 %v6296
        %v6463 = vpop.f32.mrb[0].mxu0
        %v6464 = vadd.f32 0.0, %v6463
        %v6465 = vpop.f32.mrb[0].mxu0
        %6466 = vmatprep.mubr.f32.mxu0 0.0
        %6467 = vmatmul.mubr.f32.gmra.mrb[0].mxu0 %v6297
        %v6468 = vpop.f32.mrb[0].mxu0
        %v6469 = vadd.f32 0.0, %v6468
        %v6470 = vpop.f32.mrb[0].mxu0
        %6471 = vmatprep.mubr.f32.mxu0 0.0
        %6472 = vmatmul.mubr.f32.gmra.mrb[0].mxu0 %v6298
        %v6473 = vpop.f32.mrb[0].mxu0
        %v6474 = vadd.f32 0.0, %v6473
        %v6475 = vpop.f32.mrb[0].mxu0
        %6476 = vmatprep.mubr.f32.mxu0 0.0
        %6477 = vmatmul.mubr.f32.gmra.mrb[0].mxu0 %v6299
        %v6478 = vpop.f32.mrb[0].mxu0
        %v6479 = vadd.f32 0.0, %v6478
        %v6480 = vpop.f32.mrb[0].mxu0
        %6481 = vmatprep.mubr.f32.mxu0 0.0
        %6482 = vmatmul.mubr.f32.gmra.mrb[0].mxu0 %v6300
        %v6483 = vpop.f32.mrb[0].mxu0
        %v6484 = vadd.f32 0.0, %v6483
        %v6485 = vpop.f32.mrb[0].mxu0
        %6486 = vmatprep.mubr.f32.mxu0 0.0
        %6487 = vmatmul.mubr.f32.gmra.mrb[0].mxu0 %v6301
        %v6488 = vpop.f32.mrb[0].mxu0
        %v6489 = vadd.f32 0.0, %v6488
        %v6490 = vpop.f32.mrb[0].mxu0
        %6491 = vmatprep.mubr.f32.mxu0 0.0
        %6492 = vmatmul.mubr.f32.gmra.mrb[0].mxu0 %v6302
        %v6493 = vpop.f32.mrb[0].mxu0
        %v6494 = vadd.f32 0.0, %v6493
        %v6495 = vpop.f32.mrb[0].mxu0
        %6496 = vmatprep.mubr.f32.mxu0 0.0
        %6497 = vmatmul.mubr.f32.gmra.mrb[0].mxu0 %v6303
        %v6498 = vpop.f32.mrb[0].mxu0
        %v6499 = vadd.f32 0.0, %v6498
        %v6500 = vpop.f32.mrb[0].mxu0
        %6501 = vmatprep.mubr.f32.mxu0 0.0
        %6502 = vmatmul.mubr.f32.gmra.mrb[0].mxu0 %v6304
        %v6503 = vpop.f32.mrb[0].mxu0
        %v6504 = vadd.f32 0.0, %v6503
        %v6505 = vpop.f32.mrb[0].mxu0
        %6506 = vmatprep.mubr.f32.mxu0 0.0
        %6507 = vmatmul.mubr.f32.gmra.mrb[0].mxu0 %v6305
        %v6508 = vpop.f32.mrb[0].mxu0
        %v6509 = vadd.f32 0.0, %v6508
        %v6510 = vpop.f32.mrb[0].mxu0
        %6511 = vmatprep.mubr.f32.mxu0 0.0
        %6512 = vmatmul.mubr.f32.gmra.mrb[0].mxu0 %v6306
        %v6513 = vpop.f32.mrb[0].mxu0
        %v6514 = vadd.f32 0.0, %v6513
        %v6515 = vpop.f32.mrb[0].mxu0
        %6516 = vmatprep.mubr.f32.mxu0 0.0
        %6517 = vmatmul.mubr.f32.gmra.mrb[0].mxu0 %v6307
        %v6518 = vpop.f32.mrb[0].mxu0
        %v6519 = vadd.f32 0.0, %v6518
        %v6520 = vpop.f32.mrb[0].mxu0
        %6521 = vmatprep.mubr.f32.mxu0 0.0
        %6522 = vmatmul.mubr.f32.gmra.mrb[0].mxu0 %v6308
        %v6523 = vpop.f32.mrb[0].mxu0
        %v6524 = vadd.f32 0.0, %v6523
        %v6525 = vpop.f32.mrb[0].mxu0
        %6526 = vmatprep.mubr.f32.mxu0 0.0
        %6527 = vmatmul.mubr.f32.gmra.mrb[0].mxu0 %v6309
        %v6528 = vpop.f32.mrb[0].mxu0
        %v6529 = vadd.f32 0.0, %v6528
        %v6530 = vpop.f32.mrb[0].mxu0
        %6531 = vmatprep.mubr.f32.mxu0 0.0
        %6532 = vmatmul.mubr.f32.gmra.mrb[0].mxu0 %v6310
        %v6533 = vpop.f32.mrb[0].mxu0
        %v6534 = vadd.f32 0.0, %v6533
        %v6535 = vpop.f32.mrb[0].mxu0
        %6536 = vmatprep.mubr.f32.mxu0 0.0
        %6537 = vmatmul.mubr.f32.gmra.mrb[0].mxu0 %v6311
        %v6538 = vpop.f32.mrb[0].mxu0
        %v6539 = vadd.f32 0.0, %v6538
        %v6540 = vpop.f32.mrb[0].mxu0
        %6541 = vmatprep.mubr.f32.mxu0 0.0
        %6542 = vmatmul.mubr.f32.gmra.mrb[0].mxu0 %v6312
        %v6543 = vpop.f32.mrb[0].mxu0
        %v6544 = vadd.f32 0.0, %v6543
        %v6545 = vpop.f32.mrb[0].mxu0
        %6546 = vmatprep.mubr.f32.mxu0 0.0
        %6547 = vmatmul.mubr.f32.gmra.mrb[0].mxu0 %v6313
        %v6548 = vpop.f32.mrb[0].mxu0
        %v6549 = vadd.f32 0.0, %v6548
        %v6550 = vpop.f32.mrb[0].mxu0
        %6551 = vmatprep.mubr.f32.mxu0 0.0
        %6552 = vmatmul.mubr.f32.gmra.mrb[0].mxu0 %v6314
        %v6553 = vpop.f32.mrb[0].mxu0
        %v6554 = vadd.f32 0.0, %v6553
        %v6555 = vpop.f32.mrb[0].mxu0
        %6556 = vmatprep.mubr.f32.mxu0 0.0
        %6557 = vmatmul.mubr.f32.gmra.mrb[0].mxu0 %v6315
        %v6558 = vpop.f32.mrb[0].mxu0
        %v6559 = vadd.f32 0.0, %v6558
        %v6560 = vpop.f32.mrb[0].mxu0
        %6561 = vmatprep.mubr.f32.mxu0 0.0
        %6562 = vmatmul.mubr.f32.gmra.mrb[0].mxu0 %v6316
        %v6563 = vpop.f32.mrb[0].mxu0
        %v6564 = vadd.f32 0.0, %v6563
        %v6565 = vpop.f32.mrb[0].mxu0
        %6566 = vmatprep.mubr.f32.mxu0 0.0
        %6567 = vmatmul.mubr.f32.gmra.mrb[0].mxu0 %v6317
        %v6568 = vpop.f32.mrb[0].mxu0
        %v6569 = vadd.f32 0.0, %v6568
        %v6570 = vpop.f32.mrb[0].mxu0
        %6571 = vmatprep.mubr.f32.mxu0 0.0
        %6572 = vmatmul.mubr.f32.gmra.mrb[0].mxu0 %v6318
        %v6573 = vpop.f32.mrb[0].mxu0
        %v6574 = vadd.f32 0.0, %v6573
        %v6575 = vpop.f32.mrb[0].mxu0
        %6576 = vmatprep.mubr.f32.mxu0 0.0
        %6577 = vmatmul.mubr.f32.gmra.mrb[0].mxu0 %v6319
        %v6578 = vpop.f32.mrb[0].mxu0
        %v6579 = vadd.f32 0.0, %v6578
        %v6580 = vpop.f32.mrb[0].mxu0
        %6581 = vdwg.mxu0
        %v6582 = vadd.f32 %v6248, %v6404
        %v6583 = vadd.f32 %v6249, %v6409
        %v6584 = vadd.f32 %v6250, %v6414
        %v6585 = vadd.f32 %v6251, %v6419
        %v6586 = vadd.f32 %v6252, %v6424
        %v6587 = vadd.f32 %v6253, %v6429
        %v6588 = vadd.f32 %v6254, %v6434
        %v6589 = vadd.f32 %v6255, %v6439
        %v6590 = vadd.f32 %v6256, %v6444
        %v6591 = vadd.f32 %v6257, %v6449
        %v6592 = vadd.f32 %v6258, %v6454
        %v6593 = vadd.f32 %v6259, %v6459
        %v6594 = vadd.f32 %v6260, %v6464
        %v6595 = vadd.f32 %v6261, %v6469
        %v6596 = vadd.f32 %v6262, %v6474
        %v6597 = vadd.f32 %v6263, %v6479
        %v6598 = vadd.f32 %v6264, %v6484
        %v6599 = vadd.f32 %v6265, %v6489
        %v6600 = vadd.f32 %v6266, %v6494
        %v6601 = vadd.f32 %v6267, %v6499
        %v6602 = vadd.f32 %v6268, %v6504
        %v6603 = vadd.f32 %v6269, %v6509
        %v6604 = vadd.f32 %v6270, %v6514
        %v6605 = vadd.f32 %v6271, %v6519
        %v6606 = vadd.f32 %v6272, %v6524
        %v6607 = vadd.f32 %v6273, %v6529
        %v6608 = vadd.f32 %v6274, %v6534
        %v6609 = vadd.f32 %v6275, %v6539
        %v6610 = vadd.f32 %v6276, %v6544
        %v6611 = vadd.f32 %v6277, %v6549
        %v6612 = vadd.f32 %v6278, %v6554
        %v6613 = vadd.f32 %v6279, %v6559
        %v6614 = vadd.f32 %v6280, %v6564
        %v6615 = vadd.f32 %v6281, %v6569
        %v6616 = vadd.f32 %v6282, %v6574
        %v6617 = vadd.f32 %v6283, %v6579
        %v6618 = vld [vmem:[#allocation2 + $0x14] sm:$0xff]
        %v6619 = vld [vmem:[#allocation2 + $0x1c] sm:$0xff]
        %v6620 = vld [vmem:[#allocation2 + $0x24] sm:$0xff]
        %v6621 = vld [vmem:[#allocation2 + $0x2c] sm:$0xff]
        %v6622 = vld [vmem:[#allocation2 + $0x34] sm:$0xff]
        %v6623 = vld [vmem:[#allocation2 + $0x3c] sm:$0xff]
        %v6624 = vld [vmem:[#allocation2 + $0x44] sm:$0xff]
        %v6625 = vld [vmem:[#allocation2 + $0x4c] sm:$0xff]
        %v6626 = vld [vmem:[#allocation2 + $0x54] sm:$0xff]
        %v6627 = vld [vmem:[#allocation2 + $0x5c] sm:$0xff]
        %v6628 = vld [vmem:[#allocation2 + $0x64] sm:$0xff]
        %v6629 = vld [vmem:[#allocation2 + $0x6c] sm:$0xff]
        %v6630 = vld [vmem:[#allocation2 + $0x74] sm:$0xff]
        %v6631 = vld [vmem:[#allocation2 + $0x7c] sm:$0xff]
        %v6632 = vld [vmem:[#allocation2 + $0x84] sm:$0xff]
        %v6633 = vld [vmem:[#allocation2 + $0x8c] sm:$0xff]
        %v6634 = vld [vmem:[#allocation2 + $0x94] sm:$0xff]
        %v6635 = vld [vmem:[#allocation2 + $0x9c] sm:$0xff]
        %v6636 = vld [vmem:[#allocation2 + $0xa4] sm:$0xff]
        %v6637 = vld [vmem:[#allocation2 + $0xac] sm:$0xff]
        %v6638 = vld [vmem:[#allocation2 + $0xb4] sm:$0xff]
        %v6639 = vld [vmem:[#allocation2 + $0xbc] sm:$0xff]
        %v6640 = vld [vmem:[#allocation2 + $0xc4] sm:$0xff]
        %v6641 = vld [vmem:[#allocation2 + $0xcc] sm:$0xff]
        %v6642 = vld [vmem:[#allocation2 + $0xd4] sm:$0xff]
        %v6643 = vld [vmem:[#allocation2 + $0xdc] sm:$0xff]
        %v6644 = vld [vmem:[#allocation2 + $0xe4] sm:$0xff]
        %v6645 = vld [vmem:[#allocation2 + $0xec] sm:$0xff]
        %v6646 = vld [vmem:[#allocation2 + $0xf4] sm:$0xff]
        %v6647 = vld [vmem:[#allocation2 + $0xfc] sm:$0xff]
        %v6648 = vld [vmem:[#allocation2 + $0x104] sm:$0xff]
        %v6649 = vld [vmem:[#allocation2 + $0x10c] sm:$0xff]
        %v6650 = vld [vmem:[#allocation2 + $0x114] sm:$0xff]
        %v6651 = vld [vmem:[#allocation2 + $0x11c] sm:$0xff]
        %v6652 = vld [vmem:[#allocation2 + $0x124] sm:$0xff]
        %v6653 = vld [vmem:[#allocation2 + $0x12c] sm:$0xff]
        %s6654 = scalar_lea.vmem [#allocation3], 640
        %v6655 = vld [vmem:[%s6654] sm:$0xff]
        %v6656 = vld [vmem:[%s6654 + $0x8] sm:$0xff]
        %v6657 = vld [vmem:[%s6654 + $0x10] sm:$0xff]
        %v6658 = vld [vmem:[%s6654 + $0x18] sm:$0xff]
        %v6659 = vld [vmem:[%s6654 + $0x20] sm:$0xff]
        %v6660 = vld [vmem:[%s6654 + $0x28] sm:$0xff]
        %v6661 = vld [vmem:[%s6654 + $0x30] sm:$0xff]
        %v6662 = vld [vmem:[%s6654 + $0x38] sm:$0xff]
        %v6663 = vld [vmem:[%s6654 + $0x40] sm:$0xff]
        %v6664 = vld [vmem:[%s6654 + $0x48] sm:$0xff]
        %v6665 = vld [vmem:[%s6654 + $0x50] sm:$0xff]
        %v6666 = vld [vmem:[%s6654 + $0x58] sm:$0xff]
        %v6667 = vld [vmem:[%s6654 + $0x60] sm:$0xff]
        %v6668 = vld [vmem:[%s6654 + $0x68] sm:$0xff]
        %v6669 = vld [vmem:[%s6654 + $0x70] sm:$0xff]
        %v6670 = vld [vmem:[%s6654 + $0x78] sm:$0xff]
        %6671 = vmatprep.subr.mxu0 0.0
        %6672 = vmatpush1.msra.mxu0 %v6655
        %6673 = vmatprep.subr.mxu0 0.0
        %6674 = vmatpush1.msra.mxu0 %v6656
        %6675 = vmatprep.subr.mxu0 0.0
        %6676 = vmatpush1.msra.mxu0 %v6657
        %6677 = vmatprep.subr.mxu0 0.0
        %6678 = vmatpush1.msra.mxu0 %v6658
        %6679 = vmatprep.subr.mxu0 0.0
        %6680 = vmatpush1.msra.mxu0 %v6659
        %6681 = vmatprep.subr.mxu0 0.0
        %6682 = vmatpush1.msra.mxu0 %v6660
        %6683 = vmatprep.subr.mxu0 0.0
        %6684 = vmatpush1.msra.mxu0 %v6661
        %6685 = vmatprep.subr.mxu0 0.0
        %6686 = vmatpush1.msra.mxu0 %v6662
        %6687 = vmatprep.subr.mxu0 0.0
        %6688 = vmatpush1.msra.mxu0 %v6663
        %6689 = vmatprep.subr.mxu0 0.0
        %6690 = vmatpush1.msra.mxu0 %v6664
        %6691 = vmatprep.subr.mxu0 0.0
        %6692 = vmatpush1.msra.mxu0 %v6665
        %6693 = vmatprep.subr.mxu0 0.0
        %6694 = vmatpush1.msra.mxu0 %v6666
        %6695 = vmatprep.subr.mxu0 0.0
        %6696 = vmatpush1.msra.mxu0 %v6667
        %6697 = vmatprep.subr.mxu0 0.0
        %6698 = vmatpush1.msra.mxu0 %v6668
        %6699 = vmatprep.subr.mxu0 0.0
        %6700 = vmatpush1.msra.mxu0 %v6669
        %6701 = vmatprep.subr.mxu0 0.0
        %6702 = vmatpush1.msra.mxu0 %v6670
        %6703 = vmatprep.subr.mxu0 0.0
        %6704 = vmatpush1.msra.mxu0 0.0
        %6705 = vmatprep.subr.mxu0 0.0
        %6706 = vmatpush1.msra.mxu0 0.0
        %6707 = vmatprep.subr.mxu0 0.0
        %6708 = vmatpush1.msra.mxu0 0.0
        %6709 = vmatprep.subr.mxu0 0.0
        %6710 = vmatpush1.msra.mxu0 0.0
        %6711 = vmatprep.subr.mxu0 0.0
        %6712 = vmatpush1.msra.mxu0 0.0
        %6713 = vmatprep.subr.mxu0 0.0
        %6714 = vmatpush1.msra.mxu0 0.0
        %6715 = vmatprep.subr.mxu0 0.0
        %6716 = vmatpush1.msra.mxu0 0.0
        %6717 = vmatprep.subr.mxu0 0.0
        %6718 = vmatpush1.msra.mxu0 0.0
        %6719 = vmatprep.subr.mxu0 0.0
        %6720 = vmatpush1.msra.mxu0 0.0
        %6721 = vmatprep.subr.mxu0 0.0
        %6722 = vmatpush1.msra.mxu0 0.0
        %6723 = vmatprep.subr.mxu0 0.0
        %6724 = vmatpush1.msra.mxu0 0.0
        %6725 = vmatprep.subr.mxu0 0.0
        %6726 = vmatpush1.msra.mxu0 0.0
        %6727 = vmatprep.subr.mxu0 0.0
        %6728 = vmatpush1.msra.mxu0 0.0
        %6729 = vmatprep.subr.mxu0 0.0
        %6730 = vmatpush1.msra.mxu0 0.0
        %6731 = vmatprep.subr.mxu0 0.0
        %6732 = vmatpush1.msra.mxu0 0.0
        %6733 = vmatprep.subr.mxu0 0.0
        %6734 = vmatpush1.msra.mxu0 0.0
        %6735 = vmatprep.mubr.f32.mxu0 0.0
        %6736 = vmatmul.mubr.f32.gmra.mrb[0].mxu0 %v6618
        %v6737 = vpop.f32.mrb[0].mxu0
        %v6738 = vadd.f32 0.0, %v6737
        %v6739 = vpop.f32.mrb[0].mxu0
        %6740 = vmatprep.mubr.f32.mxu0 0.0
        %6741 = vmatmul.mubr.f32.gmra.mrb[0].mxu0 %v6619
        %v6742 = vpop.f32.mrb[0].mxu0
        %v6743 = vadd.f32 0.0, %v6742
        %v6744 = vpop.f32.mrb[0].mxu0
        %6745 = vmatprep.mubr.f32.mxu0 0.0
        %6746 = vmatmul.mubr.f32.gmra.mrb[0].mxu0 %v6620
        %v6747 = vpop.f32.mrb[0].mxu0
        %v6748 = vadd.f32 0.0, %v6747
        %v6749 = vpop.f32.mrb[0].mxu0
        %6750 = vmatprep.mubr.f32.mxu0 0.0
        %6751 = vmatmul.mubr.f32.gmra.mrb[0].mxu0 %v6621
        %v6752 = vpop.f32.mrb[0].mxu0
        %v6753 = vadd.f32 0.0, %v6752
        %v6754 = vpop.f32.mrb[0].mxu0
        %6755 = vmatprep.mubr.f32.mxu0 0.0
        %6756 = vmatmul.mubr.f32.gmra.mrb[0].mxu0 %v6622
        %v6757 = vpop.f32.mrb[0].mxu0
        %v6758 = vadd.f32 0.0, %v6757
        %v6759 = vpop.f32.mrb[0].mxu0
        %6760 = vmatprep.mubr.f32.mxu0 0.0
        %6761 = vmatmul.mubr.f32.gmra.mrb[0].mxu0 %v6623
        %v6762 = vpop.f32.mrb[0].mxu0
        %v6763 = vadd.f32 0.0, %v6762
        %v6764 = vpop.f32.mrb[0].mxu0
        %6765 = vmatprep.mubr.f32.mxu0 0.0
        %6766 = vmatmul.mubr.f32.gmra.mrb[0].mxu0 %v6624
        %v6767 = vpop.f32.mrb[0].mxu0
        %v6768 = vadd.f32 0.0, %v6767
        %v6769 = vpop.f32.mrb[0].mxu0
        %6770 = vmatprep.mubr.f32.mxu0 0.0
        %6771 = vmatmul.mubr.f32.gmra.mrb[0].mxu0 %v6625
        %v6772 = vpop.f32.mrb[0].mxu0
        %v6773 = vadd.f32 0.0, %v6772
        %v6774 = vpop.f32.mrb[0].mxu0
        %6775 = vmatprep.mubr.f32.mxu0 0.0
        %6776 = vmatmul.mubr.f32.gmra.mrb[0].mxu0 %v6626
        %v6777 = vpop.f32.mrb[0].mxu0
        %v6778 = vadd.f32 0.0, %v6777
        %v6779 = vpop.f32.mrb[0].mxu0
        %6780 = vmatprep.mubr.f32.mxu0 0.0
        %6781 = vmatmul.mubr.f32.gmra.mrb[0].mxu0 %v6627
        %v6782 = vpop.f32.mrb[0].mxu0
        %v6783 = vadd.f32 0.0, %v6782
        %v6784 = vpop.f32.mrb[0].mxu0
        %6785 = vmatprep.mubr.f32.mxu0 0.0
        %6786 = vmatmul.mubr.f32.gmra.mrb[0].mxu0 %v6628
        %v6787 = vpop.f32.mrb[0].mxu0
        %v6788 = vadd.f32 0.0, %v6787
        %v6789 = vpop.f32.mrb[0].mxu0
        %6790 = vmatprep.mubr.f32.mxu0 0.0
        %6791 = vmatmul.mubr.f32.gmra.mrb[0].mxu0 %v6629
        %v6792 = vpop.f32.mrb[0].mxu0
        %v6793 = vadd.f32 0.0, %v6792
        %v6794 = vpop.f32.mrb[0].mxu0
        %6795 = vmatprep.mubr.f32.mxu0 0.0
        %6796 = vmatmul.mubr.f32.gmra.mrb[0].mxu0 %v6630
        %v6797 = vpop.f32.mrb[0].mxu0
        %v6798 = vadd.f32 0.0, %v6797
        %v6799 = vpop.f32.mrb[0].mxu0
        %6800 = vmatprep.mubr.f32.mxu0 0.0
        %6801 = vmatmul.mubr.f32.gmra.mrb[0].mxu0 %v6631
        %v6802 = vpop.f32.mrb[0].mxu0
        %v6803 = vadd.f32 0.0, %v6802
        %v6804 = vpop.f32.mrb[0].mxu0
        %6805 = vmatprep.mubr.f32.mxu0 0.0
        %6806 = vmatmul.mubr.f32.gmra.mrb[0].mxu0 %v6632
        %v6807 = vpop.f32.mrb[0].mxu0
        %v6808 = vadd.f32 0.0, %v6807
        %v6809 = vpop.f32.mrb[0].mxu0
        %6810 = vmatprep.mubr.f32.mxu0 0.0
        %6811 = vmatmul.mubr.f32.gmra.mrb[0].mxu0 %v6633
        %v6812 = vpop.f32.mrb[0].mxu0
        %v6813 = vadd.f32 0.0, %v6812
        %v6814 = vpop.f32.mrb[0].mxu0
        %6815 = vmatprep.mubr.f32.mxu0 0.0
        %6816 = vmatmul.mubr.f32.gmra.mrb[0].mxu0 %v6634
        %v6817 = vpop.f32.mrb[0].mxu0
        %v6818 = vadd.f32 0.0, %v6817
        %v6819 = vpop.f32.mrb[0].mxu0
        %6820 = vmatprep.mubr.f32.mxu0 0.0
        %6821 = vmatmul.mubr.f32.gmra.mrb[0].mxu0 %v6635
        %v6822 = vpop.f32.mrb[0].mxu0
        %v6823 = vadd.f32 0.0, %v6822
        %v6824 = vpop.f32.mrb[0].mxu0
        %6825 = vmatprep.mubr.f32.mxu0 0.0
        %6826 = vmatmul.mubr.f32.gmra.mrb[0].mxu0 %v6636
        %v6827 = vpop.f32.mrb[0].mxu0
        %v6828 = vadd.f32 0.0, %v6827
        %v6829 = vpop.f32.mrb[0].mxu0
        %6830 = vmatprep.mubr.f32.mxu0 0.0
        %6831 = vmatmul.mubr.f32.gmra.mrb[0].mxu0 %v6637
        %v6832 = vpop.f32.mrb[0].mxu0
        %v6833 = vadd.f32 0.0, %v6832
        %v6834 = vpop.f32.mrb[0].mxu0
        %6835 = vmatprep.mubr.f32.mxu0 0.0
        %6836 = vmatmul.mubr.f32.gmra.mrb[0].mxu0 %v6638
        %v6837 = vpop.f32.mrb[0].mxu0
        %v6838 = vadd.f32 0.0, %v6837
        %v6839 = vpop.f32.mrb[0].mxu0
        %6840 = vmatprep.mubr.f32.mxu0 0.0
        %6841 = vmatmul.mubr.f32.gmra.mrb[0].mxu0 %v6639
        %v6842 = vpop.f32.mrb[0].mxu0
        %v6843 = vadd.f32 0.0, %v6842
        %v6844 = vpop.f32.mrb[0].mxu0
        %6845 = vmatprep.mubr.f32.mxu0 0.0
        %6846 = vmatmul.mubr.f32.gmra.mrb[0].mxu0 %v6640
        %v6847 = vpop.f32.mrb[0].mxu0
        %v6848 = vadd.f32 0.0, %v6847
        %v6849 = vpop.f32.mrb[0].mxu0
        %6850 = vmatprep.mubr.f32.mxu0 0.0
        %6851 = vmatmul.mubr.f32.gmra.mrb[0].mxu0 %v6641
        %v6852 = vpop.f32.mrb[0].mxu0
        %v6853 = vadd.f32 0.0, %v6852
        %v6854 = vpop.f32.mrb[0].mxu0
        %6855 = vmatprep.mubr.f32.mxu0 0.0
        %6856 = vmatmul.mubr.f32.gmra.mrb[0].mxu0 %v6642
        %v6857 = vpop.f32.mrb[0].mxu0
        %v6858 = vadd.f32 0.0, %v6857
        %v6859 = vpop.f32.mrb[0].mxu0
        %6860 = vmatprep.mubr.f32.mxu0 0.0
        %6861 = vmatmul.mubr.f32.gmra.mrb[0].mxu0 %v6643
        %v6862 = vpop.f32.mrb[0].mxu0
        %v6863 = vadd.f32 0.0, %v6862
        %v6864 = vpop.f32.mrb[0].mxu0
        %6865 = vmatprep.mubr.f32.mxu0 0.0
        %6866 = vmatmul.mubr.f32.gmra.mrb[0].mxu0 %v6644
        %v6867 = vpop.f32.mrb[0].mxu0
        %v6868 = vadd.f32 0.0, %v6867
        %v6869 = vpop.f32.mrb[0].mxu0
        %6870 = vmatprep.mubr.f32.mxu0 0.0
        %6871 = vmatmul.mubr.f32.gmra.mrb[0].mxu0 %v6645
        %v6872 = vpop.f32.mrb[0].mxu0
        %v6873 = vadd.f32 0.0, %v6872
        %v6874 = vpop.f32.mrb[0].mxu0
        %6875 = vmatprep.mubr.f32.mxu0 0.0
        %6876 = vmatmul.mubr.f32.gmra.mrb[0].mxu0 %v6646
        %v6877 = vpop.f32.mrb[0].mxu0
        %v6878 = vadd.f32 0.0, %v6877
        %v6879 = vpop.f32.mrb[0].mxu0
        %6880 = vmatprep.mubr.f32.mxu0 0.0
        %6881 = vmatmul.mubr.f32.gmra.mrb[0].mxu0 %v6647
        %v6882 = vpop.f32.mrb[0].mxu0
        %v6883 = vadd.f32 0.0, %v6882
        %v6884 = vpop.f32.mrb[0].mxu0
        %6885 = vmatprep.mubr.f32.mxu0 0.0
        %6886 = vmatmul.mubr.f32.gmra.mrb[0].mxu0 %v6648
        %v6887 = vpop.f32.mrb[0].mxu0
        %v6888 = vadd.f32 0.0, %v6887
        %v6889 = vpop.f32.mrb[0].mxu0
        %6890 = vmatprep.mubr.f32.mxu0 0.0
        %6891 = vmatmul.mubr.f32.gmra.mrb[0].mxu0 %v6649
        %v6892 = vpop.f32.mrb[0].mxu0
        %v6893 = vadd.f32 0.0, %v6892
        %v6894 = vpop.f32.mrb[0].mxu0
        %6895 = vmatprep.mubr.f32.mxu0 0.0
        %6896 = vmatmul.mubr.f32.gmra.mrb[0].mxu0 %v6650
        %v6897 = vpop.f32.mrb[0].mxu0
        %v6898 = vadd.f32 0.0, %v6897
        %v6899 = vpop.f32.mrb[0].mxu0
        %6900 = vmatprep.mubr.f32.mxu0 0.0
        %6901 = vmatmul.mubr.f32.gmra.mrb[0].mxu0 %v6651
        %v6902 = vpop.f32.mrb[0].mxu0
        %v6903 = vadd.f32 0.0, %v6902
        %v6904 = vpop.f32.mrb[0].mxu0
        %6905 = vmatprep.mubr.f32.mxu0 0.0
        %6906 = vmatmul.mubr.f32.gmra.mrb[0].mxu0 %v6652
        %v6907 = vpop.f32.mrb[0].mxu0
        %v6908 = vadd.f32 0.0, %v6907
        %v6909 = vpop.f32.mrb[0].mxu0
        %6910 = vmatprep.mubr.f32.mxu0 0.0
        %6911 = vmatmul.mubr.f32.gmra.mrb[0].mxu0 %v6653
        %v6912 = vpop.f32.mrb[0].mxu0
        %v6913 = vadd.f32 0.0, %v6912
        %v6914 = vpop.f32.mrb[0].mxu0
        %6915 = vdwg.mxu0
        %v6916 = vadd.f32 %v6582, %v6738
        %v6917 = vadd.f32 %v6583, %v6743
        %v6918 = vadd.f32 %v6584, %v6748
        %v6919 = vadd.f32 %v6585, %v6753
        %v6920 = vadd.f32 %v6586, %v6758
        %v6921 = vadd.f32 %v6587, %v6763
        %v6922 = vadd.f32 %v6588, %v6768
        %v6923 = vadd.f32 %v6589, %v6773
        %v6924 = vadd.f32 %v6590, %v6778
        %v6925 = vadd.f32 %v6591, %v6783
        %v6926 = vadd.f32 %v6592, %v6788
        %v6927 = vadd.f32 %v6593, %v6793
        %v6928 = vadd.f32 %v6594, %v6798
        %v6929 = vadd.f32 %v6595, %v6803
        %v6930 = vadd.f32 %v6596, %v6808
        %v6931 = vadd.f32 %v6597, %v6813
        %v6932 = vadd.f32 %v6598, %v6818
        %v6933 = vadd.f32 %v6599, %v6823
        %v6934 = vadd.f32 %v6600, %v6828
        %v6935 = vadd.f32 %v6601, %v6833
        %v6936 = vadd.f32 %v6602, %v6838
        %v6937 = vadd.f32 %v6603, %v6843
        %v6938 = vadd.f32 %v6604, %v6848
        %v6939 = vadd.f32 %v6605, %v6853
        %v6940 = vadd.f32 %v6606, %v6858
        %v6941 = vadd.f32 %v6607, %v6863
        %v6942 = vadd.f32 %v6608, %v6868
        %v6943 = vadd.f32 %v6609, %v6873
        %v6944 = vadd.f32 %v6610, %v6878
        %v6945 = vadd.f32 %v6611, %v6883
        %v6946 = vadd.f32 %v6612, %v6888
        %v6947 = vadd.f32 %v6613, %v6893
        %v6948 = vadd.f32 %v6614, %v6898
        %v6949 = vadd.f32 %v6615, %v6903
        %v6950 = vadd.f32 %v6616, %v6908
        %v6951 = vadd.f32 %v6617, %v6913
        %v6952 = vld [vmem:[#allocation2 + $0x24] sm:$0xff]
        %v6953 = vld [vmem:[#allocation2 + $0x2c] sm:$0xff]
        %v6954 = vld [vmem:[#allocation2 + $0x34] sm:$0xff]
        %v6955 = vld [vmem:[#allocation2 + $0x3c] sm:$0xff]
        %v6956 = vld [vmem:[#allocation2 + $0x44] sm:$0xff]
        %v6957 = vld [vmem:[#allocation2 + $0x4c] sm:$0xff]
        %v6958 = vld [vmem:[#allocation2 + $0x54] sm:$0xff]
        %v6959 = vld [vmem:[#allocation2 + $0x5c] sm:$0xff]
        %v6960 = vld [vmem:[#allocation2 + $0x64] sm:$0xff]
        %v6961 = vld [vmem:[#allocation2 + $0x6c] sm:$0xff]
        %v6962 = vld [vmem:[#allocation2 + $0x74] sm:$0xff]
        %v6963 = vld [vmem:[#allocation2 + $0x7c] sm:$0xff]
        %v6964 = vld [vmem:[#allocation2 + $0x84] sm:$0xff]
        %v6965 = vld [vmem:[#allocation2 + $0x8c] sm:$0xff]
        %v6966 = vld [vmem:[#allocation2 + $0x94] sm:$0xff]
        %v6967 = vld [vmem:[#allocation2 + $0x9c] sm:$0xff]
        %v6968 = vld [vmem:[#allocation2 + $0xa4] sm:$0xff]
        %v6969 = vld [vmem:[#allocation2 + $0xac] sm:$0xff]
        %v6970 = vld [vmem:[#allocation2 + $0xb4] sm:$0xff]
        %v6971 = vld [vmem:[#allocation2 + $0xbc] sm:$0xff]
        %v6972 = vld [vmem:[#allocation2 + $0xc4] sm:$0xff]
        %v6973 = vld [vmem:[#allocation2 + $0xcc] sm:$0xff]
        %v6974 = vld [vmem:[#allocation2 + $0xd4] sm:$0xff]
        %v6975 = vld [vmem:[#allocation2 + $0xdc] sm:$0xff]
        %v6976 = vld [vmem:[#allocation2 + $0xe4] sm:$0xff]
        %v6977 = vld [vmem:[#allocation2 + $0xec] sm:$0xff]
        %v6978 = vld [vmem:[#allocation2 + $0xf4] sm:$0xff]
        %v6979 = vld [vmem:[#allocation2 + $0xfc] sm:$0xff]
        %v6980 = vld [vmem:[#allocation2 + $0x104] sm:$0xff]
        %v6981 = vld [vmem:[#allocation2 + $0x10c] sm:$0xff]
        %v6982 = vld [vmem:[#allocation2 + $0x114] sm:$0xff]
        %v6983 = vld [vmem:[#allocation2 + $0x11c] sm:$0xff]
        %v6984 = vld [vmem:[#allocation2 + $0x124] sm:$0xff]
        %v6985 = vld [vmem:[#allocation2 + $0x12c] sm:$0xff]
        %v6986 = vld [vmem:[#allocation2 + $0x134] sm:$0xff]
        %v6987 = vld [vmem:[#allocation2 + $0x13c] sm:$0xff]
        %s6988 = scalar_lea.vmem [#allocation3], 768
        %v6989 = vld [vmem:[%s6988] sm:$0xff]
        %v6990 = vld [vmem:[%s6988 + $0x8] sm:$0xff]
        %v6991 = vld [vmem:[%s6988 + $0x10] sm:$0xff]
        %v6992 = vld [vmem:[%s6988 + $0x18] sm:$0xff]
        %v6993 = vld [vmem:[%s6988 + $0x20] sm:$0xff]
        %v6994 = vld [vmem:[%s6988 + $0x28] sm:$0xff]
        %v6995 = vld [vmem:[%s6988 + $0x30] sm:$0xff]
        %v6996 = vld [vmem:[%s6988 + $0x38] sm:$0xff]
        %v6997 = vld [vmem:[%s6988 + $0x40] sm:$0xff]
        %v6998 = vld [vmem:[%s6988 + $0x48] sm:$0xff]
        %v6999 = vld [vmem:[%s6988 + $0x50] sm:$0xff]
        %v7000 = vld [vmem:[%s6988 + $0x58] sm:$0xff]
        %v7001 = vld [vmem:[%s6988 + $0x60] sm:$0xff]
        %v7002 = vld [vmem:[%s6988 + $0x68] sm:$0xff]
        %v7003 = vld [vmem:[%s6988 + $0x70] sm:$0xff]
        %v7004 = vld [vmem:[%s6988 + $0x78] sm:$0xff]
        %7005 = vmatprep.subr.mxu0 0.0
        %7006 = vmatpush1.msra.mxu0 %v6989
        %7007 = vmatprep.subr.mxu0 0.0
        %7008 = vmatpush1.msra.mxu0 %v6990
        %7009 = vmatprep.subr.mxu0 0.0
        %7010 = vmatpush1.msra.mxu0 %v6991
        %7011 = vmatprep.subr.mxu0 0.0
        %7012 = vmatpush1.msra.mxu0 %v6992
        %7013 = vmatprep.subr.mxu0 0.0
        %7014 = vmatpush1.msra.mxu0 %v6993
        %7015 = vmatprep.subr.mxu0 0.0
        %7016 = vmatpush1.msra.mxu0 %v6994
        %7017 = vmatprep.subr.mxu0 0.0
        %7018 = vmatpush1.msra.mxu0 %v6995
        %7019 = vmatprep.subr.mxu0 0.0
        %7020 = vmatpush1.msra.mxu0 %v6996
        %7021 = vmatprep.subr.mxu0 0.0
        %7022 = vmatpush1.msra.mxu0 %v6997
        %7023 = vmatprep.subr.mxu0 0.0
        %7024 = vmatpush1.msra.mxu0 %v6998
        %7025 = vmatprep.subr.mxu0 0.0
        %7026 = vmatpush1.msra.mxu0 %v6999
        %7027 = vmatprep.subr.mxu0 0.0
        %7028 = vmatpush1.msra.mxu0 %v7000
        %7029 = vmatprep.subr.mxu0 0.0
        %7030 = vmatpush1.msra.mxu0 %v7001
        %7031 = vmatprep.subr.mxu0 0.0
        %7032 = vmatpush1.msra.mxu0 %v7002
        %7033 = vmatprep.subr.mxu0 0.0
        %7034 = vmatpush1.msra.mxu0 %v7003
        %7035 = vmatprep.subr.mxu0 0.0
        %7036 = vmatpush1.msra.mxu0 %v7004
        %7037 = vmatprep.subr.mxu0 0.0
        %7038 = vmatpush1.msra.mxu0 0.0
        %7039 = vmatprep.subr.mxu0 0.0
        %7040 = vmatpush1.msra.mxu0 0.0
        %7041 = vmatprep.subr.mxu0 0.0
        %7042 = vmatpush1.msra.mxu0 0.0
        %7043 = vmatprep.subr.mxu0 0.0
        %7044 = vmatpush1.msra.mxu0 0.0
        %7045 = vmatprep.subr.mxu0 0.0
        %7046 = vmatpush1.msra.mxu0 0.0
        %7047 = vmatprep.subr.mxu0 0.0
        %7048 = vmatpush1.msra.mxu0 0.0
        %7049 = vmatprep.subr.mxu0 0.0
        %7050 = vmatpush1.msra.mxu0 0.0
        %7051 = vmatprep.subr.mxu0 0.0
        %7052 = vmatpush1.msra.mxu0 0.0
        %7053 = vmatprep.subr.mxu0 0.0
        %7054 = vmatpush1.msra.mxu0 0.0
        %7055 = vmatprep.subr.mxu0 0.0
        %7056 = vmatpush1.msra.mxu0 0.0
        %7057 = vmatprep.subr.mxu0 0.0
        %7058 = vmatpush1.msra.mxu0 0.0
        %7059 = vmatprep.subr.mxu0 0.0
        %7060 = vmatpush1.msra.mxu0 0.0
        %7061 = vmatprep.subr.mxu0 0.0
        %7062 = vmatpush1.msra.mxu0 0.0
        %7063 = vmatprep.subr.mxu0 0.0
        %7064 = vmatpush1.msra.mxu0 0.0
        %7065 = vmatprep.subr.mxu0 0.0
        %7066 = vmatpush1.msra.mxu0 0.0
        %7067 = vmatprep.subr.mxu0 0.0
        %7068 = vmatpush1.msra.mxu0 0.0
        %7069 = vmatprep.mubr.f32.mxu0 0.0
        %7070 = vmatmul.mubr.f32.gmra.mrb[0].mxu0 %v6952
        %v7071 = vpop.f32.mrb[0].mxu0
        %v7072 = vadd.f32 0.0, %v7071
        %v7073 = vpop.f32.mrb[0].mxu0
        %7074 = vmatprep.mubr.f32.mxu0 0.0
        %7075 = vmatmul.mubr.f32.gmra.mrb[0].mxu0 %v6953
        %v7076 = vpop.f32.mrb[0].mxu0
        %v7077 = vadd.f32 0.0, %v7076
        %v7078 = vpop.f32.mrb[0].mxu0
        %7079 = vmatprep.mubr.f32.mxu0 0.0
        %7080 = vmatmul.mubr.f32.gmra.mrb[0].mxu0 %v6954
        %v7081 = vpop.f32.mrb[0].mxu0
        %v7082 = vadd.f32 0.0, %v7081
        %v7083 = vpop.f32.mrb[0].mxu0
        %7084 = vmatprep.mubr.f32.mxu0 0.0
        %7085 = vmatmul.mubr.f32.gmra.mrb[0].mxu0 %v6955
        %v7086 = vpop.f32.mrb[0].mxu0
        %v7087 = vadd.f32 0.0, %v7086
        %v7088 = vpop.f32.mrb[0].mxu0
        %7089 = vmatprep.mubr.f32.mxu0 0.0
        %7090 = vmatmul.mubr.f32.gmra.mrb[0].mxu0 %v6956
        %v7091 = vpop.f32.mrb[0].mxu0
        %v7092 = vadd.f32 0.0, %v7091
        %v7093 = vpop.f32.mrb[0].mxu0
        %7094 = vmatprep.mubr.f32.mxu0 0.0
        %7095 = vmatmul.mubr.f32.gmra.mrb[0].mxu0 %v6957
        %v7096 = vpop.f32.mrb[0].mxu0
        %v7097 = vadd.f32 0.0, %v7096
        %v7098 = vpop.f32.mrb[0].mxu0
        %7099 = vmatprep.mubr.f32.mxu0 0.0
        %7100 = vmatmul.mubr.f32.gmra.mrb[0].mxu0 %v6958
        %v7101 = vpop.f32.mrb[0].mxu0
        %v7102 = vadd.f32 0.0, %v7101
        %v7103 = vpop.f32.mrb[0].mxu0
        %7104 = vmatprep.mubr.f32.mxu0 0.0
        %7105 = vmatmul.mubr.f32.gmra.mrb[0].mxu0 %v6959
        %v7106 = vpop.f32.mrb[0].mxu0
        %v7107 = vadd.f32 0.0, %v7106
        %v7108 = vpop.f32.mrb[0].mxu0
        %7109 = vmatprep.mubr.f32.mxu0 0.0
        %7110 = vmatmul.mubr.f32.gmra.mrb[0].mxu0 %v6960
        %v7111 = vpop.f32.mrb[0].mxu0
        %v7112 = vadd.f32 0.0, %v7111
        %v7113 = vpop.f32.mrb[0].mxu0
        %7114 = vmatprep.mubr.f32.mxu0 0.0
        %7115 = vmatmul.mubr.f32.gmra.mrb[0].mxu0 %v6961
        %v7116 = vpop.f32.mrb[0].mxu0
        %v7117 = vadd.f32 0.0, %v7116
        %v7118 = vpop.f32.mrb[0].mxu0
        %7119 = vmatprep.mubr.f32.mxu0 0.0
        %7120 = vmatmul.mubr.f32.gmra.mrb[0].mxu0 %v6962
        %v7121 = vpop.f32.mrb[0].mxu0
        %v7122 = vadd.f32 0.0, %v7121
        %v7123 = vpop.f32.mrb[0].mxu0
        %7124 = vmatprep.mubr.f32.mxu0 0.0
        %7125 = vmatmul.mubr.f32.gmra.mrb[0].mxu0 %v6963
        %v7126 = vpop.f32.mrb[0].mxu0
        %v7127 = vadd.f32 0.0, %v7126
        %v7128 = vpop.f32.mrb[0].mxu0
        %7129 = vmatprep.mubr.f32.mxu0 0.0
        %7130 = vmatmul.mubr.f32.gmra.mrb[0].mxu0 %v6964
        %v7131 = vpop.f32.mrb[0].mxu0
        %v7132 = vadd.f32 0.0, %v7131
        %v7133 = vpop.f32.mrb[0].mxu0
        %7134 = vmatprep.mubr.f32.mxu0 0.0
        %7135 = vmatmul.mubr.f32.gmra.mrb[0].mxu0 %v6965
        %v7136 = vpop.f32.mrb[0].mxu0
        %v7137 = vadd.f32 0.0, %v7136
        %v7138 = vpop.f32.mrb[0].mxu0
        %7139 = vmatprep.mubr.f32.mxu0 0.0
        %7140 = vmatmul.mubr.f32.gmra.mrb[0].mxu0 %v6966
        %v7141 = vpop.f32.mrb[0].mxu0
        %v7142 = vadd.f32 0.0, %v7141
        %v7143 = vpop.f32.mrb[0].mxu0
        %7144 = vmatprep.mubr.f32.mxu0 0.0
        %7145 = vmatmul.mubr.f32.gmra.mrb[0].mxu0 %v6967
        %v7146 = vpop.f32.mrb[0].mxu0
        %v7147 = vadd.f32 0.0, %v7146
        %v7148 = vpop.f32.mrb[0].mxu0
        %7149 = vmatprep.mubr.f32.mxu0 0.0
        %7150 = vmatmul.mubr.f32.gmra.mrb[0].mxu0 %v6968
        %v7151 = vpop.f32.mrb[0].mxu0
        %v7152 = vadd.f32 0.0, %v7151
        %v7153 = vpop.f32.mrb[0].mxu0
        %7154 = vmatprep.mubr.f32.mxu0 0.0
        %7155 = vmatmul.mubr.f32.gmra.mrb[0].mxu0 %v6969
        %v7156 = vpop.f32.mrb[0].mxu0
        %v7157 = vadd.f32 0.0, %v7156
        %v7158 = vpop.f32.mrb[0].mxu0
        %7159 = vmatprep.mubr.f32.mxu0 0.0
        %7160 = vmatmul.mubr.f32.gmra.mrb[0].mxu0 %v6970
        %v7161 = vpop.f32.mrb[0].mxu0
        %v7162 = vadd.f32 0.0, %v7161
        %v7163 = vpop.f32.mrb[0].mxu0
        %7164 = vmatprep.mubr.f32.mxu0 0.0
        %7165 = vmatmul.mubr.f32.gmra.mrb[0].mxu0 %v6971
        %v7166 = vpop.f32.mrb[0].mxu0
        %v7167 = vadd.f32 0.0, %v7166
        %v7168 = vpop.f32.mrb[0].mxu0
        %7169 = vmatprep.mubr.f32.mxu0 0.0
        %7170 = vmatmul.mubr.f32.gmra.mrb[0].mxu0 %v6972
        %v7171 = vpop.f32.mrb[0].mxu0
        %v7172 = vadd.f32 0.0, %v7171
        %v7173 = vpop.f32.mrb[0].mxu0
        %7174 = vmatprep.mubr.f32.mxu0 0.0
        %7175 = vmatmul.mubr.f32.gmra.mrb[0].mxu0 %v6973
        %v7176 = vpop.f32.mrb[0].mxu0
        %v7177 = vadd.f32 0.0, %v7176
        %v7178 = vpop.f32.mrb[0].mxu0
        %7179 = vmatprep.mubr.f32.mxu0 0.0
        %7180 = vmatmul.mubr.f32.gmra.mrb[0].mxu0 %v6974
        %v7181 = vpop.f32.mrb[0].mxu0
        %v7182 = vadd.f32 0.0, %v7181
        %v7183 = vpop.f32.mrb[0].mxu0
        %7184 = vmatprep.mubr.f32.mxu0 0.0
        %7185 = vmatmul.mubr.f32.gmra.mrb[0].mxu0 %v6975
        %v7186 = vpop.f32.mrb[0].mxu0
        %v7187 = vadd.f32 0.0, %v7186
        %v7188 = vpop.f32.mrb[0].mxu0
        %7189 = vmatprep.mubr.f32.mxu0 0.0
        %7190 = vmatmul.mubr.f32.gmra.mrb[0].mxu0 %v6976
        %v7191 = vpop.f32.mrb[0].mxu0
        %v7192 = vadd.f32 0.0, %v7191
        %v7193 = vpop.f32.mrb[0].mxu0
        %7194 = vmatprep.mubr.f32.mxu0 0.0
        %7195 = vmatmul.mubr.f32.gmra.mrb[0].mxu0 %v6977
        %v7196 = vpop.f32.mrb[0].mxu0
        %v7197 = vadd.f32 0.0, %v7196
        %v7198 = vpop.f32.mrb[0].mxu0
        %7199 = vmatprep.mubr.f32.mxu0 0.0
        %7200 = vmatmul.mubr.f32.gmra.mrb[0].mxu0 %v6978
        %v7201 = vpop.f32.mrb[0].mxu0
        %v7202 = vadd.f32 0.0, %v7201
        %v7203 = vpop.f32.mrb[0].mxu0
        %7204 = vmatprep.mubr.f32.mxu0 0.0
        %7205 = vmatmul.mubr.f32.gmra.mrb[0].mxu0 %v6979
        %v7206 = vpop.f32.mrb[0].mxu0
        %v7207 = vadd.f32 0.0, %v7206
        %v7208 = vpop.f32.mrb[0].mxu0
        %7209 = vmatprep.mubr.f32.mxu0 0.0
        %7210 = vmatmul.mubr.f32.gmra.mrb[0].mxu0 %v6980
        %v7211 = vpop.f32.mrb[0].mxu0
        %v7212 = vadd.f32 0.0, %v7211
        %v7213 = vpop.f32.mrb[0].mxu0
        %7214 = vmatprep.mubr.f32.mxu0 0.0
        %7215 = vmatmul.mubr.f32.gmra.mrb[0].mxu0 %v6981
        %v7216 = vpop.f32.mrb[0].mxu0
        %v7217 = vadd.f32 0.0, %v7216
        %v7218 = vpop.f32.mrb[0].mxu0
        %7219 = vmatprep.mubr.f32.mxu0 0.0
        %7220 = vmatmul.mubr.f32.gmra.mrb[0].mxu0 %v6982
        %v7221 = vpop.f32.mrb[0].mxu0
        %v7222 = vadd.f32 0.0, %v7221
        %v7223 = vpop.f32.mrb[0].mxu0
        %7224 = vmatprep.mubr.f32.mxu0 0.0
        %7225 = vmatmul.mubr.f32.gmra.mrb[0].mxu0 %v6983
        %v7226 = vpop.f32.mrb[0].mxu0
        %v7227 = vadd.f32 0.0, %v7226
        %v7228 = vpop.f32.mrb[0].mxu0
        %7229 = vmatprep.mubr.f32.mxu0 0.0
        %7230 = vmatmul.mubr.f32.gmra.mrb[0].mxu0 %v6984
        %v7231 = vpop.f32.mrb[0].mxu0
        %v7232 = vadd.f32 0.0, %v7231
        %v7233 = vpop.f32.mrb[0].mxu0
        %7234 = vmatprep.mubr.f32.mxu0 0.0
        %7235 = vmatmul.mubr.f32.gmra.mrb[0].mxu0 %v6985
        %v7236 = vpop.f32.mrb[0].mxu0
        %v7237 = vadd.f32 0.0, %v7236
        %v7238 = vpop.f32.mrb[0].mxu0
        %7239 = vmatprep.mubr.f32.mxu0 0.0
        %7240 = vmatmul.mubr.f32.gmra.mrb[0].mxu0 %v6986
        %v7241 = vpop.f32.mrb[0].mxu0
        %v7242 = vadd.f32 0.0, %v7241
        %v7243 = vpop.f32.mrb[0].mxu0
        %7244 = vmatprep.mubr.f32.mxu0 0.0
        %7245 = vmatmul.mubr.f32.gmra.mrb[0].mxu0 %v6987
        %v7246 = vpop.f32.mrb[0].mxu0
        %v7247 = vadd.f32 0.0, %v7246
        %v7248 = vpop.f32.mrb[0].mxu0
        %7249 = vdwg.mxu0
        %v7250 = vadd.f32 %v6916, %v7072
        %v7251 = vadd.f32 %v6917, %v7077
        %v7252 = vadd.f32 %v6918, %v7082
        %v7253 = vadd.f32 %v6919, %v7087
        %v7254 = vadd.f32 %v6920, %v7092
        %v7255 = vadd.f32 %v6921, %v7097
        %v7256 = vadd.f32 %v6922, %v7102
        %v7257 = vadd.f32 %v6923, %v7107
        %v7258 = vadd.f32 %v6924, %v7112
        %v7259 = vadd.f32 %v6925, %v7117
        %v7260 = vadd.f32 %v6926, %v7122
        %v7261 = vadd.f32 %v6927, %v7127
        %v7262 = vadd.f32 %v6928, %v7132
        %v7263 = vadd.f32 %v6929, %v7137
        %v7264 = vadd.f32 %v6930, %v7142
        %v7265 = vadd.f32 %v6931, %v7147
        %v7266 = vadd.f32 %v6932, %v7152
        %v7267 = vadd.f32 %v6933, %v7157
        %v7268 = vadd.f32 %v6934, %v7162
        %v7269 = vadd.f32 %v6935, %v7167
        %v7270 = vadd.f32 %v6936, %v7172
        %v7271 = vadd.f32 %v6937, %v7177
        %v7272 = vadd.f32 %v6938, %v7182
        %v7273 = vadd.f32 %v6939, %v7187
        %v7274 = vadd.f32 %v6940, %v7192
        %v7275 = vadd.f32 %v6941, %v7197
        %v7276 = vadd.f32 %v6942, %v7202
        %v7277 = vadd.f32 %v6943, %v7207
        %v7278 = vadd.f32 %v6944, %v7212
        %v7279 = vadd.f32 %v6945, %v7217
        %v7280 = vadd.f32 %v6946, %v7222
        %v7281 = vadd.f32 %v6947, %v7227
        %v7282 = vadd.f32 %v6948, %v7232
        %v7283 = vadd.f32 %v6949, %v7237
        %v7284 = vadd.f32 %v6950, %v7242
        %v7285 = vadd.f32 %v6951, %v7247
        %v7286 = vld [vmem:[#allocation2 + $0x25] sm:$0xff]
        %v7287 = vld [vmem:[#allocation2 + $0x2d] sm:$0xff]
        %v7288 = vld [vmem:[#allocation2 + $0x35] sm:$0xff]
        %v7289 = vld [vmem:[#allocation2 + $0x3d] sm:$0xff]
        %v7290 = vld [vmem:[#allocation2 + $0x45] sm:$0xff]
        %v7291 = vld [vmem:[#allocation2 + $0x4d] sm:$0xff]
        %v7292 = vld [vmem:[#allocation2 + $0x55] sm:$0xff]
        %v7293 = vld [vmem:[#allocation2 + $0x5d] sm:$0xff]
        %v7294 = vld [vmem:[#allocation2 + $0x65] sm:$0xff]
        %v7295 = vld [vmem:[#allocation2 + $0x6d] sm:$0xff]
        %v7296 = vld [vmem:[#allocation2 + $0x75] sm:$0xff]
        %v7297 = vld [vmem:[#allocation2 + $0x7d] sm:$0xff]
        %v7298 = vld [vmem:[#allocation2 + $0x85] sm:$0xff]
        %v7299 = vld [vmem:[#allocation2 + $0x8d] sm:$0xff]
        %v7300 = vld [vmem:[#allocation2 + $0x95] sm:$0xff]
        %v7301 = vld [vmem:[#allocation2 + $0x9d] sm:$0xff]
        %v7302 = vld [vmem:[#allocation2 + $0xa5] sm:$0xff]
        %v7303 = vld [vmem:[#allocation2 + $0xad] sm:$0xff]
        %v7304 = vld [vmem:[#allocation2 + $0xb5] sm:$0xff]
        %v7305 = vld [vmem:[#allocation2 + $0xbd] sm:$0xff]
        %v7306 = vld [vmem:[#allocation2 + $0xc5] sm:$0xff]
        %v7307 = vld [vmem:[#allocation2 + $0xcd] sm:$0xff]
        %v7308 = vld [vmem:[#allocation2 + $0xd5] sm:$0xff]
        %v7309 = vld [vmem:[#allocation2 + $0xdd] sm:$0xff]
        %v7310 = vld [vmem:[#allocation2 + $0xe5] sm:$0xff]
        %v7311 = vld [vmem:[#allocation2 + $0xed] sm:$0xff]
        %v7312 = vld [vmem:[#allocation2 + $0xf5] sm:$0xff]
        %v7313 = vld [vmem:[#allocation2 + $0xfd] sm:$0xff]
        %v7314 = vld [vmem:[#allocation2 + $0x105] sm:$0xff]
        %v7315 = vld [vmem:[#allocation2 + $0x10d] sm:$0xff]
        %v7316 = vld [vmem:[#allocation2 + $0x115] sm:$0xff]
        %v7317 = vld [vmem:[#allocation2 + $0x11d] sm:$0xff]
        %v7318 = vld [vmem:[#allocation2 + $0x125] sm:$0xff]
        %v7319 = vld [vmem:[#allocation2 + $0x12d] sm:$0xff]
        %v7320 = vld [vmem:[#allocation2 + $0x135] sm:$0xff]
        %v7321 = vld [vmem:[#allocation2 + $0x13d] sm:$0xff]
        %s7322 = scalar_lea.vmem [#allocation3], 896
        %v7323 = vld [vmem:[%s7322] sm:$0xff]
        %v7324 = vld [vmem:[%s7322 + $0x8] sm:$0xff]
        %v7325 = vld [vmem:[%s7322 + $0x10] sm:$0xff]
        %v7326 = vld [vmem:[%s7322 + $0x18] sm:$0xff]
        %v7327 = vld [vmem:[%s7322 + $0x20] sm:$0xff]
        %v7328 = vld [vmem:[%s7322 + $0x28] sm:$0xff]
        %v7329 = vld [vmem:[%s7322 + $0x30] sm:$0xff]
        %v7330 = vld [vmem:[%s7322 + $0x38] sm:$0xff]
        %v7331 = vld [vmem:[%s7322 + $0x40] sm:$0xff]
        %v7332 = vld [vmem:[%s7322 + $0x48] sm:$0xff]
        %v7333 = vld [vmem:[%s7322 + $0x50] sm:$0xff]
        %v7334 = vld [vmem:[%s7322 + $0x58] sm:$0xff]
        %v7335 = vld [vmem:[%s7322 + $0x60] sm:$0xff]
        %v7336 = vld [vmem:[%s7322 + $0x68] sm:$0xff]
        %v7337 = vld [vmem:[%s7322 + $0x70] sm:$0xff]
        %v7338 = vld [vmem:[%s7322 + $0x78] sm:$0xff]
        %7339 = vmatprep.subr.mxu0 0.0
        %7340 = vmatpush1.msra.mxu0 %v7323
        %7341 = vmatprep.subr.mxu0 0.0
        %7342 = vmatpush1.msra.mxu0 %v7324
        %7343 = vmatprep.subr.mxu0 0.0
        %7344 = vmatpush1.msra.mxu0 %v7325
        %7345 = vmatprep.subr.mxu0 0.0
        %7346 = vmatpush1.msra.mxu0 %v7326
        %7347 = vmatprep.subr.mxu0 0.0
        %7348 = vmatpush1.msra.mxu0 %v7327
        %7349 = vmatprep.subr.mxu0 0.0
        %7350 = vmatpush1.msra.mxu0 %v7328
        %7351 = vmatprep.subr.mxu0 0.0
        %7352 = vmatpush1.msra.mxu0 %v7329
        %7353 = vmatprep.subr.mxu0 0.0
        %7354 = vmatpush1.msra.mxu0 %v7330
        %7355 = vmatprep.subr.mxu0 0.0
        %7356 = vmatpush1.msra.mxu0 %v7331
        %7357 = vmatprep.subr.mxu0 0.0
        %7358 = vmatpush1.msra.mxu0 %v7332
        %7359 = vmatprep.subr.mxu0 0.0
        %7360 = vmatpush1.msra.mxu0 %v7333
        %7361 = vmatprep.subr.mxu0 0.0
        %7362 = vmatpush1.msra.mxu0 %v7334
        %7363 = vmatprep.subr.mxu0 0.0
        %7364 = vmatpush1.msra.mxu0 %v7335
        %7365 = vmatprep.subr.mxu0 0.0
        %7366 = vmatpush1.msra.mxu0 %v7336
        %7367 = vmatprep.subr.mxu0 0.0
        %7368 = vmatpush1.msra.mxu0 %v7337
        %7369 = vmatprep.subr.mxu0 0.0
        %7370 = vmatpush1.msra.mxu0 %v7338
        %7371 = vmatprep.subr.mxu0 0.0
        %7372 = vmatpush1.msra.mxu0 0.0
        %7373 = vmatprep.subr.mxu0 0.0
        %7374 = vmatpush1.msra.mxu0 0.0
        %7375 = vmatprep.subr.mxu0 0.0
        %7376 = vmatpush1.msra.mxu0 0.0
        %7377 = vmatprep.subr.mxu0 0.0
        %7378 = vmatpush1.msra.mxu0 0.0
        %7379 = vmatprep.subr.mxu0 0.0
        %7380 = vmatpush1.msra.mxu0 0.0
        %7381 = vmatprep.subr.mxu0 0.0
        %7382 = vmatpush1.msra.mxu0 0.0
        %7383 = vmatprep.subr.mxu0 0.0
        %7384 = vmatpush1.msra.mxu0 0.0
        %7385 = vmatprep.subr.mxu0 0.0
        %7386 = vmatpush1.msra.mxu0 0.0
        %7387 = vmatprep.subr.mxu0 0.0
        %7388 = vmatpush1.msra.mxu0 0.0
        %7389 = vmatprep.subr.mxu0 0.0
        %7390 = vmatpush1.msra.mxu0 0.0
        %7391 = vmatprep.subr.mxu0 0.0
        %7392 = vmatpush1.msra.mxu0 0.0
        %7393 = vmatprep.subr.mxu0 0.0
        %7394 = vmatpush1.msra.mxu0 0.0
        %7395 = vmatprep.subr.mxu0 0.0
        %7396 = vmatpush1.msra.mxu0 0.0
        %7397 = vmatprep.subr.mxu0 0.0
        %7398 = vmatpush1.msra.mxu0 0.0
        %7399 = vmatprep.subr.mxu0 0.0
        %7400 = vmatpush1.msra.mxu0 0.0
        %7401 = vmatprep.subr.mxu0 0.0
        %7402 = vmatpush1.msra.mxu0 0.0
        %7403 = vmatprep.mubr.f32.mxu0 0.0
        %7404 = vmatmul.mubr.f32.gmra.mrb[0].mxu0 %v7286
        %v7405 = vpop.f32.mrb[0].mxu0
        %v7406 = vadd.f32 0.0, %v7405
        %v7407 = vpop.f32.mrb[0].mxu0
        %7408 = vmatprep.mubr.f32.mxu0 0.0
        %7409 = vmatmul.mubr.f32.gmra.mrb[0].mxu0 %v7287
        %v7410 = vpop.f32.mrb[0].mxu0
        %v7411 = vadd.f32 0.0, %v7410
        %v7412 = vpop.f32.mrb[0].mxu0
        %7413 = vmatprep.mubr.f32.mxu0 0.0
        %7414 = vmatmul.mubr.f32.gmra.mrb[0].mxu0 %v7288
        %v7415 = vpop.f32.mrb[0].mxu0
        %v7416 = vadd.f32 0.0, %v7415
        %v7417 = vpop.f32.mrb[0].mxu0
        %7418 = vmatprep.mubr.f32.mxu0 0.0
        %7419 = vmatmul.mubr.f32.gmra.mrb[0].mxu0 %v7289
        %v7420 = vpop.f32.mrb[0].mxu0
        %v7421 = vadd.f32 0.0, %v7420
        %v7422 = vpop.f32.mrb[0].mxu0
        %7423 = vmatprep.mubr.f32.mxu0 0.0
        %7424 = vmatmul.mubr.f32.gmra.mrb[0].mxu0 %v7290
        %v7425 = vpop.f32.mrb[0].mxu0
        %v7426 = vadd.f32 0.0, %v7425
        %v7427 = vpop.f32.mrb[0].mxu0
        %7428 = vmatprep.mubr.f32.mxu0 0.0
        %7429 = vmatmul.mubr.f32.gmra.mrb[0].mxu0 %v7291
        %v7430 = vpop.f32.mrb[0].mxu0
        %v7431 = vadd.f32 0.0, %v7430
        %v7432 = vpop.f32.mrb[0].mxu0
        %7433 = vmatprep.mubr.f32.mxu0 0.0
        %7434 = vmatmul.mubr.f32.gmra.mrb[0].mxu0 %v7292
        %v7435 = vpop.f32.mrb[0].mxu0
        %v7436 = vadd.f32 0.0, %v7435
        %v7437 = vpop.f32.mrb[0].mxu0
        %7438 = vmatprep.mubr.f32.mxu0 0.0
        %7439 = vmatmul.mubr.f32.gmra.mrb[0].mxu0 %v7293
        %v7440 = vpop.f32.mrb[0].mxu0
        %v7441 = vadd.f32 0.0, %v7440
        %v7442 = vpop.f32.mrb[0].mxu0
        %7443 = vmatprep.mubr.f32.mxu0 0.0
        %7444 = vmatmul.mubr.f32.gmra.mrb[0].mxu0 %v7294
        %v7445 = vpop.f32.mrb[0].mxu0
        %v7446 = vadd.f32 0.0, %v7445
        %v7447 = vpop.f32.mrb[0].mxu0
        %7448 = vmatprep.mubr.f32.mxu0 0.0
        %7449 = vmatmul.mubr.f32.gmra.mrb[0].mxu0 %v7295
        %v7450 = vpop.f32.mrb[0].mxu0
        %v7451 = vadd.f32 0.0, %v7450
        %v7452 = vpop.f32.mrb[0].mxu0
        %7453 = vmatprep.mubr.f32.mxu0 0.0
        %7454 = vmatmul.mubr.f32.gmra.mrb[0].mxu0 %v7296
        %v7455 = vpop.f32.mrb[0].mxu0
        %v7456 = vadd.f32 0.0, %v7455
        %v7457 = vpop.f32.mrb[0].mxu0
        %7458 = vmatprep.mubr.f32.mxu0 0.0
        %7459 = vmatmul.mubr.f32.gmra.mrb[0].mxu0 %v7297
        %v7460 = vpop.f32.mrb[0].mxu0
        %v7461 = vadd.f32 0.0, %v7460
        %v7462 = vpop.f32.mrb[0].mxu0
        %7463 = vmatprep.mubr.f32.mxu0 0.0
        %7464 = vmatmul.mubr.f32.gmra.mrb[0].mxu0 %v7298
        %v7465 = vpop.f32.mrb[0].mxu0
        %v7466 = vadd.f32 0.0, %v7465
        %v7467 = vpop.f32.mrb[0].mxu0
        %7468 = vmatprep.mubr.f32.mxu0 0.0
        %7469 = vmatmul.mubr.f32.gmra.mrb[0].mxu0 %v7299
        %v7470 = vpop.f32.mrb[0].mxu0
        %v7471 = vadd.f32 0.0, %v7470
        %v7472 = vpop.f32.mrb[0].mxu0
        %7473 = vmatprep.mubr.f32.mxu0 0.0
        %7474 = vmatmul.mubr.f32.gmra.mrb[0].mxu0 %v7300
        %v7475 = vpop.f32.mrb[0].mxu0
        %v7476 = vadd.f32 0.0, %v7475
        %v7477 = vpop.f32.mrb[0].mxu0
        %7478 = vmatprep.mubr.f32.mxu0 0.0
        %7479 = vmatmul.mubr.f32.gmra.mrb[0].mxu0 %v7301
        %v7480 = vpop.f32.mrb[0].mxu0
        %v7481 = vadd.f32 0.0, %v7480
        %v7482 = vpop.f32.mrb[0].mxu0
        %7483 = vmatprep.mubr.f32.mxu0 0.0
        %7484 = vmatmul.mubr.f32.gmra.mrb[0].mxu0 %v7302
        %v7485 = vpop.f32.mrb[0].mxu0
        %v7486 = vadd.f32 0.0, %v7485
        %v7487 = vpop.f32.mrb[0].mxu0
        %7488 = vmatprep.mubr.f32.mxu0 0.0
        %7489 = vmatmul.mubr.f32.gmra.mrb[0].mxu0 %v7303
        %v7490 = vpop.f32.mrb[0].mxu0
        %v7491 = vadd.f32 0.0, %v7490
        %v7492 = vpop.f32.mrb[0].mxu0
        %7493 = vmatprep.mubr.f32.mxu0 0.0
        %7494 = vmatmul.mubr.f32.gmra.mrb[0].mxu0 %v7304
        %v7495 = vpop.f32.mrb[0].mxu0
        %v7496 = vadd.f32 0.0, %v7495
        %v7497 = vpop.f32.mrb[0].mxu0
        %7498 = vmatprep.mubr.f32.mxu0 0.0
        %7499 = vmatmul.mubr.f32.gmra.mrb[0].mxu0 %v7305
        %v7500 = vpop.f32.mrb[0].mxu0
        %v7501 = vadd.f32 0.0, %v7500
        %v7502 = vpop.f32.mrb[0].mxu0
        %7503 = vmatprep.mubr.f32.mxu0 0.0
        %7504 = vmatmul.mubr.f32.gmra.mrb[0].mxu0 %v7306
        %v7505 = vpop.f32.mrb[0].mxu0
        %v7506 = vadd.f32 0.0, %v7505
        %v7507 = vpop.f32.mrb[0].mxu0
        %7508 = vmatprep.mubr.f32.mxu0 0.0
        %7509 = vmatmul.mubr.f32.gmra.mrb[0].mxu0 %v7307
        %v7510 = vpop.f32.mrb[0].mxu0
        %v7511 = vadd.f32 0.0, %v7510
        %v7512 = vpop.f32.mrb[0].mxu0
        %7513 = vmatprep.mubr.f32.mxu0 0.0
        %7514 = vmatmul.mubr.f32.gmra.mrb[0].mxu0 %v7308
        %v7515 = vpop.f32.mrb[0].mxu0
        %v7516 = vadd.f32 0.0, %v7515
        %v7517 = vpop.f32.mrb[0].mxu0
        %7518 = vmatprep.mubr.f32.mxu0 0.0
        %7519 = vmatmul.mubr.f32.gmra.mrb[0].mxu0 %v7309
        %v7520 = vpop.f32.mrb[0].mxu0
        %v7521 = vadd.f32 0.0, %v7520
        %v7522 = vpop.f32.mrb[0].mxu0
        %7523 = vmatprep.mubr.f32.mxu0 0.0
        %7524 = vmatmul.mubr.f32.gmra.mrb[0].mxu0 %v7310
        %v7525 = vpop.f32.mrb[0].mxu0
        %v7526 = vadd.f32 0.0, %v7525
        %v7527 = vpop.f32.mrb[0].mxu0
        %7528 = vmatprep.mubr.f32.mxu0 0.0
        %7529 = vmatmul.mubr.f32.gmra.mrb[0].mxu0 %v7311
        %v7530 = vpop.f32.mrb[0].mxu0
        %v7531 = vadd.f32 0.0, %v7530
        %v7532 = vpop.f32.mrb[0].mxu0
        %7533 = vmatprep.mubr.f32.mxu0 0.0
        %7534 = vmatmul.mubr.f32.gmra.mrb[0].mxu0 %v7312
        %v7535 = vpop.f32.mrb[0].mxu0
        %v7536 = vadd.f32 0.0, %v7535
        %v7537 = vpop.f32.mrb[0].mxu0
        %7538 = vmatprep.mubr.f32.mxu0 0.0
        %7539 = vmatmul.mubr.f32.gmra.mrb[0].mxu0 %v7313
        %v7540 = vpop.f32.mrb[0].mxu0
        %v7541 = vadd.f32 0.0, %v7540
        %v7542 = vpop.f32.mrb[0].mxu0
        %7543 = vmatprep.mubr.f32.mxu0 0.0
        %7544 = vmatmul.mubr.f32.gmra.mrb[0].mxu0 %v7314
        %v7545 = vpop.f32.mrb[0].mxu0
        %v7546 = vadd.f32 0.0, %v7545
        %v7547 = vpop.f32.mrb[0].mxu0
        %7548 = vmatprep.mubr.f32.mxu0 0.0
        %7549 = vmatmul.mubr.f32.gmra.mrb[0].mxu0 %v7315
        %v7550 = vpop.f32.mrb[0].mxu0
        %v7551 = vadd.f32 0.0, %v7550
        %v7552 = vpop.f32.mrb[0].mxu0
        %7553 = vmatprep.mubr.f32.mxu0 0.0
        %7554 = vmatmul.mubr.f32.gmra.mrb[0].mxu0 %v7316
        %v7555 = vpop.f32.mrb[0].mxu0
        %v7556 = vadd.f32 0.0, %v7555
        %v7557 = vpop.f32.mrb[0].mxu0
        %7558 = vmatprep.mubr.f32.mxu0 0.0
        %7559 = vmatmul.mubr.f32.gmra.mrb[0].mxu0 %v7317
        %v7560 = vpop.f32.mrb[0].mxu0
        %v7561 = vadd.f32 0.0, %v7560
        %v7562 = vpop.f32.mrb[0].mxu0
        %7563 = vmatprep.mubr.f32.mxu0 0.0
        %7564 = vmatmul.mubr.f32.gmra.mrb[0].mxu0 %v7318
        %v7565 = vpop.f32.mrb[0].mxu0
        %v7566 = vadd.f32 0.0, %v7565
        %v7567 = vpop.f32.mrb[0].mxu0
        %7568 = vmatprep.mubr.f32.mxu0 0.0
        %7569 = vmatmul.mubr.f32.gmra.mrb[0].mxu0 %v7319
        %v7570 = vpop.f32.mrb[0].mxu0
        %v7571 = vadd.f32 0.0, %v7570
        %v7572 = vpop.f32.mrb[0].mxu0
        %7573 = vmatprep.mubr.f32.mxu0 0.0
        %7574 = vmatmul.mubr.f32.gmra.mrb[0].mxu0 %v7320
        %v7575 = vpop.f32.mrb[0].mxu0
        %v7576 = vadd.f32 0.0, %v7575
        %v7577 = vpop.f32.mrb[0].mxu0
        %7578 = vmatprep.mubr.f32.mxu0 0.0
        %7579 = vmatmul.mubr.f32.gmra.mrb[0].mxu0 %v7321
        %v7580 = vpop.f32.mrb[0].mxu0
        %v7581 = vadd.f32 0.0, %v7580
        %v7582 = vpop.f32.mrb[0].mxu0
        %7583 = vdwg.mxu0
        %v7584 = vadd.f32 %v7250, %v7406
        %v7585 = vadd.f32 %v7251, %v7411
        %v7586 = vadd.f32 %v7252, %v7416
        %v7587 = vadd.f32 %v7253, %v7421
        %v7588 = vadd.f32 %v7254, %v7426
        %v7589 = vadd.f32 %v7255, %v7431
        %v7590 = vadd.f32 %v7256, %v7436
        %v7591 = vadd.f32 %v7257, %v7441
        %v7592 = vadd.f32 %v7258, %v7446
        %v7593 = vadd.f32 %v7259, %v7451
        %v7594 = vadd.f32 %v7260, %v7456
        %v7595 = vadd.f32 %v7261, %v7461
        %v7596 = vadd.f32 %v7262, %v7466
        %v7597 = vadd.f32 %v7263, %v7471
        %v7598 = vadd.f32 %v7264, %v7476
        %v7599 = vadd.f32 %v7265, %v7481
        %v7600 = vadd.f32 %v7266, %v7486
        %v7601 = vadd.f32 %v7267, %v7491
        %v7602 = vadd.f32 %v7268, %v7496
        %v7603 = vadd.f32 %v7269, %v7501
        %v7604 = vadd.f32 %v7270, %v7506
        %v7605 = vadd.f32 %v7271, %v7511
        %v7606 = vadd.f32 %v7272, %v7516
        %v7607 = vadd.f32 %v7273, %v7521
        %v7608 = vadd.f32 %v7274, %v7526
        %v7609 = vadd.f32 %v7275, %v7531
        %v7610 = vadd.f32 %v7276, %v7536
        %v7611 = vadd.f32 %v7277, %v7541
        %v7612 = vadd.f32 %v7278, %v7546
        %v7613 = vadd.f32 %v7279, %v7551
        %v7614 = vadd.f32 %v7280, %v7556
        %v7615 = vadd.f32 %v7281, %v7561
        %v7616 = vadd.f32 %v7282, %v7566
        %v7617 = vadd.f32 %v7283, %v7571
        %v7618 = vadd.f32 %v7284, %v7576
        %v7619 = vadd.f32 %v7285, %v7581
        %v7620 = vld [vmem:[#allocation2 + $0x26] sm:$0xff]
        %v7621 = vld [vmem:[#allocation2 + $0x2e] sm:$0xff]
        %v7622 = vld [vmem:[#allocation2 + $0x36] sm:$0xff]
        %v7623 = vld [vmem:[#allocation2 + $0x3e] sm:$0xff]
        %v7624 = vld [vmem:[#allocation2 + $0x46] sm:$0xff]
        %v7625 = vld [vmem:[#allocation2 + $0x4e] sm:$0xff]
        %v7626 = vld [vmem:[#allocation2 + $0x56] sm:$0xff]
        %v7627 = vld [vmem:[#allocation2 + $0x5e] sm:$0xff]
        %v7628 = vld [vmem:[#allocation2 + $0x66] sm:$0xff]
        %v7629 = vld [vmem:[#allocation2 + $0x6e] sm:$0xff]
        %v7630 = vld [vmem:[#allocation2 + $0x76] sm:$0xff]
        %v7631 = vld [vmem:[#allocation2 + $0x7e] sm:$0xff]
        %v7632 = vld [vmem:[#allocation2 + $0x86] sm:$0xff]
        %v7633 = vld [vmem:[#allocation2 + $0x8e] sm:$0xff]
        %v7634 = vld [vmem:[#allocation2 + $0x96] sm:$0xff]
        %v7635 = vld [vmem:[#allocation2 + $0x9e] sm:$0xff]
        %v7636 = vld [vmem:[#allocation2 + $0xa6] sm:$0xff]
        %v7637 = vld [vmem:[#allocation2 + $0xae] sm:$0xff]
        %v7638 = vld [vmem:[#allocation2 + $0xb6] sm:$0xff]
        %v7639 = vld [vmem:[#allocation2 + $0xbe] sm:$0xff]
        %v7640 = vld [vmem:[#allocation2 + $0xc6] sm:$0xff]
        %v7641 = vld [vmem:[#allocation2 + $0xce] sm:$0xff]
        %v7642 = vld [vmem:[#allocation2 + $0xd6] sm:$0xff]
        %v7643 = vld [vmem:[#allocation2 + $0xde] sm:$0xff]
        %v7644 = vld [vmem:[#allocation2 + $0xe6] sm:$0xff]
        %v7645 = vld [vmem:[#allocation2 + $0xee] sm:$0xff]
        %v7646 = vld [vmem:[#allocation2 + $0xf6] sm:$0xff]
        %v7647 = vld [vmem:[#allocation2 + $0xfe] sm:$0xff]
        %v7648 = vld [vmem:[#allocation2 + $0x106] sm:$0xff]
        %v7649 = vld [vmem:[#allocation2 + $0x10e] sm:$0xff]
        %v7650 = vld [vmem:[#allocation2 + $0x116] sm:$0xff]
        %v7651 = vld [vmem:[#allocation2 + $0x11e] sm:$0xff]
        %v7652 = vld [vmem:[#allocation2 + $0x126] sm:$0xff]
        %v7653 = vld [vmem:[#allocation2 + $0x12e] sm:$0xff]
        %v7654 = vld [vmem:[#allocation2 + $0x136] sm:$0xff]
        %v7655 = vld [vmem:[#allocation2 + $0x13e] sm:$0xff]
        %s7656 = scalar_lea.vmem [#allocation3], 1024
        %v7657 = vld [vmem:[%s7656] sm:$0xff]
        %v7658 = vld [vmem:[%s7656 + $0x8] sm:$0xff]
        %v7659 = vld [vmem:[%s7656 + $0x10] sm:$0xff]
        %v7660 = vld [vmem:[%s7656 + $0x18] sm:$0xff]
        %v7661 = vld [vmem:[%s7656 + $0x20] sm:$0xff]
        %v7662 = vld [vmem:[%s7656 + $0x28] sm:$0xff]
        %v7663 = vld [vmem:[%s7656 + $0x30] sm:$0xff]
        %v7664 = vld [vmem:[%s7656 + $0x38] sm:$0xff]
        %v7665 = vld [vmem:[%s7656 + $0x40] sm:$0xff]
        %v7666 = vld [vmem:[%s7656 + $0x48] sm:$0xff]
        %v7667 = vld [vmem:[%s7656 + $0x50] sm:$0xff]
        %v7668 = vld [vmem:[%s7656 + $0x58] sm:$0xff]
        %v7669 = vld [vmem:[%s7656 + $0x60] sm:$0xff]
        %v7670 = vld [vmem:[%s7656 + $0x68] sm:$0xff]
        %v7671 = vld [vmem:[%s7656 + $0x70] sm:$0xff]
        %v7672 = vld [vmem:[%s7656 + $0x78] sm:$0xff]
        %7673 = vmatprep.subr.mxu0 0.0
        %7674 = vmatpush1.msra.mxu0 %v7657
        %7675 = vmatprep.subr.mxu0 0.0
        %7676 = vmatpush1.msra.mxu0 %v7658
        %7677 = vmatprep.subr.mxu0 0.0
        %7678 = vmatpush1.msra.mxu0 %v7659
        %7679 = vmatprep.subr.mxu0 0.0
        %7680 = vmatpush1.msra.mxu0 %v7660
        %7681 = vmatprep.subr.mxu0 0.0
        %7682 = vmatpush1.msra.mxu0 %v7661
        %7683 = vmatprep.subr.mxu0 0.0
        %7684 = vmatpush1.msra.mxu0 %v7662
        %7685 = vmatprep.subr.mxu0 0.0
        %7686 = vmatpush1.msra.mxu0 %v7663
        %7687 = vmatprep.subr.mxu0 0.0
        %7688 = vmatpush1.msra.mxu0 %v7664
        %7689 = vmatprep.subr.mxu0 0.0
        %7690 = vmatpush1.msra.mxu0 %v7665
        %7691 = vmatprep.subr.mxu0 0.0
        %7692 = vmatpush1.msra.mxu0 %v7666
        %7693 = vmatprep.subr.mxu0 0.0
        %7694 = vmatpush1.msra.mxu0 %v7667
        %7695 = vmatprep.subr.mxu0 0.0
        %7696 = vmatpush1.msra.mxu0 %v7668
        %7697 = vmatprep.subr.mxu0 0.0
        %7698 = vmatpush1.msra.mxu0 %v7669
        %7699 = vmatprep.subr.mxu0 0.0
        %7700 = vmatpush1.msra.mxu0 %v7670
        %7701 = vmatprep.subr.mxu0 0.0
        %7702 = vmatpush1.msra.mxu0 %v7671
        %7703 = vmatprep.subr.mxu0 0.0
        %7704 = vmatpush1.msra.mxu0 %v7672
        %7705 = vmatprep.subr.mxu0 0.0
        %7706 = vmatpush1.msra.mxu0 0.0
        %7707 = vmatprep.subr.mxu0 0.0
        %7708 = vmatpush1.msra.mxu0 0.0
        %7709 = vmatprep.subr.mxu0 0.0
        %7710 = vmatpush1.msra.mxu0 0.0
        %7711 = vmatprep.subr.mxu0 0.0
        %7712 = vmatpush1.msra.mxu0 0.0
        %7713 = vmatprep.subr.mxu0 0.0
        %7714 = vmatpush1.msra.mxu0 0.0
        %7715 = vmatprep.subr.mxu0 0.0
        %7716 = vmatpush1.msra.mxu0 0.0
        %7717 = vmatprep.subr.mxu0 0.0
        %7718 = vmatpush1.msra.mxu0 0.0
        %7719 = vmatprep.subr.mxu0 0.0
        %7720 = vmatpush1.msra.mxu0 0.0
        %7721 = vmatprep.subr.mxu0 0.0
        %7722 = vmatpush1.msra.mxu0 0.0
        %7723 = vmatprep.subr.mxu0 0.0
        %7724 = vmatpush1.msra.mxu0 0.0
        %7725 = vmatprep.subr.mxu0 0.0
        %7726 = vmatpush1.msra.mxu0 0.0
        %7727 = vmatprep.subr.mxu0 0.0
        %7728 = vmatpush1.msra.mxu0 0.0
        %7729 = vmatprep.subr.mxu0 0.0
        %7730 = vmatpush1.msra.mxu0 0.0
        %7731 = vmatprep.subr.mxu0 0.0
        %7732 = vmatpush1.msra.mxu0 0.0
        %7733 = vmatprep.subr.mxu0 0.0
        %7734 = vmatpush1.msra.mxu0 0.0
        %7735 = vmatprep.subr.mxu0 0.0
        %7736 = vmatpush1.msra.mxu0 0.0
        %7737 = vmatprep.mubr.f32.mxu0 0.0
        %7738 = vmatmul.mubr.f32.gmra.mrb[0].mxu0 %v7620
        %v7739 = vpop.f32.mrb[0].mxu0
        %v7740 = vadd.f32 0.0, %v7739
        %v7741 = vpop.f32.mrb[0].mxu0
        %7742 = vmatprep.mubr.f32.mxu0 0.0
        %7743 = vmatmul.mubr.f32.gmra.mrb[0].mxu0 %v7621
        %v7744 = vpop.f32.mrb[0].mxu0
        %v7745 = vadd.f32 0.0, %v7744
        %v7746 = vpop.f32.mrb[0].mxu0
        %7747 = vmatprep.mubr.f32.mxu0 0.0
        %7748 = vmatmul.mubr.f32.gmra.mrb[0].mxu0 %v7622
        %v7749 = vpop.f32.mrb[0].mxu0
        %v7750 = vadd.f32 0.0, %v7749
        %v7751 = vpop.f32.mrb[0].mxu0
        %7752 = vmatprep.mubr.f32.mxu0 0.0
        %7753 = vmatmul.mubr.f32.gmra.mrb[0].mxu0 %v7623
        %v7754 = vpop.f32.mrb[0].mxu0
        %v7755 = vadd.f32 0.0, %v7754
        %v7756 = vpop.f32.mrb[0].mxu0
        %7757 = vmatprep.mubr.f32.mxu0 0.0
        %7758 = vmatmul.mubr.f32.gmra.mrb[0].mxu0 %v7624
        %v7759 = vpop.f32.mrb[0].mxu0
        %v7760 = vadd.f32 0.0, %v7759
        %v7761 = vpop.f32.mrb[0].mxu0
        %7762 = vmatprep.mubr.f32.mxu0 0.0
        %7763 = vmatmul.mubr.f32.gmra.mrb[0].mxu0 %v7625
        %v7764 = vpop.f32.mrb[0].mxu0
        %v7765 = vadd.f32 0.0, %v7764
        %v7766 = vpop.f32.mrb[0].mxu0
        %7767 = vmatprep.mubr.f32.mxu0 0.0
        %7768 = vmatmul.mubr.f32.gmra.mrb[0].mxu0 %v7626
        %v7769 = vpop.f32.mrb[0].mxu0
        %v7770 = vadd.f32 0.0, %v7769
        %v7771 = vpop.f32.mrb[0].mxu0
        %7772 = vmatprep.mubr.f32.mxu0 0.0
        %7773 = vmatmul.mubr.f32.gmra.mrb[0].mxu0 %v7627
        %v7774 = vpop.f32.mrb[0].mxu0
        %v7775 = vadd.f32 0.0, %v7774
        %v7776 = vpop.f32.mrb[0].mxu0
        %7777 = vmatprep.mubr.f32.mxu0 0.0
        %7778 = vmatmul.mubr.f32.gmra.mrb[0].mxu0 %v7628
        %v7779 = vpop.f32.mrb[0].mxu0
        %v7780 = vadd.f32 0.0, %v7779
        %v7781 = vpop.f32.mrb[0].mxu0
        %7782 = vmatprep.mubr.f32.mxu0 0.0
        %7783 = vmatmul.mubr.f32.gmra.mrb[0].mxu0 %v7629
        %v7784 = vpop.f32.mrb[0].mxu0
        %v7785 = vadd.f32 0.0, %v7784
        %v7786 = vpop.f32.mrb[0].mxu0
        %7787 = vmatprep.mubr.f32.mxu0 0.0
        %7788 = vmatmul.mubr.f32.gmra.mrb[0].mxu0 %v7630
        %v7789 = vpop.f32.mrb[0].mxu0
        %v7790 = vadd.f32 0.0, %v7789
        %v7791 = vpop.f32.mrb[0].mxu0
        %7792 = vmatprep.mubr.f32.mxu0 0.0
        %7793 = vmatmul.mubr.f32.gmra.mrb[0].mxu0 %v7631
        %v7794 = vpop.f32.mrb[0].mxu0
        %v7795 = vadd.f32 0.0, %v7794
        %v7796 = vpop.f32.mrb[0].mxu0
        %7797 = vmatprep.mubr.f32.mxu0 0.0
        %7798 = vmatmul.mubr.f32.gmra.mrb[0].mxu0 %v7632
        %v7799 = vpop.f32.mrb[0].mxu0
        %v7800 = vadd.f32 0.0, %v7799
        %v7801 = vpop.f32.mrb[0].mxu0
        %7802 = vmatprep.mubr.f32.mxu0 0.0
        %7803 = vmatmul.mubr.f32.gmra.mrb[0].mxu0 %v7633
        %v7804 = vpop.f32.mrb[0].mxu0
        %v7805 = vadd.f32 0.0, %v7804
        %v7806 = vpop.f32.mrb[0].mxu0
        %7807 = vmatprep.mubr.f32.mxu0 0.0
        %7808 = vmatmul.mubr.f32.gmra.mrb[0].mxu0 %v7634
        %v7809 = vpop.f32.mrb[0].mxu0
        %v7810 = vadd.f32 0.0, %v7809
        %v7811 = vpop.f32.mrb[0].mxu0
        %7812 = vmatprep.mubr.f32.mxu0 0.0
        %7813 = vmatmul.mubr.f32.gmra.mrb[0].mxu0 %v7635
        %v7814 = vpop.f32.mrb[0].mxu0
        %v7815 = vadd.f32 0.0, %v7814
        %v7816 = vpop.f32.mrb[0].mxu0
        %7817 = vmatprep.mubr.f32.mxu0 0.0
        %7818 = vmatmul.mubr.f32.gmra.mrb[0].mxu0 %v7636
        %v7819 = vpop.f32.mrb[0].mxu0
        %v7820 = vadd.f32 0.0, %v7819
        %v7821 = vpop.f32.mrb[0].mxu0
        %7822 = vmatprep.mubr.f32.mxu0 0.0
        %7823 = vmatmul.mubr.f32.gmra.mrb[0].mxu0 %v7637
        %v7824 = vpop.f32.mrb[0].mxu0
        %v7825 = vadd.f32 0.0, %v7824
        %v7826 = vpop.f32.mrb[0].mxu0
        %7827 = vmatprep.mubr.f32.mxu0 0.0
        %7828 = vmatmul.mubr.f32.gmra.mrb[0].mxu0 %v7638
        %v7829 = vpop.f32.mrb[0].mxu0
        %v7830 = vadd.f32 0.0, %v7829
        %v7831 = vpop.f32.mrb[0].mxu0
        %7832 = vmatprep.mubr.f32.mxu0 0.0
        %7833 = vmatmul.mubr.f32.gmra.mrb[0].mxu0 %v7639
        %v7834 = vpop.f32.mrb[0].mxu0
        %v7835 = vadd.f32 0.0, %v7834
        %v7836 = vpop.f32.mrb[0].mxu0
        %7837 = vmatprep.mubr.f32.mxu0 0.0
        %7838 = vmatmul.mubr.f32.gmra.mrb[0].mxu0 %v7640
        %v7839 = vpop.f32.mrb[0].mxu0
        %v7840 = vadd.f32 0.0, %v7839
        %v7841 = vpop.f32.mrb[0].mxu0
        %7842 = vmatprep.mubr.f32.mxu0 0.0
        %7843 = vmatmul.mubr.f32.gmra.mrb[0].mxu0 %v7641
        %v7844 = vpop.f32.mrb[0].mxu0
        %v7845 = vadd.f32 0.0, %v7844
        %v7846 = vpop.f32.mrb[0].mxu0
        %7847 = vmatprep.mubr.f32.mxu0 0.0
        %7848 = vmatmul.mubr.f32.gmra.mrb[0].mxu0 %v7642
        %v7849 = vpop.f32.mrb[0].mxu0
        %v7850 = vadd.f32 0.0, %v7849
        %v7851 = vpop.f32.mrb[0].mxu0
        %7852 = vmatprep.mubr.f32.mxu0 0.0
        %7853 = vmatmul.mubr.f32.gmra.mrb[0].mxu0 %v7643
        %v7854 = vpop.f32.mrb[0].mxu0
        %v7855 = vadd.f32 0.0, %v7854
        %v7856 = vpop.f32.mrb[0].mxu0
        %7857 = vmatprep.mubr.f32.mxu0 0.0
        %7858 = vmatmul.mubr.f32.gmra.mrb[0].mxu0 %v7644
        %v7859 = vpop.f32.mrb[0].mxu0
        %v7860 = vadd.f32 0.0, %v7859
        %v7861 = vpop.f32.mrb[0].mxu0
        %7862 = vmatprep.mubr.f32.mxu0 0.0
        %7863 = vmatmul.mubr.f32.gmra.mrb[0].mxu0 %v7645
        %v7864 = vpop.f32.mrb[0].mxu0
        %v7865 = vadd.f32 0.0, %v7864
        %v7866 = vpop.f32.mrb[0].mxu0
        %7867 = vmatprep.mubr.f32.mxu0 0.0
        %7868 = vmatmul.mubr.f32.gmra.mrb[0].mxu0 %v7646
        %v7869 = vpop.f32.mrb[0].mxu0
        %v7870 = vadd.f32 0.0, %v7869
        %v7871 = vpop.f32.mrb[0].mxu0
        %7872 = vmatprep.mubr.f32.mxu0 0.0
        %7873 = vmatmul.mubr.f32.gmra.mrb[0].mxu0 %v7647
        %v7874 = vpop.f32.mrb[0].mxu0
        %v7875 = vadd.f32 0.0, %v7874
        %v7876 = vpop.f32.mrb[0].mxu0
        %7877 = vmatprep.mubr.f32.mxu0 0.0
        %7878 = vmatmul.mubr.f32.gmra.mrb[0].mxu0 %v7648
        %v7879 = vpop.f32.mrb[0].mxu0
        %v7880 = vadd.f32 0.0, %v7879
        %v7881 = vpop.f32.mrb[0].mxu0
        %7882 = vmatprep.mubr.f32.mxu0 0.0
        %7883 = vmatmul.mubr.f32.gmra.mrb[0].mxu0 %v7649
        %v7884 = vpop.f32.mrb[0].mxu0
        %v7885 = vadd.f32 0.0, %v7884
        %v7886 = vpop.f32.mrb[0].mxu0
        %7887 = vmatprep.mubr.f32.mxu0 0.0
        %7888 = vmatmul.mubr.f32.gmra.mrb[0].mxu0 %v7650
        %v7889 = vpop.f32.mrb[0].mxu0
        %v7890 = vadd.f32 0.0, %v7889
        %v7891 = vpop.f32.mrb[0].mxu0
        %7892 = vmatprep.mubr.f32.mxu0 0.0
        %7893 = vmatmul.mubr.f32.gmra.mrb[0].mxu0 %v7651
        %v7894 = vpop.f32.mrb[0].mxu0
        %v7895 = vadd.f32 0.0, %v7894
        %v7896 = vpop.f32.mrb[0].mxu0
        %7897 = vmatprep.mubr.f32.mxu0 0.0
        %7898 = vmatmul.mubr.f32.gmra.mrb[0].mxu0 %v7652
        %v7899 = vpop.f32.mrb[0].mxu0
        %v7900 = vadd.f32 0.0, %v7899
        %v7901 = vpop.f32.mrb[0].mxu0
        %7902 = vmatprep.mubr.f32.mxu0 0.0
        %7903 = vmatmul.mubr.f32.gmra.mrb[0].mxu0 %v7653
        %v7904 = vpop.f32.mrb[0].mxu0
        %v7905 = vadd.f32 0.0, %v7904
        %v7906 = vpop.f32.mrb[0].mxu0
        %7907 = vmatprep.mubr.f32.mxu0 0.0
        %7908 = vmatmul.mubr.f32.gmra.mrb[0].mxu0 %v7654
        %v7909 = vpop.f32.mrb[0].mxu0
        %v7910 = vadd.f32 0.0, %v7909
        %v7911 = vpop.f32.mrb[0].mxu0
        %7912 = vmatprep.mubr.f32.mxu0 0.0
        %7913 = vmatmul.mubr.f32.gmra.mrb[0].mxu0 %v7655
        %v7914 = vpop.f32.mrb[0].mxu0
        %v7915 = vadd.f32 0.0, %v7914
        %v7916 = vpop.f32.mrb[0].mxu0
        %7917 = vdwg.mxu0
        %v7918 = vadd.f32 %v7584, %v7740
        %v7919 = vadd.f32 %v7585, %v7745
        %v7920 = vadd.f32 %v7586, %v7750
        %v7921 = vadd.f32 %v7587, %v7755
        %v7922 = vadd.f32 %v7588, %v7760
        %v7923 = vadd.f32 %v7589, %v7765
        %v7924 = vadd.f32 %v7590, %v7770
        %v7925 = vadd.f32 %v7591, %v7775
        %v7926 = vadd.f32 %v7592, %v7780
        %v7927 = vadd.f32 %v7593, %v7785
        %v7928 = vadd.f32 %v7594, %v7790
        %v7929 = vadd.f32 %v7595, %v7795
        %v7930 = vadd.f32 %v7596, %v7800
        %v7931 = vadd.f32 %v7597, %v7805
        %v7932 = vadd.f32 %v7598, %v7810
        %v7933 = vadd.f32 %v7599, %v7815
        %v7934 = vadd.f32 %v7600, %v7820
        %v7935 = vadd.f32 %v7601, %v7825
        %v7936 = vadd.f32 %v7602, %v7830
        %v7937 = vadd.f32 %v7603, %v7835
        %v7938 = vadd.f32 %v7604, %v7840
        %v7939 = vadd.f32 %v7605, %v7845
        %v7940 = vadd.f32 %v7606, %v7850
        %v7941 = vadd.f32 %v7607, %v7855
        %v7942 = vadd.f32 %v7608, %v7860
        %v7943 = vadd.f32 %v7609, %v7865
        %v7944 = vadd.f32 %v7610, %v7870
        %v7945 = vadd.f32 %v7611, %v7875
        %v7946 = vadd.f32 %v7612, %v7880
        %v7947 = vadd.f32 %v7613, %v7885
        %v7948 = vadd.f32 %v7614, %v7890
        %v7949 = vadd.f32 %v7615, %v7895
        %v7950 = vadd.f32 %v7616, %v7900
        %v7951 = vadd.f32 %v7617, %v7905
        %v7952 = vadd.f32 %v7618, %v7910
        %v7953 = vadd.f32 %v7619, %v7915
        %v7955 = vlaneseq
        %v7956 = vshrl.u32 %v7955, 7
        %v7957 = vsub.s32 0, %v7956
        %v7958 = vrot.slane %v5019, %v7957
        %v7960 = vmul.f32 %v7918, %v7958
        %v7961 = vmul.f32 %v7919, %v7958
        %v7962 = vmul.f32 %v7920, %v7958
        %v7963 = vmul.f32 %v7921, %v7958
        %v7964 = vmul.f32 %v7922, %v7958
        %v7965 = vmul.f32 %v7923, %v7958
        %v7966 = vmul.f32 %v7924, %v7958
        %v7967 = vmul.f32 %v7925, %v7958
        %v7968 = vmul.f32 %v7926, %v7958
        %v7969 = vmul.f32 %v7927, %v7958
        %v7970 = vmul.f32 %v7928, %v7958
        %v7971 = vmul.f32 %v7929, %v7958
        %v7972 = vmul.f32 %v7930, %v7958
        %v7973 = vmul.f32 %v7931, %v7958
        %v7974 = vmul.f32 %v7932, %v7958
        %v7975 = vmul.f32 %v7933, %v7958
        %v7976 = vmul.f32 %v7934, %v7958
        %v7977 = vmul.f32 %v7935, %v7958
        %v7978 = vmul.f32 %v7936, %v7958
        %v7979 = vmul.f32 %v7937, %v7958
        %v7980 = vmul.f32 %v7938, %v7958
        %v7981 = vmul.f32 %v7939, %v7958
        %v7982 = vmul.f32 %v7940, %v7958
        %v7983 = vmul.f32 %v7941, %v7958
        %v7984 = vmul.f32 %v7942, %v7958
        %v7985 = vmul.f32 %v7943, %v7958
        %v7986 = vmul.f32 %v7944, %v7958
        %v7987 = vmul.f32 %v7945, %v7958
        %v7988 = vmul.f32 %v7946, %v7958
        %v7989 = vmul.f32 %v7947, %v7958
        %v7990 = vmul.f32 %v7948, %v7958
        %v7991 = vmul.f32 %v7949, %v7958
        %v7992 = vmul.f32 %v7950, %v7958
        %v7993 = vmul.f32 %v7951, %v7958
        %v7994 = vmul.f32 %v7952, %v7958
        %v7995 = vmul.f32 %v7953, %v7958
        %v7997 = vlaneseq
        %v7998 = vshrl.u32 %v7997, 7
        %v7999 = vsub.s32 0, %v7998
        %v8000 = vrot.slane %v5020, %v7999
        %v8002 = vadd.f32 %v7960, %v8000
        %v8003 = vadd.f32 %v7961, %v8000
        %v8004 = vadd.f32 %v7962, %v8000
        %v8005 = vadd.f32 %v7963, %v8000
        %v8006 = vadd.f32 %v7964, %v8000
        %v8007 = vadd.f32 %v7965, %v8000
        %v8008 = vadd.f32 %v7966, %v8000
        %v8009 = vadd.f32 %v7967, %v8000
        %v8010 = vadd.f32 %v7968, %v8000
        %v8011 = vadd.f32 %v7969, %v8000
        %v8012 = vadd.f32 %v7970, %v8000
        %v8013 = vadd.f32 %v7971, %v8000
        %v8014 = vadd.f32 %v7972, %v8000
        %v8015 = vadd.f32 %v7973, %v8000
        %v8016 = vadd.f32 %v7974, %v8000
        %v8017 = vadd.f32 %v7975, %v8000
        %v8018 = vadd.f32 %v7976, %v8000
        %v8019 = vadd.f32 %v7977, %v8000
        %v8020 = vadd.f32 %v7978, %v8000
        %v8021 = vadd.f32 %v7979, %v8000
        %v8022 = vadd.f32 %v7980, %v8000
        %v8023 = vadd.f32 %v7981, %v8000
        %v8024 = vadd.f32 %v7982, %v8000
        %v8025 = vadd.f32 %v7983, %v8000
        %v8026 = vadd.f32 %v7984, %v8000
        %v8027 = vadd.f32 %v7985, %v8000
        %v8028 = vadd.f32 %v7986, %v8000
        %v8029 = vadd.f32 %v7987, %v8000
        %v8030 = vadd.f32 %v7988, %v8000
        %v8031 = vadd.f32 %v7989, %v8000
        %v8032 = vadd.f32 %v7990, %v8000
        %v8033 = vadd.f32 %v7991, %v8000
        %v8034 = vadd.f32 %v7992, %v8000
        %v8035 = vadd.f32 %v7993, %v8000
        %v8036 = vadd.f32 %v7994, %v8000
        %v8037 = vadd.f32 %v7995, %v8000
        %v8038 = vmax.f32 %v8002, 0.0
        %v8039 = vmax.f32 %v8003, 0.0
        %v8040 = vmax.f32 %v8004, 0.0
        %v8041 = vmax.f32 %v8005, 0.0
        %v8042 = vmax.f32 %v8006, 0.0
        %v8043 = vmax.f32 %v8007, 0.0
        %v8044 = vmax.f32 %v8008, 0.0
        %v8045 = vmax.f32 %v8009, 0.0
        %v8046 = vmax.f32 %v8010, 0.0
        %v8047 = vmax.f32 %v8011, 0.0
        %v8048 = vmax.f32 %v8012, 0.0
        %v8049 = vmax.f32 %v8013, 0.0
        %v8050 = vmax.f32 %v8014, 0.0
        %v8051 = vmax.f32 %v8015, 0.0
        %v8052 = vmax.f32 %v8016, 0.0
        %v8053 = vmax.f32 %v8017, 0.0
        %v8054 = vmax.f32 %v8018, 0.0
        %v8055 = vmax.f32 %v8019, 0.0
        %v8056 = vmax.f32 %v8020, 0.0
        %v8057 = vmax.f32 %v8021, 0.0
        %v8058 = vmax.f32 %v8022, 0.0
        %v8059 = vmax.f32 %v8023, 0.0
        %v8060 = vmax.f32 %v8024, 0.0
        %v8061 = vmax.f32 %v8025, 0.0
        %v8062 = vmax.f32 %v8026, 0.0
        %v8063 = vmax.f32 %v8027, 0.0
        %v8064 = vmax.f32 %v8028, 0.0
        %v8065 = vmax.f32 %v8029, 0.0
        %v8066 = vmax.f32 %v8030, 0.0
        %v8067 = vmax.f32 %v8031, 0.0
        %v8068 = vmax.f32 %v8032, 0.0
        %v8069 = vmax.f32 %v8033, 0.0
        %v8070 = vmax.f32 %v8034, 0.0
        %v8071 = vmax.f32 %v8035, 0.0
        %v8072 = vmax.f32 %v8036, 0.0
        %v8073 = vmax.f32 %v8037, 0.0
        %8074 = vst [vmem:[%s286] sm:$0xff] %v8038
        %8075 = vst [vmem:[%s286 + $0x8] sm:$0xff] %v8039
        %8076 = vst [vmem:[%s286 + $0x10] sm:$0xff] %v8040
        %8077 = vst [vmem:[%s286 + $0x18] sm:$0xff] %v8041
        %8078 = vst [vmem:[%s286 + $0x20] sm:$0xff] %v8042
        %8079 = vst [vmem:[%s286 + $0x28] sm:$0xff] %v8043
        %8080 = vst [vmem:[%s286 + $0x30] sm:$0xff] %v8044
        %8081 = vst [vmem:[%s286 + $0x38] sm:$0xff] %v8045
        %8082 = vst [vmem:[%s286 + $0x40] sm:$0xff] %v8046
        %8083 = vst [vmem:[%s286 + $0x48] sm:$0xff] %v8047
        %8084 = vst [vmem:[%s286 + $0x50] sm:$0xff] %v8048
        %8085 = vst [vmem:[%s286 + $0x58] sm:$0xff] %v8049
        %8086 = vst [vmem:[%s286 + $0x60] sm:$0xff] %v8050
        %8087 = vst [vmem:[%s286 + $0x68] sm:$0xff] %v8051
        %8088 = vst [vmem:[%s286 + $0x70] sm:$0xff] %v8052
        %8089 = vst [vmem:[%s286 + $0x78] sm:$0xff] %v8053
        %8090 = vst [vmem:[%s286 + $0x80] sm:$0xff] %v8054
        %8091 = vst [vmem:[%s286 + $0x88] sm:$0xff] %v8055
        %8092 = vst [vmem:[%s286 + $0x90] sm:$0xff] %v8056
        %8093 = vst [vmem:[%s286 + $0x98] sm:$0xff] %v8057
        %8094 = vst [vmem:[%s286 + $0xa0] sm:$0xff] %v8058
        %8095 = vst [vmem:[%s286 + $0xa8] sm:$0xff] %v8059
        %8096 = vst [vmem:[%s286 + $0xb0] sm:$0xff] %v8060
        %8097 = vst [vmem:[%s286 + $0xb8] sm:$0xff] %v8061
        %8098 = vst [vmem:[%s286 + $0xc0] sm:$0xff] %v8062
        %8099 = vst [vmem:[%s286 + $0xc8] sm:$0xff] %v8063
        %8100 = vst [vmem:[%s286 + $0xd0] sm:$0xff] %v8064
        %8101 = vst [vmem:[%s286 + $0xd8] sm:$0xff] %v8065
        %8102 = vst [vmem:[%s286 + $0xe0] sm:$0xff] %v8066
        %8103 = vst [vmem:[%s286 + $0xe8] sm:$0xff] %v8067
        %8104 = vst [vmem:[%s286 + $0xf0] sm:$0xff] %v8068
        %8105 = vst [vmem:[%s286 + $0xf8] sm:$0xff] %v8069
        %8106 = vst [vmem:[%s286 + $0x100] sm:$0xff] %v8070
        %8107 = vst [vmem:[%s286 + $0x108] sm:$0xff] %v8071
        %8108 = vst [vmem:[%s286 + $0x110] sm:$0xff] %v8072
        %8109 = vst [vmem:[%s286 + $0x118] sm:$0xff] %v8073
        %s8110 = sand.u32 %s182, 1
        %s8111 = scalar_lea.sflag [#allocation5], %s8110
        %s8112 = sand.u32 %s182, 1
        %s8113 = smul.addr %s8112, 288
        %s8114 = scalar_lea.vmem [#allocation6], %s8113
        // Predicated region
        $region53: #{tpu_custom_call.1} parent=47 // pred_check
          %p8115 = pneg %p192
        $region54: #{tpu_custom_call.1} parent=47 // pred_check_branch
          %8117 = sbr.rel (%p8115) target = $region56
        $region55: #{tpu_custom_call.1} parent=47 // pred_region
          %s8119 = ssub.s32 4608, 4608
          %8120 = vsyncadd %s8111, %s8119
          %s8121 = smul.addr %s22, 36
          %s8122 = smul.addr %s8121, 128
          %s8123 = scalar_lea.hbm %s7, %s8122
          %s8124 = sshll.u32 %s8114, 4
          %s8125 = int_to_ptr.vmem [resolvable:$true] %s8124
          %8130 = dma.vmem_to_hbm [thread:$0]  %s8125, 4608, %s8123, %s8111, 128, 128, 8
        $region56: #{tpu_custom_call.1} parent=47 // pred_fallthru
          _
      $region48: #{tpu_custom_call.1} parent=5 // pred_fallthru
        _
      %p8131 = scmp.le.s32.totalorder 2, %s17
      // Predicated region
      $region57: #{tpu_custom_call.1} parent=5 // pred_check
        %p8132 = pneg %p8131
      $region58: #{tpu_custom_call.1} parent=5 // pred_check_branch
        %8134 = sbr.rel (%p8132) target = $region60
      $region59: #{tpu_custom_call.1} parent=5 // pred_region
        %s8135 = ssub.s32 %s17, 2
        // Predicated region
        $region61: #{tpu_custom_call.1} parent=59 // pred_check
          %p8136 = pneg %p198
        $region62: #{tpu_custom_call.1} parent=59 // pred_check_branch
          %8138 = sbr.rel (%p8136) target = $region64
        $region63: #{tpu_custom_call.1} parent=59 // pred_region
          %s8139 = sand.u32 %s183, 1
          %s8140 = scalar_lea.sflag [#allocation5], %s8139
          %s8141 = sand.u32 %s183, 1
          %s8142 = smul.addr %s8141, 288
          %s8143 = scalar_lea.vmem [#allocation6], %s8142
          %8144 = dma.done %s8140, 4608
        $region64: #{tpu_custom_call.1} parent=59 // pred_fallthru
          _
      $region60: #{tpu_custom_call.1} parent=5 // pred_fallthru
        _
    $region6: #{tpu_custom_call.1} parent=1 // loop_footer
      %s21 = sadd.s32 1, %s17
    $region7: #{tpu_custom_call.1} parent=1 // loop_footer_branch
      %16 = sbr.rel target = $region3
    $region8: #{tpu_custom_call.1} parent=1 // loop_exit
      _
    %8145 = vsyncpa [#allocation4], 1
    %s8146 = scalar_lea.sflag [#allocation4], 1
    %8147 = vsyncpa %s8146, 1
    %8148 = vsyncpa [#allocation5], 1
    %s8149 = scalar_lea.sflag [#allocation5], 1
    %8150 = vsyncpa %s8149, 1

</llo_original>
